<compile_context>
chip_gen: v6e
topology: v6e:2x2x1
jax: 0.10.0
libtpu: 0.0.40
codegen_flags: <defaults>
</compile_context>

<pallas_src>
import functools
import math

import numpy as np
import jax
import jax.numpy as jnp
from jax.experimental import pallas as pl
from jax.experimental.pallas import tpu as pltpu


_TAPS = tuple((dy, dx) for dy in range(3) for dx in range(3))
_OFF = 128        # lane offset of the image interior inside the halo'd plane
_SRC_ROWS = 40    # >= 9 * Cout (= 36) rows of scratch


# ----------------------------- in-kernel helpers -----------------------------

def _coords(rows, H, W):
    """Per-lane (y, x) spatial coordinates for a (rows, H*W) flat plane."""
    r = jax.lax.broadcasted_iota(jnp.int32, (rows, H * W), 1)
    if W & (W - 1) == 0:
        shift = W.bit_length() - 1
        return r >> shift, r & (W - 1)
    return r // W, r % W


def _tap_read(src_ref, row0, rows, dy, dx, H, W):
    """Shifted-plane read: out[c, r] = src[c, r + s], masked to 0 where the
    source pixel lies outside the image (so the scratch halo never needs
    zeroing and stale scratch data can never leak)."""
    HW = H * W
    s = (dy - 1) * W + (dx - 1)
    v = src_ref[pl.ds(row0, rows), pl.ds(_OFF + s, HW)]
    y, x = _coords(rows, H, W)
    conds = []
    if dy == 0:
        conds.append(y >= 1)
    elif dy == 2:
        conds.append(y <= H - 2)
    if dx == 0:
        conds.append(x >= 1)
    elif dx == 2:
        conds.append(x <= W - 2)
    if conds:
        m = conds[0]
        for c in conds[1:]:
            m = jnp.logical_and(m, c)
        v = jnp.where(m, v, 0.0)
    return v


def _basic_unit_3x3(x_t, w1c, w2s, H, W, src_ref, pat_ref):
    """conv3x3 -> ReLU -> conv3x3 (bias-free), channel-first lane-flat layout.

    x_t : (Cin, H*W)   w1c: (Cmid, 9*Cin)   w2s: (9*Cout, Cmid)
    returns (Cout, H*W) float32.
    """
    Cin, HW = x_t.shape
    Cout = w2s.shape[0] // 9

    # conv1: gather the narrow input into an im2col slab, one K = 9*Cin matmul.
    src_ref[pl.ds(0, Cin), pl.ds(_OFF, HW)] = x_t
    for t, (dy, dx) in enumerate(_TAPS):
        pat_ref[pl.ds(t * Cin, Cin), pl.ds(0, HW)] = _tap_read(
            src_ref, 0, Cin, dy, dx, H, W)
    patch = pat_ref[pl.ds(0, 9 * Cin), pl.ds(0, HW)]
    h = jnp.maximum(
        jnp.dot(w1c, patch, preferred_element_type=jnp.float32), 0.0)

    # conv2: project h once (K = Cmid matmul), then gather-shift-add nine
    # narrow (Cout, HW) planes (accumulated in registers).
    q = jnp.dot(w2s, h, preferred_element_type=jnp.float32)       # (9*Cout, HW)
    src_ref[pl.ds(0, 9 * Cout), pl.ds(_OFF, HW)] = q
    out = jnp.zeros((Cout, HW), jnp.float32)
    for t, (dy, dx) in enumerate(_TAPS):
        out = out + _tap_read(src_ref, t * Cout, Cout, dy, dx, H, W)
    return out


# --------------------------------- kernel ------------------------------------

def _gppnn_kernel(lms_ref, pan_ref, kup_ref, kdn_ref,
                  gl1_ref, gl2_ref, gr1_ref, gr2_ref, px1_ref, px2_ref,
                  pg1_ref, pg2_ref, pr1_ref, pr2_ref, pp1_ref, pp2_ref,
                  o_ref,
                  hr_ref, src_ref, pat_ref,
                  *, M, N, m, n):
    layer = pl.program_id(1)
    lms = lms_ref[0]                     # (C, m*n)
    pan = pan_ref[0]                     # (1, M*N)

    # Layer 0: HR = bicubic_upsample(l_ms, M, N).  `layer` is the inner
    # ("arbitrary") grid axis, so every core runs layer==0 for each of its
    # batches -> safe under core-parallel batch on v7x.
    @pl.when(layer == 0)
    def _():
        hr_ref[...] = jnp.dot(lms, kup_ref[...],
                              preferred_element_type=jnp.float32)

    hr = hr_ref[...]                     # (C, M*N)

    # ------------------------------ LR block --------------------------------
    lr_hat_hr = _basic_unit_3x3(hr, gl1_ref[0], gl2_ref[0], M, N,
                                src_ref, pat_ref)
    lr_hat = jnp.dot(lr_hat_hr, kdn_ref[...],
                     preferred_element_type=jnp.float32)           # (C, m*n)
    lr_res = lms - lr_hat
    hr_res_lr = _basic_unit_3x3(lr_res, gr1_ref[0], gr2_ref[0], m, n,
                                src_ref, pat_ref)
    hr_res = jnp.dot(hr_res_lr, kup_ref[...],
                     preferred_element_type=jnp.float32)           # (C, M*N)
    hr = _basic_unit_3x3(hr + hr_res, px1_ref[0], px2_ref[0], M, N,
                         src_ref, pat_ref)

    # ------------------------------ PAN block -------------------------------
    h = jnp.maximum(jnp.dot(pg1_ref[0], hr,
                            preferred_element_type=jnp.float32), 0.0)  # (64, MN)
    pan_hat = jnp.sum(h * pg2_ref[0], axis=0, keepdims=True)           # (1, MN)
    pan_res = pan - pan_hat
    h = jnp.maximum(pr1_ref[0] * pan_res, 0.0)                  # K=1 conv (VPU)
    hr_res2 = jnp.dot(pr2_ref[0], h, preferred_element_type=jnp.float32)
    h = jnp.maximum(jnp.dot(pp1_ref[0], hr + hr_res2,
                            preferred_element_type=jnp.float32), 0.0)
    hr = jnp.dot(pp2_ref[0], h, preferred_element_type=jnp.float32)

    hr_ref[...] = hr
    o_ref[0] = hr


# ------------------------------ host-side consts ------------------------------

def _bicubic_matrix_np(in_size, out_size):
    # PyTorch F.interpolate(mode='bicubic', align_corners=True), A = -0.75.
    A = -0.75
    scale = 0.0 if out_size == 1 else (in_size - 1) / (out_size - 1)

    def c1(x):
        return ((A + 2.0) * x - (A + 3.0)) * x * x + 1.0

    def c2(x):
        return ((A * x - 5.0 * A) * x + 8.0 * A) * x - 4.0 * A

    Wm = np.zeros((out_size, in_size), dtype=np.float64)
    for i in range(out_size):
        src = scale * i
        x0 = int(math.floor(src))
        t = src - x0
        coeffs = (c2(t + 1.0), c1(t), c1(1.0 - t), c2(2.0 - t))
        for k in range(4):
            idx = min(max(x0 - 1 + k, 0), in_size - 1)
            Wm[i, idx] += coeffs[k]
    return Wm


@functools.lru_cache(maxsize=None)
def _resize_consts(m, n, M, N):
    wh_up = _bicubic_matrix_np(m, M)                 # (M, m)
    ww_up = _bicubic_matrix_np(n, N)                 # (N, n)
    kup = np.kron(wh_up.T, ww_up.T)                  # (m*n, M*N)
    wh_dn = _bicubic_matrix_np(M, m)                 # (m, M)
    ww_dn = _bicubic_matrix_np(N, n)                 # (n, N)
    kdn = np.kron(wh_dn.T, ww_dn.T)                  # (M*N, m*n)
    return np.asarray(kup, np.float32), np.asarray(kdn, np.float32)


# --------------------------------- wrapper ------------------------------------

def network_forward(params, l_ms, x_pan):
    """l_ms: (B, C, m, n) NCHW, x_pan: (B, 1, M, N) NCHW -> (B, C, M, N)."""
    B, C, m, n = l_ms.shape
    _, _, M, N = x_pan.shape
    L = params['lr_gl_w1c'].shape[0]
    mn, MN = m * n, M * N
    assert N + 1 <= _OFF and n + 1 <= _OFF, "image width exceeds halo budget"

    kup_np, kdn_np = _resize_consts(m, n, M, N)
    kup = jnp.asarray(kup_np)
    kdn = jnp.asarray(kdn_np)

    lms_t = l_ms.reshape(B, C, mn)        # channel-first, lane-flat spatial
    pan_t = x_pan.reshape(B, 1, MN)

    def full(a):
        zeros = (0,) * a.ndim
        return pl.BlockSpec(a.shape, lambda b, l: zeros)

    def per_batch(a):
        zeros = (0,) * (a.ndim - 1)
        return pl.BlockSpec((1,) + a.shape[1:], lambda b, l: (b,) + zeros)

    def per_layer(a):
        zeros = (0,) * (a.ndim - 1)
        return pl.BlockSpec((1,) + a.shape[1:], lambda b, l: (l,) + zeros)

    weight_names = ['lr_gl_w1c', 'lr_gl_w2s', 'lr_gr_w1c', 'lr_gr_w2s',
                    'lr_px_w1c', 'lr_px_w2s',
                    'pan_gp_w1', 'pan_gp_w2c', 'pan_gr_w1', 'pan_gr_w2',
                    'pan_px_w1', 'pan_px_w2']
    weights = [params[k] for k in weight_names]

    out = pl.pallas_call(
        functools.partial(_gppnn_kernel, M=M, N=N, m=m, n=n),
        out_shape=jax.ShapeDtypeStruct((B, C, MN), jnp.float32),
        grid_spec=pltpu.PrefetchScalarGridSpec(
            num_scalar_prefetch=0,
            grid=(B, L),
            in_specs=[per_batch(lms_t), per_batch(pan_t), full(kup), full(kdn)]
                     + [per_layer(w) for w in weights],
            out_specs=pl.BlockSpec((1, C, MN), lambda b, l: (b, 0, 0)),
            scratch_shapes=[
                pltpu.VMEM((C, MN), jnp.float32),                     # HR state
                pltpu.VMEM((_SRC_ROWS, MN + 2 * _OFF), jnp.float32),  # halo'd plane
                pltpu.VMEM((_SRC_ROWS, MN), jnp.float32),             # im2col slab
            ]),
        compiler_params=pltpu.CompilerParams(
            dimension_semantics=("parallel", "arbitrary")),
    )(lms_t, pan_t, kup, kdn, *weights)
    return out.reshape(B, C, M, N)


# ------------------------------ parameters ------------------------------------

def _xavier_uniform(key, cout, cin, k):
    fan_in = cin * k * k
    fan_out = cout * k * k
    bound = math.sqrt(6.0 / (fan_in + fan_out))
    return jax.random.uniform(key, (cout, cin, k, k), jnp.float32, -bound, bound)


def _conv3_pair(key, cin, cmid, cout):
    k1, k2 = jax.random.split(key)
    w1 = _xavier_uniform(k1, cmid, cin, 3)        # torch (Cmid, Cin, 3, 3)
    w2 = _xavier_uniform(k2, cout, cmid, 3)       # torch (Cout, Cmid, 3, 3)
    w1c = jnp.transpose(w1, (0, 2, 3, 1)).reshape(cmid, 9 * cin)   # (Cmid, 9*Cin)
    w2s = jnp.transpose(w2, (2, 3, 0, 1)).reshape(9 * cout, cmid)  # (9*Cout, Cmid)
    return w1c, w2s


def _conv1_pair(key, cin, cmid, cout):
    k1, k2 = jax.random.split(key)
    w1 = _xavier_uniform(k1, cmid, cin, 1).reshape(cmid, cin)      # (Cmid, Cin)
    w2 = _xavier_uniform(k2, cout, cmid, 1).reshape(cout, cmid)    # (Cout, Cmid)
    return w1, w2


def init_params(key, n_layer=8, ms_channels=4, pan_channels=1, n_feat=64):
    names = ['lr_gl_w1c', 'lr_gl_w2s', 'lr_gr_w1c', 'lr_gr_w2s',
             'lr_px_w1c', 'lr_px_w2s',
             'pan_gp_w1', 'pan_gp_w2c', 'pan_gr_w1', 'pan_gr_w2',
             'pan_px_w1', 'pan_px_w2']
    acc = {k: [] for k in names}
    for _ in range(n_layer):
        key, *ks = jax.random.split(key, 7)
        gl1, gl2 = _conv3_pair(ks[0], ms_channels, n_feat, ms_channels)
        gr1, gr2 = _conv3_pair(ks[1], ms_channels, n_feat, ms_channels)
        px1, px2 = _conv3_pair(ks[2], ms_channels, n_feat, ms_channels)
        pg1, pg2 = _conv1_pair(ks[3], ms_channels, n_feat, pan_channels)
        pr1, pr2 = _conv1_pair(ks[4], pan_channels, n_feat, ms_channels)
        pp1, pp2 = _conv1_pair(ks[5], ms_channels, n_feat, ms_channels)
        acc['lr_gl_w1c'].append(gl1)
        acc['lr_gl_w2s'].append(gl2)
        acc['lr_gr_w1c'].append(gr1)
        acc['lr_gr_w2s'].append(gr2)
        acc['lr_px_w1c'].append(px1)
        acc['lr_px_w2s'].append(px2)
        acc['pan_gp_w1'].append(pg1)          # (64, 4)
        acc['pan_gp_w2c'].append(pg2.T)       # (64, 1): column form for reduce
        acc['pan_gr_w1'].append(pr1)          # (64, 1)
        acc['pan_gr_w2'].append(pr2)          # (4, 64)
        acc['pan_px_w1'].append(pp1)          # (64, 4)
        acc['pan_px_w2'].append(pp2)          # (4, 64)
    return {k: jnp.stack(v) for k, v in acc.items()}


# ---------------------------------- main --------------------------------------

if __name__ == "__main__":
    key = jax.random.PRNGKey(0)
    kp, k1, k2 = jax.random.split(key, 3)

    params = init_params(kp)

    B, ms_c, m, n = 2, 4, 8, 8
    M = N = 32
    # PyTorch-convention NCHW inputs (the kernel layout is a pure reshape).
    l_ms = jax.random.normal(k1, (B, ms_c, m, n), jnp.float32)
    x_pan = jax.random.normal(k2, (B, 1, M, N), jnp.float32)

    fwd = jax.jit(network_forward)
    out = jax.block_until_ready(fwd(params, l_ms, x_pan))

    assert out.shape == (B, ms_c, M, N)
    assert bool(jnp.all(jnp.isfinite(out)))
    print("KERNEL_OK")
</pallas_src>

<mosaic_0001>
module attributes {stable_mosaic.version = 11 : i64} {
  func.func @_gppnn_kernel(%arg0: i32, %arg1: i32, %arg2: memref<1x4x64xf32, #tpu.memory_space<vmem>>, %arg3: memref<1x1x1024xf32, #tpu.memory_space<vmem>>, %arg4: memref<64x1024xf32, #tpu.memory_space<vmem>>, %arg5: memref<1024x64xf32, #tpu.memory_space<vmem>>, %arg6: memref<1x64x36xf32, #tpu.memory_space<vmem>>, %arg7: memref<1x36x64xf32, #tpu.memory_space<vmem>>, %arg8: memref<1x64x36xf32, #tpu.memory_space<vmem>>, %arg9: memref<1x36x64xf32, #tpu.memory_space<vmem>>, %arg10: memref<1x64x36xf32, #tpu.memory_space<vmem>>, %arg11: memref<1x36x64xf32, #tpu.memory_space<vmem>>, %arg12: memref<1x64x4xf32, #tpu.memory_space<vmem>>, %arg13: memref<1x64x1xf32, #tpu.memory_space<vmem>>, %arg14: memref<1x64x1xf32, #tpu.memory_space<vmem>>, %arg15: memref<1x4x64xf32, #tpu.memory_space<vmem>>, %arg16: memref<1x64x4xf32, #tpu.memory_space<vmem>>, %arg17: memref<1x4x64xf32, #tpu.memory_space<vmem>>, %arg18: memref<1x4x1024xf32, #tpu.memory_space<vmem>>, %arg19: memref<4x1024xf32, #tpu.memory_space<vmem>>, %arg20: memref<40x1280xf32, #tpu.memory_space<vmem>>, %arg21: memref<40x1024xf32, #tpu.memory_space<vmem>>) attributes {dimension_semantics = [#tpu.dimension_semantics<parallel>, #tpu.dimension_semantics<arbitrary>], iteration_bounds = array<i64: 2, 8>, scalar_prefetch = 0 : i64, scratch_operands = 3 : i64, tpu.core_type = #tpu.core_type<tc>, window_params = [{transform_indices = @transform_0, window_bounds = array<i64: 1, 4, 64>}, {transform_indices = @transform_1, window_bounds = array<i64: 1, 1, 1024>}, {pipeline_mode = #tpu.pipeline_mode<synchronous>, transform_indices = @transform_2, window_bounds = array<i64: 64, 1024>}, {pipeline_mode = #tpu.pipeline_mode<synchronous>, transform_indices = @transform_3, window_bounds = array<i64: 1024, 64>}, {transform_indices = @transform_4, window_bounds = array<i64: 1, 64, 36>}, {transform_indices = @transform_5, window_bounds = array<i64: 1, 36, 64>}, {transform_indices = @transform_6, window_bounds = array<i64: 1, 64, 36>}, {transform_indices = @transform_7, window_bounds = array<i64: 1, 36, 64>}, {transform_indices = @transform_8, window_bounds = array<i64: 1, 64, 36>}, {transform_indices = @transform_9, window_bounds = array<i64: 1, 36, 64>}, {transform_indices = @transform_10, window_bounds = array<i64: 1, 64, 4>}, {transform_indices = @transform_11, window_bounds = array<i64: 1, 64, 1>}, {transform_indices = @transform_12, window_bounds = array<i64: 1, 64, 1>}, {transform_indices = @transform_13, window_bounds = array<i64: 1, 4, 64>}, {transform_indices = @transform_14, window_bounds = array<i64: 1, 64, 4>}, {transform_indices = @transform_15, window_bounds = array<i64: 1, 4, 64>}, {transform_indices = @transform_16, window_bounds = array<i64: 1, 4, 1024>}]} {
    %c0 = arith.constant 0 : index
    %c0_0 = arith.constant 0 : index
    %c0_1 = arith.constant 0 : index
    %0 = vector.load %arg2[%c0, %c0_0, %c0_1] : memref<1x4x64xf32, #tpu.memory_space<vmem>>, vector<1x4x64xf32>
    %1 = vector.shape_cast %0 : vector<1x4x64xf32> to vector<4x64xf32>
    %c0_2 = arith.constant 0 : index
    %c0_3 = arith.constant 0 : index
    %c0_4 = arith.constant 0 : index
    %2 = vector.load %arg3[%c0_2, %c0_3, %c0_4] : memref<1x1x1024xf32, #tpu.memory_space<vmem>>, vector<1x1x1024xf32>
    %3 = vector.shape_cast %2 : vector<1x1x1024xf32> to vector<1x1024xf32>
    %c0_i32 = arith.constant 0 : i32
    %4 = arith.cmpi eq, %arg1, %c0_i32 : i32
    %5 = arith.extui %4 : i1 to i32
    %c0_i32_5 = arith.constant 0 : i32
    %6 = arith.cmpi ne, %5, %c0_i32_5 : i32
    scf.if %6 {
      %c0_416 = arith.constant 0 : index
      %c0_417 = arith.constant 0 : index
      %649 = vector.load %arg4[%c0_416, %c0_417] : memref<64x1024xf32, #tpu.memory_space<vmem>>, vector<64x1024xf32>
      %cst_418 = arith.constant dense<0.000000e+00> : vector<4x1024xf32>
      %650 = tpu.matmul %1, %649, %cst_418 {dimension_numbers = #tpu.dot_dimension_numbers<[1], [0], [0], [1], [0, 0, 1, 1], [], []>} : vector<4x64xf32>, vector<64x1024xf32>, vector<4x1024xf32> -> vector<4x1024xf32>
      %c0_419 = arith.constant 0 : index
      %c0_420 = arith.constant 0 : index
      %651 = vector.load %arg19[%c0_419, %c0_420] : memref<4x1024xf32, #tpu.memory_space<vmem>>, vector<4x1024xf32>
      tpu.vector_store %arg19[%c0_419, %c0_420], %650 {strides = array<i32>} : memref<4x1024xf32, #tpu.memory_space<vmem>>, vector<4x1024xf32>,
    } else {
    }
    %c0_6 = arith.constant 0 : index
    %c0_7 = arith.constant 0 : index
    %7 = vector.load %arg19[%c0_6, %c0_7] : memref<4x1024xf32, #tpu.memory_space<vmem>>, vector<4x1024xf32>
    %c0_8 = arith.constant 0 : index
    %c0_9 = arith.constant 0 : index
    %c0_10 = arith.constant 0 : index
    %8 = vector.load %arg6[%c0_8, %c0_9, %c0_10] : memref<1x64x36xf32, #tpu.memory_space<vmem>>, vector<1x64x36xf32>
    %9 = vector.shape_cast %8 : vector<1x64x36xf32> to vector<64x36xf32>
    %c0_11 = arith.constant 0 : index
    %c0_12 = arith.constant 0 : index
    %c0_13 = arith.constant 0 : index
    %10 = vector.load %arg7[%c0_11, %c0_12, %c0_13] : memref<1x36x64xf32, #tpu.memory_space<vmem>>, vector<1x36x64xf32>
    %11 = vector.shape_cast %10 : vector<1x36x64xf32> to vector<36x64xf32>
    %c0_14 = arith.constant 0 : index
    %c128 = arith.constant 128 : index
    %12 = vector.load %arg20[%c0_14, %c128] : memref<40x1280xf32, #tpu.memory_space<vmem>>, vector<4x1024xf32>
    tpu.vector_store %arg20[%c0_14, %c128], %7 {strides = array<i32>} : memref<40x1280xf32, #tpu.memory_space<vmem>>, vector<4x1024xf32>,
    %c0_15 = arith.constant 0 : index
    %c95 = arith.constant 95 : index
    %13 = vector.load %arg20[%c0_15, %c95] : memref<40x1280xf32, #tpu.memory_space<vmem>>, vector<4x1024xf32>
    %14 = tpu.iota {dimensions = array<i32: 1>} : vector<4x1024xi32>
    %c5_i32 = arith.constant 5 : i32
    %15 = vector.broadcast %c5_i32 : i32 to vector<4x1024xi32>
    %16 = arith.shrsi %14, %15 : vector<4x1024xi32>
    %c31_i32 = arith.constant 31 : i32
    %17 = vector.broadcast %c31_i32 : i32 to vector<4x1024xi32>
    %18 = arith.andi %14, %17 : vector<4x1024xi32>
    %c1_i32 = arith.constant 1 : i32
    %19 = vector.broadcast %c1_i32 : i32 to vector<4x1024xi32>
    %20 = arith.cmpi sge, %16, %19 : vector<4x1024xi32>
    %c1_i32_16 = arith.constant 1 : i32
    %21 = vector.broadcast %c1_i32_16 : i32 to vector<4x1024xi32>
    %22 = arith.cmpi sge, %18, %21 : vector<4x1024xi32>
    %23 = arith.andi %20, %22 : vector<4x1024xi1>
    %cst = arith.constant 0.000000e+00 : f32
    %24 = vector.broadcast %cst : f32 to vector<4x1024xf32>
    %25 = arith.select %23, %13, %24 : vector<4x1024xi1>, vector<4x1024xf32>
    %c0_17 = arith.constant 0 : index
    %c0_18 = arith.constant 0 : index
    %26 = vector.load %arg21[%c0_17, %c0_18] : memref<40x1024xf32, #tpu.memory_space<vmem>>, vector<4x1024xf32>
    tpu.vector_store %arg21[%c0_17, %c0_18], %25 {strides = array<i32>} : memref<40x1024xf32, #tpu.memory_space<vmem>>, vector<4x1024xf32>,
    %c0_19 = arith.constant 0 : index
    %c96 = arith.constant 96 : index
    %27 = vector.load %arg20[%c0_19, %c96] : memref<40x1280xf32, #tpu.memory_space<vmem>>, vector<4x1024xf32>
    %28 = tpu.iota {dimensions = array<i32: 1>} : vector<4x1024xi32>
    %c5_i32_20 = arith.constant 5 : i32
    %29 = vector.broadcast %c5_i32_20 : i32 to vector<4x1024xi32>
    %30 = arith.shrsi %28, %29 : vector<4x1024xi32>
    %c1_i32_21 = arith.constant 1 : i32
    %31 = vector.broadcast %c1_i32_21 : i32 to vector<4x1024xi32>
    %32 = arith.cmpi sge, %30, %31 : vector<4x1024xi32>
    %cst_22 = arith.constant 0.000000e+00 : f32
    %33 = vector.broadcast %cst_22 : f32 to vector<4x1024xf32>
    %34 = arith.select %32, %27, %33 : vector<4x1024xi1>, vector<4x1024xf32>
    %c4 = arith.constant 4 : index
    %c0_23 = arith.constant 0 : index
    %35 = vector.load %arg21[%c4, %c0_23] : memref<40x1024xf32, #tpu.memory_space<vmem>>, vector<4x1024xf32>
    tpu.vector_store %arg21[%c4, %c0_23], %34 {strides = array<i32>} : memref<40x1024xf32, #tpu.memory_space<vmem>>, vector<4x1024xf32>,
    %c0_24 = arith.constant 0 : index
    %c97 = arith.constant 97 : index
    %36 = vector.load %arg20[%c0_24, %c97] : memref<40x1280xf32, #tpu.memory_space<vmem>>, vector<4x1024xf32>
    %37 = tpu.iota {dimensions = array<i32: 1>} : vector<4x1024xi32>
    %c5_i32_25 = arith.constant 5 : i32
    %38 = vector.broadcast %c5_i32_25 : i32 to vector<4x1024xi32>
    %39 = arith.shrsi %37, %38 : vector<4x1024xi32>
    %c31_i32_26 = arith.constant 31 : i32
    %40 = vector.broadcast %c31_i32_26 : i32 to vector<4x1024xi32>
    %41 = arith.andi %37, %40 : vector<4x1024xi32>
    %c1_i32_27 = arith.constant 1 : i32
    %42 = vector.broadcast %c1_i32_27 : i32 to vector<4x1024xi32>
    %43 = arith.cmpi sge, %39, %42 : vector<4x1024xi32>
    %c30_i32 = arith.constant 30 : i32
    %44 = vector.broadcast %c30_i32 : i32 to vector<4x1024xi32>
    %45 = arith.cmpi sle, %41, %44 : vector<4x1024xi32>
    %46 = arith.andi %43, %45 : vector<4x1024xi1>
    %cst_28 = arith.constant 0.000000e+00 : f32
    %47 = vector.broadcast %cst_28 : f32 to vector<4x1024xf32>
    %48 = arith.select %46, %36, %47 : vector<4x1024xi1>, vector<4x1024xf32>
    %c8 = arith.constant 8 : index
    %c0_29 = arith.constant 0 : index
    %49 = vector.load %arg21[%c8, %c0_29] : memref<40x1024xf32, #tpu.memory_space<vmem>>, vector<4x1024xf32>
    tpu.vector_store %arg21[%c8, %c0_29], %48 {strides = array<i32>} : memref<40x1024xf32, #tpu.memory_space<vmem>>, vector<4x1024xf32>,
    %c0_30 = arith.constant 0 : index
    %c127 = arith.constant 127 : index
    %50 = vector.load %arg20[%c0_30, %c127] : memref<40x1280xf32, #tpu.memory_space<vmem>>, vector<4x1024xf32>
    %51 = tpu.iota {dimensions = array<i32: 1>} : vector<4x1024xi32>
    %c31_i32_31 = arith.constant 31 : i32
    %52 = vector.broadcast %c31_i32_31 : i32 to vector<4x1024xi32>
    %53 = arith.andi %51, %52 : vector<4x1024xi32>
    %c1_i32_32 = arith.constant 1 : i32
    %54 = vector.broadcast %c1_i32_32 : i32 to vector<4x1024xi32>
    %55 = arith.cmpi sge, %53, %54 : vector<4x1024xi32>
    %cst_33 = arith.constant 0.000000e+00 : f32
    %56 = vector.broadcast %cst_33 : f32 to vector<4x1024xf32>
    %57 = arith.select %55, %50, %56 : vector<4x1024xi1>, vector<4x1024xf32>
    %c12 = arith.constant 12 : index
    %c0_34 = arith.constant 0 : index
    %58 = vector.load %arg21[%c12, %c0_34] : memref<40x1024xf32, #tpu.memory_space<vmem>>, vector<4x1024xf32>
    tpu.vector_store %arg21[%c12, %c0_34], %57 {strides = array<i32>} : memref<40x1024xf32, #tpu.memory_space<vmem>>, vector<4x1024xf32>,
    %c0_35 = arith.constant 0 : index
    %c128_36 = arith.constant 128 : index
    %59 = vector.load %arg20[%c0_35, %c128_36] : memref<40x1280xf32, #tpu.memory_space<vmem>>, vector<4x1024xf32>
    %c16 = arith.constant 16 : index
    %c0_37 = arith.constant 0 : index
    %60 = vector.load %arg21[%c16, %c0_37] : memref<40x1024xf32, #tpu.memory_space<vmem>>, vector<4x1024xf32>
    tpu.vector_store %arg21[%c16, %c0_37], %59 {strides = array<i32>} : memref<40x1024xf32, #tpu.memory_space<vmem>>, vector<4x1024xf32>,
    %c0_38 = arith.constant 0 : index
    %c129 = arith.constant 129 : index
    %61 = vector.load %arg20[%c0_38, %c129] : memref<40x1280xf32, #tpu.memory_space<vmem>>, vector<4x1024xf32>
    %62 = tpu.iota {dimensions = array<i32: 1>} : vector<4x1024xi32>
    %c31_i32_39 = arith.constant 31 : i32
    %63 = vector.broadcast %c31_i32_39 : i32 to vector<4x1024xi32>
    %64 = arith.andi %62, %63 : vector<4x1024xi32>
    %c30_i32_40 = arith.constant 30 : i32
    %65 = vector.broadcast %c30_i32_40 : i32 to vector<4x1024xi32>
    %66 = arith.cmpi sle, %64, %65 : vector<4x1024xi32>
    %cst_41 = arith.constant 0.000000e+00 : f32
    %67 = vector.broadcast %cst_41 : f32 to vector<4x1024xf32>
    %68 = arith.select %66, %61, %67 : vector<4x1024xi1>, vector<4x1024xf32>
    %c20 = arith.constant 20 : index
    %c0_42 = arith.constant 0 : index
    %69 = vector.load %arg21[%c20, %c0_42] : memref<40x1024xf32, #tpu.memory_space<vmem>>, vector<4x1024xf32>
    tpu.vector_store %arg21[%c20, %c0_42], %68 {strides = array<i32>} : memref<40x1024xf32, #tpu.memory_space<vmem>>, vector<4x1024xf32>,
    %c0_43 = arith.constant 0 : index
    %c159 = arith.constant 159 : index
    %70 = vector.load %arg20[%c0_43, %c159] : memref<40x1280xf32, #tpu.memory_space<vmem>>, vector<4x1024xf32>
    %71 = tpu.iota {dimensions = array<i32: 1>} : vector<4x1024xi32>
    %c5_i32_44 = arith.constant 5 : i32
    %72 = vector.broadcast %c5_i32_44 : i32 to vector<4x1024xi32>
    %73 = arith.shrsi %71, %72 : vector<4x1024xi32>
    %c31_i32_45 = arith.constant 31 : i32
    %74 = vector.broadcast %c31_i32_45 : i32 to vector<4x1024xi32>
    %75 = arith.andi %71, %74 : vector<4x1024xi32>
    %c30_i32_46 = arith.constant 30 : i32
    %76 = vector.broadcast %c30_i32_46 : i32 to vector<4x1024xi32>
    %77 = arith.cmpi sle, %73, %76 : vector<4x1024xi32>
    %c1_i32_47 = arith.constant 1 : i32
    %78 = vector.broadcast %c1_i32_47 : i32 to vector<4x1024xi32>
    %79 = arith.cmpi sge, %75, %78 : vector<4x1024xi32>
    %80 = arith.andi %77, %79 : vector<4x1024xi1>
    %cst_48 = arith.constant 0.000000e+00 : f32
    %81 = vector.broadcast %cst_48 : f32 to vector<4x1024xf32>
    %82 = arith.select %80, %70, %81 : vector<4x1024xi1>, vector<4x1024xf32>
    %c24 = arith.constant 24 : index
    %c0_49 = arith.constant 0 : index
    %83 = vector.load %arg21[%c24, %c0_49] : memref<40x1024xf32, #tpu.memory_space<vmem>>, vector<4x1024xf32>
    tpu.vector_store %arg21[%c24, %c0_49], %82 {strides = array<i32>} : memref<40x1024xf32, #tpu.memory_space<vmem>>, vector<4x1024xf32>,
    %c0_50 = arith.constant 0 : index
    %c160 = arith.constant 160 : index
    %84 = vector.load %arg20[%c0_50, %c160] : memref<40x1280xf32, #tpu.memory_space<vmem>>, vector<4x1024xf32>
    %85 = tpu.iota {dimensions = array<i32: 1>} : vector<4x1024xi32>
    %c5_i32_51 = arith.constant 5 : i32
    %86 = vector.broadcast %c5_i32_51 : i32 to vector<4x1024xi32>
    %87 = arith.shrsi %85, %86 : vector<4x1024xi32>
    %c30_i32_52 = arith.constant 30 : i32
    %88 = vector.broadcast %c30_i32_52 : i32 to vector<4x1024xi32>
    %89 = arith.cmpi sle, %87, %88 : vector<4x1024xi32>
    %cst_53 = arith.constant 0.000000e+00 : f32
    %90 = vector.broadcast %cst_53 : f32 to vector<4x1024xf32>
    %91 = arith.select %89, %84, %90 : vector<4x1024xi1>, vector<4x1024xf32>
    %c28 = arith.constant 28 : index
    %c0_54 = arith.constant 0 : index
    %92 = vector.load %arg21[%c28, %c0_54] : memref<40x1024xf32, #tpu.memory_space<vmem>>, vector<4x1024xf32>
    tpu.vector_store %arg21[%c28, %c0_54], %91 {strides = array<i32>} : memref<40x1024xf32, #tpu.memory_space<vmem>>, vector<4x1024xf32>,
    %c0_55 = arith.constant 0 : index
    %c161 = arith.constant 161 : index
    %93 = vector.load %arg20[%c0_55, %c161] : memref<40x1280xf32, #tpu.memory_space<vmem>>, vector<4x1024xf32>
    %94 = tpu.iota {dimensions = array<i32: 1>} : vector<4x1024xi32>
    %c5_i32_56 = arith.constant 5 : i32
    %95 = vector.broadcast %c5_i32_56 : i32 to vector<4x1024xi32>
    %96 = arith.shrsi %94, %95 : vector<4x1024xi32>
    %c31_i32_57 = arith.constant 31 : i32
    %97 = vector.broadcast %c31_i32_57 : i32 to vector<4x1024xi32>
    %98 = arith.andi %94, %97 : vector<4x1024xi32>
    %c30_i32_58 = arith.constant 30 : i32
    %99 = vector.broadcast %c30_i32_58 : i32 to vector<4x1024xi32>
    %100 = arith.cmpi sle, %96, %99 : vector<4x1024xi32>
    %c30_i32_59 = arith.constant 30 : i32
    %101 = vector.broadcast %c30_i32_59 : i32 to vector<4x1024xi32>
    %102 = arith.cmpi sle, %98, %101 : vector<4x1024xi32>
    %103 = arith.andi %100, %102 : vector<4x1024xi1>
    %cst_60 = arith.constant 0.000000e+00 : f32
    %104 = vector.broadcast %cst_60 : f32 to vector<4x1024xf32>
    %105 = arith.select %103, %93, %104 : vector<4x1024xi1>, vector<4x1024xf32>
    %c32 = arith.constant 32 : index
    %c0_61 = arith.constant 0 : index
    %106 = vector.load %arg21[%c32, %c0_61] : memref<40x1024xf32, #tpu.memory_space<vmem>>, vector<4x1024xf32>
    tpu.vector_store %arg21[%c32, %c0_61], %105 {strides = array<i32>} : memref<40x1024xf32, #tpu.memory_space<vmem>>, vector<4x1024xf32>,
    %c0_62 = arith.constant 0 : index
    %c0_63 = arith.constant 0 : index
    %107 = vector.load %arg21[%c0_62, %c0_63] : memref<40x1024xf32, #tpu.memory_space<vmem>>, vector<36x1024xf32>
    %cst_64 = arith.constant dense<0.000000e+00> : vector<64x1024xf32>
    %108 = tpu.matmul %9, %107, %cst_64 {dimension_numbers = #tpu.dot_dimension_numbers<[1], [0], [0], [1], [0, 0, 1, 1], [], []>} : vector<64x36xf32>, vector<36x1024xf32>, vector<64x1024xf32> -> vector<64x1024xf32>
    %cst_65 = arith.constant 0.000000e+00 : f32
    %109 = vector.broadcast %cst_65 : f32 to vector<64x1024xf32>
    %110 = arith.maximumf %108, %109 : vector<64x1024xf32>
    %cst_66 = arith.constant dense<0.000000e+00> : vector<36x1024xf32>
    %111 = tpu.matmul %11, %110, %cst_66 {dimension_numbers = #tpu.dot_dimension_numbers<[1], [0], [0], [1], [0, 0, 1, 1], [], []>} : vector<36x64xf32>, vector<64x1024xf32>, vector<36x1024xf32> -> vector<36x1024xf32>
    %c0_67 = arith.constant 0 : index
    %c128_68 = arith.constant 128 : index
    %112 = vector.load %arg20[%c0_67, %c128_68] : memref<40x1280xf32, #tpu.memory_space<vmem>>, vector<36x1024xf32>
    tpu.vector_store %arg20[%c0_67, %c128_68], %111 {strides = array<i32>} : memref<40x1280xf32, #tpu.memory_space<vmem>>, vector<36x1024xf32>,
    %cst_69 = arith.constant 0.000000e+00 : f32
    %113 = vector.broadcast %cst_69 : f32 to vector<4x1024xf32>
    %c0_70 = arith.constant 0 : index
    %c95_71 = arith.constant 95 : index
    %114 = vector.load %arg20[%c0_70, %c95_71] : memref<40x1280xf32, #tpu.memory_space<vmem>>, vector<4x1024xf32>
    %115 = tpu.iota {dimensions = array<i32: 1>} : vector<4x1024xi32>
    %c5_i32_72 = arith.constant 5 : i32
    %116 = vector.broadcast %c5_i32_72 : i32 to vector<4x1024xi32>
    %117 = arith.shrsi %115, %116 : vector<4x1024xi32>
    %c31_i32_73 = arith.constant 31 : i32
    %118 = vector.broadcast %c31_i32_73 : i32 to vector<4x1024xi32>
    %119 = arith.andi %115, %118 : vector<4x1024xi32>
    %c1_i32_74 = arith.constant 1 : i32
    %120 = vector.broadcast %c1_i32_74 : i32 to vector<4x1024xi32>
    %121 = arith.cmpi sge, %117, %120 : vector<4x1024xi32>
    %c1_i32_75 = arith.constant 1 : i32
    %122 = vector.broadcast %c1_i32_75 : i32 to vector<4x1024xi32>
    %123 = arith.cmpi sge, %119, %122 : vector<4x1024xi32>
    %124 = arith.andi %121, %123 : vector<4x1024xi1>
    %cst_76 = arith.constant 0.000000e+00 : f32
    %125 = vector.broadcast %cst_76 : f32 to vector<4x1024xf32>
    %126 = arith.select %124, %114, %125 : vector<4x1024xi1>, vector<4x1024xf32>
    %127 = arith.addf %113, %126 : vector<4x1024xf32>
    %c4_77 = arith.constant 4 : index
    %c96_78 = arith.constant 96 : index
    %128 = vector.load %arg20[%c4_77, %c96_78] : memref<40x1280xf32, #tpu.memory_space<vmem>>, vector<4x1024xf32>
    %129 = tpu.iota {dimensions = array<i32: 1>} : vector<4x1024xi32>
    %c5_i32_79 = arith.constant 5 : i32
    %130 = vector.broadcast %c5_i32_79 : i32 to vector<4x1024xi32>
    %131 = arith.shrsi %129, %130 : vector<4x1024xi32>
    %c1_i32_80 = arith.constant 1 : i32
    %132 = vector.broadcast %c1_i32_80 : i32 to vector<4x1024xi32>
    %133 = arith.cmpi sge, %131, %132 : vector<4x1024xi32>
    %cst_81 = arith.constant 0.000000e+00 : f32
    %134 = vector.broadcast %cst_81 : f32 to vector<4x1024xf32>
    %135 = arith.select %133, %128, %134 : vector<4x1024xi1>, vector<4x1024xf32>
    %136 = arith.addf %127, %135 : vector<4x1024xf32>
    %c8_82 = arith.constant 8 : index
    %c97_83 = arith.constant 97 : index
    %137 = vector.load %arg20[%c8_82, %c97_83] : memref<40x1280xf32, #tpu.memory_space<vmem>>, vector<4x1024xf32>
    %138 = tpu.iota {dimensions = array<i32: 1>} : vector<4x1024xi32>
    %c5_i32_84 = arith.constant 5 : i32
    %139 = vector.broadcast %c5_i32_84 : i32 to vector<4x1024xi32>
    %140 = arith.shrsi %138, %139 : vector<4x1024xi32>
    %c31_i32_85 = arith.constant 31 : i32
    %141 = vector.broadcast %c31_i32_85 : i32 to vector<4x1024xi32>
    %142 = arith.andi %138, %141 : vector<4x1024xi32>
    %c1_i32_86 = arith.constant 1 : i32
    %143 = vector.broadcast %c1_i32_86 : i32 to vector<4x1024xi32>
    %144 = arith.cmpi sge, %140, %143 : vector<4x1024xi32>
    %c30_i32_87 = arith.constant 30 : i32
    %145 = vector.broadcast %c30_i32_87 : i32 to vector<4x1024xi32>
    %146 = arith.cmpi sle, %142, %145 : vector<4x1024xi32>
    %147 = arith.andi %144, %146 : vector<4x1024xi1>
    %cst_88 = arith.constant 0.000000e+00 : f32
    %148 = vector.broadcast %cst_88 : f32 to vector<4x1024xf32>
    %149 = arith.select %147, %137, %148 : vector<4x1024xi1>, vector<4x1024xf32>
    %150 = arith.addf %136, %149 : vector<4x1024xf32>
    %c12_89 = arith.constant 12 : index
    %c127_90 = arith.constant 127 : index
    %151 = vector.load %arg20[%c12_89, %c127_90] : memref<40x1280xf32, #tpu.memory_space<vmem>>, vector<4x1024xf32>
    %152 = tpu.iota {dimensions = array<i32: 1>} : vector<4x1024xi32>
    %c31_i32_91 = arith.constant 31 : i32
    %153 = vector.broadcast %c31_i32_91 : i32 to vector<4x1024xi32>
    %154 = arith.andi %152, %153 : vector<4x1024xi32>
    %c1_i32_92 = arith.constant 1 : i32
    %155 = vector.broadcast %c1_i32_92 : i32 to vector<4x1024xi32>
    %156 = arith.cmpi sge, %154, %155 : vector<4x1024xi32>
    %cst_93 = arith.constant 0.000000e+00 : f32
    %157 = vector.broadcast %cst_93 : f32 to vector<4x1024xf32>
    %158 = arith.select %156, %151, %157 : vector<4x1024xi1>, vector<4x1024xf32>
    %159 = arith.addf %150, %158 : vector<4x1024xf32>
    %c16_94 = arith.constant 16 : index
    %c128_95 = arith.constant 128 : index
    %160 = vector.load %arg20[%c16_94, %c128_95] : memref<40x1280xf32, #tpu.memory_space<vmem>>, vector<4x1024xf32>
    %161 = arith.addf %159, %160 : vector<4x1024xf32>
    %c20_96 = arith.constant 20 : index
    %c129_97 = arith.constant 129 : index
    %162 = vector.load %arg20[%c20_96, %c129_97] : memref<40x1280xf32, #tpu.memory_space<vmem>>, vector<4x1024xf32>
    %163 = tpu.iota {dimensions = array<i32: 1>} : vector<4x1024xi32>
    %c31_i32_98 = arith.constant 31 : i32
    %164 = vector.broadcast %c31_i32_98 : i32 to vector<4x1024xi32>
    %165 = arith.andi %163, %164 : vector<4x1024xi32>
    %c30_i32_99 = arith.constant 30 : i32
    %166 = vector.broadcast %c30_i32_99 : i32 to vector<4x1024xi32>
    %167 = arith.cmpi sle, %165, %166 : vector<4x1024xi32>
    %cst_100 = arith.constant 0.000000e+00 : f32
    %168 = vector.broadcast %cst_100 : f32 to vector<4x1024xf32>
    %169 = arith.select %167, %162, %168 : vector<4x1024xi1>, vector<4x1024xf32>
    %170 = arith.addf %161, %169 : vector<4x1024xf32>
    %c24_101 = arith.constant 24 : index
    %c159_102 = arith.constant 159 : index
    %171 = vector.load %arg20[%c24_101, %c159_102] : memref<40x1280xf32, #tpu.memory_space<vmem>>, vector<4x1024xf32>
    %172 = tpu.iota {dimensions = array<i32: 1>} : vector<4x1024xi32>
    %c5_i32_103 = arith.constant 5 : i32
    %173 = vector.broadcast %c5_i32_103 : i32 to vector<4x1024xi32>
    %174 = arith.shrsi %172, %173 : vector<4x1024xi32>
    %c31_i32_104 = arith.constant 31 : i32
    %175 = vector.broadcast %c31_i32_104 : i32 to vector<4x1024xi32>
    %176 = arith.andi %172, %175 : vector<4x1024xi32>
    %c30_i32_105 = arith.constant 30 : i32
    %177 = vector.broadcast %c30_i32_105 : i32 to vector<4x1024xi32>
    %178 = arith.cmpi sle, %174, %177 : vector<4x1024xi32>
    %c1_i32_106 = arith.constant 1 : i32
    %179 = vector.broadcast %c1_i32_106 : i32 to vector<4x1024xi32>
    %180 = arith.cmpi sge, %176, %179 : vector<4x1024xi32>
    %181 = arith.andi %178, %180 : vector<4x1024xi1>
    %cst_107 = arith.constant 0.000000e+00 : f32
    %182 = vector.broadcast %cst_107 : f32 to vector<4x1024xf32>
    %183 = arith.select %181, %171, %182 : vector<4x1024xi1>, vector<4x1024xf32>
    %184 = arith.addf %170, %183 : vector<4x1024xf32>
    %c28_108 = arith.constant 28 : index
    %c160_109 = arith.constant 160 : index
    %185 = vector.load %arg20[%c28_108, %c160_109] : memref<40x1280xf32, #tpu.memory_space<vmem>>, vector<4x1024xf32>
    %186 = tpu.iota {dimensions = array<i32: 1>} : vector<4x1024xi32>
    %c5_i32_110 = arith.constant 5 : i32
    %187 = vector.broadcast %c5_i32_110 : i32 to vector<4x1024xi32>
    %188 = arith.shrsi %186, %187 : vector<4x1024xi32>
    %c30_i32_111 = arith.constant 30 : i32
    %189 = vector.broadcast %c30_i32_111 : i32 to vector<4x1024xi32>
    %190 = arith.cmpi sle, %188, %189 : vector<4x1024xi32>
    %cst_112 = arith.constant 0.000000e+00 : f32
    %191 = vector.broadcast %cst_112 : f32 to vector<4x1024xf32>
    %192 = arith.select %190, %185, %191 : vector<4x1024xi1>, vector<4x1024xf32>
    %193 = arith.addf %184, %192 : vector<4x1024xf32>
    %c32_113 = arith.constant 32 : index
    %c161_114 = arith.constant 161 : index
    %194 = vector.load %arg20[%c32_113, %c161_114] : memref<40x1280xf32, #tpu.memory_space<vmem>>, vector<4x1024xf32>
    %195 = tpu.iota {dimensions = array<i32: 1>} : vector<4x1024xi32>
    %c5_i32_115 = arith.constant 5 : i32
    %196 = vector.broadcast %c5_i32_115 : i32 to vector<4x1024xi32>
    %197 = arith.shrsi %195, %196 : vector<4x1024xi32>
    %c31_i32_116 = arith.constant 31 : i32
    %198 = vector.broadcast %c31_i32_116 : i32 to vector<4x1024xi32>
    %199 = arith.andi %195, %198 : vector<4x1024xi32>
    %c30_i32_117 = arith.constant 30 : i32
    %200 = vector.broadcast %c30_i32_117 : i32 to vector<4x1024xi32>
    %201 = arith.cmpi sle, %197, %200 : vector<4x1024xi32>
    %c30_i32_118 = arith.constant 30 : i32
    %202 = vector.broadcast %c30_i32_118 : i32 to vector<4x1024xi32>
    %203 = arith.cmpi sle, %199, %202 : vector<4x1024xi32>
    %204 = arith.andi %201, %203 : vector<4x1024xi1>
    %cst_119 = arith.constant 0.000000e+00 : f32
    %205 = vector.broadcast %cst_119 : f32 to vector<4x1024xf32>
    %206 = arith.select %204, %194, %205 : vector<4x1024xi1>, vector<4x1024xf32>
    %207 = arith.addf %193, %206 : vector<4x1024xf32>
    %c0_120 = arith.constant 0 : index
    %c0_121 = arith.constant 0 : index
    %208 = vector.load %arg5[%c0_120, %c0_121] : memref<1024x64xf32, #tpu.memory_space<vmem>>, vector<1024x64xf32>
    %cst_122 = arith.constant dense<0.000000e+00> : vector<4x64xf32>
    %209 = tpu.matmul %207, %208, %cst_122 {dimension_numbers = #tpu.dot_dimension_numbers<[1], [0], [0], [1], [0, 0, 1, 1], [], []>} : vector<4x1024xf32>, vector<1024x64xf32>, vector<4x64xf32> -> vector<4x64xf32>
    %210 = arith.subf %1, %209 : vector<4x64xf32>
    %c0_123 = arith.constant 0 : index
    %c0_124 = arith.constant 0 : index
    %c0_125 = arith.constant 0 : index
    %211 = vector.load %arg8[%c0_123, %c0_124, %c0_125] : memref<1x64x36xf32, #tpu.memory_space<vmem>>, vector<1x64x36xf32>
    %212 = vector.shape_cast %211 : vector<1x64x36xf32> to vector<64x36xf32>
    %c0_126 = arith.constant 0 : index
    %c0_127 = arith.constant 0 : index
    %c0_128 = arith.constant 0 : index
    %213 = vector.load %arg9[%c0_126, %c0_127, %c0_128] : memref<1x36x64xf32, #tpu.memory_space<vmem>>, vector<1x36x64xf32>
    %214 = vector.shape_cast %213 : vector<1x36x64xf32> to vector<36x64xf32>
    %c0_129 = arith.constant 0 : index
    %c128_130 = arith.constant 128 : index
    %215 = vector.load %arg20[%c0_129, %c128_130] : memref<40x1280xf32, #tpu.memory_space<vmem>>, vector<4x64xf32>
    tpu.vector_store %arg20[%c0_129, %c128_130], %210 {strides = array<i32>} : memref<40x1280xf32, #tpu.memory_space<vmem>>, vector<4x64xf32>,
    %c0_131 = arith.constant 0 : index
    %c119 = arith.constant 119 : index
    %216 = vector.load %arg20[%c0_131, %c119] : memref<40x1280xf32, #tpu.memory_space<vmem>>, vector<4x64xf32>
    %217 = tpu.iota {dimensions = array<i32: 1>} : vector<4x64xi32>
    %c3_i32 = arith.constant 3 : i32
    %218 = vector.broadcast %c3_i32 : i32 to vector<4x64xi32>
    %219 = arith.shrsi %217, %218 : vector<4x64xi32>
    %c7_i32 = arith.constant 7 : i32
    %220 = vector.broadcast %c7_i32 : i32 to vector<4x64xi32>
    %221 = arith.andi %217, %220 : vector<4x64xi32>
    %c1_i32_132 = arith.constant 1 : i32
    %222 = vector.broadcast %c1_i32_132 : i32 to vector<4x64xi32>
    %223 = arith.cmpi sge, %219, %222 : vector<4x64xi32>
    %c1_i32_133 = arith.constant 1 : i32
    %224 = vector.broadcast %c1_i32_133 : i32 to vector<4x64xi32>
    %225 = arith.cmpi sge, %221, %224 : vector<4x64xi32>
    %226 = arith.andi %223, %225 : vector<4x64xi1>
    %cst_134 = arith.constant 0.000000e+00 : f32
    %227 = vector.broadcast %cst_134 : f32 to vector<4x64xf32>
    %228 = arith.select %226, %216, %227 : vector<4x64xi1>, vector<4x64xf32>
    %c0_135 = arith.constant 0 : index
    %c0_136 = arith.constant 0 : index
    %229 = vector.load %arg21[%c0_135, %c0_136] : memref<40x1024xf32, #tpu.memory_space<vmem>>, vector<4x64xf32>
    tpu.vector_store %arg21[%c0_135, %c0_136], %228 {strides = array<i32>} : memref<40x1024xf32, #tpu.memory_space<vmem>>, vector<4x64xf32>,
    %c0_137 = arith.constant 0 : index
    %c120 = arith.constant 120 : index
    %230 = vector.load %arg20[%c0_137, %c120] : memref<40x1280xf32, #tpu.memory_space<vmem>>, vector<4x64xf32>
    %231 = tpu.iota {dimensions = array<i32: 1>} : vector<4x64xi32>
    %c3_i32_138 = arith.constant 3 : i32
    %232 = vector.broadcast %c3_i32_138 : i32 to vector<4x64xi32>
    %233 = arith.shrsi %231, %232 : vector<4x64xi32>
    %c1_i32_139 = arith.constant 1 : i32
    %234 = vector.broadcast %c1_i32_139 : i32 to vector<4x64xi32>
    %235 = arith.cmpi sge, %233, %234 : vector<4x64xi32>
    %cst_140 = arith.constant 0.000000e+00 : f32
    %236 = vector.broadcast %cst_140 : f32 to vector<4x64xf32>
    %237 = arith.select %235, %230, %236 : vector<4x64xi1>, vector<4x64xf32>
    %c4_141 = arith.constant 4 : index
    %c0_142 = arith.constant 0 : index
    %238 = vector.load %arg21[%c4_141, %c0_142] : memref<40x1024xf32, #tpu.memory_space<vmem>>, vector<4x64xf32>
    tpu.vector_store %arg21[%c4_141, %c0_142], %237 {strides = array<i32>} : memref<40x1024xf32, #tpu.memory_space<vmem>>, vector<4x64xf32>,
    %c0_143 = arith.constant 0 : index
    %c121 = arith.constant 121 : index
    %239 = vector.load %arg20[%c0_143, %c121] : memref<40x1280xf32, #tpu.memory_space<vmem>>, vector<4x64xf32>
    %240 = tpu.iota {dimensions = array<i32: 1>} : vector<4x64xi32>
    %c3_i32_144 = arith.constant 3 : i32
    %241 = vector.broadcast %c3_i32_144 : i32 to vector<4x64xi32>
    %242 = arith.shrsi %240, %241 : vector<4x64xi32>
    %c7_i32_145 = arith.constant 7 : i32
    %243 = vector.broadcast %c7_i32_145 : i32 to vector<4x64xi32>
    %244 = arith.andi %240, %243 : vector<4x64xi32>
    %c1_i32_146 = arith.constant 1 : i32
    %245 = vector.broadcast %c1_i32_146 : i32 to vector<4x64xi32>
    %246 = arith.cmpi sge, %242, %245 : vector<4x64xi32>
    %c6_i32 = arith.constant 6 : i32
    %247 = vector.broadcast %c6_i32 : i32 to vector<4x64xi32>
    %248 = arith.cmpi sle, %244, %247 : vector<4x64xi32>
    %249 = arith.andi %246, %248 : vector<4x64xi1>
    %cst_147 = arith.constant 0.000000e+00 : f32
    %250 = vector.broadcast %cst_147 : f32 to vector<4x64xf32>
    %251 = arith.select %249, %239, %250 : vector<4x64xi1>, vector<4x64xf32>
    %c8_148 = arith.constant 8 : index
    %c0_149 = arith.constant 0 : index
    %252 = vector.load %arg21[%c8_148, %c0_149] : memref<40x1024xf32, #tpu.memory_space<vmem>>, vector<4x64xf32>
    tpu.vector_store %arg21[%c8_148, %c0_149], %251 {strides = array<i32>} : memref<40x1024xf32, #tpu.memory_space<vmem>>, vector<4x64xf32>,
    %c0_150 = arith.constant 0 : index
    %c127_151 = arith.constant 127 : index
    %253 = vector.load %arg20[%c0_150, %c127_151] : memref<40x1280xf32, #tpu.memory_space<vmem>>, vector<4x64xf32>
    %254 = tpu.iota {dimensions = array<i32: 1>} : vector<4x64xi32>
    %c7_i32_152 = arith.constant 7 : i32
    %255 = vector.broadcast %c7_i32_152 : i32 to vector<4x64xi32>
    %256 = arith.andi %254, %255 : vector<4x64xi32>
    %c1_i32_153 = arith.constant 1 : i32
    %257 = vector.broadcast %c1_i32_153 : i32 to vector<4x64xi32>
    %258 = arith.cmpi sge, %256, %257 : vector<4x64xi32>
    %cst_154 = arith.constant 0.000000e+00 : f32
    %259 = vector.broadcast %cst_154 : f32 to vector<4x64xf32>
    %260 = arith.select %258, %253, %259 : vector<4x64xi1>, vector<4x64xf32>
    %c12_155 = arith.constant 12 : index
    %c0_156 = arith.constant 0 : index
    %261 = vector.load %arg21[%c12_155, %c0_156] : memref<40x1024xf32, #tpu.memory_space<vmem>>, vector<4x64xf32>
    tpu.vector_store %arg21[%c12_155, %c0_156], %260 {strides = array<i32>} : memref<40x1024xf32, #tpu.memory_space<vmem>>, vector<4x64xf32>,
    %c0_157 = arith.constant 0 : index
    %c128_158 = arith.constant 128 : index
    %262 = vector.load %arg20[%c0_157, %c128_158] : memref<40x1280xf32, #tpu.memory_space<vmem>>, vector<4x64xf32>
    %c16_159 = arith.constant 16 : index
    %c0_160 = arith.constant 0 : index
    %263 = vector.load %arg21[%c16_159, %c0_160] : memref<40x1024xf32, #tpu.memory_space<vmem>>, vector<4x64xf32>
    tpu.vector_store %arg21[%c16_159, %c0_160], %262 {strides = array<i32>} : memref<40x1024xf32, #tpu.memory_space<vmem>>, vector<4x64xf32>,
    %c0_161 = arith.constant 0 : index
    %c129_162 = arith.constant 129 : index
    %264 = vector.load %arg20[%c0_161, %c129_162] : memref<40x1280xf32, #tpu.memory_space<vmem>>, vector<4x64xf32>
    %265 = tpu.iota {dimensions = array<i32: 1>} : vector<4x64xi32>
    %c7_i32_163 = arith.constant 7 : i32
    %266 = vector.broadcast %c7_i32_163 : i32 to vector<4x64xi32>
    %267 = arith.andi %265, %266 : vector<4x64xi32>
    %c6_i32_164 = arith.constant 6 : i32
    %268 = vector.broadcast %c6_i32_164 : i32 to vector<4x64xi32>
    %269 = arith.cmpi sle, %267, %268 : vector<4x64xi32>
    %cst_165 = arith.constant 0.000000e+00 : f32
    %270 = vector.broadcast %cst_165 : f32 to vector<4x64xf32>
    %271 = arith.select %269, %264, %270 : vector<4x64xi1>, vector<4x64xf32>
    %c20_166 = arith.constant 20 : index
    %c0_167 = arith.constant 0 : index
    %272 = vector.load %arg21[%c20_166, %c0_167] : memref<40x1024xf32, #tpu.memory_space<vmem>>, vector<4x64xf32>
    tpu.vector_store %arg21[%c20_166, %c0_167], %271 {strides = array<i32>} : memref<40x1024xf32, #tpu.memory_space<vmem>>, vector<4x64xf32>,
    %c0_168 = arith.constant 0 : index
    %c135 = arith.constant 135 : index
    %273 = vector.load %arg20[%c0_168, %c135] : memref<40x1280xf32, #tpu.memory_space<vmem>>, vector<4x64xf32>
    %274 = tpu.iota {dimensions = array<i32: 1>} : vector<4x64xi32>
    %c3_i32_169 = arith.constant 3 : i32
    %275 = vector.broadcast %c3_i32_169 : i32 to vector<4x64xi32>
    %276 = arith.shrsi %274, %275 : vector<4x64xi32>
    %c7_i32_170 = arith.constant 7 : i32
    %277 = vector.broadcast %c7_i32_170 : i32 to vector<4x64xi32>
    %278 = arith.andi %274, %277 : vector<4x64xi32>
    %c6_i32_171 = arith.constant 6 : i32
    %279 = vector.broadcast %c6_i32_171 : i32 to vector<4x64xi32>
    %280 = arith.cmpi sle, %276, %279 : vector<4x64xi32>
    %c1_i32_172 = arith.constant 1 : i32
    %281 = vector.broadcast %c1_i32_172 : i32 to vector<4x64xi32>
    %282 = arith.cmpi sge, %278, %281 : vector<4x64xi32>
    %283 = arith.andi %280, %282 : vector<4x64xi1>
    %cst_173 = arith.constant 0.000000e+00 : f32
    %284 = vector.broadcast %cst_173 : f32 to vector<4x64xf32>
    %285 = arith.select %283, %273, %284 : vector<4x64xi1>, vector<4x64xf32>
    %c24_174 = arith.constant 24 : index
    %c0_175 = arith.constant 0 : index
    %286 = vector.load %arg21[%c24_174, %c0_175] : memref<40x1024xf32, #tpu.memory_space<vmem>>, vector<4x64xf32>
    tpu.vector_store %arg21[%c24_174, %c0_175], %285 {strides = array<i32>} : memref<40x1024xf32, #tpu.memory_space<vmem>>, vector<4x64xf32>,
    %c0_176 = arith.constant 0 : index
    %c136 = arith.constant 136 : index
    %287 = vector.load %arg20[%c0_176, %c136] : memref<40x1280xf32, #tpu.memory_space<vmem>>, vector<4x64xf32>
    %288 = tpu.iota {dimensions = array<i32: 1>} : vector<4x64xi32>
    %c3_i32_177 = arith.constant 3 : i32
    %289 = vector.broadcast %c3_i32_177 : i32 to vector<4x64xi32>
    %290 = arith.shrsi %288, %289 : vector<4x64xi32>
    %c6_i32_178 = arith.constant 6 : i32
    %291 = vector.broadcast %c6_i32_178 : i32 to vector<4x64xi32>
    %292 = arith.cmpi sle, %290, %291 : vector<4x64xi32>
    %cst_179 = arith.constant 0.000000e+00 : f32
    %293 = vector.broadcast %cst_179 : f32 to vector<4x64xf32>
    %294 = arith.select %292, %287, %293 : vector<4x64xi1>, vector<4x64xf32>
    %c28_180 = arith.constant 28 : index
    %c0_181 = arith.constant 0 : index
    %295 = vector.load %arg21[%c28_180, %c0_181] : memref<40x1024xf32, #tpu.memory_space<vmem>>, vector<4x64xf32>
    tpu.vector_store %arg21[%c28_180, %c0_181], %294 {strides = array<i32>} : memref<40x1024xf32, #tpu.memory_space<vmem>>, vector<4x64xf32>,
    %c0_182 = arith.constant 0 : index
    %c137 = arith.constant 137 : index
    %296 = vector.load %arg20[%c0_182, %c137] : memref<40x1280xf32, #tpu.memory_space<vmem>>, vector<4x64xf32>
    %297 = tpu.iota {dimensions = array<i32: 1>} : vector<4x64xi32>
    %c3_i32_183 = arith.constant 3 : i32
    %298 = vector.broadcast %c3_i32_183 : i32 to vector<4x64xi32>
    %299 = arith.shrsi %297, %298 : vector<4x64xi32>
    %c7_i32_184 = arith.constant 7 : i32
    %300 = vector.broadcast %c7_i32_184 : i32 to vector<4x64xi32>
    %301 = arith.andi %297, %300 : vector<4x64xi32>
    %c6_i32_185 = arith.constant 6 : i32
    %302 = vector.broadcast %c6_i32_185 : i32 to vector<4x64xi32>
    %303 = arith.cmpi sle, %299, %302 : vector<4x64xi32>
    %c6_i32_186 = arith.constant 6 : i32
    %304 = vector.broadcast %c6_i32_186 : i32 to vector<4x64xi32>
    %305 = arith.cmpi sle, %301, %304 : vector<4x64xi32>
    %306 = arith.andi %303, %305 : vector<4x64xi1>
    %cst_187 = arith.constant 0.000000e+00 : f32
    %307 = vector.broadcast %cst_187 : f32 to vector<4x64xf32>
    %308 = arith.select %306, %296, %307 : vector<4x64xi1>, vector<4x64xf32>
    %c32_188 = arith.constant 32 : index
    %c0_189 = arith.constant 0 : index
    %309 = vector.load %arg21[%c32_188, %c0_189] : memref<40x1024xf32, #tpu.memory_space<vmem>>, vector<4x64xf32>
    tpu.vector_store %arg21[%c32_188, %c0_189], %308 {strides = array<i32>} : memref<40x1024xf32, #tpu.memory_space<vmem>>, vector<4x64xf32>,
    %c0_190 = arith.constant 0 : index
    %c0_191 = arith.constant 0 : index
    %310 = vector.load %arg21[%c0_190, %c0_191] : memref<40x1024xf32, #tpu.memory_space<vmem>>, vector<36x64xf32>
    %cst_192 = arith.constant dense<0.000000e+00> : vector<64x64xf32>
    %311 = tpu.matmul %212, %310, %cst_192 {dimension_numbers = #tpu.dot_dimension_numbers<[1], [0], [0], [1], [0, 0, 1, 1], [], []>} : vector<64x36xf32>, vector<36x64xf32>, vector<64x64xf32> -> vector<64x64xf32>
    %cst_193 = arith.constant 0.000000e+00 : f32
    %312 = vector.broadcast %cst_193 : f32 to vector<64x64xf32>
    %313 = arith.maximumf %311, %312 : vector<64x64xf32>
    %cst_194 = arith.constant dense<0.000000e+00> : vector<36x64xf32>
    %314 = tpu.matmul %214, %313, %cst_194 {dimension_numbers = #tpu.dot_dimension_numbers<[1], [0], [0], [1], [0, 0, 1, 1], [], []>} : vector<36x64xf32>, vector<64x64xf32>, vector<36x64xf32> -> vector<36x64xf32>
    %c0_195 = arith.constant 0 : index
    %c128_196 = arith.constant 128 : index
    %315 = vector.load %arg20[%c0_195, %c128_196] : memref<40x1280xf32, #tpu.memory_space<vmem>>, vector<36x64xf32>
    tpu.vector_store %arg20[%c0_195, %c128_196], %314 {strides = array<i32>} : memref<40x1280xf32, #tpu.memory_space<vmem>>, vector<36x64xf32>,
    %cst_197 = arith.constant 0.000000e+00 : f32
    %316 = vector.broadcast %cst_197 : f32 to vector<4x64xf32>
    %c0_198 = arith.constant 0 : index
    %c119_199 = arith.constant 119 : index
    %317 = vector.load %arg20[%c0_198, %c119_199] : memref<40x1280xf32, #tpu.memory_space<vmem>>, vector<4x64xf32>
    %318 = tpu.iota {dimensions = array<i32: 1>} : vector<4x64xi32>
    %c3_i32_200 = arith.constant 3 : i32
    %319 = vector.broadcast %c3_i32_200 : i32 to vector<4x64xi32>
    %320 = arith.shrsi %318, %319 : vector<4x64xi32>
    %c7_i32_201 = arith.constant 7 : i32
    %321 = vector.broadcast %c7_i32_201 : i32 to vector<4x64xi32>
    %322 = arith.andi %318, %321 : vector<4x64xi32>
    %c1_i32_202 = arith.constant 1 : i32
    %323 = vector.broadcast %c1_i32_202 : i32 to vector<4x64xi32>
    %324 = arith.cmpi sge, %320, %323 : vector<4x64xi32>
    %c1_i32_203 = arith.constant 1 : i32
    %325 = vector.broadcast %c1_i32_203 : i32 to vector<4x64xi32>
    %326 = arith.cmpi sge, %322, %325 : vector<4x64xi32>
    %327 = arith.andi %324, %326 : vector<4x64xi1>
    %cst_204 = arith.constant 0.000000e+00 : f32
    %328 = vector.broadcast %cst_204 : f32 to vector<4x64xf32>
    %329 = arith.select %327, %317, %328 : vector<4x64xi1>, vector<4x64xf32>
    %330 = arith.addf %316, %329 : vector<4x64xf32>
    %c4_205 = arith.constant 4 : index
    %c120_206 = arith.constant 120 : index
    %331 = vector.load %arg20[%c4_205, %c120_206] : memref<40x1280xf32, #tpu.memory_space<vmem>>, vector<4x64xf32>
    %332 = tpu.iota {dimensions = array<i32: 1>} : vector<4x64xi32>
    %c3_i32_207 = arith.constant 3 : i32
    %333 = vector.broadcast %c3_i32_207 : i32 to vector<4x64xi32>
    %334 = arith.shrsi %332, %333 : vector<4x64xi32>
    %c1_i32_208 = arith.constant 1 : i32
    %335 = vector.broadcast %c1_i32_208 : i32 to vector<4x64xi32>
    %336 = arith.cmpi sge, %334, %335 : vector<4x64xi32>
    %cst_209 = arith.constant 0.000000e+00 : f32
    %337 = vector.broadcast %cst_209 : f32 to vector<4x64xf32>
    %338 = arith.select %336, %331, %337 : vector<4x64xi1>, vector<4x64xf32>
    %339 = arith.addf %330, %338 : vector<4x64xf32>
    %c8_210 = arith.constant 8 : index
    %c121_211 = arith.constant 121 : index
    %340 = vector.load %arg20[%c8_210, %c121_211] : memref<40x1280xf32, #tpu.memory_space<vmem>>, vector<4x64xf32>
    %341 = tpu.iota {dimensions = array<i32: 1>} : vector<4x64xi32>
    %c3_i32_212 = arith.constant 3 : i32
    %342 = vector.broadcast %c3_i32_212 : i32 to vector<4x64xi32>
    %343 = arith.shrsi %341, %342 : vector<4x64xi32>
    %c7_i32_213 = arith.constant 7 : i32
    %344 = vector.broadcast %c7_i32_213 : i32 to vector<4x64xi32>
    %345 = arith.andi %341, %344 : vector<4x64xi32>
    %c1_i32_214 = arith.constant 1 : i32
    %346 = vector.broadcast %c1_i32_214 : i32 to vector<4x64xi32>
    %347 = arith.cmpi sge, %343, %346 : vector<4x64xi32>
    %c6_i32_215 = arith.constant 6 : i32
    %348 = vector.broadcast %c6_i32_215 : i32 to vector<4x64xi32>
    %349 = arith.cmpi sle, %345, %348 : vector<4x64xi32>
    %350 = arith.andi %347, %349 : vector<4x64xi1>
    %cst_216 = arith.constant 0.000000e+00 : f32
    %351 = vector.broadcast %cst_216 : f32 to vector<4x64xf32>
    %352 = arith.select %350, %340, %351 : vector<4x64xi1>, vector<4x64xf32>
    %353 = arith.addf %339, %352 : vector<4x64xf32>
    %c12_217 = arith.constant 12 : index
    %c127_218 = arith.constant 127 : index
    %354 = vector.load %arg20[%c12_217, %c127_218] : memref<40x1280xf32, #tpu.memory_space<vmem>>, vector<4x64xf32>
    %355 = tpu.iota {dimensions = array<i32: 1>} : vector<4x64xi32>
    %c7_i32_219 = arith.constant 7 : i32
    %356 = vector.broadcast %c7_i32_219 : i32 to vector<4x64xi32>
    %357 = arith.andi %355, %356 : vector<4x64xi32>
    %c1_i32_220 = arith.constant 1 : i32
    %358 = vector.broadcast %c1_i32_220 : i32 to vector<4x64xi32>
    %359 = arith.cmpi sge, %357, %358 : vector<4x64xi32>
    %cst_221 = arith.constant 0.000000e+00 : f32
    %360 = vector.broadcast %cst_221 : f32 to vector<4x64xf32>
    %361 = arith.select %359, %354, %360 : vector<4x64xi1>, vector<4x64xf32>
    %362 = arith.addf %353, %361 : vector<4x64xf32>
    %c16_222 = arith.constant 16 : index
    %c128_223 = arith.constant 128 : index
    %363 = vector.load %arg20[%c16_222, %c128_223] : memref<40x1280xf32, #tpu.memory_space<vmem>>, vector<4x64xf32>
    %364 = arith.addf %362, %363 : vector<4x64xf32>
    %c20_224 = arith.constant 20 : index
    %c129_225 = arith.constant 129 : index
    %365 = vector.load %arg20[%c20_224, %c129_225] : memref<40x1280xf32, #tpu.memory_space<vmem>>, vector<4x64xf32>
    %366 = tpu.iota {dimensions = array<i32: 1>} : vector<4x64xi32>
    %c7_i32_226 = arith.constant 7 : i32
    %367 = vector.broadcast %c7_i32_226 : i32 to vector<4x64xi32>
    %368 = arith.andi %366, %367 : vector<4x64xi32>
    %c6_i32_227 = arith.constant 6 : i32
    %369 = vector.broadcast %c6_i32_227 : i32 to vector<4x64xi32>
    %370 = arith.cmpi sle, %368, %369 : vector<4x64xi32>
    %cst_228 = arith.constant 0.000000e+00 : f32
    %371 = vector.broadcast %cst_228 : f32 to vector<4x64xf32>
    %372 = arith.select %370, %365, %371 : vector<4x64xi1>, vector<4x64xf32>
    %373 = arith.addf %364, %372 : vector<4x64xf32>
    %c24_229 = arith.constant 24 : index
    %c135_230 = arith.constant 135 : index
    %374 = vector.load %arg20[%c24_229, %c135_230] : memref<40x1280xf32, #tpu.memory_space<vmem>>, vector<4x64xf32>
    %375 = tpu.iota {dimensions = array<i32: 1>} : vector<4x64xi32>
    %c3_i32_231 = arith.constant 3 : i32
    %376 = vector.broadcast %c3_i32_231 : i32 to vector<4x64xi32>
    %377 = arith.shrsi %375, %376 : vector<4x64xi32>
    %c7_i32_232 = arith.constant 7 : i32
    %378 = vector.broadcast %c7_i32_232 : i32 to vector<4x64xi32>
    %379 = arith.andi %375, %378 : vector<4x64xi32>
    %c6_i32_233 = arith.constant 6 : i32
    %380 = vector.broadcast %c6_i32_233 : i32 to vector<4x64xi32>
    %381 = arith.cmpi sle, %377, %380 : vector<4x64xi32>
    %c1_i32_234 = arith.constant 1 : i32
    %382 = vector.broadcast %c1_i32_234 : i32 to vector<4x64xi32>
    %383 = arith.cmpi sge, %379, %382 : vector<4x64xi32>
    %384 = arith.andi %381, %383 : vector<4x64xi1>
    %cst_235 = arith.constant 0.000000e+00 : f32
    %385 = vector.broadcast %cst_235 : f32 to vector<4x64xf32>
    %386 = arith.select %384, %374, %385 : vector<4x64xi1>, vector<4x64xf32>
    %387 = arith.addf %373, %386 : vector<4x64xf32>
    %c28_236 = arith.constant 28 : index
    %c136_237 = arith.constant 136 : index
    %388 = vector.load %arg20[%c28_236, %c136_237] : memref<40x1280xf32, #tpu.memory_space<vmem>>, vector<4x64xf32>
    %389 = tpu.iota {dimensions = array<i32: 1>} : vector<4x64xi32>
    %c3_i32_238 = arith.constant 3 : i32
    %390 = vector.broadcast %c3_i32_238 : i32 to vector<4x64xi32>
    %391 = arith.shrsi %389, %390 : vector<4x64xi32>
    %c6_i32_239 = arith.constant 6 : i32
    %392 = vector.broadcast %c6_i32_239 : i32 to vector<4x64xi32>
    %393 = arith.cmpi sle, %391, %392 : vector<4x64xi32>
    %cst_240 = arith.constant 0.000000e+00 : f32
    %394 = vector.broadcast %cst_240 : f32 to vector<4x64xf32>
    %395 = arith.select %393, %388, %394 : vector<4x64xi1>, vector<4x64xf32>
    %396 = arith.addf %387, %395 : vector<4x64xf32>
    %c32_241 = arith.constant 32 : index
    %c137_242 = arith.constant 137 : index
    %397 = vector.load %arg20[%c32_241, %c137_242] : memref<40x1280xf32, #tpu.memory_space<vmem>>, vector<4x64xf32>
    %398 = tpu.iota {dimensions = array<i32: 1>} : vector<4x64xi32>
    %c3_i32_243 = arith.constant 3 : i32
    %399 = vector.broadcast %c3_i32_243 : i32 to vector<4x64xi32>
    %400 = arith.shrsi %398, %399 : vector<4x64xi32>
    %c7_i32_244 = arith.constant 7 : i32
    %401 = vector.broadcast %c7_i32_244 : i32 to vector<4x64xi32>
    %402 = arith.andi %398, %401 : vector<4x64xi32>
    %c6_i32_245 = arith.constant 6 : i32
    %403 = vector.broadcast %c6_i32_245 : i32 to vector<4x64xi32>
    %404 = arith.cmpi sle, %400, %403 : vector<4x64xi32>
    %c6_i32_246 = arith.constant 6 : i32
    %405 = vector.broadcast %c6_i32_246 : i32 to vector<4x64xi32>
    %406 = arith.cmpi sle, %402, %405 : vector<4x64xi32>
    %407 = arith.andi %404, %406 : vector<4x64xi1>
    %cst_247 = arith.constant 0.000000e+00 : f32
    %408 = vector.broadcast %cst_247 : f32 to vector<4x64xf32>
    %409 = arith.select %407, %397, %408 : vector<4x64xi1>, vector<4x64xf32>
    %410 = arith.addf %396, %409 : vector<4x64xf32>
    %c0_248 = arith.constant 0 : index
    %c0_249 = arith.constant 0 : index
    %411 = vector.load %arg4[%c0_248, %c0_249] : memref<64x1024xf32, #tpu.memory_space<vmem>>, vector<64x1024xf32>
    %cst_250 = arith.constant dense<0.000000e+00> : vector<4x1024xf32>
    %412 = tpu.matmul %410, %411, %cst_250 {dimension_numbers = #tpu.dot_dimension_numbers<[1], [0], [0], [1], [0, 0, 1, 1], [], []>} : vector<4x64xf32>, vector<64x1024xf32>, vector<4x1024xf32> -> vector<4x1024xf32>
    %413 = arith.addf %7, %412 : vector<4x1024xf32>
    %c0_251 = arith.constant 0 : index
    %c0_252 = arith.constant 0 : index
    %c0_253 = arith.constant 0 : index
    %414 = vector.load %arg10[%c0_251, %c0_252, %c0_253] : memref<1x64x36xf32, #tpu.memory_space<vmem>>, vector<1x64x36xf32>
    %415 = vector.shape_cast %414 : vector<1x64x36xf32> to vector<64x36xf32>
    %c0_254 = arith.constant 0 : index
    %c0_255 = arith.constant 0 : index
    %c0_256 = arith.constant 0 : index
    %416 = vector.load %arg11[%c0_254, %c0_255, %c0_256] : memref<1x36x64xf32, #tpu.memory_space<vmem>>, vector<1x36x64xf32>
    %417 = vector.shape_cast %416 : vector<1x36x64xf32> to vector<36x64xf32>
    %c0_257 = arith.constant 0 : index
    %c128_258 = arith.constant 128 : index
    %418 = vector.load %arg20[%c0_257, %c128_258] : memref<40x1280xf32, #tpu.memory_space<vmem>>, vector<4x1024xf32>
    tpu.vector_store %arg20[%c0_257, %c128_258], %413 {strides = array<i32>} : memref<40x1280xf32, #tpu.memory_space<vmem>>, vector<4x1024xf32>,
    %c0_259 = arith.constant 0 : index
    %c95_260 = arith.constant 95 : index
    %419 = vector.load %arg20[%c0_259, %c95_260] : memref<40x1280xf32, #tpu.memory_space<vmem>>, vector<4x1024xf32>
    %420 = tpu.iota {dimensions = array<i32: 1>} : vector<4x1024xi32>
    %c5_i32_261 = arith.constant 5 : i32
    %421 = vector.broadcast %c5_i32_261 : i32 to vector<4x1024xi32>
    %422 = arith.shrsi %420, %421 : vector<4x1024xi32>
    %c31_i32_262 = arith.constant 31 : i32
    %423 = vector.broadcast %c31_i32_262 : i32 to vector<4x1024xi32>
    %424 = arith.andi %420, %423 : vector<4x1024xi32>
    %c1_i32_263 = arith.constant 1 : i32
    %425 = vector.broadcast %c1_i32_263 : i32 to vector<4x1024xi32>
    %426 = arith.cmpi sge, %422, %425 : vector<4x1024xi32>
    %c1_i32_264 = arith.constant 1 : i32
    %427 = vector.broadcast %c1_i32_264 : i32 to vector<4x1024xi32>
    %428 = arith.cmpi sge, %424, %427 : vector<4x1024xi32>
    %429 = arith.andi %426, %428 : vector<4x1024xi1>
    %cst_265 = arith.constant 0.000000e+00 : f32
    %430 = vector.broadcast %cst_265 : f32 to vector<4x1024xf32>
    %431 = arith.select %429, %419, %430 : vector<4x1024xi1>, vector<4x1024xf32>
    %c0_266 = arith.constant 0 : index
    %c0_267 = arith.constant 0 : index
    %432 = vector.load %arg21[%c0_266, %c0_267] : memref<40x1024xf32, #tpu.memory_space<vmem>>, vector<4x1024xf32>
    tpu.vector_store %arg21[%c0_266, %c0_267], %431 {strides = array<i32>} : memref<40x1024xf32, #tpu.memory_space<vmem>>, vector<4x1024xf32>,
    %c0_268 = arith.constant 0 : index
    %c96_269 = arith.constant 96 : index
    %433 = vector.load %arg20[%c0_268, %c96_269] : memref<40x1280xf32, #tpu.memory_space<vmem>>, vector<4x1024xf32>
    %434 = tpu.iota {dimensions = array<i32: 1>} : vector<4x1024xi32>
    %c5_i32_270 = arith.constant 5 : i32
    %435 = vector.broadcast %c5_i32_270 : i32 to vector<4x1024xi32>
    %436 = arith.shrsi %434, %435 : vector<4x1024xi32>
    %c1_i32_271 = arith.constant 1 : i32
    %437 = vector.broadcast %c1_i32_271 : i32 to vector<4x1024xi32>
    %438 = arith.cmpi sge, %436, %437 : vector<4x1024xi32>
    %cst_272 = arith.constant 0.000000e+00 : f32
    %439 = vector.broadcast %cst_272 : f32 to vector<4x1024xf32>
    %440 = arith.select %438, %433, %439 : vector<4x1024xi1>, vector<4x1024xf32>
    %c4_273 = arith.constant 4 : index
    %c0_274 = arith.constant 0 : index
    %441 = vector.load %arg21[%c4_273, %c0_274] : memref<40x1024xf32, #tpu.memory_space<vmem>>, vector<4x1024xf32>
    tpu.vector_store %arg21[%c4_273, %c0_274], %440 {strides = array<i32>} : memref<40x1024xf32, #tpu.memory_space<vmem>>, vector<4x1024xf32>,
    %c0_275 = arith.constant 0 : index
    %c97_276 = arith.constant 97 : index
    %442 = vector.load %arg20[%c0_275, %c97_276] : memref<40x1280xf32, #tpu.memory_space<vmem>>, vector<4x1024xf32>
    %443 = tpu.iota {dimensions = array<i32: 1>} : vector<4x1024xi32>
    %c5_i32_277 = arith.constant 5 : i32
    %444 = vector.broadcast %c5_i32_277 : i32 to vector<4x1024xi32>
    %445 = arith.shrsi %443, %444 : vector<4x1024xi32>
    %c31_i32_278 = arith.constant 31 : i32
    %446 = vector.broadcast %c31_i32_278 : i32 to vector<4x1024xi32>
    %447 = arith.andi %443, %446 : vector<4x1024xi32>
    %c1_i32_279 = arith.constant 1 : i32
    %448 = vector.broadcast %c1_i32_279 : i32 to vector<4x1024xi32>
    %449 = arith.cmpi sge, %445, %448 : vector<4x1024xi32>
    %c30_i32_280 = arith.constant 30 : i32
    %450 = vector.broadcast %c30_i32_280 : i32 to vector<4x1024xi32>
    %451 = arith.cmpi sle, %447, %450 : vector<4x1024xi32>
    %452 = arith.andi %449, %451 : vector<4x1024xi1>
    %cst_281 = arith.constant 0.000000e+00 : f32
    %453 = vector.broadcast %cst_281 : f32 to vector<4x1024xf32>
    %454 = arith.select %452, %442, %453 : vector<4x1024xi1>, vector<4x1024xf32>
    %c8_282 = arith.constant 8 : index
    %c0_283 = arith.constant 0 : index
    %455 = vector.load %arg21[%c8_282, %c0_283] : memref<40x1024xf32, #tpu.memory_space<vmem>>, vector<4x1024xf32>
    tpu.vector_store %arg21[%c8_282, %c0_283], %454 {strides = array<i32>} : memref<40x1024xf32, #tpu.memory_space<vmem>>, vector<4x1024xf32>,
    %c0_284 = arith.constant 0 : index
    %c127_285 = arith.constant 127 : index
    %456 = vector.load %arg20[%c0_284, %c127_285] : memref<40x1280xf32, #tpu.memory_space<vmem>>, vector<4x1024xf32>
    %457 = tpu.iota {dimensions = array<i32: 1>} : vector<4x1024xi32>
    %c31_i32_286 = arith.constant 31 : i32
    %458 = vector.broadcast %c31_i32_286 : i32 to vector<4x1024xi32>
    %459 = arith.andi %457, %458 : vector<4x1024xi32>
    %c1_i32_287 = arith.constant 1 : i32
    %460 = vector.broadcast %c1_i32_287 : i32 to vector<4x1024xi32>
    %461 = arith.cmpi sge, %459, %460 : vector<4x1024xi32>
    %cst_288 = arith.constant 0.000000e+00 : f32
    %462 = vector.broadcast %cst_288 : f32 to vector<4x1024xf32>
    %463 = arith.select %461, %456, %462 : vector<4x1024xi1>, vector<4x1024xf32>
    %c12_289 = arith.constant 12 : index
    %c0_290 = arith.constant 0 : index
    %464 = vector.load %arg21[%c12_289, %c0_290] : memref<40x1024xf32, #tpu.memory_space<vmem>>, vector<4x1024xf32>
    tpu.vector_store %arg21[%c12_289, %c0_290], %463 {strides = array<i32>} : memref<40x1024xf32, #tpu.memory_space<vmem>>, vector<4x1024xf32>,
    %c0_291 = arith.constant 0 : index
    %c128_292 = arith.constant 128 : index
    %465 = vector.load %arg20[%c0_291, %c128_292] : memref<40x1280xf32, #tpu.memory_space<vmem>>, vector<4x1024xf32>
    %c16_293 = arith.constant 16 : index
    %c0_294 = arith.constant 0 : index
    %466 = vector.load %arg21[%c16_293, %c0_294] : memref<40x1024xf32, #tpu.memory_space<vmem>>, vector<4x1024xf32>
    tpu.vector_store %arg21[%c16_293, %c0_294], %465 {strides = array<i32>} : memref<40x1024xf32, #tpu.memory_space<vmem>>, vector<4x1024xf32>,
    %c0_295 = arith.constant 0 : index
    %c129_296 = arith.constant 129 : index
    %467 = vector.load %arg20[%c0_295, %c129_296] : memref<40x1280xf32, #tpu.memory_space<vmem>>, vector<4x1024xf32>
    %468 = tpu.iota {dimensions = array<i32: 1>} : vector<4x1024xi32>
    %c31_i32_297 = arith.constant 31 : i32
    %469 = vector.broadcast %c31_i32_297 : i32 to vector<4x1024xi32>
    %470 = arith.andi %468, %469 : vector<4x1024xi32>
    %c30_i32_298 = arith.constant 30 : i32
    %471 = vector.broadcast %c30_i32_298 : i32 to vector<4x1024xi32>
    %472 = arith.cmpi sle, %470, %471 : vector<4x1024xi32>
    %cst_299 = arith.constant 0.000000e+00 : f32
    %473 = vector.broadcast %cst_299 : f32 to vector<4x1024xf32>
    %474 = arith.select %472, %467, %473 : vector<4x1024xi1>, vector<4x1024xf32>
    %c20_300 = arith.constant 20 : index
    %c0_301 = arith.constant 0 : index
    %475 = vector.load %arg21[%c20_300, %c0_301] : memref<40x1024xf32, #tpu.memory_space<vmem>>, vector<4x1024xf32>
    tpu.vector_store %arg21[%c20_300, %c0_301], %474 {strides = array<i32>} : memref<40x1024xf32, #tpu.memory_space<vmem>>, vector<4x1024xf32>,
    %c0_302 = arith.constant 0 : index
    %c159_303 = arith.constant 159 : index
    %476 = vector.load %arg20[%c0_302, %c159_303] : memref<40x1280xf32, #tpu.memory_space<vmem>>, vector<4x1024xf32>
    %477 = tpu.iota {dimensions = array<i32: 1>} : vector<4x1024xi32>
    %c5_i32_304 = arith.constant 5 : i32
    %478 = vector.broadcast %c5_i32_304 : i32 to vector<4x1024xi32>
    %479 = arith.shrsi %477, %478 : vector<4x1024xi32>
    %c31_i32_305 = arith.constant 31 : i32
    %480 = vector.broadcast %c31_i32_305 : i32 to vector<4x1024xi32>
    %481 = arith.andi %477, %480 : vector<4x1024xi32>
    %c30_i32_306 = arith.constant 30 : i32
    %482 = vector.broadcast %c30_i32_306 : i32 to vector<4x1024xi32>
    %483 = arith.cmpi sle, %479, %482 : vector<4x1024xi32>
    %c1_i32_307 = arith.constant 1 : i32
    %484 = vector.broadcast %c1_i32_307 : i32 to vector<4x1024xi32>
    %485 = arith.cmpi sge, %481, %484 : vector<4x1024xi32>
    %486 = arith.andi %483, %485 : vector<4x1024xi1>
    %cst_308 = arith.constant 0.000000e+00 : f32
    %487 = vector.broadcast %cst_308 : f32 to vector<4x1024xf32>
    %488 = arith.select %486, %476, %487 : vector<4x1024xi1>, vector<4x1024xf32>
    %c24_309 = arith.constant 24 : index
    %c0_310 = arith.constant 0 : index
    %489 = vector.load %arg21[%c24_309, %c0_310] : memref<40x1024xf32, #tpu.memory_space<vmem>>, vector<4x1024xf32>
    tpu.vector_store %arg21[%c24_309, %c0_310], %488 {strides = array<i32>} : memref<40x1024xf32, #tpu.memory_space<vmem>>, vector<4x1024xf32>,
    %c0_311 = arith.constant 0 : index
    %c160_312 = arith.constant 160 : index
    %490 = vector.load %arg20[%c0_311, %c160_312] : memref<40x1280xf32, #tpu.memory_space<vmem>>, vector<4x1024xf32>
    %491 = tpu.iota {dimensions = array<i32: 1>} : vector<4x1024xi32>
    %c5_i32_313 = arith.constant 5 : i32
    %492 = vector.broadcast %c5_i32_313 : i32 to vector<4x1024xi32>
    %493 = arith.shrsi %491, %492 : vector<4x1024xi32>
    %c30_i32_314 = arith.constant 30 : i32
    %494 = vector.broadcast %c30_i32_314 : i32 to vector<4x1024xi32>
    %495 = arith.cmpi sle, %493, %494 : vector<4x1024xi32>
    %cst_315 = arith.constant 0.000000e+00 : f32
    %496 = vector.broadcast %cst_315 : f32 to vector<4x1024xf32>
    %497 = arith.select %495, %490, %496 : vector<4x1024xi1>, vector<4x1024xf32>
    %c28_316 = arith.constant 28 : index
    %c0_317 = arith.constant 0 : index
    %498 = vector.load %arg21[%c28_316, %c0_317] : memref<40x1024xf32, #tpu.memory_space<vmem>>, vector<4x1024xf32>
    tpu.vector_store %arg21[%c28_316, %c0_317], %497 {strides = array<i32>} : memref<40x1024xf32, #tpu.memory_space<vmem>>, vector<4x1024xf32>,
    %c0_318 = arith.constant 0 : index
    %c161_319 = arith.constant 161 : index
    %499 = vector.load %arg20[%c0_318, %c161_319] : memref<40x1280xf32, #tpu.memory_space<vmem>>, vector<4x1024xf32>
    %500 = tpu.iota {dimensions = array<i32: 1>} : vector<4x1024xi32>
    %c5_i32_320 = arith.constant 5 : i32
    %501 = vector.broadcast %c5_i32_320 : i32 to vector<4x1024xi32>
    %502 = arith.shrsi %500, %501 : vector<4x1024xi32>
    %c31_i32_321 = arith.constant 31 : i32
    %503 = vector.broadcast %c31_i32_321 : i32 to vector<4x1024xi32>
    %504 = arith.andi %500, %503 : vector<4x1024xi32>
    %c30_i32_322 = arith.constant 30 : i32
    %505 = vector.broadcast %c30_i32_322 : i32 to vector<4x1024xi32>
    %506 = arith.cmpi sle, %502, %505 : vector<4x1024xi32>
    %c30_i32_323 = arith.constant 30 : i32
    %507 = vector.broadcast %c30_i32_323 : i32 to vector<4x1024xi32>
    %508 = arith.cmpi sle, %504, %507 : vector<4x1024xi32>
    %509 = arith.andi %506, %508 : vector<4x1024xi1>
    %cst_324 = arith.constant 0.000000e+00 : f32
    %510 = vector.broadcast %cst_324 : f32 to vector<4x1024xf32>
    %511 = arith.select %509, %499, %510 : vector<4x1024xi1>, vector<4x1024xf32>
    %c32_325 = arith.constant 32 : index
    %c0_326 = arith.constant 0 : index
    %512 = vector.load %arg21[%c32_325, %c0_326] : memref<40x1024xf32, #tpu.memory_space<vmem>>, vector<4x1024xf32>
    tpu.vector_store %arg21[%c32_325, %c0_326], %511 {strides = array<i32>} : memref<40x1024xf32, #tpu.memory_space<vmem>>, vector<4x1024xf32>,
    %c0_327 = arith.constant 0 : index
    %c0_328 = arith.constant 0 : index
    %513 = vector.load %arg21[%c0_327, %c0_328] : memref<40x1024xf32, #tpu.memory_space<vmem>>, vector<36x1024xf32>
    %cst_329 = arith.constant dense<0.000000e+00> : vector<64x1024xf32>
    %514 = tpu.matmul %415, %513, %cst_329 {dimension_numbers = #tpu.dot_dimension_numbers<[1], [0], [0], [1], [0, 0, 1, 1], [], []>} : vector<64x36xf32>, vector<36x1024xf32>, vector<64x1024xf32> -> vector<64x1024xf32>
    %cst_330 = arith.constant 0.000000e+00 : f32
    %515 = vector.broadcast %cst_330 : f32 to vector<64x1024xf32>
    %516 = arith.maximumf %514, %515 : vector<64x1024xf32>
    %cst_331 = arith.constant dense<0.000000e+00> : vector<36x1024xf32>
    %517 = tpu.matmul %417, %516, %cst_331 {dimension_numbers = #tpu.dot_dimension_numbers<[1], [0], [0], [1], [0, 0, 1, 1], [], []>} : vector<36x64xf32>, vector<64x1024xf32>, vector<36x1024xf32> -> vector<36x1024xf32>
    %c0_332 = arith.constant 0 : index
    %c128_333 = arith.constant 128 : index
    %518 = vector.load %arg20[%c0_332, %c128_333] : memref<40x1280xf32, #tpu.memory_space<vmem>>, vector<36x1024xf32>
    tpu.vector_store %arg20[%c0_332, %c128_333], %517 {strides = array<i32>} : memref<40x1280xf32, #tpu.memory_space<vmem>>, vector<36x1024xf32>,
    %cst_334 = arith.constant 0.000000e+00 : f32
    %519 = vector.broadcast %cst_334 : f32 to vector<4x1024xf32>
    %c0_335 = arith.constant 0 : index
    %c95_336 = arith.constant 95 : index
    %520 = vector.load %arg20[%c0_335, %c95_336] : memref<40x1280xf32, #tpu.memory_space<vmem>>, vector<4x1024xf32>
    %521 = tpu.iota {dimensions = array<i32: 1>} : vector<4x1024xi32>
    %c5_i32_337 = arith.constant 5 : i32
    %522 = vector.broadcast %c5_i32_337 : i32 to vector<4x1024xi32>
    %523 = arith.shrsi %521, %522 : vector<4x1024xi32>
    %c31_i32_338 = arith.constant 31 : i32
    %524 = vector.broadcast %c31_i32_338 : i32 to vector<4x1024xi32>
    %525 = arith.andi %521, %524 : vector<4x1024xi32>
    %c1_i32_339 = arith.constant 1 : i32
    %526 = vector.broadcast %c1_i32_339 : i32 to vector<4x1024xi32>
    %527 = arith.cmpi sge, %523, %526 : vector<4x1024xi32>
    %c1_i32_340 = arith.constant 1 : i32
    %528 = vector.broadcast %c1_i32_340 : i32 to vector<4x1024xi32>
    %529 = arith.cmpi sge, %525, %528 : vector<4x1024xi32>
    %530 = arith.andi %527, %529 : vector<4x1024xi1>
    %cst_341 = arith.constant 0.000000e+00 : f32
    %531 = vector.broadcast %cst_341 : f32 to vector<4x1024xf32>
    %532 = arith.select %530, %520, %531 : vector<4x1024xi1>, vector<4x1024xf32>
    %533 = arith.addf %519, %532 : vector<4x1024xf32>
    %c4_342 = arith.constant 4 : index
    %c96_343 = arith.constant 96 : index
    %534 = vector.load %arg20[%c4_342, %c96_343] : memref<40x1280xf32, #tpu.memory_space<vmem>>, vector<4x1024xf32>
    %535 = tpu.iota {dimensions = array<i32: 1>} : vector<4x1024xi32>
    %c5_i32_344 = arith.constant 5 : i32
    %536 = vector.broadcast %c5_i32_344 : i32 to vector<4x1024xi32>
    %537 = arith.shrsi %535, %536 : vector<4x1024xi32>
    %c1_i32_345 = arith.constant 1 : i32
    %538 = vector.broadcast %c1_i32_345 : i32 to vector<4x1024xi32>
    %539 = arith.cmpi sge, %537, %538 : vector<4x1024xi32>
    %cst_346 = arith.constant 0.000000e+00 : f32
    %540 = vector.broadcast %cst_346 : f32 to vector<4x1024xf32>
    %541 = arith.select %539, %534, %540 : vector<4x1024xi1>, vector<4x1024xf32>
    %542 = arith.addf %533, %541 : vector<4x1024xf32>
    %c8_347 = arith.constant 8 : index
    %c97_348 = arith.constant 97 : index
    %543 = vector.load %arg20[%c8_347, %c97_348] : memref<40x1280xf32, #tpu.memory_space<vmem>>, vector<4x1024xf32>
    %544 = tpu.iota {dimensions = array<i32: 1>} : vector<4x1024xi32>
    %c5_i32_349 = arith.constant 5 : i32
    %545 = vector.broadcast %c5_i32_349 : i32 to vector<4x1024xi32>
    %546 = arith.shrsi %544, %545 : vector<4x1024xi32>
    %c31_i32_350 = arith.constant 31 : i32
    %547 = vector.broadcast %c31_i32_350 : i32 to vector<4x1024xi32>
    %548 = arith.andi %544, %547 : vector<4x1024xi32>
    %c1_i32_351 = arith.constant 1 : i32
    %549 = vector.broadcast %c1_i32_351 : i32 to vector<4x1024xi32>
    %550 = arith.cmpi sge, %546, %549 : vector<4x1024xi32>
    %c30_i32_352 = arith.constant 30 : i32
    %551 = vector.broadcast %c30_i32_352 : i32 to vector<4x1024xi32>
    %552 = arith.cmpi sle, %548, %551 : vector<4x1024xi32>
    %553 = arith.andi %550, %552 : vector<4x1024xi1>
    %cst_353 = arith.constant 0.000000e+00 : f32
    %554 = vector.broadcast %cst_353 : f32 to vector<4x1024xf32>
    %555 = arith.select %553, %543, %554 : vector<4x1024xi1>, vector<4x1024xf32>
    %556 = arith.addf %542, %555 : vector<4x1024xf32>
    %c12_354 = arith.constant 12 : index
    %c127_355 = arith.constant 127 : index
    %557 = vector.load %arg20[%c12_354, %c127_355] : memref<40x1280xf32, #tpu.memory_space<vmem>>, vector<4x1024xf32>
    %558 = tpu.iota {dimensions = array<i32: 1>} : vector<4x1024xi32>
    %c31_i32_356 = arith.constant 31 : i32
    %559 = vector.broadcast %c31_i32_356 : i32 to vector<4x1024xi32>
    %560 = arith.andi %558, %559 : vector<4x1024xi32>
    %c1_i32_357 = arith.constant 1 : i32
    %561 = vector.broadcast %c1_i32_357 : i32 to vector<4x1024xi32>
    %562 = arith.cmpi sge, %560, %561 : vector<4x1024xi32>
    %cst_358 = arith.constant 0.000000e+00 : f32
    %563 = vector.broadcast %cst_358 : f32 to vector<4x1024xf32>
    %564 = arith.select %562, %557, %563 : vector<4x1024xi1>, vector<4x1024xf32>
    %565 = arith.addf %556, %564 : vector<4x1024xf32>
    %c16_359 = arith.constant 16 : index
    %c128_360 = arith.constant 128 : index
    %566 = vector.load %arg20[%c16_359, %c128_360] : memref<40x1280xf32, #tpu.memory_space<vmem>>, vector<4x1024xf32>
    %567 = arith.addf %565, %566 : vector<4x1024xf32>
    %c20_361 = arith.constant 20 : index
    %c129_362 = arith.constant 129 : index
    %568 = vector.load %arg20[%c20_361, %c129_362] : memref<40x1280xf32, #tpu.memory_space<vmem>>, vector<4x1024xf32>
    %569 = tpu.iota {dimensions = array<i32: 1>} : vector<4x1024xi32>
    %c31_i32_363 = arith.constant 31 : i32
    %570 = vector.broadcast %c31_i32_363 : i32 to vector<4x1024xi32>
    %571 = arith.andi %569, %570 : vector<4x1024xi32>
    %c30_i32_364 = arith.constant 30 : i32
    %572 = vector.broadcast %c30_i32_364 : i32 to vector<4x1024xi32>
    %573 = arith.cmpi sle, %571, %572 : vector<4x1024xi32>
    %cst_365 = arith.constant 0.000000e+00 : f32
    %574 = vector.broadcast %cst_365 : f32 to vector<4x1024xf32>
    %575 = arith.select %573, %568, %574 : vector<4x1024xi1>, vector<4x1024xf32>
    %576 = arith.addf %567, %575 : vector<4x1024xf32>
    %c24_366 = arith.constant 24 : index
    %c159_367 = arith.constant 159 : index
    %577 = vector.load %arg20[%c24_366, %c159_367] : memref<40x1280xf32, #tpu.memory_space<vmem>>, vector<4x1024xf32>
    %578 = tpu.iota {dimensions = array<i32: 1>} : vector<4x1024xi32>
    %c5_i32_368 = arith.constant 5 : i32
    %579 = vector.broadcast %c5_i32_368 : i32 to vector<4x1024xi32>
    %580 = arith.shrsi %578, %579 : vector<4x1024xi32>
    %c31_i32_369 = arith.constant 31 : i32
    %581 = vector.broadcast %c31_i32_369 : i32 to vector<4x1024xi32>
    %582 = arith.andi %578, %581 : vector<4x1024xi32>
    %c30_i32_370 = arith.constant 30 : i32
    %583 = vector.broadcast %c30_i32_370 : i32 to vector<4x1024xi32>
    %584 = arith.cmpi sle, %580, %583 : vector<4x1024xi32>
    %c1_i32_371 = arith.constant 1 : i32
    %585 = vector.broadcast %c1_i32_371 : i32 to vector<4x1024xi32>
    %586 = arith.cmpi sge, %582, %585 : vector<4x1024xi32>
    %587 = arith.andi %584, %586 : vector<4x1024xi1>
    %cst_372 = arith.constant 0.000000e+00 : f32
    %588 = vector.broadcast %cst_372 : f32 to vector<4x1024xf32>
    %589 = arith.select %587, %577, %588 : vector<4x1024xi1>, vector<4x1024xf32>
    %590 = arith.addf %576, %589 : vector<4x1024xf32>
    %c28_373 = arith.constant 28 : index
    %c160_374 = arith.constant 160 : index
    %591 = vector.load %arg20[%c28_373, %c160_374] : memref<40x1280xf32, #tpu.memory_space<vmem>>, vector<4x1024xf32>
    %592 = tpu.iota {dimensions = array<i32: 1>} : vector<4x1024xi32>
    %c5_i32_375 = arith.constant 5 : i32
    %593 = vector.broadcast %c5_i32_375 : i32 to vector<4x1024xi32>
    %594 = arith.shrsi %592, %593 : vector<4x1024xi32>
    %c30_i32_376 = arith.constant 30 : i32
    %595 = vector.broadcast %c30_i32_376 : i32 to vector<4x1024xi32>
    %596 = arith.cmpi sle, %594, %595 : vector<4x1024xi32>
    %cst_377 = arith.constant 0.000000e+00 : f32
    %597 = vector.broadcast %cst_377 : f32 to vector<4x1024xf32>
    %598 = arith.select %596, %591, %597 : vector<4x1024xi1>, vector<4x1024xf32>
    %599 = arith.addf %590, %598 : vector<4x1024xf32>
    %c32_378 = arith.constant 32 : index
    %c161_379 = arith.constant 161 : index
    %600 = vector.load %arg20[%c32_378, %c161_379] : memref<40x1280xf32, #tpu.memory_space<vmem>>, vector<4x1024xf32>
    %601 = tpu.iota {dimensions = array<i32: 1>} : vector<4x1024xi32>
    %c5_i32_380 = arith.constant 5 : i32
    %602 = vector.broadcast %c5_i32_380 : i32 to vector<4x1024xi32>
    %603 = arith.shrsi %601, %602 : vector<4x1024xi32>
    %c31_i32_381 = arith.constant 31 : i32
    %604 = vector.broadcast %c31_i32_381 : i32 to vector<4x1024xi32>
    %605 = arith.andi %601, %604 : vector<4x1024xi32>
    %c30_i32_382 = arith.constant 30 : i32
    %606 = vector.broadcast %c30_i32_382 : i32 to vector<4x1024xi32>
    %607 = arith.cmpi sle, %603, %606 : vector<4x1024xi32>
    %c30_i32_383 = arith.constant 30 : i32
    %608 = vector.broadcast %c30_i32_383 : i32 to vector<4x1024xi32>
    %609 = arith.cmpi sle, %605, %608 : vector<4x1024xi32>
    %610 = arith.andi %607, %609 : vector<4x1024xi1>
    %cst_384 = arith.constant 0.000000e+00 : f32
    %611 = vector.broadcast %cst_384 : f32 to vector<4x1024xf32>
    %612 = arith.select %610, %600, %611 : vector<4x1024xi1>, vector<4x1024xf32>
    %613 = arith.addf %599, %612 : vector<4x1024xf32>
    %c0_385 = arith.constant 0 : index
    %c0_386 = arith.constant 0 : index
    %c0_387 = arith.constant 0 : index
    %614 = vector.load %arg12[%c0_385, %c0_386, %c0_387] : memref<1x64x4xf32, #tpu.memory_space<vmem>>, vector<1x64x4xf32>
    %615 = vector.shape_cast %614 : vector<1x64x4xf32> to vector<64x4xf32>
    %cst_388 = arith.constant dense<0.000000e+00> : vector<64x1024xf32>
    %616 = tpu.matmul %615, %613, %cst_388 {dimension_numbers = #tpu.dot_dimension_numbers<[1], [0], [0], [1], [0, 0, 1, 1], [], []>} : vector<64x4xf32>, vector<4x1024xf32>, vector<64x1024xf32> -> vector<64x1024xf32>
    %cst_389 = arith.constant 0.000000e+00 : f32
    %617 = vector.broadcast %cst_389 : f32 to vector<64x1024xf32>
    %618 = arith.maximumf %616, %617 : vector<64x1024xf32>
    %c0_390 = arith.constant 0 : index
    %c0_391 = arith.constant 0 : index
    %c0_392 = arith.constant 0 : index
    %619 = vector.load %arg13[%c0_390, %c0_391, %c0_392] : memref<1x64x1xf32, #tpu.memory_space<vmem>>, vector<1x64x1xf32>
    %620 = vector.shape_cast %619 : vector<1x64x1xf32> to vector<64x1xf32>
    %621 = vector.broadcast %620 : vector<64x1xf32> to vector<64x1024xf32>
    %622 = arith.mulf %618, %621 : vector<64x1024xf32>
    %cst_393 = arith.constant dense<0.000000e+00> : vector<1024xf32>
    %623 = vector.multi_reduction <add>, %622, %cst_393 [0] : vector<64x1024xf32> to vector<1024xf32>
    %624 = vector.shape_cast %623 : vector<1024xf32> to vector<1x1024xf32>
    %625 = arith.subf %3, %624 : vector<1x1024xf32>
    %c0_394 = arith.constant 0 : index
    %c0_395 = arith.constant 0 : index
    %c0_396 = arith.constant 0 : index
    %626 = vector.load %arg14[%c0_394, %c0_395, %c0_396] : memref<1x64x1xf32, #tpu.memory_space<vmem>>, vector<1x64x1xf32>
    %627 = vector.shape_cast %626 : vector<1x64x1xf32> to vector<64x1xf32>
    %628 = vector.broadcast %627 : vector<64x1xf32> to vector<64x1024xf32>
    %629 = vector.broadcast %625 : vector<1x1024xf32> to vector<64x1024xf32>
    %630 = arith.mulf %628, %629 : vector<64x1024xf32>
    %cst_397 = arith.constant 0.000000e+00 : f32
    %631 = vector.broadcast %cst_397 : f32 to vector<64x1024xf32>
    %632 = arith.maximumf %630, %631 : vector<64x1024xf32>
    %c0_398 = arith.constant 0 : index
    %c0_399 = arith.constant 0 : index
    %c0_400 = arith.constant 0 : index
    %633 = vector.load %arg15[%c0_398, %c0_399, %c0_400] : memref<1x4x64xf32, #tpu.memory_space<vmem>>, vector<1x4x64xf32>
    %634 = vector.shape_cast %633 : vector<1x4x64xf32> to vector<4x64xf32>
    %cst_401 = arith.constant dense<0.000000e+00> : vector<4x1024xf32>
    %635 = tpu.matmul %634, %632, %cst_401 {dimension_numbers = #tpu.dot_dimension_numbers<[1], [0], [0], [1], [0, 0, 1, 1], [], []>} : vector<4x64xf32>, vector<64x1024xf32>, vector<4x1024xf32> -> vector<4x1024xf32>
    %c0_402 = arith.constant 0 : index
    %c0_403 = arith.constant 0 : index
    %c0_404 = arith.constant 0 : index
    %636 = vector.load %arg16[%c0_402, %c0_403, %c0_404] : memref<1x64x4xf32, #tpu.memory_space<vmem>>, vector<1x64x4xf32>
    %637 = vector.shape_cast %636 : vector<1x64x4xf32> to vector<64x4xf32>
    %638 = arith.addf %613, %635 : vector<4x1024xf32>
    %cst_405 = arith.constant dense<0.000000e+00> : vector<64x1024xf32>
    %639 = tpu.matmul %637, %638, %cst_405 {dimension_numbers = #tpu.dot_dimension_numbers<[1], [0], [0], [1], [0, 0, 1, 1], [], []>} : vector<64x4xf32>, vector<4x1024xf32>, vector<64x1024xf32> -> vector<64x1024xf32>
    %cst_406 = arith.constant 0.000000e+00 : f32
    %640 = vector.broadcast %cst_406 : f32 to vector<64x1024xf32>
    %641 = arith.maximumf %639, %640 : vector<64x1024xf32>
    %c0_407 = arith.constant 0 : index
    %c0_408 = arith.constant 0 : index
    %c0_409 = arith.constant 0 : index
    %642 = vector.load %arg17[%c0_407, %c0_408, %c0_409] : memref<1x4x64xf32, #tpu.memory_space<vmem>>, vector<1x4x64xf32>
    %643 = vector.shape_cast %642 : vector<1x4x64xf32> to vector<4x64xf32>
    %cst_410 = arith.constant dense<0.000000e+00> : vector<4x1024xf32>
    %644 = tpu.matmul %643, %641, %cst_410 {dimension_numbers = #tpu.dot_dimension_numbers<[1], [0], [0], [1], [0, 0, 1, 1], [], []>} : vector<4x64xf32>, vector<64x1024xf32>, vector<4x1024xf32> -> vector<4x1024xf32>
    %c0_411 = arith.constant 0 : index
    %c0_412 = arith.constant 0 : index
    %645 = vector.load %arg19[%c0_411, %c0_412] : memref<4x1024xf32, #tpu.memory_space<vmem>>, vector<4x1024xf32>
    tpu.vector_store %arg19[%c0_411, %c0_412], %644 {strides = array<i32>} : memref<4x1024xf32, #tpu.memory_space<vmem>>, vector<4x1024xf32>,
    %c0_413 = arith.constant 0 : index
    %c0_414 = arith.constant 0 : index
    %c0_415 = arith.constant 0 : index
    %646 = vector.load %arg18[%c0_413, %c0_414, %c0_415] : memref<1x4x1024xf32, #tpu.memory_space<vmem>>, vector<1x4x1024xf32>
    %647 = vector.shape_cast %646 : vector<1x4x1024xf32> to vector<4x1024xf32>
    %648 = vector.shape_cast %644 : vector<4x1024xf32> to vector<1x4x1024xf32>
    tpu.vector_store %arg18[%c0_413, %c0_414, %c0_415], %648 {strides = array<i32>} : memref<1x4x1024xf32, #tpu.memory_space<vmem>>, vector<1x4x1024xf32>,
    return
  }
  func.func @transform_0(%arg0: i32, %arg1: i32) -> (i32, i32, i32) {
    %c0_i32 = arith.constant 0 : i32
    %c0_i32_0 = arith.constant 0 : i32
    %c0_i32_1 = arith.constant 0 : i32
    return %arg0, %c0_i32, %c0_i32_0 : i32, i32, i32
  }
  func.func @transform_1(%arg0: i32, %arg1: i32) -> (i32, i32, i32) {
    %c0_i32 = arith.constant 0 : i32
    %c0_i32_0 = arith.constant 0 : i32
    %c0_i32_1 = arith.constant 0 : i32
    return %arg0, %c0_i32, %c0_i32_0 : i32, i32, i32
  }
  func.func @transform_2(%arg0: i32, %arg1: i32) -> (i32, i32) {
    %c0_i32 = arith.constant 0 : i32
    %c0_i32_0 = arith.constant 0 : i32
    %c0_i32_1 = arith.constant 0 : i32
    return %c0_i32, %c0_i32_0 : i32, i32
  }
  func.func @transform_3(%arg0: i32, %arg1: i32) -> (i32, i32) {
    %c0_i32 = arith.constant 0 : i32
    %c0_i32_0 = arith.constant 0 : i32
    %c0_i32_1 = arith.constant 0 : i32
    return %c0_i32, %c0_i32_0 : i32, i32
  }
  func.func @transform_4(%arg0: i32, %arg1: i32) -> (i32, i32, i32) {
    %c0_i32 = arith.constant 0 : i32
    %c0_i32_0 = arith.constant 0 : i32
    %c0_i32_1 = arith.constant 0 : i32
    return %arg1, %c0_i32, %c0_i32_0 : i32, i32, i32
  }
  func.func @transform_5(%arg0: i32, %arg1: i32) -> (i32, i32, i32) {
    %c0_i32 = arith.constant 0 : i32
    %c0_i32_0 = arith.constant 0 : i32
    %c0_i32_1 = arith.constant 0 : i32
    return %arg1, %c0_i32, %c0_i32_0 : i32, i32, i32
  }
  func.func @transform_6(%arg0: i32, %arg1: i32) -> (i32, i32, i32) {
    %c0_i32 = arith.constant 0 : i32
    %c0_i32_0 = arith.constant 0 : i32
    %c0_i32_1 = arith.constant 0 : i32
    return %arg1, %c0_i32, %c0_i32_0 : i32, i32, i32
  }
  func.func @transform_7(%arg0: i32, %arg1: i32) -> (i32, i32, i32) {
    %c0_i32 = arith.constant 0 : i32
    %c0_i32_0 = arith.constant 0 : i32
    %c0_i32_1 = arith.constant 0 : i32
    return %arg1, %c0_i32, %c0_i32_0 : i32, i32, i32
  }
  func.func @transform_8(%arg0: i32, %arg1: i32) -> (i32, i32, i32) {
    %c0_i32 = arith.constant 0 : i32
    %c0_i32_0 = arith.constant 0 : i32
    %c0_i32_1 = arith.constant 0 : i32
    return %arg1, %c0_i32, %c0_i32_0 : i32, i32, i32
  }
  func.func @transform_9(%arg0: i32, %arg1: i32) -> (i32, i32, i32) {
    %c0_i32 = arith.constant 0 : i32
    %c0_i32_0 = arith.constant 0 : i32
    %c0_i32_1 = arith.constant 0 : i32
    return %arg1, %c0_i32, %c0_i32_0 : i32, i32, i32
  }
  func.func @transform_10(%arg0: i32, %arg1: i32) -> (i32, i32, i32) {
    %c0_i32 = arith.constant 0 : i32
    %c0_i32_0 = arith.constant 0 : i32
    %c0_i32_1 = arith.constant 0 : i32
    return %arg1, %c0_i32, %c0_i32_0 : i32, i32, i32
  }
  func.func @transform_11(%arg0: i32, %arg1: i32) -> (i32, i32, i32) {
    %c0_i32 = arith.constant 0 : i32
    %c0_i32_0 = arith.constant 0 : i32
    %c0_i32_1 = arith.constant 0 : i32
    return %arg1, %c0_i32, %c0_i32_0 : i32, i32, i32
  }
  func.func @transform_12(%arg0: i32, %arg1: i32) -> (i32, i32, i32) {
    %c0_i32 = arith.constant 0 : i32
    %c0_i32_0 = arith.constant 0 : i32
    %c0_i32_1 = arith.constant 0 : i32
    return %arg1, %c0_i32, %c0_i32_0 : i32, i32, i32
  }
  func.func @transform_13(%arg0: i32, %arg1: i32) -> (i32, i32, i32) {
    %c0_i32 = arith.constant 0 : i32
    %c0_i32_0 = arith.constant 0 : i32
    %c0_i32_1 = arith.constant 0 : i32
    return %arg1, %c0_i32, %c0_i32_0 : i32, i32, i32
  }
  func.func @transform_14(%arg0: i32, %arg1: i32) -> (i32, i32, i32) {
    %c0_i32 = arith.constant 0 : i32
    %c0_i32_0 = arith.constant 0 : i32
    %c0_i32_1 = arith.constant 0 : i32
    return %arg1, %c0_i32, %c0_i32_0 : i32, i32, i32
  }
  func.func @transform_15(%arg0: i32, %arg1: i32) -> (i32, i32, i32) {
    %c0_i32 = arith.constant 0 : i32
    %c0_i32_0 = arith.constant 0 : i32
    %c0_i32_1 = arith.constant 0 : i32
    return %arg1, %c0_i32, %c0_i32_0 : i32, i32, i32
  }
  func.func @transform_16(%arg0: i32, %arg1: i32) -> (i32, i32, i32) {
    %c0_i32 = arith.constant 0 : i32
    %c0_i32_0 = arith.constant 0 : i32
    %c0_i32_1 = arith.constant 0 : i32
    return %arg0, %c0_i32, %c0_i32_0 : i32, i32, i32
  }
}

</mosaic_0001>

<llo_original>
// kernel: network_forward.1
$region0: #{network_forward.1}
  #allocation0 [shape = 'u32[]', space=smem, size = 0x4, offset = 0x4, fixed_abs, tag = 'smem constant byte address 0x4 - core index']
  #allocation1 [shape = 'u32[144,128]{1,0:T(1,128)}', space=vmem, size = 0x12000, scoped, tag = 'internal scratch']
  #allocation2 [shape = 'f32[4,1024]{1,0:T(4,128)}', space=vmem, size = 0x4000, scoped, tag = 'scratch operand']
  #allocation3 [shape = 'f32[40,1280]{1,0:T(8,128)}', space=vmem, size = 0x32000, scoped, tag = 'scratch operand']
  #allocation4 [shape = 'f32[40,1024]{1,0:T(8,128)}', space=vmem, size = 0x28000, scoped, tag = 'scratch operand']
  %s0 = inlined_call_operand.vmem [shape: f32[2,4,64], index: 0, kind: input, shape index: {}]
  %s1 = inlined_call_operand.vmem [shape: f32[2,1,1024], index: 1, kind: input, shape index: {}]
  %s2 = inlined_call_operand.vmem [shape: f32[64,1024], index: 2, kind: input, shape index: {}]
  %s3 = inlined_call_operand.vmem [shape: f32[1024,64], index: 3, kind: input, shape index: {}]
  %s4 = inlined_call_operand.vmem [shape: f32[8,64,36], index: 4, kind: input, shape index: {}]
  %s5 = inlined_call_operand.vmem [shape: f32[8,36,64], index: 5, kind: input, shape index: {}]
  %s6 = inlined_call_operand.vmem [shape: f32[8,64,36], index: 6, kind: input, shape index: {}]
  %s7 = inlined_call_operand.vmem [shape: f32[8,36,64], index: 7, kind: input, shape index: {}]
  %s8 = inlined_call_operand.vmem [shape: f32[8,64,36], index: 8, kind: input, shape index: {}]
  %s9 = inlined_call_operand.vmem [shape: f32[8,36,64], index: 9, kind: input, shape index: {}]
  %s10 = inlined_call_operand.vmem [shape: f32[8,64,4], index: 10, kind: input, shape index: {}]
  %s11 = inlined_call_operand.vmem [shape: f32[8,64,1], index: 11, kind: input, shape index: {}]
  %s12 = inlined_call_operand.vmem [shape: f32[8,64,1], index: 12, kind: input, shape index: {}]
  %s13 = inlined_call_operand.vmem [shape: f32[8,4,64], index: 13, kind: input, shape index: {}]
  %s14 = inlined_call_operand.vmem [shape: f32[8,64,4], index: 14, kind: input, shape index: {}]
  %s15 = inlined_call_operand.vmem [shape: f32[8,4,64], index: 15, kind: input, shape index: {}]
  %s16 = inlined_call_operand.vmem [shape: f32[2,4,1024], index: 16, kind: output, shape index: {}]
  %s17 = sld [smem:[#allocation0]]
  $region101: #{network_forward.1} parent=0
    _
  %s19 = ssub.s32 1, %s17
  %s20 = scalar_select 0, %s19, %s17
  loop: start=0, step=1, limit=18
  $region2: #{network_forward.1} parent=0 // loop_pre_header
    _
  $region3: #{network_forward.1} parent=0 // loop_header
    %s22 = sphi 0, %s26
    %p23 = scmp.ge.s32.totalorder %s22, 18
    %s29 = sphi 0, %s41
    %s30 = sphi 0, %s37
    %s31 = sphi 0, %s29
    %s32 = sphi 0, %s30
    %s33 = sphi 0, %s31
    %s34 = sphi 0, %s32
    %s44 = sphi 0, %s46
    %s47 = sphi 0, %s44
    %s48 = sphi 0, %s47
    %s64 = sphi 0, %s48
    %s70 = sphi 0, %s72
    %s73 = sphi 0, %s70
    %s74 = sphi 0, %s73
    %s90 = sphi 0, %s74
    %s94 = sphi 0, %s94
    %s96 = sphi 0, %s94
    %s97 = sphi 0, %s96
    %s111 = sphi 0, %s97
    %s115 = sphi 0, %s115
    %s117 = sphi 0, %s115
    %s118 = sphi 0, %s117
    %s132 = sphi 0, %s118
    %s138 = sphi 0, %s140
    %s141 = sphi 0, %s138
    %s142 = sphi 0, %s141
    %s158 = sphi 0, %s142
    %s164 = sphi 0, %s166
    %s167 = sphi 0, %s164
    %s168 = sphi 0, %s167
    %s184 = sphi 0, %s168
    %s190 = sphi 0, %s192
    %s193 = sphi 0, %s190
    %s194 = sphi 0, %s193
    %s210 = sphi 0, %s194
    %s216 = sphi 0, %s218
    %s219 = sphi 0, %s216
    %s220 = sphi 0, %s219
    %s236 = sphi 0, %s220
    %s242 = sphi 0, %s244
    %s245 = sphi 0, %s242
    %s246 = sphi 0, %s245
    %s262 = sphi 0, %s246
    %s268 = sphi 0, %s270
    %s271 = sphi 0, %s268
    %s272 = sphi 0, %s271
    %s288 = sphi 0, %s272
    %s294 = sphi 0, %s296
    %s297 = sphi 0, %s294
    %s298 = sphi 0, %s297
    %s314 = sphi 0, %s298
    %s320 = sphi 0, %s322
    %s323 = sphi 0, %s320
    %s324 = sphi 0, %s323
    %s340 = sphi 0, %s324
    %s346 = sphi 0, %s348
    %s349 = sphi 0, %s346
    %s350 = sphi 0, %s349
    %s366 = sphi 0, %s350
    %s372 = sphi 0, %s374
    %s375 = sphi 0, %s372
    %s376 = sphi 0, %s375
    %s392 = sphi 0, %s376
    %s398 = sphi 0, %s400
    %s401 = sphi 0, %s398
    %s402 = sphi 0, %s401
    %s418 = sphi 0, %s402
    %s424 = sphi 0, %s426
    %s427 = sphi 0, %s424
    %s428 = sphi 0, %s427
    %s444 = sphi 0, %s428
    %s450 = sphi 0, %s452
    %s453 = sphi 0, %s450
    %s454 = sphi 0, %s453
    %s470 = sphi 0, %s454
  $region4: #{network_forward.1} parent=0 // loop_header_branch
    %25 = sbr.rel (%p23) target = $region8
  $region5: #{network_forward.1} parent=0 // loop_body
    %s27 = ssub.s32 %s22, 1
    %s28 = ssub.s32 %s22, 2
    %s35 = sadd.s32 1, %s30
    %p36 = scmp.ge.s32.totalorder %s35, 8
    %s37 = scalar_select %p36, 0, %s35
    %s38 = sadd.s32 1, %s29
    %s39 = scalar_select %p36, %s38, %s29
    %p40 = scmp.ge.s32.totalorder %s39, 2
    %s41 = scalar_select %p40, 0, %s39
    %s42 = ssub.s32 %s29, %s41
    %p43 = scmp.eq.s32.totalorder %s42, 0
    %s45 = sadd.s32 %s44, 1
    %s46 = scalar_select %p43, %s44, %s45
    %p49 = pneg %p43
    %p50 = scmp.eq.s32.totalorder %s22, 15
    %p51 = por %p49, %p50
    %p52 = scmp.ne.s32.totalorder %s44, %s47
    %p53 = scmp.eq.s32.totalorder %s22, 0
    %p54 = por %p52, %p53
    %p55 = scmp.ne.s32.totalorder %s44, %s47
    %p56 = scmp.eq.s32.totalorder %s27, 15
    %p57 = por %p55, %p56
    %p58 = scmp.ne.s32.totalorder %s47, %s48
    %p59 = scmp.eq.s32.totalorder %s27, 0
    %p60 = por %p58, %p59
    %p61 = scmp.ne.s32.totalorder %s47, %s48
    %p62 = scmp.eq.s32.totalorder %s28, 15
    %p63 = por %p61, %p62
    %p65 = scmp.ne.s32.totalorder %s48, %s64
    %p66 = scmp.eq.s32.totalorder %s28, 0
    %p67 = por %p65, %p66
    %s68 = ssub.s32 %s29, %s41
    %p69 = scmp.eq.s32.totalorder %s68, 0
    %s71 = sadd.s32 %s70, 1
    %s72 = scalar_select %p69, %s70, %s71
    %p75 = pneg %p69
    %p76 = scmp.eq.s32.totalorder %s22, 15
    %p77 = por %p75, %p76
    %p78 = scmp.ne.s32.totalorder %s70, %s73
    %p79 = scmp.eq.s32.totalorder %s22, 0
    %p80 = por %p78, %p79
    %p81 = scmp.ne.s32.totalorder %s70, %s73
    %p82 = scmp.eq.s32.totalorder %s27, 15
    %p83 = por %p81, %p82
    %p84 = scmp.ne.s32.totalorder %s73, %s74
    %p85 = scmp.eq.s32.totalorder %s27, 0
    %p86 = por %p84, %p85
    %p87 = scmp.ne.s32.totalorder %s73, %s74
    %p88 = scmp.eq.s32.totalorder %s28, 15
    %p89 = por %p87, %p88
    %p91 = scmp.ne.s32.totalorder %s74, %s90
    %p92 = scmp.eq.s32.totalorder %s28, 0
    %p93 = por %p91, %p92
    %s95 = sadd.s32 %s94, 1
    %p98 = scmp.eq.s32.totalorder %s22, 15
    %p99 = scmp.ne.s32.totalorder %s94, %s96
    %p100 = scmp.eq.s32.totalorder %s22, 0
    %p101 = por %p99, %p100
    %p102 = scmp.ne.s32.totalorder %s94, %s96
    %p103 = scmp.eq.s32.totalorder %s27, 15
    %p104 = por %p102, %p103
    %p105 = scmp.ne.s32.totalorder %s96, %s97
    %p106 = scmp.eq.s32.totalorder %s27, 0
    %p107 = por %p105, %p106
    %p108 = scmp.ne.s32.totalorder %s96, %s97
    %p109 = scmp.eq.s32.totalorder %s28, 15
    %p110 = por %p108, %p109
    %p112 = scmp.ne.s32.totalorder %s97, %s111
    %p113 = scmp.eq.s32.totalorder %s28, 0
    %p114 = por %p112, %p113
    %s116 = sadd.s32 %s115, 1
    %p119 = scmp.eq.s32.totalorder %s22, 15
    %p120 = scmp.ne.s32.totalorder %s115, %s117
    %p121 = scmp.eq.s32.totalorder %s22, 0
    %p122 = por %p120, %p121
    %p123 = scmp.ne.s32.totalorder %s115, %s117
    %p124 = scmp.eq.s32.totalorder %s27, 15
    %p125 = por %p123, %p124
    %p126 = scmp.ne.s32.totalorder %s117, %s118
    %p127 = scmp.eq.s32.totalorder %s27, 0
    %p128 = por %p126, %p127
    %p129 = scmp.ne.s32.totalorder %s117, %s118
    %p130 = scmp.eq.s32.totalorder %s28, 15
    %p131 = por %p129, %p130
    %p133 = scmp.ne.s32.totalorder %s118, %s132
    %p134 = scmp.eq.s32.totalorder %s28, 0
    %p135 = por %p133, %p134
    %s136 = ssub.s32 %s30, %s37
    %p137 = scmp.eq.s32.totalorder %s136, 0
    %s139 = sadd.s32 %s138, 1
    %s140 = scalar_select %p137, %s138, %s139
    %p143 = pneg %p137
    %p144 = scmp.eq.s32.totalorder %s22, 15
    %p145 = por %p143, %p144
    %p146 = scmp.ne.s32.totalorder %s138, %s141
    %p147 = scmp.eq.s32.totalorder %s22, 0
    %p148 = por %p146, %p147
    %p149 = scmp.ne.s32.totalorder %s138, %s141
    %p150 = scmp.eq.s32.totalorder %s27, 15
    %p151 = por %p149, %p150
    %p152 = scmp.ne.s32.totalorder %s141, %s142
    %p153 = scmp.eq.s32.totalorder %s27, 0
    %p154 = por %p152, %p153
    %p155 = scmp.ne.s32.totalorder %s141, %s142
    %p156 = scmp.eq.s32.totalorder %s28, 15
    %p157 = por %p155, %p156
    %p159 = scmp.ne.s32.totalorder %s142, %s158
    %p160 = scmp.eq.s32.totalorder %s28, 0
    %p161 = por %p159, %p160
    %s162 = ssub.s32 %s30, %s37
    %p163 = scmp.eq.s32.totalorder %s162, 0
    %s165 = sadd.s32 %s164, 1
    %s166 = scalar_select %p163, %s164, %s165
    %p169 = pneg %p163
    %p170 = scmp.eq.s32.totalorder %s22, 15
    %p171 = por %p169, %p170
    %p172 = scmp.ne.s32.totalorder %s164, %s167
    %p173 = scmp.eq.s32.totalorder %s22, 0
    %p174 = por %p172, %p173
    %p175 = scmp.ne.s32.totalorder %s164, %s167
    %p176 = scmp.eq.s32.totalorder %s27, 15
    %p177 = por %p175, %p176
    %p178 = scmp.ne.s32.totalorder %s167, %s168
    %p179 = scmp.eq.s32.totalorder %s27, 0
    %p180 = por %p178, %p179
    %p181 = scmp.ne.s32.totalorder %s167, %s168
    %p182 = scmp.eq.s32.totalorder %s28, 15
    %p183 = por %p181, %p182
    %p185 = scmp.ne.s32.totalorder %s168, %s184
    %p186 = scmp.eq.s32.totalorder %s28, 0
    %p187 = por %p185, %p186
    %s188 = ssub.s32 %s30, %s37
    %p189 = scmp.eq.s32.totalorder %s188, 0
    %s191 = sadd.s32 %s190, 1
    %s192 = scalar_select %p189, %s190, %s191
    %p195 = pneg %p189
    %p196 = scmp.eq.s32.totalorder %s22, 15
    %p197 = por %p195, %p196
    %p198 = scmp.ne.s32.totalorder %s190, %s193
    %p199 = scmp.eq.s32.totalorder %s22, 0
    %p200 = por %p198, %p199
    %p201 = scmp.ne.s32.totalorder %s190, %s193
    %p202 = scmp.eq.s32.totalorder %s27, 15
    %p203 = por %p201, %p202
    %p204 = scmp.ne.s32.totalorder %s193, %s194
    %p205 = scmp.eq.s32.totalorder %s27, 0
    %p206 = por %p204, %p205
    %p207 = scmp.ne.s32.totalorder %s193, %s194
    %p208 = scmp.eq.s32.totalorder %s28, 15
    %p209 = por %p207, %p208
    %p211 = scmp.ne.s32.totalorder %s194, %s210
    %p212 = scmp.eq.s32.totalorder %s28, 0
    %p213 = por %p211, %p212
    %s214 = ssub.s32 %s30, %s37
    %p215 = scmp.eq.s32.totalorder %s214, 0
    %s217 = sadd.s32 %s216, 1
    %s218 = scalar_select %p215, %s216, %s217
    %p221 = pneg %p215
    %p222 = scmp.eq.s32.totalorder %s22, 15
    %p223 = por %p221, %p222
    %p224 = scmp.ne.s32.totalorder %s216, %s219
    %p225 = scmp.eq.s32.totalorder %s22, 0
    %p226 = por %p224, %p225
    %p227 = scmp.ne.s32.totalorder %s216, %s219
    %p228 = scmp.eq.s32.totalorder %s27, 15
    %p229 = por %p227, %p228
    %p230 = scmp.ne.s32.totalorder %s219, %s220
    %p231 = scmp.eq.s32.totalorder %s27, 0
    %p232 = por %p230, %p231
    %p233 = scmp.ne.s32.totalorder %s219, %s220
    %p234 = scmp.eq.s32.totalorder %s28, 15
    %p235 = por %p233, %p234
    %p237 = scmp.ne.s32.totalorder %s220, %s236
    %p238 = scmp.eq.s32.totalorder %s28, 0
    %p239 = por %p237, %p238
    %s240 = ssub.s32 %s30, %s37
    %p241 = scmp.eq.s32.totalorder %s240, 0
    %s243 = sadd.s32 %s242, 1
    %s244 = scalar_select %p241, %s242, %s243
    %p247 = pneg %p241
    %p248 = scmp.eq.s32.totalorder %s22, 15
    %p249 = por %p247, %p248
    %p250 = scmp.ne.s32.totalorder %s242, %s245
    %p251 = scmp.eq.s32.totalorder %s22, 0
    %p252 = por %p250, %p251
    %p253 = scmp.ne.s32.totalorder %s242, %s245
    %p254 = scmp.eq.s32.totalorder %s27, 15
    %p255 = por %p253, %p254
    %p256 = scmp.ne.s32.totalorder %s245, %s246
    %p257 = scmp.eq.s32.totalorder %s27, 0
    %p258 = por %p256, %p257
    %p259 = scmp.ne.s32.totalorder %s245, %s246
    %p260 = scmp.eq.s32.totalorder %s28, 15
    %p261 = por %p259, %p260
    %p263 = scmp.ne.s32.totalorder %s246, %s262
    %p264 = scmp.eq.s32.totalorder %s28, 0
    %p265 = por %p263, %p264
    %s266 = ssub.s32 %s30, %s37
    %p267 = scmp.eq.s32.totalorder %s266, 0
    %s269 = sadd.s32 %s268, 1
    %s270 = scalar_select %p267, %s268, %s269
    %p273 = pneg %p267
    %p274 = scmp.eq.s32.totalorder %s22, 15
    %p275 = por %p273, %p274
    %p276 = scmp.ne.s32.totalorder %s268, %s271
    %p277 = scmp.eq.s32.totalorder %s22, 0
    %p278 = por %p276, %p277
    %p279 = scmp.ne.s32.totalorder %s268, %s271
    %p280 = scmp.eq.s32.totalorder %s27, 15
    %p281 = por %p279, %p280
    %p282 = scmp.ne.s32.totalorder %s271, %s272
    %p283 = scmp.eq.s32.totalorder %s27, 0
    %p284 = por %p282, %p283
    %p285 = scmp.ne.s32.totalorder %s271, %s272
    %p286 = scmp.eq.s32.totalorder %s28, 15
    %p287 = por %p285, %p286
    %p289 = scmp.ne.s32.totalorder %s272, %s288
    %p290 = scmp.eq.s32.totalorder %s28, 0
    %p291 = por %p289, %p290
    %s292 = ssub.s32 %s30, %s37
    %p293 = scmp.eq.s32.totalorder %s292, 0
    %s295 = sadd.s32 %s294, 1
    %s296 = scalar_select %p293, %s294, %s295
    %p299 = pneg %p293
    %p300 = scmp.eq.s32.totalorder %s22, 15
    %p301 = por %p299, %p300
    %p302 = scmp.ne.s32.totalorder %s294, %s297
    %p303 = scmp.eq.s32.totalorder %s22, 0
    %p304 = por %p302, %p303
    %p305 = scmp.ne.s32.totalorder %s294, %s297
    %p306 = scmp.eq.s32.totalorder %s27, 15
    %p307 = por %p305, %p306
    %p308 = scmp.ne.s32.totalorder %s297, %s298
    %p309 = scmp.eq.s32.totalorder %s27, 0
    %p310 = por %p308, %p309
    %p311 = scmp.ne.s32.totalorder %s297, %s298
    %p312 = scmp.eq.s32.totalorder %s28, 15
    %p313 = por %p311, %p312
    %p315 = scmp.ne.s32.totalorder %s298, %s314
    %p316 = scmp.eq.s32.totalorder %s28, 0
    %p317 = por %p315, %p316
    %s318 = ssub.s32 %s30, %s37
    %p319 = scmp.eq.s32.totalorder %s318, 0
    %s321 = sadd.s32 %s320, 1
    %s322 = scalar_select %p319, %s320, %s321
    %p325 = pneg %p319
    %p326 = scmp.eq.s32.totalorder %s22, 15
    %p327 = por %p325, %p326
    %p328 = scmp.ne.s32.totalorder %s320, %s323
    %p329 = scmp.eq.s32.totalorder %s22, 0
    %p330 = por %p328, %p329
    %p331 = scmp.ne.s32.totalorder %s320, %s323
    %p332 = scmp.eq.s32.totalorder %s27, 15
    %p333 = por %p331, %p332
    %p334 = scmp.ne.s32.totalorder %s323, %s324
    %p335 = scmp.eq.s32.totalorder %s27, 0
    %p336 = por %p334, %p335
    %p337 = scmp.ne.s32.totalorder %s323, %s324
    %p338 = scmp.eq.s32.totalorder %s28, 15
    %p339 = por %p337, %p338
    %p341 = scmp.ne.s32.totalorder %s324, %s340
    %p342 = scmp.eq.s32.totalorder %s28, 0
    %p343 = por %p341, %p342
    %s344 = ssub.s32 %s30, %s37
    %p345 = scmp.eq.s32.totalorder %s344, 0
    %s347 = sadd.s32 %s346, 1
    %s348 = scalar_select %p345, %s346, %s347
    %p351 = pneg %p345
    %p352 = scmp.eq.s32.totalorder %s22, 15
    %p353 = por %p351, %p352
    %p354 = scmp.ne.s32.totalorder %s346, %s349
    %p355 = scmp.eq.s32.totalorder %s22, 0
    %p356 = por %p354, %p355
    %p357 = scmp.ne.s32.totalorder %s346, %s349
    %p358 = scmp.eq.s32.totalorder %s27, 15
    %p359 = por %p357, %p358
    %p360 = scmp.ne.s32.totalorder %s349, %s350
    %p361 = scmp.eq.s32.totalorder %s27, 0
    %p362 = por %p360, %p361
    %p363 = scmp.ne.s32.totalorder %s349, %s350
    %p364 = scmp.eq.s32.totalorder %s28, 15
    %p365 = por %p363, %p364
    %p367 = scmp.ne.s32.totalorder %s350, %s366
    %p368 = scmp.eq.s32.totalorder %s28, 0
    %p369 = por %p367, %p368
    %s370 = ssub.s32 %s30, %s37
    %p371 = scmp.eq.s32.totalorder %s370, 0
    %s373 = sadd.s32 %s372, 1
    %s374 = scalar_select %p371, %s372, %s373
    %p377 = pneg %p371
    %p378 = scmp.eq.s32.totalorder %s22, 15
    %p379 = por %p377, %p378
    %p380 = scmp.ne.s32.totalorder %s372, %s375
    %p381 = scmp.eq.s32.totalorder %s22, 0
    %p382 = por %p380, %p381
    %p383 = scmp.ne.s32.totalorder %s372, %s375
    %p384 = scmp.eq.s32.totalorder %s27, 15
    %p385 = por %p383, %p384
    %p386 = scmp.ne.s32.totalorder %s375, %s376
    %p387 = scmp.eq.s32.totalorder %s27, 0
    %p388 = por %p386, %p387
    %p389 = scmp.ne.s32.totalorder %s375, %s376
    %p390 = scmp.eq.s32.totalorder %s28, 15
    %p391 = por %p389, %p390
    %p393 = scmp.ne.s32.totalorder %s376, %s392
    %p394 = scmp.eq.s32.totalorder %s28, 0
    %p395 = por %p393, %p394
    %s396 = ssub.s32 %s30, %s37
    %p397 = scmp.eq.s32.totalorder %s396, 0
    %s399 = sadd.s32 %s398, 1
    %s400 = scalar_select %p397, %s398, %s399
    %p403 = pneg %p397
    %p404 = scmp.eq.s32.totalorder %s22, 15
    %p405 = por %p403, %p404
    %p406 = scmp.ne.s32.totalorder %s398, %s401
    %p407 = scmp.eq.s32.totalorder %s22, 0
    %p408 = por %p406, %p407
    %p409 = scmp.ne.s32.totalorder %s398, %s401
    %p410 = scmp.eq.s32.totalorder %s27, 15
    %p411 = por %p409, %p410
    %p412 = scmp.ne.s32.totalorder %s401, %s402
    %p413 = scmp.eq.s32.totalorder %s27, 0
    %p414 = por %p412, %p413
    %p415 = scmp.ne.s32.totalorder %s401, %s402
    %p416 = scmp.eq.s32.totalorder %s28, 15
    %p417 = por %p415, %p416
    %p419 = scmp.ne.s32.totalorder %s402, %s418
    %p420 = scmp.eq.s32.totalorder %s28, 0
    %p421 = por %p419, %p420
    %s422 = ssub.s32 %s30, %s37
    %p423 = scmp.eq.s32.totalorder %s422, 0
    %s425 = sadd.s32 %s424, 1
    %s426 = scalar_select %p423, %s424, %s425
    %p429 = pneg %p423
    %p430 = scmp.eq.s32.totalorder %s22, 15
    %p431 = por %p429, %p430
    %p432 = scmp.ne.s32.totalorder %s424, %s427
    %p433 = scmp.eq.s32.totalorder %s22, 0
    %p434 = por %p432, %p433
    %p435 = scmp.ne.s32.totalorder %s424, %s427
    %p436 = scmp.eq.s32.totalorder %s27, 15
    %p437 = por %p435, %p436
    %p438 = scmp.ne.s32.totalorder %s427, %s428
    %p439 = scmp.eq.s32.totalorder %s27, 0
    %p440 = por %p438, %p439
    %p441 = scmp.ne.s32.totalorder %s427, %s428
    %p442 = scmp.eq.s32.totalorder %s28, 15
    %p443 = por %p441, %p442
    %p445 = scmp.ne.s32.totalorder %s428, %s444
    %p446 = scmp.eq.s32.totalorder %s28, 0
    %p447 = por %p445, %p446
    %s448 = ssub.s32 %s29, %s41
    %p449 = scmp.eq.s32.totalorder %s448, 0
    %s451 = sadd.s32 %s450, 1
    %s452 = scalar_select %p449, %s450, %s451
    %p455 = pneg %p449
    %p456 = scmp.eq.s32.totalorder %s22, 15
    %p457 = por %p455, %p456
    %p458 = scmp.ne.s32.totalorder %s450, %s453
    %p459 = scmp.eq.s32.totalorder %s22, 0
    %p460 = por %p458, %p459
    %p461 = scmp.ne.s32.totalorder %s450, %s453
    %p462 = scmp.eq.s32.totalorder %s27, 15
    %p463 = por %p461, %p462
    %p464 = scmp.ne.s32.totalorder %s453, %s454
    %p465 = scmp.eq.s32.totalorder %s27, 0
    %p466 = por %p464, %p465
    %p467 = scmp.ne.s32.totalorder %s453, %s454
    %p468 = scmp.eq.s32.totalorder %s28, 15
    %p469 = por %p467, %p468
    %p471 = scmp.ne.s32.totalorder %s454, %s470
    %p472 = scmp.eq.s32.totalorder %s28, 0
    %p473 = por %p471, %p472
    %p474 = scmp.le.s32.totalorder 1, %s22
    %p475 = scmp.lt.s32.totalorder %s22, 17
    %p476 = pnand %p474, %p475
    %p477 = pneg %p476
    // Predicated region
    $region9: #{network_forward.1} parent=5 // pred_check
      _
    $region10: #{network_forward.1} parent=5 // pred_check_branch
      %479 = sbr.rel (%p476) target = $region12
    $region11: #{network_forward.1} parent=5 // pred_region
      %s480 = ssub.s32 %s22, 1
      // Predicated region
      $region13: #{network_forward.1} parent=11 // pred_check
        %p481 = pneg %p107
      $region14: #{network_forward.1} parent=11 // pred_check_branch
        %483 = sbr.rel (%p481) target = $region16
      $region15: #{network_forward.1} parent=11 // pred_region
        _
      $region16: #{network_forward.1} parent=11 // pred_fallthru
        _
      // Predicated region
      $region17: #{network_forward.1} parent=11 // pred_check
        %p484 = pneg %p128
      $region18: #{network_forward.1} parent=11 // pred_check_branch
        %486 = sbr.rel (%p484) target = $region20
      $region19: #{network_forward.1} parent=11 // pred_region
        _
      $region20: #{network_forward.1} parent=11 // pred_fallthru
        _
    $region12: #{network_forward.1} parent=5 // pred_fallthru
      _
    %p487 = scmp.lt.s32.totalorder %s22, 16
    // Predicated region
    $region21: #{network_forward.1} parent=5 // pred_check
      %p488 = pneg %p487
    $region22: #{network_forward.1} parent=5 // pred_check_branch
      %490 = sbr.rel (%p488) target = $region24
    $region23: #{network_forward.1} parent=5 // pred_region
      // Predicated region
      $region25: #{network_forward.1} parent=23 // pred_check
        %p491 = pneg %p54
      $region26: #{network_forward.1} parent=23 // pred_check_branch
        %493 = sbr.rel (%p491) target = $region28
      $region27: #{network_forward.1} parent=23 // pred_region
        %p494 = scmp.lt.s32.totalorder %s29, 1
        %s495 = scalar_select %p494, %s29, 1
        %s496 = smul.addr %s495, 4
        %s497 = scalar_lea.vmem %s0, %s496
      $region28: #{network_forward.1} parent=23 // pred_fallthru
        _
      // Predicated region
      $region29: #{network_forward.1} parent=23 // pred_check
        %p498 = pneg %p80
      $region30: #{network_forward.1} parent=23 // pred_check_branch
        %500 = sbr.rel (%p498) target = $region32
      $region31: #{network_forward.1} parent=23 // pred_region
        %p501 = scmp.lt.s32.totalorder %s29, 1
        %s502 = scalar_select %p501, %s29, 1
        %s503 = smul.addr %s502, 8
        %s504 = scalar_lea.vmem %s1, %s503
      $region32: #{network_forward.1} parent=23 // pred_fallthru
        _
      // Predicated region
      $region33: #{network_forward.1} parent=23 // pred_check
        %p505 = pneg %p148
      $region34: #{network_forward.1} parent=23 // pred_check_branch
        %507 = sbr.rel (%p505) target = $region36
      $region35: #{network_forward.1} parent=23 // pred_region
        %p508 = scmp.lt.s32.totalorder %s30, 7
        %s509 = scalar_select %p508, %s30, 7
        %s510 = smul.addr %s509, 8
        %s511 = smul.addr %s510, 8
        %s512 = scalar_lea.vmem %s4, %s511
      $region36: #{network_forward.1} parent=23 // pred_fallthru
        _
      // Predicated region
      $region37: #{network_forward.1} parent=23 // pred_check
        %p513 = pneg %p174
      $region38: #{network_forward.1} parent=23 // pred_check_branch
        %515 = sbr.rel (%p513) target = $region40
      $region39: #{network_forward.1} parent=23 // pred_region
        %p516 = scmp.lt.s32.totalorder %s30, 7
        %s517 = scalar_select %p516, %s30, 7
        %s518 = smul.addr %s517, 5
        %s519 = smul.addr %s518, 8
        %s520 = scalar_lea.vmem %s5, %s519
      $region40: #{network_forward.1} parent=23 // pred_fallthru
        _
      // Predicated region
      $region41: #{network_forward.1} parent=23 // pred_check
        %p521 = pneg %p200
      $region42: #{network_forward.1} parent=23 // pred_check_branch
        %523 = sbr.rel (%p521) target = $region44
      $region43: #{network_forward.1} parent=23 // pred_region
        %p524 = scmp.lt.s32.totalorder %s30, 7
        %s525 = scalar_select %p524, %s30, 7
        %s526 = smul.addr %s525, 8
        %s527 = smul.addr %s526, 8
        %s528 = scalar_lea.vmem %s6, %s527
      $region44: #{network_forward.1} parent=23 // pred_fallthru
        _
      // Predicated region
      $region45: #{network_forward.1} parent=23 // pred_check
        %p529 = pneg %p226
      $region46: #{network_forward.1} parent=23 // pred_check_branch
        %531 = sbr.rel (%p529) target = $region48
      $region47: #{network_forward.1} parent=23 // pred_region
        %p532 = scmp.lt.s32.totalorder %s30, 7
        %s533 = scalar_select %p532, %s30, 7
        %s534 = smul.addr %s533, 5
        %s535 = smul.addr %s534, 8
        %s536 = scalar_lea.vmem %s7, %s535
      $region48: #{network_forward.1} parent=23 // pred_fallthru
        _
      // Predicated region
      $region49: #{network_forward.1} parent=23 // pred_check
        %p537 = pneg %p252
      $region50: #{network_forward.1} parent=23 // pred_check_branch
        %539 = sbr.rel (%p537) target = $region52
      $region51: #{network_forward.1} parent=23 // pred_region
        %p540 = scmp.lt.s32.totalorder %s30, 7
        %s541 = scalar_select %p540, %s30, 7
        %s542 = smul.addr %s541, 8
        %s543 = smul.addr %s542, 8
        %s544 = scalar_lea.vmem %s8, %s543
      $region52: #{network_forward.1} parent=23 // pred_fallthru
        _
      // Predicated region
      $region53: #{network_forward.1} parent=23 // pred_check
        %p545 = pneg %p278
      $region54: #{network_forward.1} parent=23 // pred_check_branch
        %547 = sbr.rel (%p545) target = $region56
      $region55: #{network_forward.1} parent=23 // pred_region
        %p548 = scmp.lt.s32.totalorder %s30, 7
        %s549 = scalar_select %p548, %s30, 7
        %s550 = smul.addr %s549, 5
        %s551 = smul.addr %s550, 8
        %s552 = scalar_lea.vmem %s9, %s551
      $region56: #{network_forward.1} parent=23 // pred_fallthru
        _
      // Predicated region
      $region57: #{network_forward.1} parent=23 // pred_check
        %p553 = pneg %p304
      $region58: #{network_forward.1} parent=23 // pred_check_branch
        %555 = sbr.rel (%p553) target = $region60
      $region59: #{network_forward.1} parent=23 // pred_region
        %p556 = scmp.lt.s32.totalorder %s30, 7
        %s557 = scalar_select %p556, %s30, 7
        %s558 = smul.addr %s557, 8
        %s559 = smul.addr %s558, 8
        %s560 = scalar_lea.vmem %s10, %s559
      $region60: #{network_forward.1} parent=23 // pred_fallthru
        _
      // Predicated region
      $region61: #{network_forward.1} parent=23 // pred_check
        %p561 = pneg %p330
      $region62: #{network_forward.1} parent=23 // pred_check_branch
        %563 = sbr.rel (%p561) target = $region64
      $region63: #{network_forward.1} parent=23 // pred_region
        %p564 = scmp.lt.s32.totalorder %s30, 7
        %s565 = scalar_select %p564, %s30, 7
        %s566 = smul.addr %s565, 8
        %s567 = smul.addr %s566, 8
        %s568 = scalar_lea.vmem %s11, %s567
      $region64: #{network_forward.1} parent=23 // pred_fallthru
        _
      // Predicated region
      $region65: #{network_forward.1} parent=23 // pred_check
        %p569 = pneg %p356
      $region66: #{network_forward.1} parent=23 // pred_check_branch
        %571 = sbr.rel (%p569) target = $region68
      $region67: #{network_forward.1} parent=23 // pred_region
        %p572 = scmp.lt.s32.totalorder %s30, 7
        %s573 = scalar_select %p572, %s30, 7
        %s574 = smul.addr %s573, 8
        %s575 = smul.addr %s574, 8
        %s576 = scalar_lea.vmem %s12, %s575
      $region68: #{network_forward.1} parent=23 // pred_fallthru
        _
      // Predicated region
      $region69: #{network_forward.1} parent=23 // pred_check
        %p577 = pneg %p382
      $region70: #{network_forward.1} parent=23 // pred_check_branch
        %579 = sbr.rel (%p577) target = $region72
      $region71: #{network_forward.1} parent=23 // pred_region
        %p580 = scmp.lt.s32.totalorder %s30, 7
        %s581 = scalar_select %p580, %s30, 7
        %s582 = smul.addr %s581, 4
        %s583 = scalar_lea.vmem %s13, %s582
      $region72: #{network_forward.1} parent=23 // pred_fallthru
        _
      // Predicated region
      $region73: #{network_forward.1} parent=23 // pred_check
        %p584 = pneg %p408
      $region74: #{network_forward.1} parent=23 // pred_check_branch
        %586 = sbr.rel (%p584) target = $region76
      $region75: #{network_forward.1} parent=23 // pred_region
        %p587 = scmp.lt.s32.totalorder %s30, 7
        %s588 = scalar_select %p587, %s30, 7
        %s589 = smul.addr %s588, 8
        %s590 = smul.addr %s589, 8
        %s591 = scalar_lea.vmem %s14, %s590
      $region76: #{network_forward.1} parent=23 // pred_fallthru
        _
      // Predicated region
      $region77: #{network_forward.1} parent=23 // pred_check
        %p592 = pneg %p434
      $region78: #{network_forward.1} parent=23 // pred_check_branch
        %594 = sbr.rel (%p592) target = $region80
      $region79: #{network_forward.1} parent=23 // pred_region
        %p595 = scmp.lt.s32.totalorder %s30, 7
        %s596 = scalar_select %p595, %s30, 7
        %s597 = smul.addr %s596, 4
        %s598 = scalar_lea.vmem %s15, %s597
      $region80: #{network_forward.1} parent=23 // pred_fallthru
        _
    $region24: #{network_forward.1} parent=5 // pred_fallthru
      _
    %p599 = scmp.le.s32.totalorder 1, %s22
    %p600 = scmp.lt.s32.totalorder %s22, 17
    %p601 = pnand %p599, %p600
    %p602 = pneg %p601
    // Predicated region
    $region81: #{network_forward.1} parent=5 // pred_check
      _
    $region82: #{network_forward.1} parent=5 // pred_check_branch
      %604 = sbr.rel (%p601) target = $region84
    $region83: #{network_forward.1} parent=5 // pred_region
      %s605 = ssub.s32 %s22, 1
      %p606 = scmp.lt.s32.totalorder %s31, 1
      %s607 = scalar_select %p606, %s31, 1
      %s608 = smul.addr %s607, 4
      %s609 = scalar_lea.vmem %s0, %s608
      %p610 = pneg %p60
      %p611 = pneg %p57
      %p612 = scmp.lt.s32.totalorder %s31, 1
      %s613 = scalar_select %p612, %s31, 1
      %s614 = smul.addr %s613, 8
      %s615 = scalar_lea.vmem %s1, %s614
      %p616 = pneg %p86
      %p617 = pneg %p83
      %p618 = pneg %p107
      %p619 = pneg %p104
      %p620 = pneg %p128
      %p621 = pneg %p125
      %p622 = scmp.lt.s32.totalorder %s32, 7
      %s623 = scalar_select %p622, %s32, 7
      %s624 = smul.addr %s623, 8
      %s625 = smul.addr %s624, 8
      %s626 = scalar_lea.vmem %s4, %s625
      %p627 = pneg %p154
      %p628 = pneg %p151
      %p629 = scmp.lt.s32.totalorder %s32, 7
      %s630 = scalar_select %p629, %s32, 7
      %s631 = smul.addr %s630, 5
      %s632 = smul.addr %s631, 8
      %s633 = scalar_lea.vmem %s5, %s632
      %p634 = pneg %p180
      %p635 = pneg %p177
      %p636 = scmp.lt.s32.totalorder %s32, 7
      %s637 = scalar_select %p636, %s32, 7
      %s638 = smul.addr %s637, 8
      %s639 = smul.addr %s638, 8
      %s640 = scalar_lea.vmem %s6, %s639
      %p641 = pneg %p206
      %p642 = pneg %p203
      %p643 = scmp.lt.s32.totalorder %s32, 7
      %s644 = scalar_select %p643, %s32, 7
      %s645 = smul.addr %s644, 5
      %s646 = smul.addr %s645, 8
      %s647 = scalar_lea.vmem %s7, %s646
      %p648 = pneg %p232
      %p649 = pneg %p229
      %p650 = scmp.lt.s32.totalorder %s32, 7
      %s651 = scalar_select %p650, %s32, 7
      %s652 = smul.addr %s651, 8
      %s653 = smul.addr %s652, 8
      %s654 = scalar_lea.vmem %s8, %s653
      %p655 = pneg %p258
      %p656 = pneg %p255
      %p657 = scmp.lt.s32.totalorder %s32, 7
      %s658 = scalar_select %p657, %s32, 7
      %s659 = smul.addr %s658, 5
      %s660 = smul.addr %s659, 8
      %s661 = scalar_lea.vmem %s9, %s660
      %p662 = pneg %p284
      %p663 = pneg %p281
      %p664 = scmp.lt.s32.totalorder %s32, 7
      %s665 = scalar_select %p664, %s32, 7
      %s666 = smul.addr %s665, 8
      %s667 = smul.addr %s666, 8
      %s668 = scalar_lea.vmem %s10, %s667
      %p669 = pneg %p310
      %p670 = pneg %p307
      %p671 = scmp.lt.s32.totalorder %s32, 7
      %s672 = scalar_select %p671, %s32, 7
      %s673 = smul.addr %s672, 8
      %s674 = smul.addr %s673, 8
      %s675 = scalar_lea.vmem %s11, %s674
      %p676 = pneg %p336
      %p677 = pneg %p333
      %p678 = scmp.lt.s32.totalorder %s32, 7
      %s679 = scalar_select %p678, %s32, 7
      %s680 = smul.addr %s679, 8
      %s681 = smul.addr %s680, 8
      %s682 = scalar_lea.vmem %s12, %s681
      %p683 = pneg %p362
      %p684 = pneg %p359
      %p685 = scmp.lt.s32.totalorder %s32, 7
      %s686 = scalar_select %p685, %s32, 7
      %s687 = smul.addr %s686, 4
      %s688 = scalar_lea.vmem %s13, %s687
      %p689 = pneg %p388
      %p690 = pneg %p385
      %p691 = scmp.lt.s32.totalorder %s32, 7
      %s692 = scalar_select %p691, %s32, 7
      %s693 = smul.addr %s692, 8
      %s694 = smul.addr %s693, 8
      %s695 = scalar_lea.vmem %s14, %s694
      %p696 = pneg %p414
      %p697 = pneg %p411
      %p698 = scmp.lt.s32.totalorder %s32, 7
      %s699 = scalar_select %p698, %s32, 7
      %s700 = smul.addr %s699, 4
      %s701 = scalar_lea.vmem %s15, %s700
      %p702 = pneg %p440
      %p703 = pneg %p437
      %p704 = pneg %p466
      %p705 = pneg %p463
      %p706 = scmp.lt.s32.totalorder %s31, 1
      %s707 = scalar_select %p706, %s31, 1
      %s708 = smul.addr %s707, 8
      %s709 = smul.addr %s708, 4
      %s710 = scalar_lea.vmem %s16, %s709
      %p711 = scmp.lt.s32.totalorder %s31, 1
      %s712 = scalar_select %p711, %s31, 1
      %s713 = smul.addr %s712, 4
      %s714 = scalar_lea.vmem %s0, %s713
      %p715 = scmp.lt.s32.totalorder %s31, 1
      %s716 = scalar_select %p715, %s31, 1
      %s717 = smul.addr %s716, 8
      %s718 = scalar_lea.vmem %s1, %s717
      %p719 = scmp.lt.s32.totalorder %s32, 7
      %s720 = scalar_select %p719, %s32, 7
      %s721 = smul.addr %s720, 8
      %s722 = smul.addr %s721, 8
      %s723 = scalar_lea.vmem %s4, %s722
      %p724 = scmp.lt.s32.totalorder %s32, 7
      %s725 = scalar_select %p724, %s32, 7
      %s726 = smul.addr %s725, 5
      %s727 = smul.addr %s726, 8
      %s728 = scalar_lea.vmem %s5, %s727
      %p729 = scmp.lt.s32.totalorder %s32, 7
      %s730 = scalar_select %p729, %s32, 7
      %s731 = smul.addr %s730, 8
      %s732 = smul.addr %s731, 8
      %s733 = scalar_lea.vmem %s6, %s732
      %p734 = scmp.lt.s32.totalorder %s32, 7
      %s735 = scalar_select %p734, %s32, 7
      %s736 = smul.addr %s735, 5
      %s737 = smul.addr %s736, 8
      %s738 = scalar_lea.vmem %s7, %s737
      %p739 = scmp.lt.s32.totalorder %s32, 7
      %s740 = scalar_select %p739, %s32, 7
      %s741 = smul.addr %s740, 8
      %s742 = smul.addr %s741, 8
      %s743 = scalar_lea.vmem %s8, %s742
      %p744 = scmp.lt.s32.totalorder %s32, 7
      %s745 = scalar_select %p744, %s32, 7
      %s746 = smul.addr %s745, 5
      %s747 = smul.addr %s746, 8
      %s748 = scalar_lea.vmem %s9, %s747
      %p749 = scmp.lt.s32.totalorder %s32, 7
      %s750 = scalar_select %p749, %s32, 7
      %s751 = smul.addr %s750, 8
      %s752 = smul.addr %s751, 8
      %s753 = scalar_lea.vmem %s10, %s752
      %p754 = scmp.lt.s32.totalorder %s32, 7
      %s755 = scalar_select %p754, %s32, 7
      %s756 = smul.addr %s755, 8
      %s757 = smul.addr %s756, 8
      %s758 = scalar_lea.vmem %s11, %s757
      %p759 = scmp.lt.s32.totalorder %s32, 7
      %s760 = scalar_select %p759, %s32, 7
      %s761 = smul.addr %s760, 8
      %s762 = smul.addr %s761, 8
      %s763 = scalar_lea.vmem %s12, %s762
      %p764 = scmp.lt.s32.totalorder %s32, 7
      %s765 = scalar_select %p764, %s32, 7
      %s766 = smul.addr %s765, 4
      %s767 = scalar_lea.vmem %s13, %s766
      %p768 = scmp.lt.s32.totalorder %s32, 7
      %s769 = scalar_select %p768, %s32, 7
      %s770 = smul.addr %s769, 8
      %s771 = smul.addr %s770, 8
      %s772 = scalar_lea.vmem %s14, %s771
      %p773 = scmp.lt.s32.totalorder %s32, 7
      %s774 = scalar_select %p773, %s32, 7
      %s775 = smul.addr %s774, 4
      %s776 = scalar_lea.vmem %s15, %s775
      %p777 = scmp.lt.s32.totalorder %s31, 1
      %s778 = scalar_select %p777, %s31, 1
      %s779 = smul.addr %s778, 8
      %s780 = smul.addr %s779, 4
      %s781 = scalar_lea.vmem %s16, %s780
      %v782 = vld [vmem:[%s714] sm:$0xf]
      %v783 = vld [vmem:[%s718] sm:$0xff]
      %p784 = scmp.eq.s32.totalorder %s32, 0
      // Predicated region
      $region85: #{network_forward.1} parent=83 // pred_check
        %p785 = pneg %p784
      $region86: #{network_forward.1} parent=83 // pred_check_branch
        %787 = sbr.rel (%p785) target = $region88
      $region87: #{network_forward.1} parent=83 // pred_region
        %v788 = vld [vmem:[%s2] sm:$0xff]
        %v789 = vld [vmem:[%s2 + $0x8] sm:$0xff]
        %v790 = vld [vmem:[%s2 + $0x10] sm:$0xff]
        %v791 = vld [vmem:[%s2 + $0x18] sm:$0xff]
        %v792 = vld [vmem:[%s2 + $0x20] sm:$0xff]
        %v793 = vld [vmem:[%s2 + $0x28] sm:$0xff]
        %v794 = vld [vmem:[%s2 + $0x30] sm:$0xff]
        %v795 = vld [vmem:[%s2 + $0x38] sm:$0xff]
        %v796 = vld [vmem:[%s2 + $0x40] sm:$0xff]
        %v797 = vld [vmem:[%s2 + $0x48] sm:$0xff]
        %v798 = vld [vmem:[%s2 + $0x50] sm:$0xff]
        %v799 = vld [vmem:[%s2 + $0x58] sm:$0xff]
        %v800 = vld [vmem:[%s2 + $0x60] sm:$0xff]
        %v801 = vld [vmem:[%s2 + $0x68] sm:$0xff]
        %v802 = vld [vmem:[%s2 + $0x70] sm:$0xff]
        %v803 = vld [vmem:[%s2 + $0x78] sm:$0xff]
        %v804 = vld [vmem:[%s2 + $0x80] sm:$0xff]
        %v805 = vld [vmem:[%s2 + $0x88] sm:$0xff]
        %v806 = vld [vmem:[%s2 + $0x90] sm:$0xff]
        %v807 = vld [vmem:[%s2 + $0x98] sm:$0xff]
        %v808 = vld [vmem:[%s2 + $0xa0] sm:$0xff]
        %v809 = vld [vmem:[%s2 + $0xa8] sm:$0xff]
        %v810 = vld [vmem:[%s2 + $0xb0] sm:$0xff]
        %v811 = vld [vmem:[%s2 + $0xb8] sm:$0xff]
        %v812 = vld [vmem:[%s2 + $0xc0] sm:$0xff]
        %v813 = vld [vmem:[%s2 + $0xc8] sm:$0xff]
        %v814 = vld [vmem:[%s2 + $0xd0] sm:$0xff]
        %v815 = vld [vmem:[%s2 + $0xd8] sm:$0xff]
        %v816 = vld [vmem:[%s2 + $0xe0] sm:$0xff]
        %v817 = vld [vmem:[%s2 + $0xe8] sm:$0xff]
        %v818 = vld [vmem:[%s2 + $0xf0] sm:$0xff]
        %v819 = vld [vmem:[%s2 + $0xf8] sm:$0xff]
        %v820 = vld [vmem:[%s2 + $0x100] sm:$0xff]
        %v821 = vld [vmem:[%s2 + $0x108] sm:$0xff]
        %v822 = vld [vmem:[%s2 + $0x110] sm:$0xff]
        %v823 = vld [vmem:[%s2 + $0x118] sm:$0xff]
        %v824 = vld [vmem:[%s2 + $0x120] sm:$0xff]
        %v825 = vld [vmem:[%s2 + $0x128] sm:$0xff]
        %v826 = vld [vmem:[%s2 + $0x130] sm:$0xff]
        %v827 = vld [vmem:[%s2 + $0x138] sm:$0xff]
        %v828 = vld [vmem:[%s2 + $0x140] sm:$0xff]
        %v829 = vld [vmem:[%s2 + $0x148] sm:$0xff]
        %v830 = vld [vmem:[%s2 + $0x150] sm:$0xff]
        %v831 = vld [vmem:[%s2 + $0x158] sm:$0xff]
        %v832 = vld [vmem:[%s2 + $0x160] sm:$0xff]
        %v833 = vld [vmem:[%s2 + $0x168] sm:$0xff]
        %v834 = vld [vmem:[%s2 + $0x170] sm:$0xff]
        %v835 = vld [vmem:[%s2 + $0x178] sm:$0xff]
        %v836 = vld [vmem:[%s2 + $0x180] sm:$0xff]
        %v837 = vld [vmem:[%s2 + $0x188] sm:$0xff]
        %v838 = vld [vmem:[%s2 + $0x190] sm:$0xff]
        %v839 = vld [vmem:[%s2 + $0x198] sm:$0xff]
        %v840 = vld [vmem:[%s2 + $0x1a0] sm:$0xff]
        %v841 = vld [vmem:[%s2 + $0x1a8] sm:$0xff]
        %v842 = vld [vmem:[%s2 + $0x1b0] sm:$0xff]
        %v843 = vld [vmem:[%s2 + $0x1b8] sm:$0xff]
        %v844 = vld [vmem:[%s2 + $0x1c0] sm:$0xff]
        %v845 = vld [vmem:[%s2 + $0x1c8] sm:$0xff]
        %v846 = vld [vmem:[%s2 + $0x1d0] sm:$0xff]
        %v847 = vld [vmem:[%s2 + $0x1d8] sm:$0xff]
        %v848 = vld [vmem:[%s2 + $0x1e0] sm:$0xff]
        %v849 = vld [vmem:[%s2 + $0x1e8] sm:$0xff]
        %v850 = vld [vmem:[%s2 + $0x1f0] sm:$0xff]
        %v851 = vld [vmem:[%s2 + $0x1f8] sm:$0xff]
        %vm852 = vcmask 523264
        %v854 = vsel %vm852, %v782, 0
        %856 = vmatprep.subr.mxu0 0.0
        %857 = vmatpush1.msra.mxu0 0.0
        %858 = vmatprep.subr.mxu0 0.0
        %859 = vmatpush1.msra.mxu0 0.0
        %860 = vmatprep.subr.mxu0 0.0
        %861 = vmatpush1.msra.mxu0 0.0
        %862 = vmatprep.subr.mxu0 0.0
        %863 = vmatpush1.msra.mxu0 0.0
        %864 = vmatprep.subr.mxu0 0.0
        %865 = vmatpush1.msra.mxu0 0.0
        %866 = vmatprep.subr.mxu0 0.0
        %867 = vmatpush1.msra.mxu0 0.0
        %868 = vmatprep.subr.mxu0 0.0
        %869 = vmatpush1.msra.mxu0 0.0
        %870 = vmatprep.subr.mxu0 0.0
        %871 = vmatpush1.msra.mxu0 0.0
        %872 = vmatprep.subr.mxu0 %v845
        %873 = vmatpush1.msra.mxu0 %v844
        %874 = vmatprep.subr.mxu0 %v837
        %875 = vmatpush1.msra.mxu0 %v836
        %876 = vmatprep.subr.mxu0 %v829
        %877 = vmatpush1.msra.mxu0 %v828
        %878 = vmatprep.subr.mxu0 %v821
        %879 = vmatpush1.msra.mxu0 %v820
        %880 = vmatprep.subr.mxu0 %v813
        %881 = vmatpush1.msra.mxu0 %v812
        %882 = vmatprep.subr.mxu0 %v805
        %883 = vmatpush1.msra.mxu0 %v804
        %884 = vmatprep.subr.mxu0 %v797
        %885 = vmatpush1.msra.mxu0 %v796
        %886 = vmatprep.subr.mxu0 %v789
        %887 = vmatpush1.msra.mxu0 %v788
        %888 = vmatprep.subr.mxu0 0.0
        %889 = vmatpush2.msra.mxu0 0.0
        %890 = vmatprep.subr.mxu0 0.0
        %891 = vmatpush2.msra.mxu0 0.0
        %892 = vmatprep.subr.mxu0 0.0
        %893 = vmatpush2.msra.mxu0 0.0
        %894 = vmatprep.subr.mxu0 0.0
        %895 = vmatpush2.msra.mxu0 0.0
        %896 = vmatprep.subr.mxu0 0.0
        %897 = vmatpush2.msra.mxu0 0.0
        %898 = vmatprep.subr.mxu0 0.0
        %899 = vmatpush2.msra.mxu0 0.0
        %900 = vmatprep.subr.mxu0 0.0
        %901 = vmatpush2.msra.mxu0 0.0
        %902 = vmatprep.subr.mxu0 0.0
        %903 = vmatpush2.msra.mxu0 0.0
        %904 = vmatprep.subr.mxu0 0.0
        %905 = vmatpush2.msra.mxu0 0.0
        %906 = vmatprep.subr.mxu0 0.0
        %907 = vmatpush2.msra.mxu0 0.0
        %908 = vmatprep.subr.mxu0 0.0
        %909 = vmatpush2.msra.mxu0 0.0
        %910 = vmatprep.subr.mxu0 0.0
        %911 = vmatpush2.msra.mxu0 0.0
        %912 = vmatprep.subr.mxu0 0.0
        %913 = vmatpush2.msra.mxu0 0.0
        %914 = vmatprep.subr.mxu0 0.0
        %915 = vmatpush2.msra.mxu0 0.0
        %916 = vmatprep.subr.mxu0 0.0
        %917 = vmatpush2.msra.mxu0 0.0
        %918 = vmatprep.subr.mxu0 0.0
        %919 = vmatpush2.msra.mxu0 0.0
        %920 = vmatprep.mubr.f32.mxu0 0.0
        %921 = vmatmul.mubr.f32.gmra.mxu0 %v854
        %v922 = vpop.f32.mrf.mxu0
        %v923 = vadd.f32 0.0, %v922
        %v924 = vpop.f32.mrf.mxu0
        %v925 = vadd.f32 0.0, %v924
        %926 = vdwg.mxu0
        %927 = vmatprep.subr.mxu0 0.0
        %928 = vmatpush1.msra.mxu0 0.0
        %929 = vmatprep.subr.mxu0 0.0
        %930 = vmatpush1.msra.mxu0 0.0
        %931 = vmatprep.subr.mxu0 0.0
        %932 = vmatpush1.msra.mxu0 0.0
        %933 = vmatprep.subr.mxu0 0.0
        %934 = vmatpush1.msra.mxu0 0.0
        %935 = vmatprep.subr.mxu0 0.0
        %936 = vmatpush1.msra.mxu0 0.0
        %937 = vmatprep.subr.mxu0 0.0
        %938 = vmatpush1.msra.mxu0 0.0
        %939 = vmatprep.subr.mxu0 0.0
        %940 = vmatpush1.msra.mxu0 0.0
        %941 = vmatprep.subr.mxu0 0.0
        %942 = vmatpush1.msra.mxu0 0.0
        %943 = vmatprep.subr.mxu0 %v847
        %944 = vmatpush1.msra.mxu0 %v846
        %945 = vmatprep.subr.mxu0 %v839
        %946 = vmatpush1.msra.mxu0 %v838
        %947 = vmatprep.subr.mxu0 %v831
        %948 = vmatpush1.msra.mxu0 %v830
        %949 = vmatprep.subr.mxu0 %v823
        %950 = vmatpush1.msra.mxu0 %v822
        %951 = vmatprep.subr.mxu0 %v815
        %952 = vmatpush1.msra.mxu0 %v814
        %953 = vmatprep.subr.mxu0 %v807
        %954 = vmatpush1.msra.mxu0 %v806
        %955 = vmatprep.subr.mxu0 %v799
        %956 = vmatpush1.msra.mxu0 %v798
        %957 = vmatprep.subr.mxu0 %v791
        %958 = vmatpush1.msra.mxu0 %v790
        %959 = vmatprep.subr.mxu0 0.0
        %960 = vmatpush2.msra.mxu0 0.0
        %961 = vmatprep.subr.mxu0 0.0
        %962 = vmatpush2.msra.mxu0 0.0
        %963 = vmatprep.subr.mxu0 0.0
        %964 = vmatpush2.msra.mxu0 0.0
        %965 = vmatprep.subr.mxu0 0.0
        %966 = vmatpush2.msra.mxu0 0.0
        %967 = vmatprep.subr.mxu0 0.0
        %968 = vmatpush2.msra.mxu0 0.0
        %969 = vmatprep.subr.mxu0 0.0
        %970 = vmatpush2.msra.mxu0 0.0
        %971 = vmatprep.subr.mxu0 0.0
        %972 = vmatpush2.msra.mxu0 0.0
        %973 = vmatprep.subr.mxu0 0.0
        %974 = vmatpush2.msra.mxu0 0.0
        %975 = vmatprep.subr.mxu0 0.0
        %976 = vmatpush2.msra.mxu0 0.0
        %977 = vmatprep.subr.mxu0 0.0
        %978 = vmatpush2.msra.mxu0 0.0
        %979 = vmatprep.subr.mxu0 0.0
        %980 = vmatpush2.msra.mxu0 0.0
        %981 = vmatprep.subr.mxu0 0.0
        %982 = vmatpush2.msra.mxu0 0.0
        %983 = vmatprep.subr.mxu0 0.0
        %984 = vmatpush2.msra.mxu0 0.0
        %985 = vmatprep.subr.mxu0 0.0
        %986 = vmatpush2.msra.mxu0 0.0
        %987 = vmatprep.subr.mxu0 0.0
        %988 = vmatpush2.msra.mxu0 0.0
        %989 = vmatprep.subr.mxu0 0.0
        %990 = vmatpush2.msra.mxu0 0.0
        %991 = vmatprep.mubr.f32.mxu0 0.0
        %992 = vmatmul.mubr.f32.gmra.mxu0 %v854
        %v993 = vpop.f32.mrf.mxu0
        %v994 = vadd.f32 0.0, %v993
        %v995 = vpop.f32.mrf.mxu0
        %v996 = vadd.f32 0.0, %v995
        %997 = vdwg.mxu0
        %998 = vmatprep.subr.mxu0 0.0
        %999 = vmatpush1.msra.mxu0 0.0
        %1000 = vmatprep.subr.mxu0 0.0
        %1001 = vmatpush1.msra.mxu0 0.0
        %1002 = vmatprep.subr.mxu0 0.0
        %1003 = vmatpush1.msra.mxu0 0.0
        %1004 = vmatprep.subr.mxu0 0.0
        %1005 = vmatpush1.msra.mxu0 0.0
        %1006 = vmatprep.subr.mxu0 0.0
        %1007 = vmatpush1.msra.mxu0 0.0
        %1008 = vmatprep.subr.mxu0 0.0
        %1009 = vmatpush1.msra.mxu0 0.0
        %1010 = vmatprep.subr.mxu0 0.0
        %1011 = vmatpush1.msra.mxu0 0.0
        %1012 = vmatprep.subr.mxu0 0.0
        %1013 = vmatpush1.msra.mxu0 0.0
        %1014 = vmatprep.subr.mxu0 %v849
        %1015 = vmatpush1.msra.mxu0 %v848
        %1016 = vmatprep.subr.mxu0 %v841
        %1017 = vmatpush1.msra.mxu0 %v840
        %1018 = vmatprep.subr.mxu0 %v833
        %1019 = vmatpush1.msra.mxu0 %v832
        %1020 = vmatprep.subr.mxu0 %v825
        %1021 = vmatpush1.msra.mxu0 %v824
        %1022 = vmatprep.subr.mxu0 %v817
        %1023 = vmatpush1.msra.mxu0 %v816
        %1024 = vmatprep.subr.mxu0 %v809
        %1025 = vmatpush1.msra.mxu0 %v808
        %1026 = vmatprep.subr.mxu0 %v801
        %1027 = vmatpush1.msra.mxu0 %v800
        %1028 = vmatprep.subr.mxu0 %v793
        %1029 = vmatpush1.msra.mxu0 %v792
        %1030 = vmatprep.subr.mxu0 0.0
        %1031 = vmatpush2.msra.mxu0 0.0
        %1032 = vmatprep.subr.mxu0 0.0
        %1033 = vmatpush2.msra.mxu0 0.0
        %1034 = vmatprep.subr.mxu0 0.0
        %1035 = vmatpush2.msra.mxu0 0.0
        %1036 = vmatprep.subr.mxu0 0.0
        %1037 = vmatpush2.msra.mxu0 0.0
        %1038 = vmatprep.subr.mxu0 0.0
        %1039 = vmatpush2.msra.mxu0 0.0
        %1040 = vmatprep.subr.mxu0 0.0
        %1041 = vmatpush2.msra.mxu0 0.0
        %1042 = vmatprep.subr.mxu0 0.0
        %1043 = vmatpush2.msra.mxu0 0.0
        %1044 = vmatprep.subr.mxu0 0.0
        %1045 = vmatpush2.msra.mxu0 0.0
        %1046 = vmatprep.subr.mxu0 0.0
        %1047 = vmatpush2.msra.mxu0 0.0
        %1048 = vmatprep.subr.mxu0 0.0
        %1049 = vmatpush2.msra.mxu0 0.0
        %1050 = vmatprep.subr.mxu0 0.0
        %1051 = vmatpush2.msra.mxu0 0.0
        %1052 = vmatprep.subr.mxu0 0.0
        %1053 = vmatpush2.msra.mxu0 0.0
        %1054 = vmatprep.subr.mxu0 0.0
        %1055 = vmatpush2.msra.mxu0 0.0
        %1056 = vmatprep.subr.mxu0 0.0
        %1057 = vmatpush2.msra.mxu0 0.0
        %1058 = vmatprep.subr.mxu0 0.0
        %1059 = vmatpush2.msra.mxu0 0.0
        %1060 = vmatprep.subr.mxu0 0.0
        %1061 = vmatpush2.msra.mxu0 0.0
        %1062 = vmatprep.mubr.f32.mxu0 0.0
        %1063 = vmatmul.mubr.f32.gmra.mxu0 %v854
        %v1064 = vpop.f32.mrf.mxu0
        %v1065 = vadd.f32 0.0, %v1064
        %v1066 = vpop.f32.mrf.mxu0
        %v1067 = vadd.f32 0.0, %v1066
        %1068 = vdwg.mxu0
        %1069 = vmatprep.subr.mxu0 0.0
        %1070 = vmatpush1.msra.mxu0 0.0
        %1071 = vmatprep.subr.mxu0 0.0
        %1072 = vmatpush1.msra.mxu0 0.0
        %1073 = vmatprep.subr.mxu0 0.0
        %1074 = vmatpush1.msra.mxu0 0.0
        %1075 = vmatprep.subr.mxu0 0.0
        %1076 = vmatpush1.msra.mxu0 0.0
        %1077 = vmatprep.subr.mxu0 0.0
        %1078 = vmatpush1.msra.mxu0 0.0
        %1079 = vmatprep.subr.mxu0 0.0
        %1080 = vmatpush1.msra.mxu0 0.0
        %1081 = vmatprep.subr.mxu0 0.0
        %1082 = vmatpush1.msra.mxu0 0.0
        %1083 = vmatprep.subr.mxu0 0.0
        %1084 = vmatpush1.msra.mxu0 0.0
        %1085 = vmatprep.subr.mxu0 %v851
        %1086 = vmatpush1.msra.mxu0 %v850
        %1087 = vmatprep.subr.mxu0 %v843
        %1088 = vmatpush1.msra.mxu0 %v842
        %1089 = vmatprep.subr.mxu0 %v835
        %1090 = vmatpush1.msra.mxu0 %v834
        %1091 = vmatprep.subr.mxu0 %v827
        %1092 = vmatpush1.msra.mxu0 %v826
        %1093 = vmatprep.subr.mxu0 %v819
        %1094 = vmatpush1.msra.mxu0 %v818
        %1095 = vmatprep.subr.mxu0 %v811
        %1096 = vmatpush1.msra.mxu0 %v810
        %1097 = vmatprep.subr.mxu0 %v803
        %1098 = vmatpush1.msra.mxu0 %v802
        %1099 = vmatprep.subr.mxu0 %v795
        %1100 = vmatpush1.msra.mxu0 %v794
        %1101 = vmatprep.subr.mxu0 0.0
        %1102 = vmatpush2.msra.mxu0 0.0
        %1103 = vmatprep.subr.mxu0 0.0
        %1104 = vmatpush2.msra.mxu0 0.0
        %1105 = vmatprep.subr.mxu0 0.0
        %1106 = vmatpush2.msra.mxu0 0.0
        %1107 = vmatprep.subr.mxu0 0.0
        %1108 = vmatpush2.msra.mxu0 0.0
        %1109 = vmatprep.subr.mxu0 0.0
        %1110 = vmatpush2.msra.mxu0 0.0
        %1111 = vmatprep.subr.mxu0 0.0
        %1112 = vmatpush2.msra.mxu0 0.0
        %1113 = vmatprep.subr.mxu0 0.0
        %1114 = vmatpush2.msra.mxu0 0.0
        %1115 = vmatprep.subr.mxu0 0.0
        %1116 = vmatpush2.msra.mxu0 0.0
        %1117 = vmatprep.subr.mxu0 0.0
        %1118 = vmatpush2.msra.mxu0 0.0
        %1119 = vmatprep.subr.mxu0 0.0
        %1120 = vmatpush2.msra.mxu0 0.0
        %1121 = vmatprep.subr.mxu0 0.0
        %1122 = vmatpush2.msra.mxu0 0.0
        %1123 = vmatprep.subr.mxu0 0.0
        %1124 = vmatpush2.msra.mxu0 0.0
        %1125 = vmatprep.subr.mxu0 0.0
        %1126 = vmatpush2.msra.mxu0 0.0
        %1127 = vmatprep.subr.mxu0 0.0
        %1128 = vmatpush2.msra.mxu0 0.0
        %1129 = vmatprep.subr.mxu0 0.0
        %1130 = vmatpush2.msra.mxu0 0.0
        %1131 = vmatprep.subr.mxu0 0.0
        %1132 = vmatpush2.msra.mxu0 0.0
        %1133 = vmatprep.mubr.f32.mxu0 0.0
        %1134 = vmatmul.mubr.f32.gmra.mxu0 %v854
        %v1135 = vpop.f32.mrf.mxu0
        %v1136 = vadd.f32 0.0, %v1135
        %v1137 = vpop.f32.mrf.mxu0
        %v1138 = vadd.f32 0.0, %v1137
        %1139 = vdwg.mxu0
        %v1148 = vcombine.low %v923, %v925
        %v1149 = vcombine.low %v994, %v996
        %v1150 = vcombine.low %v1065, %v1067
        %v1151 = vcombine.low %v1136, %v1138
        %1156 = vst [vmem:[#allocation2] sm:$0xff] %v1148
        %1157 = vst [vmem:[#allocation2 + $0x8] sm:$0xff] %v1149
        %1158 = vst [vmem:[#allocation2 + $0x10] sm:$0xff] %v1150
        %1159 = vst [vmem:[#allocation2 + $0x18] sm:$0xff] %v1151
      $region88: #{network_forward.1} parent=83 // pred_fallthru
        _
      %v1160 = vld [vmem:[#allocation2] sm:$0xff]
      %v1161 = vld [vmem:[#allocation2 + $0x8] sm:$0xff]
      %v1162 = vld [vmem:[#allocation2 + $0x10] sm:$0xff]
      %v1163 = vld [vmem:[#allocation2 + $0x18] sm:$0xff]
      %v1164 = vld [vmem:[%s723] sm:$0xff]
      %v1165 = vld [vmem:[%s723 + $0x8] sm:$0xff]
      %v1166 = vld [vmem:[%s723 + $0x10] sm:$0xff]
      %v1167 = vld [vmem:[%s723 + $0x18] sm:$0xff]
      %v1168 = vld [vmem:[%s723 + $0x20] sm:$0xff]
      %v1169 = vld [vmem:[%s723 + $0x28] sm:$0xff]
      %v1170 = vld [vmem:[%s723 + $0x30] sm:$0xff]
      %v1171 = vld [vmem:[%s723 + $0x38] sm:$0xff]
      %v1172 = vld [vmem:[%s728] sm:$0xff]
      %v1173 = vld [vmem:[%s728 + $0x8] sm:$0xff]
      %v1174 = vld [vmem:[%s728 + $0x10] sm:$0xff]
      %v1175 = vld [vmem:[%s728 + $0x18] sm:$0xff]
      %v1176 = vld [vmem:[%s728 + $0x20] sm:$0xf]
      %v1181 = vcombine.high %v1160, %v1160
      %v1182 = vcombine.high %v1161, %v1161
      %v1183 = vcombine.high %v1162, %v1162
      %v1184 = vcombine.high %v1163, %v1163
      %1189 = vst [vmem:[#allocation3 + $0x8] sm:$0xf] %v1160
      %1190 = vst [vmem:[#allocation3 + $0x10] sm:$0xf] %v1181
      %1191 = vst [vmem:[#allocation3 + $0x18] sm:$0xf] %v1161
      %1192 = vst [vmem:[#allocation3 + $0x20] sm:$0xf] %v1182
      %1193 = vst [vmem:[#allocation3 + $0x28] sm:$0xf] %v1162
      %1194 = vst [vmem:[#allocation3 + $0x30] sm:$0xf] %v1183
      %1195 = vst [vmem:[#allocation3 + $0x38] sm:$0xf] %v1163
      %1196 = vst [vmem:[#allocation3 + $0x40] sm:$0xf] %v1184
      %v1197 = vld [vmem:[#allocation3] sm:$0xf]
      %v1198 = vld [vmem:[#allocation3 + $0x8] sm:$0xf]
      %v1199 = vld [vmem:[#allocation3 + $0x10] sm:$0xf]
      %v1200 = vld [vmem:[#allocation3 + $0x18] sm:$0xf]
      %v1201 = vld [vmem:[#allocation3 + $0x20] sm:$0xf]
      %v1202 = vld [vmem:[#allocation3 + $0x28] sm:$0xf]
      %v1203 = vld [vmem:[#allocation3 + $0x30] sm:$0xf]
      %v1204 = vld [vmem:[#allocation3 + $0x38] sm:$0xf]
      %v1205 = vld [vmem:[#allocation3 + $0x40] sm:$0xf]
      %v1206 = vlaneseq
      %v1207 = vand.u32 %v1206, 127
      %v1208 = vadd.s32 %v1207, 128
      %v1209 = vadd.s32 %v1207, 256
      %v1210 = vadd.s32 %v1207, 384
      %v1211 = vadd.s32 %v1207, 512
      %v1212 = vadd.s32 %v1207, 640
      %v1213 = vadd.s32 %v1207, 768
      %v1214 = vadd.s32 %v1207, 896
      %v1215 = vshra.s32 %v1207, 5
      %v1216 = vshra.s32 %v1208, 5
      %v1217 = vshra.s32 %v1209, 5
      %v1218 = vshra.s32 %v1210, 5
      %v1219 = vshra.s32 %v1211, 5
      %v1220 = vshra.s32 %v1212, 5
      %v1221 = vshra.s32 %v1213, 5
      %v1222 = vshra.s32 %v1214, 5
      %v1223 = vand.u32 %v1207, 31
      %v1224 = vand.u32 %v1208, 31
      %v1225 = vand.u32 %v1209, 31
      %v1226 = vand.u32 %v1210, 31
      %v1227 = vand.u32 %v1211, 31
      %v1228 = vand.u32 %v1212, 31
      %v1229 = vand.u32 %v1213, 31
      %v1230 = vand.u32 %v1214, 31
      %vm1231 = vcmp.ge.s32.totalorder %v1215, 1
      %vm1232 = vcmp.ge.s32.totalorder %v1216, 1
      %vm1233 = vcmp.ge.s32.totalorder %v1217, 1
      %vm1234 = vcmp.ge.s32.totalorder %v1218, 1
      %vm1235 = vcmp.ge.s32.totalorder %v1219, 1
      %vm1236 = vcmp.ge.s32.totalorder %v1220, 1
      %vm1237 = vcmp.ge.s32.totalorder %v1221, 1
      %vm1238 = vcmp.ge.s32.totalorder %v1222, 1
      %vm1239 = vcmp.ge.s32.totalorder %v1223, 1
      %vm1240 = vcmp.ge.s32.totalorder %v1224, 1
      %vm1241 = vcmp.ge.s32.totalorder %v1225, 1
      %vm1242 = vcmp.ge.s32.totalorder %v1226, 1
      %vm1243 = vcmp.ge.s32.totalorder %v1227, 1
      %vm1244 = vcmp.ge.s32.totalorder %v1228, 1
      %vm1245 = vcmp.ge.s32.totalorder %v1229, 1
      %vm1246 = vcmp.ge.s32.totalorder %v1230, 1
      %vm1247 = vmand %vm1231, %vm1239
      %vm1248 = vmand %vm1232, %vm1240
      %vm1249 = vmand %vm1233, %vm1241
      %vm1250 = vmand %vm1234, %vm1242
      %vm1251 = vmand %vm1235, %vm1243
      %vm1252 = vmand %vm1236, %vm1244
      %vm1253 = vmand %vm1237, %vm1245
      %vm1254 = vmand %vm1238, %vm1246
      %1264 = vrot.lane.b32.xlu0 %v1197, 33
      %v1265 = vpop.permute.xlu0 %1264
      %1266 = vrot.lane.b32.xlu0 %v1198, 33
      %v1267 = vpop.permute.xlu0 %1266
      %1268 = vrot.lane.b32.xlu0 %v1199, 33
      %v1269 = vpop.permute.xlu0 %1268
      %1270 = vrot.lane.b32.xlu0 %v1200, 33
      %v1271 = vpop.permute.xlu0 %1270
      %1272 = vrot.lane.b32.xlu0 %v1201, 33
      %v1273 = vpop.permute.xlu0 %1272
      %1274 = vrot.lane.b32.xlu0 %v1202, 33
      %v1275 = vpop.permute.xlu0 %1274
      %1276 = vrot.lane.b32.xlu0 %v1203, 33
      %v1277 = vpop.permute.xlu0 %1276
      %1278 = vrot.lane.b32.xlu0 %v1204, 33
      %v1279 = vpop.permute.xlu0 %1278
      %1280 = vrot.lane.b32.xlu0 %v1205, 33
      %v1281 = vpop.permute.xlu0 %1280
      %vm1282 = vcmask 269312
      %v1283 = vsel %vm1282, %v1265, %v1267
      %v1284 = vsel %vm1282, %v1267, %v1269
      %v1285 = vsel %vm1282, %v1269, %v1271
      %v1286 = vsel %vm1282, %v1271, %v1273
      %v1287 = vsel %vm1282, %v1273, %v1275
      %v1288 = vsel %vm1282, %v1275, %v1277
      %v1289 = vsel %vm1282, %v1277, %v1279
      %v1290 = vsel %vm1282, %v1279, %v1281
      %v1299 = vsel %vm1247, %v1283, 0.0
      %v1300 = vsel %vm1248, %v1284, 0.0
      %v1301 = vsel %vm1249, %v1285, 0.0
      %v1302 = vsel %vm1250, %v1286, 0.0
      %v1303 = vsel %vm1251, %v1287, 0.0
      %v1304 = vsel %vm1252, %v1288, 0.0
      %v1305 = vsel %vm1253, %v1289, 0.0
      %v1306 = vsel %vm1254, %v1290, 0.0
      %1307 = vst [vmem:[#allocation4] sm:$0xf] %v1299
      %1308 = vst [vmem:[#allocation4 + $0x8] sm:$0xf] %v1300
      %1309 = vst [vmem:[#allocation4 + $0x10] sm:$0xf] %v1301
      %1310 = vst [vmem:[#allocation4 + $0x18] sm:$0xf] %v1302
      %1311 = vst [vmem:[#allocation4 + $0x20] sm:$0xf] %v1303
      %1312 = vst [vmem:[#allocation4 + $0x28] sm:$0xf] %v1304
      %1313 = vst [vmem:[#allocation4 + $0x30] sm:$0xf] %v1305
      %1314 = vst [vmem:[#allocation4 + $0x38] sm:$0xf] %v1306
      %v1315 = vld [vmem:[#allocation3] sm:$0xf]
      %v1316 = vld [vmem:[#allocation3 + $0x8] sm:$0xf]
      %v1317 = vld [vmem:[#allocation3 + $0x10] sm:$0xf]
      %v1318 = vld [vmem:[#allocation3 + $0x18] sm:$0xf]
      %v1319 = vld [vmem:[#allocation3 + $0x20] sm:$0xf]
      %v1320 = vld [vmem:[#allocation3 + $0x28] sm:$0xf]
      %v1321 = vld [vmem:[#allocation3 + $0x30] sm:$0xf]
      %v1322 = vld [vmem:[#allocation3 + $0x38] sm:$0xf]
      %v1323 = vld [vmem:[#allocation3 + $0x40] sm:$0xf]
      %1333 = vrot.lane.b32.xlu0 %v1315, 32
      %v1334 = vpop.permute.xlu0 %1333
      %1335 = vrot.lane.b32.xlu0 %v1316, 32
      %v1336 = vpop.permute.xlu0 %1335
      %1337 = vrot.lane.b32.xlu0 %v1317, 32
      %v1338 = vpop.permute.xlu0 %1337
      %1339 = vrot.lane.b32.xlu0 %v1318, 32
      %v1340 = vpop.permute.xlu0 %1339
      %1341 = vrot.lane.b32.xlu0 %v1319, 32
      %v1342 = vpop.permute.xlu0 %1341
      %1343 = vrot.lane.b32.xlu0 %v1320, 32
      %v1344 = vpop.permute.xlu0 %1343
      %1345 = vrot.lane.b32.xlu0 %v1321, 32
      %v1346 = vpop.permute.xlu0 %1345
      %1347 = vrot.lane.b32.xlu0 %v1322, 32
      %v1348 = vpop.permute.xlu0 %1347
      %1349 = vrot.lane.b32.xlu0 %v1323, 32
      %v1350 = vpop.permute.xlu0 %1349
      %vm1351 = vcmask 261120
      %v1352 = vsel %vm1351, %v1334, %v1336
      %v1353 = vsel %vm1351, %v1336, %v1338
      %v1354 = vsel %vm1351, %v1338, %v1340
      %v1355 = vsel %vm1351, %v1340, %v1342
      %v1356 = vsel %vm1351, %v1342, %v1344
      %v1357 = vsel %vm1351, %v1344, %v1346
      %v1358 = vsel %vm1351, %v1346, %v1348
      %v1359 = vsel %vm1351, %v1348, %v1350
      %v1368 = vsel %vm1231, %v1352, 0.0
      %v1369 = vsel %vm1232, %v1353, 0.0
      %v1370 = vsel %vm1233, %v1354, 0.0
      %v1371 = vsel %vm1234, %v1355, 0.0
      %v1372 = vsel %vm1235, %v1356, 0.0
      %v1373 = vsel %vm1236, %v1357, 0.0
      %v1374 = vsel %vm1237, %v1358, 0.0
      %v1375 = vsel %vm1238, %v1359, 0.0
      %v1384 = vrot.slane %v1368, 4
      %v1385 = vrot.slane %v1369, 4
      %v1386 = vrot.slane %v1370, 4
      %v1387 = vrot.slane %v1371, 4
      %v1388 = vrot.slane %v1372, 4
      %v1389 = vrot.slane %v1373, 4
      %v1390 = vrot.slane %v1374, 4
      %v1391 = vrot.slane %v1375, 4
      %1400 = vst [vmem:[#allocation4] sm:$0xf0] %v1384
      %1401 = vst [vmem:[#allocation4 + $0x8] sm:$0xf0] %v1385
      %1402 = vst [vmem:[#allocation4 + $0x10] sm:$0xf0] %v1386
      %1403 = vst [vmem:[#allocation4 + $0x18] sm:$0xf0] %v1387
      %1404 = vst [vmem:[#allocation4 + $0x20] sm:$0xf0] %v1388
      %1405 = vst [vmem:[#allocation4 + $0x28] sm:$0xf0] %v1389
      %1406 = vst [vmem:[#allocation4 + $0x30] sm:$0xf0] %v1390
      %1407 = vst [vmem:[#allocation4 + $0x38] sm:$0xf0] %v1391
      %v1408 = vld [vmem:[#allocation3] sm:$0xf]
      %v1409 = vld [vmem:[#allocation3 + $0x8] sm:$0xf]
      %v1410 = vld [vmem:[#allocation3 + $0x10] sm:$0xf]
      %v1411 = vld [vmem:[#allocation3 + $0x18] sm:$0xf]
      %v1412 = vld [vmem:[#allocation3 + $0x20] sm:$0xf]
      %v1413 = vld [vmem:[#allocation3 + $0x28] sm:$0xf]
      %v1414 = vld [vmem:[#allocation3 + $0x30] sm:$0xf]
      %v1415 = vld [vmem:[#allocation3 + $0x38] sm:$0xf]
      %v1416 = vld [vmem:[#allocation3 + $0x40] sm:$0xf]
      %vm1417 = vcmp.le.s32.totalorder %v1223, 30
      %vm1418 = vcmp.le.s32.totalorder %v1224, 30
      %vm1419 = vcmp.le.s32.totalorder %v1225, 30
      %vm1420 = vcmp.le.s32.totalorder %v1226, 30
      %vm1421 = vcmp.le.s32.totalorder %v1227, 30
      %vm1422 = vcmp.le.s32.totalorder %v1228, 30
      %vm1423 = vcmp.le.s32.totalorder %v1229, 30
      %vm1424 = vcmp.le.s32.totalorder %v1230, 30
      %vm1425 = vmand %vm1231, %vm1417
      %vm1426 = vmand %vm1232, %vm1418
      %vm1427 = vmand %vm1233, %vm1419
      %vm1428 = vmand %vm1234, %vm1420
      %vm1429 = vmand %vm1235, %vm1421
      %vm1430 = vmand %vm1236, %vm1422
      %vm1431 = vmand %vm1237, %vm1423
      %vm1432 = vmand %vm1238, %vm1424
      %1442 = vrot.lane.b32.xlu0 %v1408, 31
      %v1443 = vpop.permute.xlu0 %1442
      %1444 = vrot.lane.b32.xlu0 %v1409, 31
      %v1445 = vpop.permute.xlu0 %1444
      %1446 = vrot.lane.b32.xlu0 %v1410, 31
      %v1447 = vpop.permute.xlu0 %1446
      %1448 = vrot.lane.b32.xlu0 %v1411, 31
      %v1449 = vpop.permute.xlu0 %1448
      %1450 = vrot.lane.b32.xlu0 %v1412, 31
      %v1451 = vpop.permute.xlu0 %1450
      %1452 = vrot.lane.b32.xlu0 %v1413, 31
      %v1453 = vpop.permute.xlu0 %1452
      %1454 = vrot.lane.b32.xlu0 %v1414, 31
      %v1455 = vpop.permute.xlu0 %1454
      %1456 = vrot.lane.b32.xlu0 %v1415, 31
      %v1457 = vpop.permute.xlu0 %1456
      %1458 = vrot.lane.b32.xlu0 %v1416, 31
      %v1459 = vpop.permute.xlu0 %1458
      %vm1460 = vcmask 252928
      %v1461 = vsel %vm1460, %v1443, %v1445
      %v1462 = vsel %vm1460, %v1445, %v1447
      %v1463 = vsel %vm1460, %v1447, %v1449
      %v1464 = vsel %vm1460, %v1449, %v1451
      %v1465 = vsel %vm1460, %v1451, %v1453
      %v1466 = vsel %vm1460, %v1453, %v1455
      %v1467 = vsel %vm1460, %v1455, %v1457
      %v1468 = vsel %vm1460, %v1457, %v1459
      %v1477 = vsel %vm1425, %v1461, 0.0
      %v1478 = vsel %vm1426, %v1462, 0.0
      %v1479 = vsel %vm1427, %v1463, 0.0
      %v1480 = vsel %vm1428, %v1464, 0.0
      %v1481 = vsel %vm1429, %v1465, 0.0
      %v1482 = vsel %vm1430, %v1466, 0.0
      %v1483 = vsel %vm1431, %v1467, 0.0
      %v1484 = vsel %vm1432, %v1468, 0.0
      %1485 = vst [vmem:[#allocation4 + $0x40] sm:$0xf] %v1477
      %1486 = vst [vmem:[#allocation4 + $0x48] sm:$0xf] %v1478
      %1487 = vst [vmem:[#allocation4 + $0x50] sm:$0xf] %v1479
      %1488 = vst [vmem:[#allocation4 + $0x58] sm:$0xf] %v1480
      %1489 = vst [vmem:[#allocation4 + $0x60] sm:$0xf] %v1481
      %1490 = vst [vmem:[#allocation4 + $0x68] sm:$0xf] %v1482
      %1491 = vst [vmem:[#allocation4 + $0x70] sm:$0xf] %v1483
      %1492 = vst [vmem:[#allocation4 + $0x78] sm:$0xf] %v1484
      %v1493 = vld [vmem:[#allocation3] sm:$0xf]
      %v1494 = vld [vmem:[#allocation3 + $0x8] sm:$0xf]
      %v1495 = vld [vmem:[#allocation3 + $0x10] sm:$0xf]
      %v1496 = vld [vmem:[#allocation3 + $0x18] sm:$0xf]
      %v1497 = vld [vmem:[#allocation3 + $0x20] sm:$0xf]
      %v1498 = vld [vmem:[#allocation3 + $0x28] sm:$0xf]
      %v1499 = vld [vmem:[#allocation3 + $0x30] sm:$0xf]
      %v1500 = vld [vmem:[#allocation3 + $0x38] sm:$0xf]
      %v1501 = vld [vmem:[#allocation3 + $0x40] sm:$0xf]
      %1511 = vrot.lane.b32.xlu0 %v1493, 1
      %v1512 = vpop.permute.xlu0 %1511
      %1513 = vrot.lane.b32.xlu0 %v1494, 1
      %v1514 = vpop.permute.xlu0 %1513
      %1515 = vrot.lane.b32.xlu0 %v1495, 1
      %v1516 = vpop.permute.xlu0 %1515
      %1517 = vrot.lane.b32.xlu0 %v1496, 1
      %v1518 = vpop.permute.xlu0 %1517
      %1519 = vrot.lane.b32.xlu0 %v1497, 1
      %v1520 = vpop.permute.xlu0 %1519
      %1521 = vrot.lane.b32.xlu0 %v1498, 1
      %v1522 = vpop.permute.xlu0 %1521
      %1523 = vrot.lane.b32.xlu0 %v1499, 1
      %v1524 = vpop.permute.xlu0 %1523
      %1525 = vrot.lane.b32.xlu0 %v1500, 1
      %v1526 = vpop.permute.xlu0 %1525
      %1527 = vrot.lane.b32.xlu0 %v1501, 1
      %v1528 = vpop.permute.xlu0 %1527
      %vm1529 = vcmask 7168
      %v1530 = vsel %vm1529, %v1512, %v1514
      %v1531 = vsel %vm1529, %v1514, %v1516
      %v1532 = vsel %vm1529, %v1516, %v1518
      %v1533 = vsel %vm1529, %v1518, %v1520
      %v1534 = vsel %vm1529, %v1520, %v1522
      %v1535 = vsel %vm1529, %v1522, %v1524
      %v1536 = vsel %vm1529, %v1524, %v1526
      %v1537 = vsel %vm1529, %v1526, %v1528
      %v1546 = vsel %vm1239, %v1530, 0.0
      %v1547 = vsel %vm1240, %v1531, 0.0
      %v1548 = vsel %vm1241, %v1532, 0.0
      %v1549 = vsel %vm1242, %v1533, 0.0
      %v1550 = vsel %vm1243, %v1534, 0.0
      %v1551 = vsel %vm1244, %v1535, 0.0
      %v1552 = vsel %vm1245, %v1536, 0.0
      %v1553 = vsel %vm1246, %v1537, 0.0
      %v1562 = vrot.slane %v1546, 4
      %v1563 = vrot.slane %v1547, 4
      %v1564 = vrot.slane %v1548, 4
      %v1565 = vrot.slane %v1549, 4
      %v1566 = vrot.slane %v1550, 4
      %v1567 = vrot.slane %v1551, 4
      %v1568 = vrot.slane %v1552, 4
      %v1569 = vrot.slane %v1553, 4
      %1578 = vst [vmem:[#allocation4 + $0x40] sm:$0xf0] %v1562
      %1579 = vst [vmem:[#allocation4 + $0x48] sm:$0xf0] %v1563
      %1580 = vst [vmem:[#allocation4 + $0x50] sm:$0xf0] %v1564
      %1581 = vst [vmem:[#allocation4 + $0x58] sm:$0xf0] %v1565
      %1582 = vst [vmem:[#allocation4 + $0x60] sm:$0xf0] %v1566
      %1583 = vst [vmem:[#allocation4 + $0x68] sm:$0xf0] %v1567
      %1584 = vst [vmem:[#allocation4 + $0x70] sm:$0xf0] %v1568
      %1585 = vst [vmem:[#allocation4 + $0x78] sm:$0xf0] %v1569
      %v1586 = vld [vmem:[#allocation3 + $0x8] sm:$0xf]
      %v1587 = vld [vmem:[#allocation3 + $0x10] sm:$0xf]
      %v1588 = vld [vmem:[#allocation3 + $0x18] sm:$0xf]
      %v1589 = vld [vmem:[#allocation3 + $0x20] sm:$0xf]
      %v1590 = vld [vmem:[#allocation3 + $0x28] sm:$0xf]
      %v1591 = vld [vmem:[#allocation3 + $0x30] sm:$0xf]
      %v1592 = vld [vmem:[#allocation3 + $0x38] sm:$0xf]
      %v1593 = vld [vmem:[#allocation3 + $0x40] sm:$0xf]
      %1594 = vst [vmem:[#allocation4 + $0x80] sm:$0xf] %v1586
      %1595 = vst [vmem:[#allocation4 + $0x88] sm:$0xf] %v1587
      %1596 = vst [vmem:[#allocation4 + $0x90] sm:$0xf] %v1588
      %1597 = vst [vmem:[#allocation4 + $0x98] sm:$0xf] %v1589
      %1598 = vst [vmem:[#allocation4 + $0xa0] sm:$0xf] %v1590
      %1599 = vst [vmem:[#allocation4 + $0xa8] sm:$0xf] %v1591
      %1600 = vst [vmem:[#allocation4 + $0xb0] sm:$0xf] %v1592
      %1601 = vst [vmem:[#allocation4 + $0xb8] sm:$0xf] %v1593
      %v1602 = vld [vmem:[#allocation3 + $0x8] sm:$0xf]
      %v1603 = vld [vmem:[#allocation3 + $0x10] sm:$0xf]
      %v1604 = vld [vmem:[#allocation3 + $0x18] sm:$0xf]
      %v1605 = vld [vmem:[#allocation3 + $0x20] sm:$0xf]
      %v1606 = vld [vmem:[#allocation3 + $0x28] sm:$0xf]
      %v1607 = vld [vmem:[#allocation3 + $0x30] sm:$0xf]
      %v1608 = vld [vmem:[#allocation3 + $0x38] sm:$0xf]
      %v1609 = vld [vmem:[#allocation3 + $0x40] sm:$0xf]
      %v1610 = vld [vmem:[#allocation3 + $0x48] sm:$0xf]
      %1620 = vrot.lane.b32.xlu0 %v1602, 127
      %v1621 = vpop.permute.xlu0 %1620
      %1622 = vrot.lane.b32.xlu0 %v1603, 127
      %v1623 = vpop.permute.xlu0 %1622
      %1624 = vrot.lane.b32.xlu0 %v1604, 127
      %v1625 = vpop.permute.xlu0 %1624
      %1626 = vrot.lane.b32.xlu0 %v1605, 127
      %v1627 = vpop.permute.xlu0 %1626
      %1628 = vrot.lane.b32.xlu0 %v1606, 127
      %v1629 = vpop.permute.xlu0 %1628
      %1630 = vrot.lane.b32.xlu0 %v1607, 127
      %v1631 = vpop.permute.xlu0 %1630
      %1632 = vrot.lane.b32.xlu0 %v1608, 127
      %v1633 = vpop.permute.xlu0 %1632
      %1634 = vrot.lane.b32.xlu0 %v1609, 127
      %v1635 = vpop.permute.xlu0 %1634
      %1636 = vrot.lane.b32.xlu0 %v1610, 127
      %v1637 = vpop.permute.xlu0 %1636
      %vm1638 = vcmask 1039360
      %v1639 = vsel %vm1638, %v1621, %v1623
      %v1640 = vsel %vm1638, %v1623, %v1625
      %v1641 = vsel %vm1638, %v1625, %v1627
      %v1642 = vsel %vm1638, %v1627, %v1629
      %v1643 = vsel %vm1638, %v1629, %v1631
      %v1644 = vsel %vm1638, %v1631, %v1633
      %v1645 = vsel %vm1638, %v1633, %v1635
      %v1646 = vsel %vm1638, %v1635, %v1637
      %v1655 = vsel %vm1417, %v1639, 0.0
      %v1656 = vsel %vm1418, %v1640, 0.0
      %v1657 = vsel %vm1419, %v1641, 0.0
      %v1658 = vsel %vm1420, %v1642, 0.0
      %v1659 = vsel %vm1421, %v1643, 0.0
      %v1660 = vsel %vm1422, %v1644, 0.0
      %v1661 = vsel %vm1423, %v1645, 0.0
      %v1662 = vsel %vm1424, %v1646, 0.0
      %v1671 = vrot.slane %v1655, 4
      %v1672 = vrot.slane %v1656, 4
      %v1673 = vrot.slane %v1657, 4
      %v1674 = vrot.slane %v1658, 4
      %v1675 = vrot.slane %v1659, 4
      %v1676 = vrot.slane %v1660, 4
      %v1677 = vrot.slane %v1661, 4
      %v1678 = vrot.slane %v1662, 4
      %1687 = vst [vmem:[#allocation4 + $0x80] sm:$0xf0] %v1671
      %1688 = vst [vmem:[#allocation4 + $0x88] sm:$0xf0] %v1672
      %1689 = vst [vmem:[#allocation4 + $0x90] sm:$0xf0] %v1673
      %1690 = vst [vmem:[#allocation4 + $0x98] sm:$0xf0] %v1674
      %1691 = vst [vmem:[#allocation4 + $0xa0] sm:$0xf0] %v1675
      %1692 = vst [vmem:[#allocation4 + $0xa8] sm:$0xf0] %v1676
      %1693 = vst [vmem:[#allocation4 + $0xb0] sm:$0xf0] %v1677
      %1694 = vst [vmem:[#allocation4 + $0xb8] sm:$0xf0] %v1678
      %v1695 = vld [vmem:[#allocation3 + $0x8] sm:$0xf]
      %v1696 = vld [vmem:[#allocation3 + $0x10] sm:$0xf]
      %v1697 = vld [vmem:[#allocation3 + $0x18] sm:$0xf]
      %v1698 = vld [vmem:[#allocation3 + $0x20] sm:$0xf]
      %v1699 = vld [vmem:[#allocation3 + $0x28] sm:$0xf]
      %v1700 = vld [vmem:[#allocation3 + $0x30] sm:$0xf]
      %v1701 = vld [vmem:[#allocation3 + $0x38] sm:$0xf]
      %v1702 = vld [vmem:[#allocation3 + $0x40] sm:$0xf]
      %v1703 = vld [vmem:[#allocation3 + $0x48] sm:$0xf]
      %vm1704 = vcmp.le.s32.totalorder %v1215, 30
      %vm1705 = vcmp.le.s32.totalorder %v1216, 30
      %vm1706 = vcmp.le.s32.totalorder %v1217, 30
      %vm1707 = vcmp.le.s32.totalorder %v1218, 30
      %vm1708 = vcmp.le.s32.totalorder %v1219, 30
      %vm1709 = vcmp.le.s32.totalorder %v1220, 30
      %vm1710 = vcmp.le.s32.totalorder %v1221, 30
      %vm1711 = vcmp.le.s32.totalorder %v1222, 30
      %vm1712 = vmand %vm1704, %vm1239
      %vm1713 = vmand %vm1705, %vm1240
      %vm1714 = vmand %vm1706, %vm1241
      %vm1715 = vmand %vm1707, %vm1242
      %vm1716 = vmand %vm1708, %vm1243
      %vm1717 = vmand %vm1709, %vm1244
      %vm1718 = vmand %vm1710, %vm1245
      %vm1719 = vmand %vm1711, %vm1246
      %1729 = vrot.lane.b32.xlu0 %v1695, 97
      %v1730 = vpop.permute.xlu0 %1729
      %1731 = vrot.lane.b32.xlu0 %v1696, 97
      %v1732 = vpop.permute.xlu0 %1731
      %1733 = vrot.lane.b32.xlu0 %v1697, 97
      %v1734 = vpop.permute.xlu0 %1733
      %1735 = vrot.lane.b32.xlu0 %v1698, 97
      %v1736 = vpop.permute.xlu0 %1735
      %1737 = vrot.lane.b32.xlu0 %v1699, 97
      %v1738 = vpop.permute.xlu0 %1737
      %1739 = vrot.lane.b32.xlu0 %v1700, 97
      %v1740 = vpop.permute.xlu0 %1739
      %1741 = vrot.lane.b32.xlu0 %v1701, 97
      %v1742 = vpop.permute.xlu0 %1741
      %1743 = vrot.lane.b32.xlu0 %v1702, 97
      %v1744 = vpop.permute.xlu0 %1743
      %1745 = vrot.lane.b32.xlu0 %v1703, 97
      %v1746 = vpop.permute.xlu0 %1745
      %vm1747 = vcmask 793600
      %v1748 = vsel %vm1747, %v1730, %v1732
      %v1749 = vsel %vm1747, %v1732, %v1734
      %v1750 = vsel %vm1747, %v1734, %v1736
      %v1751 = vsel %vm1747, %v1736, %v1738
      %v1752 = vsel %vm1747, %v1738, %v1740
      %v1753 = vsel %vm1747, %v1740, %v1742
      %v1754 = vsel %vm1747, %v1742, %v1744
      %v1755 = vsel %vm1747, %v1744, %v1746
      %v1764 = vsel %vm1712, %v1748, 0.0
      %v1765 = vsel %vm1713, %v1749, 0.0
      %v1766 = vsel %vm1714, %v1750, 0.0
      %v1767 = vsel %vm1715, %v1751, 0.0
      %v1768 = vsel %vm1716, %v1752, 0.0
      %v1769 = vsel %vm1717, %v1753, 0.0
      %v1770 = vsel %vm1718, %v1754, 0.0
      %v1771 = vsel %vm1719, %v1755, 0.0
      %1772 = vst [vmem:[#allocation4 + $0xc0] sm:$0xf] %v1764
      %1773 = vst [vmem:[#allocation4 + $0xc8] sm:$0xf] %v1765
      %1774 = vst [vmem:[#allocation4 + $0xd0] sm:$0xf] %v1766
      %1775 = vst [vmem:[#allocation4 + $0xd8] sm:$0xf] %v1767
      %1776 = vst [vmem:[#allocation4 + $0xe0] sm:$0xf] %v1768
      %1777 = vst [vmem:[#allocation4 + $0xe8] sm:$0xf] %v1769
      %1778 = vst [vmem:[#allocation4 + $0xf0] sm:$0xf] %v1770
      %1779 = vst [vmem:[#allocation4 + $0xf8] sm:$0xf] %v1771
      %v1780 = vld [vmem:[#allocation3 + $0x8] sm:$0xf]
      %v1781 = vld [vmem:[#allocation3 + $0x10] sm:$0xf]
      %v1782 = vld [vmem:[#allocation3 + $0x18] sm:$0xf]
      %v1783 = vld [vmem:[#allocation3 + $0x20] sm:$0xf]
      %v1784 = vld [vmem:[#allocation3 + $0x28] sm:$0xf]
      %v1785 = vld [vmem:[#allocation3 + $0x30] sm:$0xf]
      %v1786 = vld [vmem:[#allocation3 + $0x38] sm:$0xf]
      %v1787 = vld [vmem:[#allocation3 + $0x40] sm:$0xf]
      %v1788 = vld [vmem:[#allocation3 + $0x48] sm:$0xf]
      %1798 = vrot.lane.b32.xlu0 %v1780, 96
      %v1799 = vpop.permute.xlu0 %1798
      %1800 = vrot.lane.b32.xlu0 %v1781, 96
      %v1801 = vpop.permute.xlu0 %1800
      %1802 = vrot.lane.b32.xlu0 %v1782, 96
      %v1803 = vpop.permute.xlu0 %1802
      %1804 = vrot.lane.b32.xlu0 %v1783, 96
      %v1805 = vpop.permute.xlu0 %1804
      %1806 = vrot.lane.b32.xlu0 %v1784, 96
      %v1807 = vpop.permute.xlu0 %1806
      %1808 = vrot.lane.b32.xlu0 %v1785, 96
      %v1809 = vpop.permute.xlu0 %1808
      %1810 = vrot.lane.b32.xlu0 %v1786, 96
      %v1811 = vpop.permute.xlu0 %1810
      %1812 = vrot.lane.b32.xlu0 %v1787, 96
      %v1813 = vpop.permute.xlu0 %1812
      %1814 = vrot.lane.b32.xlu0 %v1788, 96
      %v1815 = vpop.permute.xlu0 %1814
      %vm1816 = vcmask 785408
      %v1817 = vsel %vm1816, %v1799, %v1801
      %v1818 = vsel %vm1816, %v1801, %v1803
      %v1819 = vsel %vm1816, %v1803, %v1805
      %v1820 = vsel %vm1816, %v1805, %v1807
      %v1821 = vsel %vm1816, %v1807, %v1809
      %v1822 = vsel %vm1816, %v1809, %v1811
      %v1823 = vsel %vm1816, %v1811, %v1813
      %v1824 = vsel %vm1816, %v1813, %v1815
      %v1833 = vsel %vm1704, %v1817, 0.0
      %v1834 = vsel %vm1705, %v1818, 0.0
      %v1835 = vsel %vm1706, %v1819, 0.0
      %v1836 = vsel %vm1707, %v1820, 0.0
      %v1837 = vsel %vm1708, %v1821, 0.0
      %v1838 = vsel %vm1709, %v1822, 0.0
      %v1839 = vsel %vm1710, %v1823, 0.0
      %v1840 = vsel %vm1711, %v1824, 0.0
      %v1849 = vrot.slane %v1833, 4
      %v1850 = vrot.slane %v1834, 4
      %v1851 = vrot.slane %v1835, 4
      %v1852 = vrot.slane %v1836, 4
      %v1853 = vrot.slane %v1837, 4
      %v1854 = vrot.slane %v1838, 4
      %v1855 = vrot.slane %v1839, 4
      %v1856 = vrot.slane %v1840, 4
      %1865 = vst [vmem:[#allocation4 + $0xc0] sm:$0xf0] %v1849
      %1866 = vst [vmem:[#allocation4 + $0xc8] sm:$0xf0] %v1850
      %1867 = vst [vmem:[#allocation4 + $0xd0] sm:$0xf0] %v1851
      %1868 = vst [vmem:[#allocation4 + $0xd8] sm:$0xf0] %v1852
      %1869 = vst [vmem:[#allocation4 + $0xe0] sm:$0xf0] %v1853
      %1870 = vst [vmem:[#allocation4 + $0xe8] sm:$0xf0] %v1854
      %1871 = vst [vmem:[#allocation4 + $0xf0] sm:$0xf0] %v1855
      %1872 = vst [vmem:[#allocation4 + $0xf8] sm:$0xf0] %v1856
      %v1873 = vld [vmem:[#allocation3 + $0x8] sm:$0xf]
      %v1874 = vld [vmem:[#allocation3 + $0x10] sm:$0xf]
      %v1875 = vld [vmem:[#allocation3 + $0x18] sm:$0xf]
      %v1876 = vld [vmem:[#allocation3 + $0x20] sm:$0xf]
      %v1877 = vld [vmem:[#allocation3 + $0x28] sm:$0xf]
      %v1878 = vld [vmem:[#allocation3 + $0x30] sm:$0xf]
      %v1879 = vld [vmem:[#allocation3 + $0x38] sm:$0xf]
      %v1880 = vld [vmem:[#allocation3 + $0x40] sm:$0xf]
      %v1881 = vld [vmem:[#allocation3 + $0x48] sm:$0xf]
      %vm1882 = vmand %vm1704, %vm1417
      %vm1883 = vmand %vm1705, %vm1418
      %vm1884 = vmand %vm1706, %vm1419
      %vm1885 = vmand %vm1707, %vm1420
      %vm1886 = vmand %vm1708, %vm1421
      %vm1887 = vmand %vm1709, %vm1422
      %vm1888 = vmand %vm1710, %vm1423
      %vm1889 = vmand %vm1711, %vm1424
      %1899 = vrot.lane.b32.xlu0 %v1873, 95
      %v1900 = vpop.permute.xlu0 %1899
      %1901 = vrot.lane.b32.xlu0 %v1874, 95
      %v1902 = vpop.permute.xlu0 %1901
      %1903 = vrot.lane.b32.xlu0 %v1875, 95
      %v1904 = vpop.permute.xlu0 %1903
      %1905 = vrot.lane.b32.xlu0 %v1876, 95
      %v1906 = vpop.permute.xlu0 %1905
      %1907 = vrot.lane.b32.xlu0 %v1877, 95
      %v1908 = vpop.permute.xlu0 %1907
      %1909 = vrot.lane.b32.xlu0 %v1878, 95
      %v1910 = vpop.permute.xlu0 %1909
      %1911 = vrot.lane.b32.xlu0 %v1879, 95
      %v1912 = vpop.permute.xlu0 %1911
      %1913 = vrot.lane.b32.xlu0 %v1880, 95
      %v1914 = vpop.permute.xlu0 %1913
      %1915 = vrot.lane.b32.xlu0 %v1881, 95
      %v1916 = vpop.permute.xlu0 %1915
      %vm1917 = vcmask 777216
      %v1918 = vsel %vm1917, %v1900, %v1902
      %v1919 = vsel %vm1917, %v1902, %v1904
      %v1920 = vsel %vm1917, %v1904, %v1906
      %v1921 = vsel %vm1917, %v1906, %v1908
      %v1922 = vsel %vm1917, %v1908, %v1910
      %v1923 = vsel %vm1917, %v1910, %v1912
      %v1924 = vsel %vm1917, %v1912, %v1914
      %v1925 = vsel %vm1917, %v1914, %v1916
      %v1934 = vsel %vm1882, %v1918, 0.0
      %v1935 = vsel %vm1883, %v1919, 0.0
      %v1936 = vsel %vm1884, %v1920, 0.0
      %v1937 = vsel %vm1885, %v1921, 0.0
      %v1938 = vsel %vm1886, %v1922, 0.0
      %v1939 = vsel %vm1887, %v1923, 0.0
      %v1940 = vsel %vm1888, %v1924, 0.0
      %v1941 = vsel %vm1889, %v1925, 0.0
      %1942 = vst [vmem:[#allocation4 + $0x100] sm:$0xf] %v1934
      %1943 = vst [vmem:[#allocation4 + $0x108] sm:$0xf] %v1935
      %1944 = vst [vmem:[#allocation4 + $0x110] sm:$0xf] %v1936
      %1945 = vst [vmem:[#allocation4 + $0x118] sm:$0xf] %v1937
      %1946 = vst [vmem:[#allocation4 + $0x120] sm:$0xf] %v1938
      %1947 = vst [vmem:[#allocation4 + $0x128] sm:$0xf] %v1939
      %1948 = vst [vmem:[#allocation4 + $0x130] sm:$0xf] %v1940
      %1949 = vst [vmem:[#allocation4 + $0x138] sm:$0xf] %v1941
      %v1950 = vld [vmem:[#allocation4] sm:$0xff]
      %v1951 = vld [vmem:[#allocation4 + $0x8] sm:$0xff]
      %v1952 = vld [vmem:[#allocation4 + $0x10] sm:$0xff]
      %v1953 = vld [vmem:[#allocation4 + $0x18] sm:$0xff]
      %v1954 = vld [vmem:[#allocation4 + $0x20] sm:$0xff]
      %v1955 = vld [vmem:[#allocation4 + $0x28] sm:$0xff]
      %v1956 = vld [vmem:[#allocation4 + $0x30] sm:$0xff]
      %v1957 = vld [vmem:[#allocation4 + $0x38] sm:$0xff]
      %v1958 = vld [vmem:[#allocation4 + $0x40] sm:$0xff]
      %v1959 = vld [vmem:[#allocation4 + $0x48] sm:$0xff]
      %v1960 = vld [vmem:[#allocation4 + $0x50] sm:$0xff]
      %v1961 = vld [vmem:[#allocation4 + $0x58] sm:$0xff]
      %v1962 = vld [vmem:[#allocation4 + $0x60] sm:$0xff]
      %v1963 = vld [vmem:[#allocation4 + $0x68] sm:$0xff]
      %v1964 = vld [vmem:[#allocation4 + $0x70] sm:$0xff]
      %v1965 = vld [vmem:[#allocation4 + $0x78] sm:$0xff]
      %v1966 = vld [vmem:[#allocation4 + $0x80] sm:$0xff]
      %v1967 = vld [vmem:[#allocation4 + $0x88] sm:$0xff]
      %v1968 = vld [vmem:[#allocation4 + $0x90] sm:$0xff]
      %v1969 = vld [vmem:[#allocation4 + $0x98] sm:$0xff]
      %v1970 = vld [vmem:[#allocation4 + $0xa0] sm:$0xff]
      %v1971 = vld [vmem:[#allocation4 + $0xa8] sm:$0xff]
      %v1972 = vld [vmem:[#allocation4 + $0xb0] sm:$0xff]
      %v1973 = vld [vmem:[#allocation4 + $0xb8] sm:$0xff]
      %v1974 = vld [vmem:[#allocation4 + $0xc0] sm:$0xff]
      %v1975 = vld [vmem:[#allocation4 + $0xc8] sm:$0xff]
      %v1976 = vld [vmem:[#allocation4 + $0xd0] sm:$0xff]
      %v1977 = vld [vmem:[#allocation4 + $0xd8] sm:$0xff]
      %v1978 = vld [vmem:[#allocation4 + $0xe0] sm:$0xff]
      %v1979 = vld [vmem:[#allocation4 + $0xe8] sm:$0xff]
      %v1980 = vld [vmem:[#allocation4 + $0xf0] sm:$0xff]
      %v1981 = vld [vmem:[#allocation4 + $0xf8] sm:$0xff]
      %v1982 = vld [vmem:[#allocation4 + $0x100] sm:$0xf]
      %v1983 = vld [vmem:[#allocation4 + $0x108] sm:$0xf]
      %v1984 = vld [vmem:[#allocation4 + $0x110] sm:$0xf]
      %v1985 = vld [vmem:[#allocation4 + $0x118] sm:$0xf]
      %v1986 = vld [vmem:[#allocation4 + $0x120] sm:$0xf]
      %v1987 = vld [vmem:[#allocation4 + $0x128] sm:$0xf]
      %v1988 = vld [vmem:[#allocation4 + $0x130] sm:$0xf]
      %v1989 = vld [vmem:[#allocation4 + $0x138] sm:$0xf]
      %vm1990 = vcmask 293888
      %v1992 = vsel %vm1990, %v1164, 0
      %v1995 = vsel %vm1990, %v1165, 0
      %v1998 = vsel %vm1990, %v1166, 0
      %v2001 = vsel %vm1990, %v1167, 0
      %v2004 = vsel %vm1990, %v1168, 0
      %v2007 = vsel %vm1990, %v1169, 0
      %v2010 = vsel %vm1990, %v1170, 0
      %v2013 = vsel %vm1990, %v1171, 0
      %vm2015 = vcmask 1043456
      %v2017 = vsel %vm2015, %v1982, 0
      %v2020 = vsel %vm2015, %v1983, 0
      %v2023 = vsel %vm2015, %v1984, 0
      %v2026 = vsel %vm2015, %v1985, 0
      %v2029 = vsel %vm2015, %v1986, 0
      %v2032 = vsel %vm2015, %v1987, 0
      %v2035 = vsel %vm2015, %v1988, 0
      %v2038 = vsel %vm2015, %v1989, 0
      %2040 = vmatprep.subr.mxu0 0.0
      %2041 = vmatpush1.msra.mxu0 0.0
      %2042 = vmatprep.subr.mxu0 0.0
      %2043 = vmatpush1.msra.mxu0 0.0
      %2044 = vmatprep.subr.mxu0 0.0
      %2045 = vmatpush1.msra.mxu0 0.0
      %2046 = vmatprep.subr.mxu0 0.0
      %2047 = vmatpush1.msra.mxu0 0.0
      %2048 = vmatprep.subr.mxu0 0.0
      %2049 = vmatpush1.msra.mxu0 0.0
      %2050 = vmatprep.subr.mxu0 0.0
      %2051 = vmatpush1.msra.mxu0 0.0
      %2052 = vmatprep.subr.mxu0 0.0
      %2053 = vmatpush1.msra.mxu0 0.0
      %2054 = vmatprep.subr.mxu0 0.0
      %2055 = vmatpush1.msra.mxu0 0.0
      %2056 = vmatprep.subr.mxu0 0.0
      %2057 = vmatpush1.msra.mxu0 0.0
      %2058 = vmatprep.subr.mxu0 0.0
      %2059 = vmatpush1.msra.mxu0 0.0
      %2060 = vmatprep.subr.mxu0 0.0
      %2061 = vmatpush1.msra.mxu0 0.0
      %2062 = vmatprep.subr.mxu0 %v2020
      %2063 = vmatpush1.msra.mxu0 %v2017
      %2064 = vmatprep.subr.mxu0 %v1975
      %2065 = vmatpush1.msra.mxu0 %v1974
      %2066 = vmatprep.subr.mxu0 %v1967
      %2067 = vmatpush1.msra.mxu0 %v1966
      %2068 = vmatprep.subr.mxu0 %v1959
      %2069 = vmatpush1.msra.mxu0 %v1958
      %2070 = vmatprep.subr.mxu0 %v1951
      %2071 = vmatpush1.msra.mxu0 %v1950
      %2072 = vmatprep.subr.mxu0 0.0
      %2073 = vmatpush2.msra.mxu0 0.0
      %2074 = vmatprep.subr.mxu0 0.0
      %2075 = vmatpush2.msra.mxu0 0.0
      %2076 = vmatprep.subr.mxu0 0.0
      %2077 = vmatpush2.msra.mxu0 0.0
      %2078 = vmatprep.subr.mxu0 0.0
      %2079 = vmatpush2.msra.mxu0 0.0
      %2080 = vmatprep.subr.mxu0 0.0
      %2081 = vmatpush2.msra.mxu0 0.0
      %2082 = vmatprep.subr.mxu0 0.0
      %2083 = vmatpush2.msra.mxu0 0.0
      %2084 = vmatprep.subr.mxu0 0.0
      %2085 = vmatpush2.msra.mxu0 0.0
      %2086 = vmatprep.subr.mxu0 0.0
      %2087 = vmatpush2.msra.mxu0 0.0
      %2088 = vmatprep.subr.mxu0 0.0
      %2089 = vmatpush2.msra.mxu0 0.0
      %2090 = vmatprep.subr.mxu0 0.0
      %2091 = vmatpush2.msra.mxu0 0.0
      %2092 = vmatprep.subr.mxu0 0.0
      %2093 = vmatpush2.msra.mxu0 0.0
      %2094 = vmatprep.subr.mxu0 0.0
      %2095 = vmatpush2.msra.mxu0 0.0
      %2096 = vmatprep.subr.mxu0 0.0
      %2097 = vmatpush2.msra.mxu0 0.0
      %2098 = vmatprep.subr.mxu0 0.0
      %2099 = vmatpush2.msra.mxu0 0.0
      %2100 = vmatprep.subr.mxu0 0.0
      %2101 = vmatpush2.msra.mxu0 0.0
      %2102 = vmatprep.subr.mxu0 0.0
      %2103 = vmatpush2.msra.mxu0 0.0
      %2104 = vmatprep.mubr.f32.mxu0 0.0
      %2105 = vmatmul.mubr.f32.gmra.mxu0 %v1992
      %v2106 = vpop.f32.mrf.mxu0
      %v2107 = vadd.f32 0.0, %v2106
      %v2108 = vpop.f32.mrf.mxu0
      %v2109 = vadd.f32 0.0, %v2108
      %2110 = vmatprep.mubr.f32.mxu0 0.0
      %2111 = vmatmul.mubr.f32.gmra.mxu0 %v1995
      %v2112 = vpop.f32.mrf.mxu0
      %v2113 = vadd.f32 0.0, %v2112
      %v2114 = vpop.f32.mrf.mxu0
      %v2115 = vadd.f32 0.0, %v2114
      %2116 = vmatprep.mubr.f32.mxu0 0.0
      %2117 = vmatmul.mubr.f32.gmra.mxu0 %v1998
      %v2118 = vpop.f32.mrf.mxu0
      %v2119 = vadd.f32 0.0, %v2118
      %v2120 = vpop.f32.mrf.mxu0
      %v2121 = vadd.f32 0.0, %v2120
      %2122 = vmatprep.mubr.f32.mxu0 0.0
      %2123 = vmatmul.mubr.f32.gmra.mxu0 %v2001
      %v2124 = vpop.f32.mrf.mxu0
      %v2125 = vadd.f32 0.0, %v2124
      %v2126 = vpop.f32.mrf.mxu0
      %v2127 = vadd.f32 0.0, %v2126
      %2128 = vmatprep.mubr.f32.mxu0 0.0
      %2129 = vmatmul.mubr.f32.gmra.mxu0 %v2004
      %v2130 = vpop.f32.mrf.mxu0
      %v2131 = vadd.f32 0.0, %v2130
      %v2132 = vpop.f32.mrf.mxu0
      %v2133 = vadd.f32 0.0, %v2132
      %2134 = vmatprep.mubr.f32.mxu0 0.0
      %2135 = vmatmul.mubr.f32.gmra.mxu0 %v2007
      %v2136 = vpop.f32.mrf.mxu0
      %v2137 = vadd.f32 0.0, %v2136
      %v2138 = vpop.f32.mrf.mxu0
      %v2139 = vadd.f32 0.0, %v2138
      %2140 = vmatprep.mubr.f32.mxu0 0.0
      %2141 = vmatmul.mubr.f32.gmra.mxu0 %v2010
      %v2142 = vpop.f32.mrf.mxu0
      %v2143 = vadd.f32 0.0, %v2142
      %v2144 = vpop.f32.mrf.mxu0
      %v2145 = vadd.f32 0.0, %v2144
      %2146 = vmatprep.mubr.f32.mxu0 0.0
      %2147 = vmatmul.mubr.f32.gmra.mxu0 %v2013
      %v2148 = vpop.f32.mrf.mxu0
      %v2149 = vadd.f32 0.0, %v2148
      %v2150 = vpop.f32.mrf.mxu0
      %v2151 = vadd.f32 0.0, %v2150
      %2152 = vdwg.mxu0
      %2153 = vmatprep.subr.mxu0 0.0
      %2154 = vmatpush1.msra.mxu0 0.0
      %2155 = vmatprep.subr.mxu0 0.0
      %2156 = vmatpush1.msra.mxu0 0.0
      %2157 = vmatprep.subr.mxu0 0.0
      %2158 = vmatpush1.msra.mxu0 0.0
      %2159 = vmatprep.subr.mxu0 0.0
      %2160 = vmatpush1.msra.mxu0 0.0
      %2161 = vmatprep.subr.mxu0 0.0
      %2162 = vmatpush1.msra.mxu0 0.0
      %2163 = vmatprep.subr.mxu0 0.0
      %2164 = vmatpush1.msra.mxu0 0.0
      %2165 = vmatprep.subr.mxu0 0.0
      %2166 = vmatpush1.msra.mxu0 0.0
      %2167 = vmatprep.subr.mxu0 0.0
      %2168 = vmatpush1.msra.mxu0 0.0
      %2169 = vmatprep.subr.mxu0 0.0
      %2170 = vmatpush1.msra.mxu0 0.0
      %2171 = vmatprep.subr.mxu0 0.0
      %2172 = vmatpush1.msra.mxu0 0.0
      %2173 = vmatprep.subr.mxu0 0.0
      %2174 = vmatpush1.msra.mxu0 0.0
      %2175 = vmatprep.subr.mxu0 %v2026
      %2176 = vmatpush1.msra.mxu0 %v2023
      %2177 = vmatprep.subr.mxu0 %v1977
      %2178 = vmatpush1.msra.mxu0 %v1976
      %2179 = vmatprep.subr.mxu0 %v1969
      %2180 = vmatpush1.msra.mxu0 %v1968
      %2181 = vmatprep.subr.mxu0 %v1961
      %2182 = vmatpush1.msra.mxu0 %v1960
      %2183 = vmatprep.subr.mxu0 %v1953
      %2184 = vmatpush1.msra.mxu0 %v1952
      %2185 = vmatprep.subr.mxu0 0.0
      %2186 = vmatpush2.msra.mxu0 0.0
      %2187 = vmatprep.subr.mxu0 0.0
      %2188 = vmatpush2.msra.mxu0 0.0
      %2189 = vmatprep.subr.mxu0 0.0
      %2190 = vmatpush2.msra.mxu0 0.0
      %2191 = vmatprep.subr.mxu0 0.0
      %2192 = vmatpush2.msra.mxu0 0.0
      %2193 = vmatprep.subr.mxu0 0.0
      %2194 = vmatpush2.msra.mxu0 0.0
      %2195 = vmatprep.subr.mxu0 0.0
      %2196 = vmatpush2.msra.mxu0 0.0
      %2197 = vmatprep.subr.mxu0 0.0
      %2198 = vmatpush2.msra.mxu0 0.0
      %2199 = vmatprep.subr.mxu0 0.0
      %2200 = vmatpush2.msra.mxu0 0.0
      %2201 = vmatprep.subr.mxu0 0.0
      %2202 = vmatpush2.msra.mxu0 0.0
      %2203 = vmatprep.subr.mxu0 0.0
      %2204 = vmatpush2.msra.mxu0 0.0
      %2205 = vmatprep.subr.mxu0 0.0
      %2206 = vmatpush2.msra.mxu0 0.0
      %2207 = vmatprep.subr.mxu0 0.0
      %2208 = vmatpush2.msra.mxu0 0.0
      %2209 = vmatprep.subr.mxu0 0.0
      %2210 = vmatpush2.msra.mxu0 0.0
      %2211 = vmatprep.subr.mxu0 0.0
      %2212 = vmatpush2.msra.mxu0 0.0
      %2213 = vmatprep.subr.mxu0 0.0
      %2214 = vmatpush2.msra.mxu0 0.0
      %2215 = vmatprep.subr.mxu0 0.0
      %2216 = vmatpush2.msra.mxu0 0.0
      %2217 = vmatprep.mubr.f32.mxu0 0.0
      %2218 = vmatmul.mubr.f32.gmra.mxu0 %v1992
      %v2219 = vpop.f32.mrf.mxu0
      %v2220 = vadd.f32 0.0, %v2219
      %v2221 = vpop.f32.mrf.mxu0
      %v2222 = vadd.f32 0.0, %v2221
      %2223 = vmatprep.mubr.f32.mxu0 0.0
      %2224 = vmatmul.mubr.f32.gmra.mxu0 %v1995
      %v2225 = vpop.f32.mrf.mxu0
      %v2226 = vadd.f32 0.0, %v2225
      %v2227 = vpop.f32.mrf.mxu0
      %v2228 = vadd.f32 0.0, %v2227
      %2229 = vmatprep.mubr.f32.mxu0 0.0
      %2230 = vmatmul.mubr.f32.gmra.mxu0 %v1998
      %v2231 = vpop.f32.mrf.mxu0
      %v2232 = vadd.f32 0.0, %v2231
      %v2233 = vpop.f32.mrf.mxu0
      %v2234 = vadd.f32 0.0, %v2233
      %2235 = vmatprep.mubr.f32.mxu0 0.0
      %2236 = vmatmul.mubr.f32.gmra.mxu0 %v2001
      %v2237 = vpop.f32.mrf.mxu0
      %v2238 = vadd.f32 0.0, %v2237
      %v2239 = vpop.f32.mrf.mxu0
      %v2240 = vadd.f32 0.0, %v2239
      %2241 = vmatprep.mubr.f32.mxu0 0.0
      %2242 = vmatmul.mubr.f32.gmra.mxu0 %v2004
      %v2243 = vpop.f32.mrf.mxu0
      %v2244 = vadd.f32 0.0, %v2243
      %v2245 = vpop.f32.mrf.mxu0
      %v2246 = vadd.f32 0.0, %v2245
      %2247 = vmatprep.mubr.f32.mxu0 0.0
      %2248 = vmatmul.mubr.f32.gmra.mxu0 %v2007
      %v2249 = vpop.f32.mrf.mxu0
      %v2250 = vadd.f32 0.0, %v2249
      %v2251 = vpop.f32.mrf.mxu0
      %v2252 = vadd.f32 0.0, %v2251
      %2253 = vmatprep.mubr.f32.mxu0 0.0
      %2254 = vmatmul.mubr.f32.gmra.mxu0 %v2010
      %v2255 = vpop.f32.mrf.mxu0
      %v2256 = vadd.f32 0.0, %v2255
      %v2257 = vpop.f32.mrf.mxu0
      %v2258 = vadd.f32 0.0, %v2257
      %2259 = vmatprep.mubr.f32.mxu0 0.0
      %2260 = vmatmul.mubr.f32.gmra.mxu0 %v2013
      %v2261 = vpop.f32.mrf.mxu0
      %v2262 = vadd.f32 0.0, %v2261
      %v2263 = vpop.f32.mrf.mxu0
      %v2264 = vadd.f32 0.0, %v2263
      %2265 = vdwg.mxu0
      %2266 = vmatprep.subr.mxu0 0.0
      %2267 = vmatpush1.msra.mxu0 0.0
      %2268 = vmatprep.subr.mxu0 0.0
      %2269 = vmatpush1.msra.mxu0 0.0
      %2270 = vmatprep.subr.mxu0 0.0
      %2271 = vmatpush1.msra.mxu0 0.0
      %2272 = vmatprep.subr.mxu0 0.0
      %2273 = vmatpush1.msra.mxu0 0.0
      %2274 = vmatprep.subr.mxu0 0.0
      %2275 = vmatpush1.msra.mxu0 0.0
      %2276 = vmatprep.subr.mxu0 0.0
      %2277 = vmatpush1.msra.mxu0 0.0
      %2278 = vmatprep.subr.mxu0 0.0
      %2279 = vmatpush1.msra.mxu0 0.0
      %2280 = vmatprep.subr.mxu0 0.0
      %2281 = vmatpush1.msra.mxu0 0.0
      %2282 = vmatprep.subr.mxu0 0.0
      %2283 = vmatpush1.msra.mxu0 0.0
      %2284 = vmatprep.subr.mxu0 0.0
      %2285 = vmatpush1.msra.mxu0 0.0
      %2286 = vmatprep.subr.mxu0 0.0
      %2287 = vmatpush1.msra.mxu0 0.0
      %2288 = vmatprep.subr.mxu0 %v2032
      %2289 = vmatpush1.msra.mxu0 %v2029
      %2290 = vmatprep.subr.mxu0 %v1979
      %2291 = vmatpush1.msra.mxu0 %v1978
      %2292 = vmatprep.subr.mxu0 %v1971
      %2293 = vmatpush1.msra.mxu0 %v1970
      %2294 = vmatprep.subr.mxu0 %v1963
      %2295 = vmatpush1.msra.mxu0 %v1962
      %2296 = vmatprep.subr.mxu0 %v1955
      %2297 = vmatpush1.msra.mxu0 %v1954
      %2298 = vmatprep.subr.mxu0 0.0
      %2299 = vmatpush2.msra.mxu0 0.0
      %2300 = vmatprep.subr.mxu0 0.0
      %2301 = vmatpush2.msra.mxu0 0.0
      %2302 = vmatprep.subr.mxu0 0.0
      %2303 = vmatpush2.msra.mxu0 0.0
      %2304 = vmatprep.subr.mxu0 0.0
      %2305 = vmatpush2.msra.mxu0 0.0
      %2306 = vmatprep.subr.mxu0 0.0
      %2307 = vmatpush2.msra.mxu0 0.0
      %2308 = vmatprep.subr.mxu0 0.0
      %2309 = vmatpush2.msra.mxu0 0.0
      %2310 = vmatprep.subr.mxu0 0.0
      %2311 = vmatpush2.msra.mxu0 0.0
      %2312 = vmatprep.subr.mxu0 0.0
      %2313 = vmatpush2.msra.mxu0 0.0
      %2314 = vmatprep.subr.mxu0 0.0
      %2315 = vmatpush2.msra.mxu0 0.0
      %2316 = vmatprep.subr.mxu0 0.0
      %2317 = vmatpush2.msra.mxu0 0.0
      %2318 = vmatprep.subr.mxu0 0.0
      %2319 = vmatpush2.msra.mxu0 0.0
      %2320 = vmatprep.subr.mxu0 0.0
      %2321 = vmatpush2.msra.mxu0 0.0
      %2322 = vmatprep.subr.mxu0 0.0
      %2323 = vmatpush2.msra.mxu0 0.0
      %2324 = vmatprep.subr.mxu0 0.0
      %2325 = vmatpush2.msra.mxu0 0.0
      %2326 = vmatprep.subr.mxu0 0.0
      %2327 = vmatpush2.msra.mxu0 0.0
      %2328 = vmatprep.subr.mxu0 0.0
      %2329 = vmatpush2.msra.mxu0 0.0
      %2330 = vmatprep.mubr.f32.mxu0 0.0
      %2331 = vmatmul.mubr.f32.gmra.mxu0 %v1992
      %v2332 = vpop.f32.mrf.mxu0
      %v2333 = vadd.f32 0.0, %v2332
      %v2334 = vpop.f32.mrf.mxu0
      %v2335 = vadd.f32 0.0, %v2334
      %2336 = vmatprep.mubr.f32.mxu0 0.0
      %2337 = vmatmul.mubr.f32.gmra.mxu0 %v1995
      %v2338 = vpop.f32.mrf.mxu0
      %v2339 = vadd.f32 0.0, %v2338
      %v2340 = vpop.f32.mrf.mxu0
      %v2341 = vadd.f32 0.0, %v2340
      %2342 = vmatprep.mubr.f32.mxu0 0.0
      %2343 = vmatmul.mubr.f32.gmra.mxu0 %v1998
      %v2344 = vpop.f32.mrf.mxu0
      %v2345 = vadd.f32 0.0, %v2344
      %v2346 = vpop.f32.mrf.mxu0
      %v2347 = vadd.f32 0.0, %v2346
      %2348 = vmatprep.mubr.f32.mxu0 0.0
      %2349 = vmatmul.mubr.f32.gmra.mxu0 %v2001
      %v2350 = vpop.f32.mrf.mxu0
      %v2351 = vadd.f32 0.0, %v2350
      %v2352 = vpop.f32.mrf.mxu0
      %v2353 = vadd.f32 0.0, %v2352
      %2354 = vmatprep.mubr.f32.mxu0 0.0
      %2355 = vmatmul.mubr.f32.gmra.mxu0 %v2004
      %v2356 = vpop.f32.mrf.mxu0
      %v2357 = vadd.f32 0.0, %v2356
      %v2358 = vpop.f32.mrf.mxu0
      %v2359 = vadd.f32 0.0, %v2358
      %2360 = vmatprep.mubr.f32.mxu0 0.0
      %2361 = vmatmul.mubr.f32.gmra.mxu0 %v2007
      %v2362 = vpop.f32.mrf.mxu0
      %v2363 = vadd.f32 0.0, %v2362
      %v2364 = vpop.f32.mrf.mxu0
      %v2365 = vadd.f32 0.0, %v2364
      %2366 = vmatprep.mubr.f32.mxu0 0.0
      %2367 = vmatmul.mubr.f32.gmra.mxu0 %v2010
      %v2368 = vpop.f32.mrf.mxu0
      %v2369 = vadd.f32 0.0, %v2368
      %v2370 = vpop.f32.mrf.mxu0
      %v2371 = vadd.f32 0.0, %v2370
      %2372 = vmatprep.mubr.f32.mxu0 0.0
      %2373 = vmatmul.mubr.f32.gmra.mxu0 %v2013
      %v2374 = vpop.f32.mrf.mxu0
      %v2375 = vadd.f32 0.0, %v2374
      %v2376 = vpop.f32.mrf.mxu0
      %v2377 = vadd.f32 0.0, %v2376
      %2378 = vdwg.mxu0
      %2379 = vmatprep.subr.mxu0 0.0
      %2380 = vmatpush1.msra.mxu0 0.0
      %2381 = vmatprep.subr.mxu0 0.0
      %2382 = vmatpush1.msra.mxu0 0.0
      %2383 = vmatprep.subr.mxu0 0.0
      %2384 = vmatpush1.msra.mxu0 0.0
      %2385 = vmatprep.subr.mxu0 0.0
      %2386 = vmatpush1.msra.mxu0 0.0
      %2387 = vmatprep.subr.mxu0 0.0
      %2388 = vmatpush1.msra.mxu0 0.0
      %2389 = vmatprep.subr.mxu0 0.0
      %2390 = vmatpush1.msra.mxu0 0.0
      %2391 = vmatprep.subr.mxu0 0.0
      %2392 = vmatpush1.msra.mxu0 0.0
      %2393 = vmatprep.subr.mxu0 0.0
      %2394 = vmatpush1.msra.mxu0 0.0
      %2395 = vmatprep.subr.mxu0 0.0
      %2396 = vmatpush1.msra.mxu0 0.0
      %2397 = vmatprep.subr.mxu0 0.0
      %2398 = vmatpush1.msra.mxu0 0.0
      %2399 = vmatprep.subr.mxu0 0.0
      %2400 = vmatpush1.msra.mxu0 0.0
      %2401 = vmatprep.subr.mxu0 %v2038
      %2402 = vmatpush1.msra.mxu0 %v2035
      %2403 = vmatprep.subr.mxu0 %v1981
      %2404 = vmatpush1.msra.mxu0 %v1980
      %2405 = vmatprep.subr.mxu0 %v1973
      %2406 = vmatpush1.msra.mxu0 %v1972
      %2407 = vmatprep.subr.mxu0 %v1965
      %2408 = vmatpush1.msra.mxu0 %v1964
      %2409 = vmatprep.subr.mxu0 %v1957
      %2410 = vmatpush1.msra.mxu0 %v1956
      %2411 = vmatprep.subr.mxu0 0.0
      %2412 = vmatpush2.msra.mxu0 0.0
      %2413 = vmatprep.subr.mxu0 0.0
      %2414 = vmatpush2.msra.mxu0 0.0
      %2415 = vmatprep.subr.mxu0 0.0
      %2416 = vmatpush2.msra.mxu0 0.0
      %2417 = vmatprep.subr.mxu0 0.0
      %2418 = vmatpush2.msra.mxu0 0.0
      %2419 = vmatprep.subr.mxu0 0.0
      %2420 = vmatpush2.msra.mxu0 0.0
      %2421 = vmatprep.subr.mxu0 0.0
      %2422 = vmatpush2.msra.mxu0 0.0
      %2423 = vmatprep.subr.mxu0 0.0
      %2424 = vmatpush2.msra.mxu0 0.0
      %2425 = vmatprep.subr.mxu0 0.0
      %2426 = vmatpush2.msra.mxu0 0.0
      %2427 = vmatprep.subr.mxu0 0.0
      %2428 = vmatpush2.msra.mxu0 0.0
      %2429 = vmatprep.subr.mxu0 0.0
      %2430 = vmatpush2.msra.mxu0 0.0
      %2431 = vmatprep.subr.mxu0 0.0
      %2432 = vmatpush2.msra.mxu0 0.0
      %2433 = vmatprep.subr.mxu0 0.0
      %2434 = vmatpush2.msra.mxu0 0.0
      %2435 = vmatprep.subr.mxu0 0.0
      %2436 = vmatpush2.msra.mxu0 0.0
      %2437 = vmatprep.subr.mxu0 0.0
      %2438 = vmatpush2.msra.mxu0 0.0
      %2439 = vmatprep.subr.mxu0 0.0
      %2440 = vmatpush2.msra.mxu0 0.0
      %2441 = vmatprep.subr.mxu0 0.0
      %2442 = vmatpush2.msra.mxu0 0.0
      %2443 = vmatprep.mubr.f32.mxu0 0.0
      %2444 = vmatmul.mubr.f32.gmra.mxu0 %v1992
      %v2445 = vpop.f32.mrf.mxu0
      %v2446 = vadd.f32 0.0, %v2445
      %v2447 = vpop.f32.mrf.mxu0
      %v2448 = vadd.f32 0.0, %v2447
      %2449 = vmatprep.mubr.f32.mxu0 0.0
      %2450 = vmatmul.mubr.f32.gmra.mxu0 %v1995
      %v2451 = vpop.f32.mrf.mxu0
      %v2452 = vadd.f32 0.0, %v2451
      %v2453 = vpop.f32.mrf.mxu0
      %v2454 = vadd.f32 0.0, %v2453
      %2455 = vmatprep.mubr.f32.mxu0 0.0
      %2456 = vmatmul.mubr.f32.gmra.mxu0 %v1998
      %v2457 = vpop.f32.mrf.mxu0
      %v2458 = vadd.f32 0.0, %v2457
      %v2459 = vpop.f32.mrf.mxu0
      %v2460 = vadd.f32 0.0, %v2459
      %2461 = vmatprep.mubr.f32.mxu0 0.0
      %2462 = vmatmul.mubr.f32.gmra.mxu0 %v2001
      %v2463 = vpop.f32.mrf.mxu0
      %v2464 = vadd.f32 0.0, %v2463
      %v2465 = vpop.f32.mrf.mxu0
      %v2466 = vadd.f32 0.0, %v2465
      %2467 = vmatprep.mubr.f32.mxu0 0.0
      %2468 = vmatmul.mubr.f32.gmra.mxu0 %v2004
      %v2469 = vpop.f32.mrf.mxu0
      %v2470 = vadd.f32 0.0, %v2469
      %v2471 = vpop.f32.mrf.mxu0
      %v2472 = vadd.f32 0.0, %v2471
      %2473 = vmatprep.mubr.f32.mxu0 0.0
      %2474 = vmatmul.mubr.f32.gmra.mxu0 %v2007
      %v2475 = vpop.f32.mrf.mxu0
      %v2476 = vadd.f32 0.0, %v2475
      %v2477 = vpop.f32.mrf.mxu0
      %v2478 = vadd.f32 0.0, %v2477
      %2479 = vmatprep.mubr.f32.mxu0 0.0
      %2480 = vmatmul.mubr.f32.gmra.mxu0 %v2010
      %v2481 = vpop.f32.mrf.mxu0
      %v2482 = vadd.f32 0.0, %v2481
      %v2483 = vpop.f32.mrf.mxu0
      %v2484 = vadd.f32 0.0, %v2483
      %2485 = vmatprep.mubr.f32.mxu0 0.0
      %2486 = vmatmul.mubr.f32.gmra.mxu0 %v2013
      %v2487 = vpop.f32.mrf.mxu0
      %v2488 = vadd.f32 0.0, %v2487
      %v2489 = vpop.f32.mrf.mxu0
      %v2490 = vadd.f32 0.0, %v2489
      %2491 = vdwg.mxu0
      %v2492 = vmax.f32 %v2107, 0.0
      %v2493 = vmax.f32 %v2109, 0.0
      %v2494 = vmax.f32 %v2220, 0.0
      %v2495 = vmax.f32 %v2222, 0.0
      %v2496 = vmax.f32 %v2333, 0.0
      %v2497 = vmax.f32 %v2335, 0.0
      %v2498 = vmax.f32 %v2446, 0.0
      %v2499 = vmax.f32 %v2448, 0.0
      %v2500 = vmax.f32 %v2113, 0.0
      %v2501 = vmax.f32 %v2115, 0.0
      %v2502 = vmax.f32 %v2226, 0.0
      %v2503 = vmax.f32 %v2228, 0.0
      %v2504 = vmax.f32 %v2339, 0.0
      %v2505 = vmax.f32 %v2341, 0.0
      %v2506 = vmax.f32 %v2452, 0.0
      %v2507 = vmax.f32 %v2454, 0.0
      %v2508 = vmax.f32 %v2119, 0.0
      %v2509 = vmax.f32 %v2121, 0.0
      %v2510 = vmax.f32 %v2232, 0.0
      %v2511 = vmax.f32 %v2234, 0.0
      %v2512 = vmax.f32 %v2345, 0.0
      %v2513 = vmax.f32 %v2347, 0.0
      %v2514 = vmax.f32 %v2458, 0.0
      %v2515 = vmax.f32 %v2460, 0.0
      %v2516 = vmax.f32 %v2125, 0.0
      %v2517 = vmax.f32 %v2127, 0.0
      %v2518 = vmax.f32 %v2238, 0.0
      %v2519 = vmax.f32 %v2240, 0.0
      %v2520 = vmax.f32 %v2351, 0.0
      %v2521 = vmax.f32 %v2353, 0.0
      %v2522 = vmax.f32 %v2464, 0.0
      %v2523 = vmax.f32 %v2466, 0.0
      %v2524 = vmax.f32 %v2131, 0.0
      %v2525 = vmax.f32 %v2133, 0.0
      %v2526 = vmax.f32 %v2244, 0.0
      %v2527 = vmax.f32 %v2246, 0.0
      %v2528 = vmax.f32 %v2357, 0.0
      %v2529 = vmax.f32 %v2359, 0.0
      %v2530 = vmax.f32 %v2470, 0.0
      %v2531 = vmax.f32 %v2472, 0.0
      %v2532 = vmax.f32 %v2137, 0.0
      %v2533 = vmax.f32 %v2139, 0.0
      %v2534 = vmax.f32 %v2250, 0.0
      %v2535 = vmax.f32 %v2252, 0.0
      %v2536 = vmax.f32 %v2363, 0.0
      %v2537 = vmax.f32 %v2365, 0.0
      %v2538 = vmax.f32 %v2476, 0.0
      %v2539 = vmax.f32 %v2478, 0.0
      %v2540 = vmax.f32 %v2143, 0.0
      %v2541 = vmax.f32 %v2145, 0.0
      %v2542 = vmax.f32 %v2256, 0.0
      %v2543 = vmax.f32 %v2258, 0.0
      %v2544 = vmax.f32 %v2369, 0.0
      %v2545 = vmax.f32 %v2371, 0.0
      %v2546 = vmax.f32 %v2482, 0.0
      %v2547 = vmax.f32 %v2484, 0.0
      %v2548 = vmax.f32 %v2149, 0.0
      %v2549 = vmax.f32 %v2151, 0.0
      %v2550 = vmax.f32 %v2262, 0.0
      %v2551 = vmax.f32 %v2264, 0.0
      %v2552 = vmax.f32 %v2375, 0.0
      %v2553 = vmax.f32 %v2377, 0.0
      %v2554 = vmax.f32 %v2488, 0.0
      %v2555 = vmax.f32 %v2490, 0.0
      %vm2556 = vcmask 523264
      %v2558 = vsel %vm2556, %v1172, 0
      %v2561 = vsel %vm2556, %v1173, 0
      %v2564 = vsel %vm2556, %v1174, 0
      %v2567 = vsel %vm2556, %v1175, 0
      %v2570 = vsel %vm2556, %v1176, 0
      %2572 = vmatprep.subr.mxu0 0.0
      %2573 = vmatpush1.msra.mxu0 0.0
      %2574 = vmatprep.subr.mxu0 0.0
      %2575 = vmatpush1.msra.mxu0 0.0
      %2576 = vmatprep.subr.mxu0 0.0
      %2577 = vmatpush1.msra.mxu0 0.0
      %2578 = vmatprep.subr.mxu0 0.0
      %2579 = vmatpush1.msra.mxu0 0.0
      %2580 = vmatprep.subr.mxu0 0.0
      %2581 = vmatpush1.msra.mxu0 0.0
      %2582 = vmatprep.subr.mxu0 0.0
      %2583 = vmatpush1.msra.mxu0 0.0
      %2584 = vmatprep.subr.mxu0 0.0
      %2585 = vmatpush1.msra.mxu0 0.0
      %2586 = vmatprep.subr.mxu0 0.0
      %2587 = vmatpush1.msra.mxu0 0.0
      %2588 = vmatprep.subr.mxu0 %v2549
      %2589 = vmatpush1.msra.mxu0 %v2548
      %2590 = vmatprep.subr.mxu0 %v2541
      %2591 = vmatpush1.msra.mxu0 %v2540
      %2592 = vmatprep.subr.mxu0 %v2533
      %2593 = vmatpush1.msra.mxu0 %v2532
      %2594 = vmatprep.subr.mxu0 %v2525
      %2595 = vmatpush1.msra.mxu0 %v2524
      %2596 = vmatprep.subr.mxu0 %v2517
      %2597 = vmatpush1.msra.mxu0 %v2516
      %2598 = vmatprep.subr.mxu0 %v2509
      %2599 = vmatpush1.msra.mxu0 %v2508
      %2600 = vmatprep.subr.mxu0 %v2501
      %2601 = vmatpush1.msra.mxu0 %v2500
      %2602 = vmatprep.subr.mxu0 %v2493
      %2603 = vmatpush1.msra.mxu0 %v2492
      %2604 = vmatprep.subr.mxu0 0.0
      %2605 = vmatpush2.msra.mxu0 0.0
      %2606 = vmatprep.subr.mxu0 0.0
      %2607 = vmatpush2.msra.mxu0 0.0
      %2608 = vmatprep.subr.mxu0 0.0
      %2609 = vmatpush2.msra.mxu0 0.0
      %2610 = vmatprep.subr.mxu0 0.0
      %2611 = vmatpush2.msra.mxu0 0.0
      %2612 = vmatprep.subr.mxu0 0.0
      %2613 = vmatpush2.msra.mxu0 0.0
      %2614 = vmatprep.subr.mxu0 0.0
      %2615 = vmatpush2.msra.mxu0 0.0
      %2616 = vmatprep.subr.mxu0 0.0
      %2617 = vmatpush2.msra.mxu0 0.0
      %2618 = vmatprep.subr.mxu0 0.0
      %2619 = vmatpush2.msra.mxu0 0.0
      %2620 = vmatprep.subr.mxu0 0.0
      %2621 = vmatpush2.msra.mxu0 0.0
      %2622 = vmatprep.subr.mxu0 0.0
      %2623 = vmatpush2.msra.mxu0 0.0
      %2624 = vmatprep.subr.mxu0 0.0
      %2625 = vmatpush2.msra.mxu0 0.0
      %2626 = vmatprep.subr.mxu0 0.0
      %2627 = vmatpush2.msra.mxu0 0.0
      %2628 = vmatprep.subr.mxu0 0.0
      %2629 = vmatpush2.msra.mxu0 0.0
      %2630 = vmatprep.subr.mxu0 0.0
      %2631 = vmatpush2.msra.mxu0 0.0
      %2632 = vmatprep.subr.mxu0 0.0
      %2633 = vmatpush2.msra.mxu0 0.0
      %2634 = vmatprep.subr.mxu0 0.0
      %2635 = vmatpush2.msra.mxu0 0.0
      %2636 = vmatprep.mubr.f32.mxu0 0.0
      %2637 = vmatmul.mubr.f32.gmra.mxu0 %v2558
      %v2638 = vpop.f32.mrf.mxu0
      %v2639 = vadd.f32 0.0, %v2638
      %v2640 = vpop.f32.mrf.mxu0
      %v2641 = vadd.f32 0.0, %v2640
      %2642 = vmatprep.mubr.f32.mxu0 0.0
      %2643 = vmatmul.mubr.f32.gmra.mxu0 %v2561
      %v2644 = vpop.f32.mrf.mxu0
      %v2645 = vadd.f32 0.0, %v2644
      %v2646 = vpop.f32.mrf.mxu0
      %v2647 = vadd.f32 0.0, %v2646
      %2648 = vmatprep.mubr.f32.mxu0 0.0
      %2649 = vmatmul.mubr.f32.gmra.mxu0 %v2564
      %v2650 = vpop.f32.mrf.mxu0
      %v2651 = vadd.f32 0.0, %v2650
      %v2652 = vpop.f32.mrf.mxu0
      %v2653 = vadd.f32 0.0, %v2652
      %2654 = vmatprep.mubr.f32.mxu0 0.0
      %2655 = vmatmul.mubr.f32.gmra.mxu0 %v2567
      %v2656 = vpop.f32.mrf.mxu0
      %v2657 = vadd.f32 0.0, %v2656
      %v2658 = vpop.f32.mrf.mxu0
      %v2659 = vadd.f32 0.0, %v2658
      %2660 = vmatprep.mubr.f32.mxu0 0.0
      %2661 = vmatmul.mubr.f32.gmra.mxu0 %v2570
      %v2662 = vpop.f32.mrf.mxu0
      %v2663 = vadd.f32 0.0, %v2662
      %v2664 = vpop.f32.mrf.mxu0
      %v2665 = vadd.f32 0.0, %v2664
      %2666 = vdwg.mxu0
      %2667 = vmatprep.subr.mxu0 0.0
      %2668 = vmatpush1.msra.mxu0 0.0
      %2669 = vmatprep.subr.mxu0 0.0
      %2670 = vmatpush1.msra.mxu0 0.0
      %2671 = vmatprep.subr.mxu0 0.0
      %2672 = vmatpush1.msra.mxu0 0.0
      %2673 = vmatprep.subr.mxu0 0.0
      %2674 = vmatpush1.msra.mxu0 0.0
      %2675 = vmatprep.subr.mxu0 0.0
      %2676 = vmatpush1.msra.mxu0 0.0
      %2677 = vmatprep.subr.mxu0 0.0
      %2678 = vmatpush1.msra.mxu0 0.0
      %2679 = vmatprep.subr.mxu0 0.0
      %2680 = vmatpush1.msra.mxu0 0.0
      %2681 = vmatprep.subr.mxu0 0.0
      %2682 = vmatpush1.msra.mxu0 0.0
      %2683 = vmatprep.subr.mxu0 %v2551
      %2684 = vmatpush1.msra.mxu0 %v2550
      %2685 = vmatprep.subr.mxu0 %v2543
      %2686 = vmatpush1.msra.mxu0 %v2542
      %2687 = vmatprep.subr.mxu0 %v2535
      %2688 = vmatpush1.msra.mxu0 %v2534
      %2689 = vmatprep.subr.mxu0 %v2527
      %2690 = vmatpush1.msra.mxu0 %v2526
      %2691 = vmatprep.subr.mxu0 %v2519
      %2692 = vmatpush1.msra.mxu0 %v2518
      %2693 = vmatprep.subr.mxu0 %v2511
      %2694 = vmatpush1.msra.mxu0 %v2510
      %2695 = vmatprep.subr.mxu0 %v2503
      %2696 = vmatpush1.msra.mxu0 %v2502
      %2697 = vmatprep.subr.mxu0 %v2495
      %2698 = vmatpush1.msra.mxu0 %v2494
      %2699 = vmatprep.subr.mxu0 0.0
      %2700 = vmatpush2.msra.mxu0 0.0
      %2701 = vmatprep.subr.mxu0 0.0
      %2702 = vmatpush2.msra.mxu0 0.0
      %2703 = vmatprep.subr.mxu0 0.0
      %2704 = vmatpush2.msra.mxu0 0.0
      %2705 = vmatprep.subr.mxu0 0.0
      %2706 = vmatpush2.msra.mxu0 0.0
      %2707 = vmatprep.subr.mxu0 0.0
      %2708 = vmatpush2.msra.mxu0 0.0
      %2709 = vmatprep.subr.mxu0 0.0
      %2710 = vmatpush2.msra.mxu0 0.0
      %2711 = vmatprep.subr.mxu0 0.0
      %2712 = vmatpush2.msra.mxu0 0.0
      %2713 = vmatprep.subr.mxu0 0.0
      %2714 = vmatpush2.msra.mxu0 0.0
      %2715 = vmatprep.subr.mxu0 0.0
      %2716 = vmatpush2.msra.mxu0 0.0
      %2717 = vmatprep.subr.mxu0 0.0
      %2718 = vmatpush2.msra.mxu0 0.0
      %2719 = vmatprep.subr.mxu0 0.0
      %2720 = vmatpush2.msra.mxu0 0.0
      %2721 = vmatprep.subr.mxu0 0.0
      %2722 = vmatpush2.msra.mxu0 0.0
      %2723 = vmatprep.subr.mxu0 0.0
      %2724 = vmatpush2.msra.mxu0 0.0
      %2725 = vmatprep.subr.mxu0 0.0
      %2726 = vmatpush2.msra.mxu0 0.0
      %2727 = vmatprep.subr.mxu0 0.0
      %2728 = vmatpush2.msra.mxu0 0.0
      %2729 = vmatprep.subr.mxu0 0.0
      %2730 = vmatpush2.msra.mxu0 0.0
      %2731 = vmatprep.mubr.f32.mxu0 0.0
      %2732 = vmatmul.mubr.f32.gmra.mxu0 %v2558
      %v2733 = vpop.f32.mrf.mxu0
      %v2734 = vadd.f32 0.0, %v2733
      %v2735 = vpop.f32.mrf.mxu0
      %v2736 = vadd.f32 0.0, %v2735
      %2737 = vmatprep.mubr.f32.mxu0 0.0
      %2738 = vmatmul.mubr.f32.gmra.mxu0 %v2561
      %v2739 = vpop.f32.mrf.mxu0
      %v2740 = vadd.f32 0.0, %v2739
      %v2741 = vpop.f32.mrf.mxu0
      %v2742 = vadd.f32 0.0, %v2741
      %2743 = vmatprep.mubr.f32.mxu0 0.0
      %2744 = vmatmul.mubr.f32.gmra.mxu0 %v2564
      %v2745 = vpop.f32.mrf.mxu0
      %v2746 = vadd.f32 0.0, %v2745
      %v2747 = vpop.f32.mrf.mxu0
      %v2748 = vadd.f32 0.0, %v2747
      %2749 = vmatprep.mubr.f32.mxu0 0.0
      %2750 = vmatmul.mubr.f32.gmra.mxu0 %v2567
      %v2751 = vpop.f32.mrf.mxu0
      %v2752 = vadd.f32 0.0, %v2751
      %v2753 = vpop.f32.mrf.mxu0
      %v2754 = vadd.f32 0.0, %v2753
      %2755 = vmatprep.mubr.f32.mxu0 0.0
      %2756 = vmatmul.mubr.f32.gmra.mxu0 %v2570
      %v2757 = vpop.f32.mrf.mxu0
      %v2758 = vadd.f32 0.0, %v2757
      %v2759 = vpop.f32.mrf.mxu0
      %v2760 = vadd.f32 0.0, %v2759
      %2761 = vdwg.mxu0
      %2762 = vmatprep.subr.mxu0 0.0
      %2763 = vmatpush1.msra.mxu0 0.0
      %2764 = vmatprep.subr.mxu0 0.0
      %2765 = vmatpush1.msra.mxu0 0.0
      %2766 = vmatprep.subr.mxu0 0.0
      %2767 = vmatpush1.msra.mxu0 0.0
      %2768 = vmatprep.subr.mxu0 0.0
      %2769 = vmatpush1.msra.mxu0 0.0
      %2770 = vmatprep.subr.mxu0 0.0
      %2771 = vmatpush1.msra.mxu0 0.0
      %2772 = vmatprep.subr.mxu0 0.0
      %2773 = vmatpush1.msra.mxu0 0.0
      %2774 = vmatprep.subr.mxu0 0.0
      %2775 = vmatpush1.msra.mxu0 0.0
      %2776 = vmatprep.subr.mxu0 0.0
      %2777 = vmatpush1.msra.mxu0 0.0
      %2778 = vmatprep.subr.mxu0 %v2553
      %2779 = vmatpush1.msra.mxu0 %v2552
      %2780 = vmatprep.subr.mxu0 %v2545
      %2781 = vmatpush1.msra.mxu0 %v2544
      %2782 = vmatprep.subr.mxu0 %v2537
      %2783 = vmatpush1.msra.mxu0 %v2536
      %2784 = vmatprep.subr.mxu0 %v2529
      %2785 = vmatpush1.msra.mxu0 %v2528
      %2786 = vmatprep.subr.mxu0 %v2521
      %2787 = vmatpush1.msra.mxu0 %v2520
      %2788 = vmatprep.subr.mxu0 %v2513
      %2789 = vmatpush1.msra.mxu0 %v2512
      %2790 = vmatprep.subr.mxu0 %v2505
      %2791 = vmatpush1.msra.mxu0 %v2504
      %2792 = vmatprep.subr.mxu0 %v2497
      %2793 = vmatpush1.msra.mxu0 %v2496
      %2794 = vmatprep.subr.mxu0 0.0
      %2795 = vmatpush2.msra.mxu0 0.0
      %2796 = vmatprep.subr.mxu0 0.0
      %2797 = vmatpush2.msra.mxu0 0.0
      %2798 = vmatprep.subr.mxu0 0.0
      %2799 = vmatpush2.msra.mxu0 0.0
      %2800 = vmatprep.subr.mxu0 0.0
      %2801 = vmatpush2.msra.mxu0 0.0
      %2802 = vmatprep.subr.mxu0 0.0
      %2803 = vmatpush2.msra.mxu0 0.0
      %2804 = vmatprep.subr.mxu0 0.0
      %2805 = vmatpush2.msra.mxu0 0.0
      %2806 = vmatprep.subr.mxu0 0.0
      %2807 = vmatpush2.msra.mxu0 0.0
      %2808 = vmatprep.subr.mxu0 0.0
      %2809 = vmatpush2.msra.mxu0 0.0
      %2810 = vmatprep.subr.mxu0 0.0
      %2811 = vmatpush2.msra.mxu0 0.0
      %2812 = vmatprep.subr.mxu0 0.0
      %2813 = vmatpush2.msra.mxu0 0.0
      %2814 = vmatprep.subr.mxu0 0.0
      %2815 = vmatpush2.msra.mxu0 0.0
      %2816 = vmatprep.subr.mxu0 0.0
      %2817 = vmatpush2.msra.mxu0 0.0
      %2818 = vmatprep.subr.mxu0 0.0
      %2819 = vmatpush2.msra.mxu0 0.0
      %2820 = vmatprep.subr.mxu0 0.0
      %2821 = vmatpush2.msra.mxu0 0.0
      %2822 = vmatprep.subr.mxu0 0.0
      %2823 = vmatpush2.msra.mxu0 0.0
      %2824 = vmatprep.subr.mxu0 0.0
      %2825 = vmatpush2.msra.mxu0 0.0
      %2826 = vmatprep.mubr.f32.mxu0 0.0
      %2827 = vmatmul.mubr.f32.gmra.mxu0 %v2558
      %v2828 = vpop.f32.mrf.mxu0
      %v2829 = vadd.f32 0.0, %v2828
      %v2830 = vpop.f32.mrf.mxu0
      %v2831 = vadd.f32 0.0, %v2830
      %2832 = vmatprep.mubr.f32.mxu0 0.0
      %2833 = vmatmul.mubr.f32.gmra.mxu0 %v2561
      %v2834 = vpop.f32.mrf.mxu0
      %v2835 = vadd.f32 0.0, %v2834
      %v2836 = vpop.f32.mrf.mxu0
      %v2837 = vadd.f32 0.0, %v2836
      %2838 = vmatprep.mubr.f32.mxu0 0.0
      %2839 = vmatmul.mubr.f32.gmra.mxu0 %v2564
      %v2840 = vpop.f32.mrf.mxu0
      %v2841 = vadd.f32 0.0, %v2840
      %v2842 = vpop.f32.mrf.mxu0
      %v2843 = vadd.f32 0.0, %v2842
      %2844 = vmatprep.mubr.f32.mxu0 0.0
      %2845 = vmatmul.mubr.f32.gmra.mxu0 %v2567
      %v2846 = vpop.f32.mrf.mxu0
      %v2847 = vadd.f32 0.0, %v2846
      %v2848 = vpop.f32.mrf.mxu0
      %v2849 = vadd.f32 0.0, %v2848
      %2850 = vmatprep.mubr.f32.mxu0 0.0
      %2851 = vmatmul.mubr.f32.gmra.mxu0 %v2570
      %v2852 = vpop.f32.mrf.mxu0
      %v2853 = vadd.f32 0.0, %v2852
      %v2854 = vpop.f32.mrf.mxu0
      %v2855 = vadd.f32 0.0, %v2854
      %2856 = vdwg.mxu0
      %2857 = vmatprep.subr.mxu0 0.0
      %2858 = vmatpush1.msra.mxu0 0.0
      %2859 = vmatprep.subr.mxu0 0.0
      %2860 = vmatpush1.msra.mxu0 0.0
      %2861 = vmatprep.subr.mxu0 0.0
      %2862 = vmatpush1.msra.mxu0 0.0
      %2863 = vmatprep.subr.mxu0 0.0
      %2864 = vmatpush1.msra.mxu0 0.0
      %2865 = vmatprep.subr.mxu0 0.0
      %2866 = vmatpush1.msra.mxu0 0.0
      %2867 = vmatprep.subr.mxu0 0.0
      %2868 = vmatpush1.msra.mxu0 0.0
      %2869 = vmatprep.subr.mxu0 0.0
      %2870 = vmatpush1.msra.mxu0 0.0
      %2871 = vmatprep.subr.mxu0 0.0
      %2872 = vmatpush1.msra.mxu0 0.0
      %2873 = vmatprep.subr.mxu0 %v2555
      %2874 = vmatpush1.msra.mxu0 %v2554
      %2875 = vmatprep.subr.mxu0 %v2547
      %2876 = vmatpush1.msra.mxu0 %v2546
      %2877 = vmatprep.subr.mxu0 %v2539
      %2878 = vmatpush1.msra.mxu0 %v2538
      %2879 = vmatprep.subr.mxu0 %v2531
      %2880 = vmatpush1.msra.mxu0 %v2530
      %2881 = vmatprep.subr.mxu0 %v2523
      %2882 = vmatpush1.msra.mxu0 %v2522
      %2883 = vmatprep.subr.mxu0 %v2515
      %2884 = vmatpush1.msra.mxu0 %v2514
      %2885 = vmatprep.subr.mxu0 %v2507
      %2886 = vmatpush1.msra.mxu0 %v2506
      %2887 = vmatprep.subr.mxu0 %v2499
      %2888 = vmatpush1.msra.mxu0 %v2498
      %2889 = vmatprep.subr.mxu0 0.0
      %2890 = vmatpush2.msra.mxu0 0.0
      %2891 = vmatprep.subr.mxu0 0.0
      %2892 = vmatpush2.msra.mxu0 0.0
      %2893 = vmatprep.subr.mxu0 0.0
      %2894 = vmatpush2.msra.mxu0 0.0
      %2895 = vmatprep.subr.mxu0 0.0
      %2896 = vmatpush2.msra.mxu0 0.0
      %2897 = vmatprep.subr.mxu0 0.0
      %2898 = vmatpush2.msra.mxu0 0.0
      %2899 = vmatprep.subr.mxu0 0.0
      %2900 = vmatpush2.msra.mxu0 0.0
      %2901 = vmatprep.subr.mxu0 0.0
      %2902 = vmatpush2.msra.mxu0 0.0
      %2903 = vmatprep.subr.mxu0 0.0
      %2904 = vmatpush2.msra.mxu0 0.0
      %2905 = vmatprep.subr.mxu0 0.0
      %2906 = vmatpush2.msra.mxu0 0.0
      %2907 = vmatprep.subr.mxu0 0.0
      %2908 = vmatpush2.msra.mxu0 0.0
      %2909 = vmatprep.subr.mxu0 0.0
      %2910 = vmatpush2.msra.mxu0 0.0
      %2911 = vmatprep.subr.mxu0 0.0
      %2912 = vmatpush2.msra.mxu0 0.0
      %2913 = vmatprep.subr.mxu0 0.0
      %2914 = vmatpush2.msra.mxu0 0.0
      %2915 = vmatprep.subr.mxu0 0.0
      %2916 = vmatpush2.msra.mxu0 0.0
      %2917 = vmatprep.subr.mxu0 0.0
      %2918 = vmatpush2.msra.mxu0 0.0
      %2919 = vmatprep.subr.mxu0 0.0
      %2920 = vmatpush2.msra.mxu0 0.0
      %2921 = vmatprep.mubr.f32.mxu0 0.0
      %2922 = vmatmul.mubr.f32.gmra.mxu0 %v2558
      %v2923 = vpop.f32.mrf.mxu0
      %v2924 = vadd.f32 0.0, %v2923
      %v2925 = vpop.f32.mrf.mxu0
      %v2926 = vadd.f32 0.0, %v2925
      %2927 = vmatprep.mubr.f32.mxu0 0.0
      %2928 = vmatmul.mubr.f32.gmra.mxu0 %v2561
      %v2929 = vpop.f32.mrf.mxu0
      %v2930 = vadd.f32 0.0, %v2929
      %v2931 = vpop.f32.mrf.mxu0
      %v2932 = vadd.f32 0.0, %v2931
      %2933 = vmatprep.mubr.f32.mxu0 0.0
      %2934 = vmatmul.mubr.f32.gmra.mxu0 %v2564
      %v2935 = vpop.f32.mrf.mxu0
      %v2936 = vadd.f32 0.0, %v2935
      %v2937 = vpop.f32.mrf.mxu0
      %v2938 = vadd.f32 0.0, %v2937
      %2939 = vmatprep.mubr.f32.mxu0 0.0
      %2940 = vmatmul.mubr.f32.gmra.mxu0 %v2567
      %v2941 = vpop.f32.mrf.mxu0
      %v2942 = vadd.f32 0.0, %v2941
      %v2943 = vpop.f32.mrf.mxu0
      %v2944 = vadd.f32 0.0, %v2943
      %2945 = vmatprep.mubr.f32.mxu0 0.0
      %2946 = vmatmul.mubr.f32.gmra.mxu0 %v2570
      %v2947 = vpop.f32.mrf.mxu0
      %v2948 = vadd.f32 0.0, %v2947
      %v2949 = vpop.f32.mrf.mxu0
      %v2950 = vadd.f32 0.0, %v2949
      %2951 = vdwg.mxu0
      %2952 = vst [vmem:[#allocation3 + $0x8] sm:$0xff] %v2639
      %2953 = vst [vmem:[#allocation3 + $0x10] sm:$0xff] %v2641
      %2954 = vst [vmem:[#allocation3 + $0x18] sm:$0xff] %v2734
      %2955 = vst [vmem:[#allocation3 + $0x20] sm:$0xff] %v2736
      %2956 = vst [vmem:[#allocation3 + $0x28] sm:$0xff] %v2829
      %2957 = vst [vmem:[#allocation3 + $0x30] sm:$0xff] %v2831
      %2958 = vst [vmem:[#allocation3 + $0x38] sm:$0xff] %v2924
      %2959 = vst [vmem:[#allocation3 + $0x40] sm:$0xff] %v2926
      %2960 = vst [vmem:[#allocation3 + $0x58] sm:$0xff] %v2645
      %2961 = vst [vmem:[#allocation3 + $0x60] sm:$0xff] %v2647
      %2962 = vst [vmem:[#allocation3 + $0x68] sm:$0xff] %v2740
      %2963 = vst [vmem:[#allocation3 + $0x70] sm:$0xff] %v2742
      %2964 = vst [vmem:[#allocation3 + $0x78] sm:$0xff] %v2835
      %2965 = vst [vmem:[#allocation3 + $0x80] sm:$0xff] %v2837
      %2966 = vst [vmem:[#allocation3 + $0x88] sm:$0xff] %v2930
      %2967 = vst [vmem:[#allocation3 + $0x90] sm:$0xff] %v2932
      %2968 = vst [vmem:[#allocation3 + $0xa8] sm:$0xff] %v2651
      %2969 = vst [vmem:[#allocation3 + $0xb0] sm:$0xff] %v2653
      %2970 = vst [vmem:[#allocation3 + $0xb8] sm:$0xff] %v2746
      %2971 = vst [vmem:[#allocation3 + $0xc0] sm:$0xff] %v2748
      %2972 = vst [vmem:[#allocation3 + $0xc8] sm:$0xff] %v2841
      %2973 = vst [vmem:[#allocation3 + $0xd0] sm:$0xff] %v2843
      %2974 = vst [vmem:[#allocation3 + $0xd8] sm:$0xff] %v2936
      %2975 = vst [vmem:[#allocation3 + $0xe0] sm:$0xff] %v2938
      %2976 = vst [vmem:[#allocation3 + $0xf8] sm:$0xff] %v2657
      %2977 = vst [vmem:[#allocation3 + $0x100] sm:$0xff] %v2659
      %2978 = vst [vmem:[#allocation3 + $0x108] sm:$0xff] %v2752
      %2979 = vst [vmem:[#allocation3 + $0x110] sm:$0xff] %v2754
      %2980 = vst [vmem:[#allocation3 + $0x118] sm:$0xff] %v2847
      %2981 = vst [vmem:[#allocation3 + $0x120] sm:$0xff] %v2849
      %2982 = vst [vmem:[#allocation3 + $0x128] sm:$0xff] %v2942
      %2983 = vst [vmem:[#allocation3 + $0x130] sm:$0xff] %v2944
      %2984 = vst [vmem:[#allocation3 + $0x148] sm:$0xf] %v2663
      %2985 = vst [vmem:[#allocation3 + $0x150] sm:$0xf] %v2665
      %2986 = vst [vmem:[#allocation3 + $0x158] sm:$0xf] %v2758
      %2987 = vst [vmem:[#allocation3 + $0x160] sm:$0xf] %v2760
      %2988 = vst [vmem:[#allocation3 + $0x168] sm:$0xf] %v2853
      %2989 = vst [vmem:[#allocation3 + $0x170] sm:$0xf] %v2855
      %2990 = vst [vmem:[#allocation3 + $0x178] sm:$0xf] %v2948
      %2991 = vst [vmem:[#allocation3 + $0x180] sm:$0xf] %v2950
      %v2992 = vld [vmem:[#allocation3] sm:$0xf]
      %v2993 = vld [vmem:[#allocation3 + $0x8] sm:$0xf]
      %v2994 = vld [vmem:[#allocation3 + $0x10] sm:$0xf]
      %v2995 = vld [vmem:[#allocation3 + $0x18] sm:$0xf]
      %v2996 = vld [vmem:[#allocation3 + $0x20] sm:$0xf]
      %v2997 = vld [vmem:[#allocation3 + $0x28] sm:$0xf]
      %v2998 = vld [vmem:[#allocation3 + $0x30] sm:$0xf]
      %v2999 = vld [vmem:[#allocation3 + $0x38] sm:$0xf]
      %v3000 = vld [vmem:[#allocation3 + $0x40] sm:$0xf]
      %3010 = vrot.lane.b32.xlu0 %v2992, 33
      %v3011 = vpop.permute.xlu0 %3010
      %3012 = vrot.lane.b32.xlu0 %v2993, 33
      %v3013 = vpop.permute.xlu0 %3012
      %3014 = vrot.lane.b32.xlu0 %v2994, 33
      %v3015 = vpop.permute.xlu0 %3014
      %3016 = vrot.lane.b32.xlu0 %v2995, 33
      %v3017 = vpop.permute.xlu0 %3016
      %3018 = vrot.lane.b32.xlu0 %v2996, 33
      %v3019 = vpop.permute.xlu0 %3018
      %3020 = vrot.lane.b32.xlu0 %v2997, 33
      %v3021 = vpop.permute.xlu0 %3020
      %3022 = vrot.lane.b32.xlu0 %v2998, 33
      %v3023 = vpop.permute.xlu0 %3022
      %3024 = vrot.lane.b32.xlu0 %v2999, 33
      %v3025 = vpop.permute.xlu0 %3024
      %3026 = vrot.lane.b32.xlu0 %v3000, 33
      %v3027 = vpop.permute.xlu0 %3026
      %v3028 = vsel %vm1282, %v3011, %v3013
      %v3029 = vsel %vm1282, %v3013, %v3015
      %v3030 = vsel %vm1282, %v3015, %v3017
      %v3031 = vsel %vm1282, %v3017, %v3019
      %v3032 = vsel %vm1282, %v3019, %v3021
      %v3033 = vsel %vm1282, %v3021, %v3023
      %v3034 = vsel %vm1282, %v3023, %v3025
      %v3035 = vsel %vm1282, %v3025, %v3027
      %v3044 = vsel %vm1247, %v3028, 0.0
      %v3045 = vsel %vm1248, %v3029, 0.0
      %v3046 = vsel %vm1249, %v3030, 0.0
      %v3047 = vsel %vm1250, %v3031, 0.0
      %v3048 = vsel %vm1251, %v3032, 0.0
      %v3049 = vsel %vm1252, %v3033, 0.0
      %v3050 = vsel %vm1253, %v3034, 0.0
      %v3051 = vsel %vm1254, %v3035, 0.0
      %v3052 = vadd.f32 %v3044, 0.0
      %v3053 = vadd.f32 %v3045, 0.0
      %v3054 = vadd.f32 %v3046, 0.0
      %v3055 = vadd.f32 %v3047, 0.0
      %v3056 = vadd.f32 %v3048, 0.0
      %v3057 = vadd.f32 %v3049, 0.0
      %v3058 = vadd.f32 %v3050, 0.0
      %v3059 = vadd.f32 %v3051, 0.0
      %v3060 = vld [vmem:[#allocation3] sm:$0xf0]
      %v3061 = vld [vmem:[#allocation3 + $0x8] sm:$0xf0]
      %v3062 = vld [vmem:[#allocation3 + $0x10] sm:$0xf0]
      %v3063 = vld [vmem:[#allocation3 + $0x18] sm:$0xf0]
      %v3064 = vld [vmem:[#allocation3 + $0x20] sm:$0xf0]
      %v3065 = vld [vmem:[#allocation3 + $0x28] sm:$0xf0]
      %v3066 = vld [vmem:[#allocation3 + $0x30] sm:$0xf0]
      %v3067 = vld [vmem:[#allocation3 + $0x38] sm:$0xf0]
      %v3068 = vld [vmem:[#allocation3 + $0x40] sm:$0xf0]
      %v3078 = vrot.slane %v3060, 4
      %v3079 = vrot.slane %v3061, 4
      %v3080 = vrot.slane %v3062, 4
      %v3081 = vrot.slane %v3063, 4
      %v3082 = vrot.slane %v3064, 4
      %v3083 = vrot.slane %v3065, 4
      %v3084 = vrot.slane %v3066, 4
      %v3085 = vrot.slane %v3067, 4
      %v3086 = vrot.slane %v3068, 4
      %3087 = vrot.lane.b32.xlu0 %v3078, 32
      %v3088 = vpop.permute.xlu0 %3087
      %3089 = vrot.lane.b32.xlu0 %v3079, 32
      %v3090 = vpop.permute.xlu0 %3089
      %3091 = vrot.lane.b32.xlu0 %v3080, 32
      %v3092 = vpop.permute.xlu0 %3091
      %3093 = vrot.lane.b32.xlu0 %v3081, 32
      %v3094 = vpop.permute.xlu0 %3093
      %3095 = vrot.lane.b32.xlu0 %v3082, 32
      %v3096 = vpop.permute.xlu0 %3095
      %3097 = vrot.lane.b32.xlu0 %v3083, 32
      %v3098 = vpop.permute.xlu0 %3097
      %3099 = vrot.lane.b32.xlu0 %v3084, 32
      %v3100 = vpop.permute.xlu0 %3099
      %3101 = vrot.lane.b32.xlu0 %v3085, 32
      %v3102 = vpop.permute.xlu0 %3101
      %3103 = vrot.lane.b32.xlu0 %v3086, 32
      %v3104 = vpop.permute.xlu0 %3103
      %v3105 = vsel %vm1351, %v3088, %v3090
      %v3106 = vsel %vm1351, %v3090, %v3092
      %v3107 = vsel %vm1351, %v3092, %v3094
      %v3108 = vsel %vm1351, %v3094, %v3096
      %v3109 = vsel %vm1351, %v3096, %v3098
      %v3110 = vsel %vm1351, %v3098, %v3100
      %v3111 = vsel %vm1351, %v3100, %v3102
      %v3112 = vsel %vm1351, %v3102, %v3104
      %v3121 = vsel %vm1231, %v3105, 0.0
      %v3122 = vsel %vm1232, %v3106, 0.0
      %v3123 = vsel %vm1233, %v3107, 0.0
      %v3124 = vsel %vm1234, %v3108, 0.0
      %v3125 = vsel %vm1235, %v3109, 0.0
      %v3126 = vsel %vm1236, %v3110, 0.0
      %v3127 = vsel %vm1237, %v3111, 0.0
      %v3128 = vsel %vm1238, %v3112, 0.0
      %v3129 = vadd.f32 %v3052, %v3121
      %v3130 = vadd.f32 %v3053, %v3122
      %v3131 = vadd.f32 %v3054, %v3123
      %v3132 = vadd.f32 %v3055, %v3124
      %v3133 = vadd.f32 %v3056, %v3125
      %v3134 = vadd.f32 %v3057, %v3126
      %v3135 = vadd.f32 %v3058, %v3127
      %v3136 = vadd.f32 %v3059, %v3128
      %v3137 = vld [vmem:[#allocation3 + $0x50] sm:$0xf]
      %v3138 = vld [vmem:[#allocation3 + $0x58] sm:$0xf]
      %v3139 = vld [vmem:[#allocation3 + $0x60] sm:$0xf]
      %v3140 = vld [vmem:[#allocation3 + $0x68] sm:$0xf]
      %v3141 = vld [vmem:[#allocation3 + $0x70] sm:$0xf]
      %v3142 = vld [vmem:[#allocation3 + $0x78] sm:$0xf]
      %v3143 = vld [vmem:[#allocation3 + $0x80] sm:$0xf]
      %v3144 = vld [vmem:[#allocation3 + $0x88] sm:$0xf]
      %v3145 = vld [vmem:[#allocation3 + $0x90] sm:$0xf]
      %3155 = vrot.lane.b32.xlu0 %v3137, 31
      %v3156 = vpop.permute.xlu0 %3155
      %3157 = vrot.lane.b32.xlu0 %v3138, 31
      %v3158 = vpop.permute.xlu0 %3157
      %3159 = vrot.lane.b32.xlu0 %v3139, 31
      %v3160 = vpop.permute.xlu0 %3159
      %3161 = vrot.lane.b32.xlu0 %v3140, 31
      %v3162 = vpop.permute.xlu0 %3161
      %3163 = vrot.lane.b32.xlu0 %v3141, 31
      %v3164 = vpop.permute.xlu0 %3163
      %3165 = vrot.lane.b32.xlu0 %v3142, 31
      %v3166 = vpop.permute.xlu0 %3165
      %3167 = vrot.lane.b32.xlu0 %v3143, 31
      %v3168 = vpop.permute.xlu0 %3167
      %3169 = vrot.lane.b32.xlu0 %v3144, 31
      %v3170 = vpop.permute.xlu0 %3169
      %3171 = vrot.lane.b32.xlu0 %v3145, 31
      %v3172 = vpop.permute.xlu0 %3171
      %v3173 = vsel %vm1460, %v3156, %v3158
      %v3174 = vsel %vm1460, %v3158, %v3160
      %v3175 = vsel %vm1460, %v3160, %v3162
      %v3176 = vsel %vm1460, %v3162, %v3164
      %v3177 = vsel %vm1460, %v3164, %v3166
      %v3178 = vsel %vm1460, %v3166, %v3168
      %v3179 = vsel %vm1460, %v3168, %v3170
      %v3180 = vsel %vm1460, %v3170, %v3172
      %v3189 = vsel %vm1425, %v3173, 0.0
      %v3190 = vsel %vm1426, %v3174, 0.0
      %v3191 = vsel %vm1427, %v3175, 0.0
      %v3192 = vsel %vm1428, %v3176, 0.0
      %v3193 = vsel %vm1429, %v3177, 0.0
      %v3194 = vsel %vm1430, %v3178, 0.0
      %v3195 = vsel %vm1431, %v3179, 0.0
      %v3196 = vsel %vm1432, %v3180, 0.0
      %v3197 = vadd.f32 %v3129, %v3189
      %v3198 = vadd.f32 %v3130, %v3190
      %v3199 = vadd.f32 %v3131, %v3191
      %v3200 = vadd.f32 %v3132, %v3192
      %v3201 = vadd.f32 %v3133, %v3193
      %v3202 = vadd.f32 %v3134, %v3194
      %v3203 = vadd.f32 %v3135, %v3195
      %v3204 = vadd.f32 %v3136, %v3196
      %v3205 = vld [vmem:[#allocation3 + $0x50] sm:$0xf0]
      %v3206 = vld [vmem:[#allocation3 + $0x58] sm:$0xf0]
      %v3207 = vld [vmem:[#allocation3 + $0x60] sm:$0xf0]
      %v3208 = vld [vmem:[#allocation3 + $0x68] sm:$0xf0]
      %v3209 = vld [vmem:[#allocation3 + $0x70] sm:$0xf0]
      %v3210 = vld [vmem:[#allocation3 + $0x78] sm:$0xf0]
      %v3211 = vld [vmem:[#allocation3 + $0x80] sm:$0xf0]
      %v3212 = vld [vmem:[#allocation3 + $0x88] sm:$0xf0]
      %v3213 = vld [vmem:[#allocation3 + $0x90] sm:$0xf0]
      %v3223 = vrot.slane %v3205, 4
      %v3224 = vrot.slane %v3206, 4
      %v3225 = vrot.slane %v3207, 4
      %v3226 = vrot.slane %v3208, 4
      %v3227 = vrot.slane %v3209, 4
      %v3228 = vrot.slane %v3210, 4
      %v3229 = vrot.slane %v3211, 4
      %v3230 = vrot.slane %v3212, 4
      %v3231 = vrot.slane %v3213, 4
      %3232 = vrot.lane.b32.xlu0 %v3223, 1
      %v3233 = vpop.permute.xlu0 %3232
      %3234 = vrot.lane.b32.xlu0 %v3224, 1
      %v3235 = vpop.permute.xlu0 %3234
      %3236 = vrot.lane.b32.xlu0 %v3225, 1
      %v3237 = vpop.permute.xlu0 %3236
      %3238 = vrot.lane.b32.xlu0 %v3226, 1
      %v3239 = vpop.permute.xlu0 %3238
      %3240 = vrot.lane.b32.xlu0 %v3227, 1
      %v3241 = vpop.permute.xlu0 %3240
      %3242 = vrot.lane.b32.xlu0 %v3228, 1
      %v3243 = vpop.permute.xlu0 %3242
      %3244 = vrot.lane.b32.xlu0 %v3229, 1
      %v3245 = vpop.permute.xlu0 %3244
      %3246 = vrot.lane.b32.xlu0 %v3230, 1
      %v3247 = vpop.permute.xlu0 %3246
      %3248 = vrot.lane.b32.xlu0 %v3231, 1
      %v3249 = vpop.permute.xlu0 %3248
      %v3250 = vsel %vm1529, %v3233, %v3235
      %v3251 = vsel %vm1529, %v3235, %v3237
      %v3252 = vsel %vm1529, %v3237, %v3239
      %v3253 = vsel %vm1529, %v3239, %v3241
      %v3254 = vsel %vm1529, %v3241, %v3243
      %v3255 = vsel %vm1529, %v3243, %v3245
      %v3256 = vsel %vm1529, %v3245, %v3247
      %v3257 = vsel %vm1529, %v3247, %v3249
      %v3266 = vsel %vm1239, %v3250, 0.0
      %v3267 = vsel %vm1240, %v3251, 0.0
      %v3268 = vsel %vm1241, %v3252, 0.0
      %v3269 = vsel %vm1242, %v3253, 0.0
      %v3270 = vsel %vm1243, %v3254, 0.0
      %v3271 = vsel %vm1244, %v3255, 0.0
      %v3272 = vsel %vm1245, %v3256, 0.0
      %v3273 = vsel %vm1246, %v3257, 0.0
      %v3274 = vadd.f32 %v3197, %v3266
      %v3275 = vadd.f32 %v3198, %v3267
      %v3276 = vadd.f32 %v3199, %v3268
      %v3277 = vadd.f32 %v3200, %v3269
      %v3278 = vadd.f32 %v3201, %v3270
      %v3279 = vadd.f32 %v3202, %v3271
      %v3280 = vadd.f32 %v3203, %v3272
      %v3281 = vadd.f32 %v3204, %v3273
      %v3282 = vld [vmem:[#allocation3 + $0xa8] sm:$0xf]
      %v3283 = vld [vmem:[#allocation3 + $0xb0] sm:$0xf]
      %v3284 = vld [vmem:[#allocation3 + $0xb8] sm:$0xf]
      %v3285 = vld [vmem:[#allocation3 + $0xc0] sm:$0xf]
      %v3286 = vld [vmem:[#allocation3 + $0xc8] sm:$0xf]
      %v3287 = vld [vmem:[#allocation3 + $0xd0] sm:$0xf]
      %v3288 = vld [vmem:[#allocation3 + $0xd8] sm:$0xf]
      %v3289 = vld [vmem:[#allocation3 + $0xe0] sm:$0xf]
      %v3290 = vadd.f32 %v3274, %v3282
      %v3291 = vadd.f32 %v3275, %v3283
      %v3292 = vadd.f32 %v3276, %v3284
      %v3293 = vadd.f32 %v3277, %v3285
      %v3294 = vadd.f32 %v3278, %v3286
      %v3295 = vadd.f32 %v3279, %v3287
      %v3296 = vadd.f32 %v3280, %v3288
      %v3297 = vadd.f32 %v3281, %v3289
      %v3298 = vld [vmem:[#allocation3 + $0xa8] sm:$0xf0]
      %v3299 = vld [vmem:[#allocation3 + $0xb0] sm:$0xf0]
      %v3300 = vld [vmem:[#allocation3 + $0xb8] sm:$0xf0]
      %v3301 = vld [vmem:[#allocation3 + $0xc0] sm:$0xf0]
      %v3302 = vld [vmem:[#allocation3 + $0xc8] sm:$0xf0]
      %v3303 = vld [vmem:[#allocation3 + $0xd0] sm:$0xf0]
      %v3304 = vld [vmem:[#allocation3 + $0xd8] sm:$0xf0]
      %v3305 = vld [vmem:[#allocation3 + $0xe0] sm:$0xf0]
      %v3306 = vld [vmem:[#allocation3 + $0xe8] sm:$0xf0]
      %v3316 = vrot.slane %v3298, 4
      %v3317 = vrot.slane %v3299, 4
      %v3318 = vrot.slane %v3300, 4
      %v3319 = vrot.slane %v3301, 4
      %v3320 = vrot.slane %v3302, 4
      %v3321 = vrot.slane %v3303, 4
      %v3322 = vrot.slane %v3304, 4
      %v3323 = vrot.slane %v3305, 4
      %v3324 = vrot.slane %v3306, 4
      %3325 = vrot.lane.b32.xlu0 %v3316, 127
      %v3326 = vpop.permute.xlu0 %3325
      %3327 = vrot.lane.b32.xlu0 %v3317, 127
      %v3328 = vpop.permute.xlu0 %3327
      %3329 = vrot.lane.b32.xlu0 %v3318, 127
      %v3330 = vpop.permute.xlu0 %3329
      %3331 = vrot.lane.b32.xlu0 %v3319, 127
      %v3332 = vpop.permute.xlu0 %3331
      %3333 = vrot.lane.b32.xlu0 %v3320, 127
      %v3334 = vpop.permute.xlu0 %3333
      %3335 = vrot.lane.b32.xlu0 %v3321, 127
      %v3336 = vpop.permute.xlu0 %3335
      %3337 = vrot.lane.b32.xlu0 %v3322, 127
      %v3338 = vpop.permute.xlu0 %3337
      %3339 = vrot.lane.b32.xlu0 %v3323, 127
      %v3340 = vpop.permute.xlu0 %3339
      %3341 = vrot.lane.b32.xlu0 %v3324, 127
      %v3342 = vpop.permute.xlu0 %3341
      %v3343 = vsel %vm1638, %v3326, %v3328
      %v3344 = vsel %vm1638, %v3328, %v3330
      %v3345 = vsel %vm1638, %v3330, %v3332
      %v3346 = vsel %vm1638, %v3332, %v3334
      %v3347 = vsel %vm1638, %v3334, %v3336
      %v3348 = vsel %vm1638, %v3336, %v3338
      %v3349 = vsel %vm1638, %v3338, %v3340
      %v3350 = vsel %vm1638, %v3340, %v3342
      %v3359 = vsel %vm1417, %v3343, 0.0
      %v3360 = vsel %vm1418, %v3344, 0.0
      %v3361 = vsel %vm1419, %v3345, 0.0
      %v3362 = vsel %vm1420, %v3346, 0.0
      %v3363 = vsel %vm1421, %v3347, 0.0
      %v3364 = vsel %vm1422, %v3348, 0.0
      %v3365 = vsel %vm1423, %v3349, 0.0
      %v3366 = vsel %vm1424, %v3350, 0.0
      %v3367 = vadd.f32 %v3290, %v3359
      %v3368 = vadd.f32 %v3291, %v3360
      %v3369 = vadd.f32 %v3292, %v3361
      %v3370 = vadd.f32 %v3293, %v3362
      %v3371 = vadd.f32 %v3294, %v3363
      %v3372 = vadd.f32 %v3295, %v3364
      %v3373 = vadd.f32 %v3296, %v3365
      %v3374 = vadd.f32 %v3297, %v3366
      %v3375 = vld [vmem:[#allocation3 + $0xf8] sm:$0xf]
      %v3376 = vld [vmem:[#allocation3 + $0x100] sm:$0xf]
      %v3377 = vld [vmem:[#allocation3 + $0x108] sm:$0xf]
      %v3378 = vld [vmem:[#allocation3 + $0x110] sm:$0xf]
      %v3379 = vld [vmem:[#allocation3 + $0x118] sm:$0xf]
      %v3380 = vld [vmem:[#allocation3 + $0x120] sm:$0xf]
      %v3381 = vld [vmem:[#allocation3 + $0x128] sm:$0xf]
      %v3382 = vld [vmem:[#allocation3 + $0x130] sm:$0xf]
      %v3383 = vld [vmem:[#allocation3 + $0x138] sm:$0xf]
      %3393 = vrot.lane.b32.xlu0 %v3375, 97
      %v3394 = vpop.permute.xlu0 %3393
      %3395 = vrot.lane.b32.xlu0 %v3376, 97
      %v3396 = vpop.permute.xlu0 %3395
      %3397 = vrot.lane.b32.xlu0 %v3377, 97
      %v3398 = vpop.permute.xlu0 %3397
      %3399 = vrot.lane.b32.xlu0 %v3378, 97
      %v3400 = vpop.permute.xlu0 %3399
      %3401 = vrot.lane.b32.xlu0 %v3379, 97
      %v3402 = vpop.permute.xlu0 %3401
      %3403 = vrot.lane.b32.xlu0 %v3380, 97
      %v3404 = vpop.permute.xlu0 %3403
      %3405 = vrot.lane.b32.xlu0 %v3381, 97
      %v3406 = vpop.permute.xlu0 %3405
      %3407 = vrot.lane.b32.xlu0 %v3382, 97
      %v3408 = vpop.permute.xlu0 %3407
      %3409 = vrot.lane.b32.xlu0 %v3383, 97
      %v3410 = vpop.permute.xlu0 %3409
      %v3411 = vsel %vm1747, %v3394, %v3396
      %v3412 = vsel %vm1747, %v3396, %v3398
      %v3413 = vsel %vm1747, %v3398, %v3400
      %v3414 = vsel %vm1747, %v3400, %v3402
      %v3415 = vsel %vm1747, %v3402, %v3404
      %v3416 = vsel %vm1747, %v3404, %v3406
      %v3417 = vsel %vm1747, %v3406, %v3408
      %v3418 = vsel %vm1747, %v3408, %v3410
      %v3427 = vsel %vm1712, %v3411, 0.0
      %v3428 = vsel %vm1713, %v3412, 0.0
      %v3429 = vsel %vm1714, %v3413, 0.0
      %v3430 = vsel %vm1715, %v3414, 0.0
      %v3431 = vsel %vm1716, %v3415, 0.0
      %v3432 = vsel %vm1717, %v3416, 0.0
      %v3433 = vsel %vm1718, %v3417, 0.0
      %v3434 = vsel %vm1719, %v3418, 0.0
      %v3435 = vadd.f32 %v3367, %v3427
      %v3436 = vadd.f32 %v3368, %v3428
      %v3437 = vadd.f32 %v3369, %v3429
      %v3438 = vadd.f32 %v3370, %v3430
      %v3439 = vadd.f32 %v3371, %v3431
      %v3440 = vadd.f32 %v3372, %v3432
      %v3441 = vadd.f32 %v3373, %v3433
      %v3442 = vadd.f32 %v3374, %v3434
      %v3443 = vld [vmem:[#allocation3 + $0xf8] sm:$0xf0]
      %v3444 = vld [vmem:[#allocation3 + $0x100] sm:$0xf0]
      %v3445 = vld [vmem:[#allocation3 + $0x108] sm:$0xf0]
      %v3446 = vld [vmem:[#allocation3 + $0x110] sm:$0xf0]
      %v3447 = vld [vmem:[#allocation3 + $0x118] sm:$0xf0]
      %v3448 = vld [vmem:[#allocation3 + $0x120] sm:$0xf0]
      %v3449 = vld [vmem:[#allocation3 + $0x128] sm:$0xf0]
      %v3450 = vld [vmem:[#allocation3 + $0x130] sm:$0xf0]
      %v3451 = vld [vmem:[#allocation3 + $0x138] sm:$0xf0]
      %v3461 = vrot.slane %v3443, 4
      %v3462 = vrot.slane %v3444, 4
      %v3463 = vrot.slane %v3445, 4
      %v3464 = vrot.slane %v3446, 4
      %v3465 = vrot.slane %v3447, 4
      %v3466 = vrot.slane %v3448, 4
      %v3467 = vrot.slane %v3449, 4
      %v3468 = vrot.slane %v3450, 4
      %v3469 = vrot.slane %v3451, 4
      %3470 = vrot.lane.b32.xlu0 %v3461, 96
      %v3471 = vpop.permute.xlu0 %3470
      %3472 = vrot.lane.b32.xlu0 %v3462, 96
      %v3473 = vpop.permute.xlu0 %3472
      %3474 = vrot.lane.b32.xlu0 %v3463, 96
      %v3475 = vpop.permute.xlu0 %3474
      %3476 = vrot.lane.b32.xlu0 %v3464, 96
      %v3477 = vpop.permute.xlu0 %3476
      %3478 = vrot.lane.b32.xlu0 %v3465, 96
      %v3479 = vpop.permute.xlu0 %3478
      %3480 = vrot.lane.b32.xlu0 %v3466, 96
      %v3481 = vpop.permute.xlu0 %3480
      %3482 = vrot.lane.b32.xlu0 %v3467, 96
      %v3483 = vpop.permute.xlu0 %3482
      %3484 = vrot.lane.b32.xlu0 %v3468, 96
      %v3485 = vpop.permute.xlu0 %3484
      %3486 = vrot.lane.b32.xlu0 %v3469, 96
      %v3487 = vpop.permute.xlu0 %3486
      %v3488 = vsel %vm1816, %v3471, %v3473
      %v3489 = vsel %vm1816, %v3473, %v3475
      %v3490 = vsel %vm1816, %v3475, %v3477
      %v3491 = vsel %vm1816, %v3477, %v3479
      %v3492 = vsel %vm1816, %v3479, %v3481
      %v3493 = vsel %vm1816, %v3481, %v3483
      %v3494 = vsel %vm1816, %v3483, %v3485
      %v3495 = vsel %vm1816, %v3485, %v3487
      %v3504 = vsel %vm1704, %v3488, 0.0
      %v3505 = vsel %vm1705, %v3489, 0.0
      %v3506 = vsel %vm1706, %v3490, 0.0
      %v3507 = vsel %vm1707, %v3491, 0.0
      %v3508 = vsel %vm1708, %v3492, 0.0
      %v3509 = vsel %vm1709, %v3493, 0.0
      %v3510 = vsel %vm1710, %v3494, 0.0
      %v3511 = vsel %vm1711, %v3495, 0.0
      %v3512 = vadd.f32 %v3435, %v3504
      %v3513 = vadd.f32 %v3436, %v3505
      %v3514 = vadd.f32 %v3437, %v3506
      %v3515 = vadd.f32 %v3438, %v3507
      %v3516 = vadd.f32 %v3439, %v3508
      %v3517 = vadd.f32 %v3440, %v3509
      %v3518 = vadd.f32 %v3441, %v3510
      %v3519 = vadd.f32 %v3442, %v3511
      %v3520 = vld [vmem:[#allocation3 + $0x148] sm:$0xf]
      %v3521 = vld [vmem:[#allocation3 + $0x150] sm:$0xf]
      %v3522 = vld [vmem:[#allocation3 + $0x158] sm:$0xf]
      %v3523 = vld [vmem:[#allocation3 + $0x160] sm:$0xf]
      %v3524 = vld [vmem:[#allocation3 + $0x168] sm:$0xf]
      %v3525 = vld [vmem:[#allocation3 + $0x170] sm:$0xf]
      %v3526 = vld [vmem:[#allocation3 + $0x178] sm:$0xf]
      %v3527 = vld [vmem:[#allocation3 + $0x180] sm:$0xf]
      %v3528 = vld [vmem:[#allocation3 + $0x188] sm:$0xf]
      %3538 = vrot.lane.b32.xlu0 %v3520, 95
      %v3539 = vpop.permute.xlu0 %3538
      %3540 = vrot.lane.b32.xlu0 %v3521, 95
      %v3541 = vpop.permute.xlu0 %3540
      %3542 = vrot.lane.b32.xlu0 %v3522, 95
      %v3543 = vpop.permute.xlu0 %3542
      %3544 = vrot.lane.b32.xlu0 %v3523, 95
      %v3545 = vpop.permute.xlu0 %3544
      %3546 = vrot.lane.b32.xlu0 %v3524, 95
      %v3547 = vpop.permute.xlu0 %3546
      %3548 = vrot.lane.b32.xlu0 %v3525, 95
      %v3549 = vpop.permute.xlu0 %3548
      %3550 = vrot.lane.b32.xlu0 %v3526, 95
      %v3551 = vpop.permute.xlu0 %3550
      %3552 = vrot.lane.b32.xlu0 %v3527, 95
      %v3553 = vpop.permute.xlu0 %3552
      %3554 = vrot.lane.b32.xlu0 %v3528, 95
      %v3555 = vpop.permute.xlu0 %3554
      %v3556 = vsel %vm1917, %v3539, %v3541
      %v3557 = vsel %vm1917, %v3541, %v3543
      %v3558 = vsel %vm1917, %v3543, %v3545
      %v3559 = vsel %vm1917, %v3545, %v3547
      %v3560 = vsel %vm1917, %v3547, %v3549
      %v3561 = vsel %vm1917, %v3549, %v3551
      %v3562 = vsel %vm1917, %v3551, %v3553
      %v3563 = vsel %vm1917, %v3553, %v3555
      %v3572 = vsel %vm1882, %v3556, 0.0
      %v3573 = vsel %vm1883, %v3557, 0.0
      %v3574 = vsel %vm1884, %v3558, 0.0
      %v3575 = vsel %vm1885, %v3559, 0.0
      %v3576 = vsel %vm1886, %v3560, 0.0
      %v3577 = vsel %vm1887, %v3561, 0.0
      %v3578 = vsel %vm1888, %v3562, 0.0
      %v3579 = vsel %vm1889, %v3563, 0.0
      %v3580 = vadd.f32 %v3512, %v3572
      %v3581 = vadd.f32 %v3513, %v3573
      %v3582 = vadd.f32 %v3514, %v3574
      %v3583 = vadd.f32 %v3515, %v3575
      %v3584 = vadd.f32 %v3516, %v3576
      %v3585 = vadd.f32 %v3517, %v3577
      %v3586 = vadd.f32 %v3518, %v3578
      %v3587 = vadd.f32 %v3519, %v3579
      %v3588 = vld [vmem:[%s3] sm:$0xff]
      %v3589 = vld [vmem:[%s3 + $0x8] sm:$0xff]
      %v3590 = vld [vmem:[%s3 + $0x10] sm:$0xff]
      %v3591 = vld [vmem:[%s3 + $0x18] sm:$0xff]
      %v3592 = vld [vmem:[%s3 + $0x20] sm:$0xff]
      %v3593 = vld [vmem:[%s3 + $0x28] sm:$0xff]
      %v3594 = vld [vmem:[%s3 + $0x30] sm:$0xff]
      %v3595 = vld [vmem:[%s3 + $0x38] sm:$0xff]
      %v3596 = vld [vmem:[%s3 + $0x40] sm:$0xff]
      %v3597 = vld [vmem:[%s3 + $0x48] sm:$0xff]
      %v3598 = vld [vmem:[%s3 + $0x50] sm:$0xff]
      %v3599 = vld [vmem:[%s3 + $0x58] sm:$0xff]
      %v3600 = vld [vmem:[%s3 + $0x60] sm:$0xff]
      %v3601 = vld [vmem:[%s3 + $0x68] sm:$0xff]
      %v3602 = vld [vmem:[%s3 + $0x70] sm:$0xff]
      %v3603 = vld [vmem:[%s3 + $0x78] sm:$0xff]
      %v3604 = vld [vmem:[%s3 + $0x80] sm:$0xff]
      %v3605 = vld [vmem:[%s3 + $0x88] sm:$0xff]
      %v3606 = vld [vmem:[%s3 + $0x90] sm:$0xff]
      %v3607 = vld [vmem:[%s3 + $0x98] sm:$0xff]
      %v3608 = vld [vmem:[%s3 + $0xa0] sm:$0xff]
      %v3609 = vld [vmem:[%s3 + $0xa8] sm:$0xff]
      %v3610 = vld [vmem:[%s3 + $0xb0] sm:$0xff]
      %v3611 = vld [vmem:[%s3 + $0xb8] sm:$0xff]
      %v3612 = vld [vmem:[%s3 + $0xc0] sm:$0xff]
      %v3613 = vld [vmem:[%s3 + $0xc8] sm:$0xff]
      %v3614 = vld [vmem:[%s3 + $0xd0] sm:$0xff]
      %v3615 = vld [vmem:[%s3 + $0xd8] sm:$0xff]
      %v3616 = vld [vmem:[%s3 + $0xe0] sm:$0xff]
      %v3617 = vld [vmem:[%s3 + $0xe8] sm:$0xff]
      %v3618 = vld [vmem:[%s3 + $0xf0] sm:$0xff]
      %v3619 = vld [vmem:[%s3 + $0xf8] sm:$0xff]
      %v3620 = vld [vmem:[%s3 + $0x100] sm:$0xff]
      %v3621 = vld [vmem:[%s3 + $0x108] sm:$0xff]
      %v3622 = vld [vmem:[%s3 + $0x110] sm:$0xff]
      %v3623 = vld [vmem:[%s3 + $0x118] sm:$0xff]
      %v3624 = vld [vmem:[%s3 + $0x120] sm:$0xff]
      %v3625 = vld [vmem:[%s3 + $0x128] sm:$0xff]
      %v3626 = vld [vmem:[%s3 + $0x130] sm:$0xff]
      %v3627 = vld [vmem:[%s3 + $0x138] sm:$0xff]
      %v3628 = vld [vmem:[%s3 + $0x140] sm:$0xff]
      %v3629 = vld [vmem:[%s3 + $0x148] sm:$0xff]
      %v3630 = vld [vmem:[%s3 + $0x150] sm:$0xff]
      %v3631 = vld [vmem:[%s3 + $0x158] sm:$0xff]
      %v3632 = vld [vmem:[%s3 + $0x160] sm:$0xff]
      %v3633 = vld [vmem:[%s3 + $0x168] sm:$0xff]
      %v3634 = vld [vmem:[%s3 + $0x170] sm:$0xff]
      %v3635 = vld [vmem:[%s3 + $0x178] sm:$0xff]
      %v3636 = vld [vmem:[%s3 + $0x180] sm:$0xff]
      %v3637 = vld [vmem:[%s3 + $0x188] sm:$0xff]
      %v3638 = vld [vmem:[%s3 + $0x190] sm:$0xff]
      %v3639 = vld [vmem:[%s3 + $0x198] sm:$0xff]
      %v3640 = vld [vmem:[%s3 + $0x1a0] sm:$0xff]
      %v3641 = vld [vmem:[%s3 + $0x1a8] sm:$0xff]
      %v3642 = vld [vmem:[%s3 + $0x1b0] sm:$0xff]
      %v3643 = vld [vmem:[%s3 + $0x1b8] sm:$0xff]
      %v3644 = vld [vmem:[%s3 + $0x1c0] sm:$0xff]
      %v3645 = vld [vmem:[%s3 + $0x1c8] sm:$0xff]
      %v3646 = vld [vmem:[%s3 + $0x1d0] sm:$0xff]
      %v3647 = vld [vmem:[%s3 + $0x1d8] sm:$0xff]
      %v3648 = vld [vmem:[%s3 + $0x1e0] sm:$0xff]
      %v3649 = vld [vmem:[%s3 + $0x1e8] sm:$0xff]
      %v3650 = vld [vmem:[%s3 + $0x1f0] sm:$0xff]
      %v3651 = vld [vmem:[%s3 + $0x1f8] sm:$0xff]
      %v3652 = vld [vmem:[%s3 + $0x200] sm:$0xff]
      %v3653 = vld [vmem:[%s3 + $0x208] sm:$0xff]
      %v3654 = vld [vmem:[%s3 + $0x210] sm:$0xff]
      %v3655 = vld [vmem:[%s3 + $0x218] sm:$0xff]
      %v3656 = vld [vmem:[%s3 + $0x220] sm:$0xff]
      %v3657 = vld [vmem:[%s3 + $0x228] sm:$0xff]
      %v3658 = vld [vmem:[%s3 + $0x230] sm:$0xff]
      %v3659 = vld [vmem:[%s3 + $0x238] sm:$0xff]
      %v3660 = vld [vmem:[%s3 + $0x240] sm:$0xff]
      %v3661 = vld [vmem:[%s3 + $0x248] sm:$0xff]
      %v3662 = vld [vmem:[%s3 + $0x250] sm:$0xff]
      %v3663 = vld [vmem:[%s3 + $0x258] sm:$0xff]
      %v3664 = vld [vmem:[%s3 + $0x260] sm:$0xff]
      %v3665 = vld [vmem:[%s3 + $0x268] sm:$0xff]
      %v3666 = vld [vmem:[%s3 + $0x270] sm:$0xff]
      %v3667 = vld [vmem:[%s3 + $0x278] sm:$0xff]
      %v3668 = vld [vmem:[%s3 + $0x280] sm:$0xff]
      %v3669 = vld [vmem:[%s3 + $0x288] sm:$0xff]
      %v3670 = vld [vmem:[%s3 + $0x290] sm:$0xff]
      %v3671 = vld [vmem:[%s3 + $0x298] sm:$0xff]
      %v3672 = vld [vmem:[%s3 + $0x2a0] sm:$0xff]
      %v3673 = vld [vmem:[%s3 + $0x2a8] sm:$0xff]
      %v3674 = vld [vmem:[%s3 + $0x2b0] sm:$0xff]
      %v3675 = vld [vmem:[%s3 + $0x2b8] sm:$0xff]
      %v3676 = vld [vmem:[%s3 + $0x2c0] sm:$0xff]
      %v3677 = vld [vmem:[%s3 + $0x2c8] sm:$0xff]
      %v3678 = vld [vmem:[%s3 + $0x2d0] sm:$0xff]
      %v3679 = vld [vmem:[%s3 + $0x2d8] sm:$0xff]
      %v3680 = vld [vmem:[%s3 + $0x2e0] sm:$0xff]
      %v3681 = vld [vmem:[%s3 + $0x2e8] sm:$0xff]
      %v3682 = vld [vmem:[%s3 + $0x2f0] sm:$0xff]
      %v3683 = vld [vmem:[%s3 + $0x2f8] sm:$0xff]
      %v3684 = vld [vmem:[%s3 + $0x300] sm:$0xff]
      %v3685 = vld [vmem:[%s3 + $0x308] sm:$0xff]
      %v3686 = vld [vmem:[%s3 + $0x310] sm:$0xff]
      %v3687 = vld [vmem:[%s3 + $0x318] sm:$0xff]
      %v3688 = vld [vmem:[%s3 + $0x320] sm:$0xff]
      %v3689 = vld [vmem:[%s3 + $0x328] sm:$0xff]
      %v3690 = vld [vmem:[%s3 + $0x330] sm:$0xff]
      %v3691 = vld [vmem:[%s3 + $0x338] sm:$0xff]
      %v3692 = vld [vmem:[%s3 + $0x340] sm:$0xff]
      %v3693 = vld [vmem:[%s3 + $0x348] sm:$0xff]
      %v3694 = vld [vmem:[%s3 + $0x350] sm:$0xff]
      %v3695 = vld [vmem:[%s3 + $0x358] sm:$0xff]
      %v3696 = vld [vmem:[%s3 + $0x360] sm:$0xff]
      %v3697 = vld [vmem:[%s3 + $0x368] sm:$0xff]
      %v3698 = vld [vmem:[%s3 + $0x370] sm:$0xff]
      %v3699 = vld [vmem:[%s3 + $0x378] sm:$0xff]
      %v3700 = vld [vmem:[%s3 + $0x380] sm:$0xff]
      %v3701 = vld [vmem:[%s3 + $0x388] sm:$0xff]
      %v3702 = vld [vmem:[%s3 + $0x390] sm:$0xff]
      %v3703 = vld [vmem:[%s3 + $0x398] sm:$0xff]
      %v3704 = vld [vmem:[%s3 + $0x3a0] sm:$0xff]
      %v3705 = vld [vmem:[%s3 + $0x3a8] sm:$0xff]
      %v3706 = vld [vmem:[%s3 + $0x3b0] sm:$0xff]
      %v3707 = vld [vmem:[%s3 + $0x3b8] sm:$0xff]
      %v3708 = vld [vmem:[%s3 + $0x3c0] sm:$0xff]
      %v3709 = vld [vmem:[%s3 + $0x3c8] sm:$0xff]
      %v3710 = vld [vmem:[%s3 + $0x3d0] sm:$0xff]
      %v3711 = vld [vmem:[%s3 + $0x3d8] sm:$0xff]
      %v3712 = vld [vmem:[%s3 + $0x3e0] sm:$0xff]
      %v3713 = vld [vmem:[%s3 + $0x3e8] sm:$0xff]
      %v3714 = vld [vmem:[%s3 + $0x3f0] sm:$0xff]
      %v3715 = vld [vmem:[%s3 + $0x3f8] sm:$0xff]
      %3716 = vmatprep.subr.mxu0 0.0
      %3717 = vmatpush1.msra.mxu0 %v3603
      %3718 = vmatprep.subr.mxu0 0.0
      %3719 = vmatpush1.msra.mxu0 %v3602
      %3720 = vmatprep.subr.mxu0 0.0
      %3721 = vmatpush1.msra.mxu0 %v3601
      %3722 = vmatprep.subr.mxu0 0.0
      %3723 = vmatpush1.msra.mxu0 %v3600
      %3724 = vmatprep.subr.mxu0 0.0
      %3725 = vmatpush1.msra.mxu0 %v3599
      %3726 = vmatprep.subr.mxu0 0.0
      %3727 = vmatpush1.msra.mxu0 %v3598
      %3728 = vmatprep.subr.mxu0 0.0
      %3729 = vmatpush1.msra.mxu0 %v3597
      %3730 = vmatprep.subr.mxu0 0.0
      %3731 = vmatpush1.msra.mxu0 %v3596
      %3732 = vmatprep.subr.mxu0 0.0
      %3733 = vmatpush1.msra.mxu0 %v3595
      %3734 = vmatprep.subr.mxu0 0.0
      %3735 = vmatpush1.msra.mxu0 %v3594
      %3736 = vmatprep.subr.mxu0 0.0
      %3737 = vmatpush1.msra.mxu0 %v3593
      %3738 = vmatprep.subr.mxu0 0.0
      %3739 = vmatpush1.msra.mxu0 %v3592
      %3740 = vmatprep.subr.mxu0 0.0
      %3741 = vmatpush1.msra.mxu0 %v3591
      %3742 = vmatprep.subr.mxu0 0.0
      %3743 = vmatpush1.msra.mxu0 %v3590
      %3744 = vmatprep.subr.mxu0 0.0
      %3745 = vmatpush1.msra.mxu0 %v3589
      %3746 = vmatprep.subr.mxu0 0.0
      %3747 = vmatpush1.msra.mxu0 %v3588
      %3748 = vmatprep.subr.mxu0 0.0
      %3749 = vmatpush2.msra.mxu0 %v3619
      %3750 = vmatprep.subr.mxu0 0.0
      %3751 = vmatpush2.msra.mxu0 %v3618
      %3752 = vmatprep.subr.mxu0 0.0
      %3753 = vmatpush2.msra.mxu0 %v3617
      %3754 = vmatprep.subr.mxu0 0.0
      %3755 = vmatpush2.msra.mxu0 %v3616
      %3756 = vmatprep.subr.mxu0 0.0
      %3757 = vmatpush2.msra.mxu0 %v3615
      %3758 = vmatprep.subr.mxu0 0.0
      %3759 = vmatpush2.msra.mxu0 %v3614
      %3760 = vmatprep.subr.mxu0 0.0
      %3761 = vmatpush2.msra.mxu0 %v3613
      %3762 = vmatprep.subr.mxu0 0.0
      %3763 = vmatpush2.msra.mxu0 %v3612
      %3764 = vmatprep.subr.mxu0 0.0
      %3765 = vmatpush2.msra.mxu0 %v3611
      %3766 = vmatprep.subr.mxu0 0.0
      %3767 = vmatpush2.msra.mxu0 %v3610
      %3768 = vmatprep.subr.mxu0 0.0
      %3769 = vmatpush2.msra.mxu0 %v3609
      %3770 = vmatprep.subr.mxu0 0.0
      %3771 = vmatpush2.msra.mxu0 %v3608
      %3772 = vmatprep.subr.mxu0 0.0
      %3773 = vmatpush2.msra.mxu0 %v3607
      %3774 = vmatprep.subr.mxu0 0.0
      %3775 = vmatpush2.msra.mxu0 %v3606
      %3776 = vmatprep.subr.mxu0 0.0
      %3777 = vmatpush2.msra.mxu0 %v3605
      %3778 = vmatprep.subr.mxu0 0.0
      %3779 = vmatpush2.msra.mxu0 %v3604
      %3780 = vmatprep.mubr.f32.mxu0 %v3581
      %3781 = vmatmul.mubr.f32.gmra.mxu0 %v3580
      %v3782 = vpop.f32.mrf.mxu0
      %v3783 = vadd.f32 0.0, %v3782
      %v3784 = vpop.f32.mrf.mxu0
      %3785 = vdwg.mxu0
      %3786 = vmatprep.subr.mxu0 0.0
      %3787 = vmatpush1.msra.mxu0 %v3635
      %3788 = vmatprep.subr.mxu0 0.0
      %3789 = vmatpush1.msra.mxu0 %v3634
      %3790 = vmatprep.subr.mxu0 0.0
      %3791 = vmatpush1.msra.mxu0 %v3633
      %3792 = vmatprep.subr.mxu0 0.0
      %3793 = vmatpush1.msra.mxu0 %v3632
      %3794 = vmatprep.subr.mxu0 0.0
      %3795 = vmatpush1.msra.mxu0 %v3631
      %3796 = vmatprep.subr.mxu0 0.0
      %3797 = vmatpush1.msra.mxu0 %v3630
      %3798 = vmatprep.subr.mxu0 0.0
      %3799 = vmatpush1.msra.mxu0 %v3629
      %3800 = vmatprep.subr.mxu0 0.0
      %3801 = vmatpush1.msra.mxu0 %v3628
      %3802 = vmatprep.subr.mxu0 0.0
      %3803 = vmatpush1.msra.mxu0 %v3627
      %3804 = vmatprep.subr.mxu0 0.0
      %3805 = vmatpush1.msra.mxu0 %v3626
      %3806 = vmatprep.subr.mxu0 0.0
      %3807 = vmatpush1.msra.mxu0 %v3625
      %3808 = vmatprep.subr.mxu0 0.0
      %3809 = vmatpush1.msra.mxu0 %v3624
      %3810 = vmatprep.subr.mxu0 0.0
      %3811 = vmatpush1.msra.mxu0 %v3623
      %3812 = vmatprep.subr.mxu0 0.0
      %3813 = vmatpush1.msra.mxu0 %v3622
      %3814 = vmatprep.subr.mxu0 0.0
      %3815 = vmatpush1.msra.mxu0 %v3621
      %3816 = vmatprep.subr.mxu0 0.0
      %3817 = vmatpush1.msra.mxu0 %v3620
      %3818 = vmatprep.subr.mxu0 0.0
      %3819 = vmatpush2.msra.mxu0 %v3651
      %3820 = vmatprep.subr.mxu0 0.0
      %3821 = vmatpush2.msra.mxu0 %v3650
      %3822 = vmatprep.subr.mxu0 0.0
      %3823 = vmatpush2.msra.mxu0 %v3649
      %3824 = vmatprep.subr.mxu0 0.0
      %3825 = vmatpush2.msra.mxu0 %v3648
      %3826 = vmatprep.subr.mxu0 0.0
      %3827 = vmatpush2.msra.mxu0 %v3647
      %3828 = vmatprep.subr.mxu0 0.0
      %3829 = vmatpush2.msra.mxu0 %v3646
      %3830 = vmatprep.subr.mxu0 0.0
      %3831 = vmatpush2.msra.mxu0 %v3645
      %3832 = vmatprep.subr.mxu0 0.0
      %3833 = vmatpush2.msra.mxu0 %v3644
      %3834 = vmatprep.subr.mxu0 0.0
      %3835 = vmatpush2.msra.mxu0 %v3643
      %3836 = vmatprep.subr.mxu0 0.0
      %3837 = vmatpush2.msra.mxu0 %v3642
      %3838 = vmatprep.subr.mxu0 0.0
      %3839 = vmatpush2.msra.mxu0 %v3641
      %3840 = vmatprep.subr.mxu0 0.0
      %3841 = vmatpush2.msra.mxu0 %v3640
      %3842 = vmatprep.subr.mxu0 0.0
      %3843 = vmatpush2.msra.mxu0 %v3639
      %3844 = vmatprep.subr.mxu0 0.0
      %3845 = vmatpush2.msra.mxu0 %v3638
      %3846 = vmatprep.subr.mxu0 0.0
      %3847 = vmatpush2.msra.mxu0 %v3637
      %3848 = vmatprep.subr.mxu0 0.0
      %3849 = vmatpush2.msra.mxu0 %v3636
      %3850 = vmatprep.mubr.f32.mxu0 %v3583
      %3851 = vmatmul.mubr.f32.gmra.mxu0 %v3582
      %v3852 = vpop.f32.mrf.mxu0
      %v3853 = vadd.f32 %v3783, %v3852
      %v3854 = vpop.f32.mrf.mxu0
      %3855 = vdwg.mxu0
      %3856 = vmatprep.subr.mxu0 0.0
      %3857 = vmatpush1.msra.mxu0 %v3667
      %3858 = vmatprep.subr.mxu0 0.0
      %3859 = vmatpush1.msra.mxu0 %v3666
      %3860 = vmatprep.subr.mxu0 0.0
      %3861 = vmatpush1.msra.mxu0 %v3665
      %3862 = vmatprep.subr.mxu0 0.0
      %3863 = vmatpush1.msra.mxu0 %v3664
      %3864 = vmatprep.subr.mxu0 0.0
      %3865 = vmatpush1.msra.mxu0 %v3663
      %3866 = vmatprep.subr.mxu0 0.0
      %3867 = vmatpush1.msra.mxu0 %v3662
      %3868 = vmatprep.subr.mxu0 0.0
      %3869 = vmatpush1.msra.mxu0 %v3661
      %3870 = vmatprep.subr.mxu0 0.0
      %3871 = vmatpush1.msra.mxu0 %v3660
      %3872 = vmatprep.subr.mxu0 0.0
      %3873 = vmatpush1.msra.mxu0 %v3659
      %3874 = vmatprep.subr.mxu0 0.0
      %3875 = vmatpush1.msra.mxu0 %v3658
      %3876 = vmatprep.subr.mxu0 0.0
      %3877 = vmatpush1.msra.mxu0 %v3657
      %3878 = vmatprep.subr.mxu0 0.0
      %3879 = vmatpush1.msra.mxu0 %v3656
      %3880 = vmatprep.subr.mxu0 0.0
      %3881 = vmatpush1.msra.mxu0 %v3655
      %3882 = vmatprep.subr.mxu0 0.0
      %3883 = vmatpush1.msra.mxu0 %v3654
      %3884 = vmatprep.subr.mxu0 0.0
      %3885 = vmatpush1.msra.mxu0 %v3653
      %3886 = vmatprep.subr.mxu0 0.0
      %3887 = vmatpush1.msra.mxu0 %v3652
      %3888 = vmatprep.subr.mxu0 0.0
      %3889 = vmatpush2.msra.mxu0 %v3683
      %3890 = vmatprep.subr.mxu0 0.0
      %3891 = vmatpush2.msra.mxu0 %v3682
      %3892 = vmatprep.subr.mxu0 0.0
      %3893 = vmatpush2.msra.mxu0 %v3681
      %3894 = vmatprep.subr.mxu0 0.0
      %3895 = vmatpush2.msra.mxu0 %v3680
      %3896 = vmatprep.subr.mxu0 0.0
      %3897 = vmatpush2.msra.mxu0 %v3679
      %3898 = vmatprep.subr.mxu0 0.0
      %3899 = vmatpush2.msra.mxu0 %v3678
      %3900 = vmatprep.subr.mxu0 0.0
      %3901 = vmatpush2.msra.mxu0 %v3677
      %3902 = vmatprep.subr.mxu0 0.0
      %3903 = vmatpush2.msra.mxu0 %v3676
      %3904 = vmatprep.subr.mxu0 0.0
      %3905 = vmatpush2.msra.mxu0 %v3675
      %3906 = vmatprep.subr.mxu0 0.0
      %3907 = vmatpush2.msra.mxu0 %v3674
      %3908 = vmatprep.subr.mxu0 0.0
      %3909 = vmatpush2.msra.mxu0 %v3673
      %3910 = vmatprep.subr.mxu0 0.0
      %3911 = vmatpush2.msra.mxu0 %v3672
      %3912 = vmatprep.subr.mxu0 0.0
      %3913 = vmatpush2.msra.mxu0 %v3671
      %3914 = vmatprep.subr.mxu0 0.0
      %3915 = vmatpush2.msra.mxu0 %v3670
      %3916 = vmatprep.subr.mxu0 0.0
      %3917 = vmatpush2.msra.mxu0 %v3669
      %3918 = vmatprep.subr.mxu0 0.0
      %3919 = vmatpush2.msra.mxu0 %v3668
      %3920 = vmatprep.mubr.f32.mxu0 %v3585
      %3921 = vmatmul.mubr.f32.gmra.mxu0 %v3584
      %v3922 = vpop.f32.mrf.mxu0
      %v3923 = vadd.f32 %v3853, %v3922
      %v3924 = vpop.f32.mrf.mxu0
      %3925 = vdwg.mxu0
      %3926 = vmatprep.subr.mxu0 0.0
      %3927 = vmatpush1.msra.mxu0 %v3699
      %3928 = vmatprep.subr.mxu0 0.0
      %3929 = vmatpush1.msra.mxu0 %v3698
      %3930 = vmatprep.subr.mxu0 0.0
      %3931 = vmatpush1.msra.mxu0 %v3697
      %3932 = vmatprep.subr.mxu0 0.0
      %3933 = vmatpush1.msra.mxu0 %v3696
      %3934 = vmatprep.subr.mxu0 0.0
      %3935 = vmatpush1.msra.mxu0 %v3695
      %3936 = vmatprep.subr.mxu0 0.0
      %3937 = vmatpush1.msra.mxu0 %v3694
      %3938 = vmatprep.subr.mxu0 0.0
      %3939 = vmatpush1.msra.mxu0 %v3693
      %3940 = vmatprep.subr.mxu0 0.0
      %3941 = vmatpush1.msra.mxu0 %v3692
      %3942 = vmatprep.subr.mxu0 0.0
      %3943 = vmatpush1.msra.mxu0 %v3691
      %3944 = vmatprep.subr.mxu0 0.0
      %3945 = vmatpush1.msra.mxu0 %v3690
      %3946 = vmatprep.subr.mxu0 0.0
      %3947 = vmatpush1.msra.mxu0 %v3689
      %3948 = vmatprep.subr.mxu0 0.0
      %3949 = vmatpush1.msra.mxu0 %v3688
      %3950 = vmatprep.subr.mxu0 0.0
      %3951 = vmatpush1.msra.mxu0 %v3687
      %3952 = vmatprep.subr.mxu0 0.0
      %3953 = vmatpush1.msra.mxu0 %v3686
      %3954 = vmatprep.subr.mxu0 0.0
      %3955 = vmatpush1.msra.mxu0 %v3685
      %3956 = vmatprep.subr.mxu0 0.0
      %3957 = vmatpush1.msra.mxu0 %v3684
      %3958 = vmatprep.subr.mxu0 0.0
      %3959 = vmatpush2.msra.mxu0 %v3715
      %3960 = vmatprep.subr.mxu0 0.0
      %3961 = vmatpush2.msra.mxu0 %v3714
      %3962 = vmatprep.subr.mxu0 0.0
      %3963 = vmatpush2.msra.mxu0 %v3713
      %3964 = vmatprep.subr.mxu0 0.0
      %3965 = vmatpush2.msra.mxu0 %v3712
      %3966 = vmatprep.subr.mxu0 0.0
      %3967 = vmatpush2.msra.mxu0 %v3711
      %3968 = vmatprep.subr.mxu0 0.0
      %3969 = vmatpush2.msra.mxu0 %v3710
      %3970 = vmatprep.subr.mxu0 0.0
      %3971 = vmatpush2.msra.mxu0 %v3709
      %3972 = vmatprep.subr.mxu0 0.0
      %3973 = vmatpush2.msra.mxu0 %v3708
      %3974 = vmatprep.subr.mxu0 0.0
      %3975 = vmatpush2.msra.mxu0 %v3707
      %3976 = vmatprep.subr.mxu0 0.0
      %3977 = vmatpush2.msra.mxu0 %v3706
      %3978 = vmatprep.subr.mxu0 0.0
      %3979 = vmatpush2.msra.mxu0 %v3705
      %3980 = vmatprep.subr.mxu0 0.0
      %3981 = vmatpush2.msra.mxu0 %v3704
      %3982 = vmatprep.subr.mxu0 0.0
      %3983 = vmatpush2.msra.mxu0 %v3703
      %3984 = vmatprep.subr.mxu0 0.0
      %3985 = vmatpush2.msra.mxu0 %v3702
      %3986 = vmatprep.subr.mxu0 0.0
      %3987 = vmatpush2.msra.mxu0 %v3701
      %3988 = vmatprep.subr.mxu0 0.0
      %3989 = vmatpush2.msra.mxu0 %v3700
      %3990 = vmatprep.mubr.f32.mxu0 %v3587
      %3991 = vmatmul.mubr.f32.gmra.mxu0 %v3586
      %v3992 = vpop.f32.mrf.mxu0
      %v3993 = vadd.f32 %v3923, %v3992
      %v3994 = vpop.f32.mrf.mxu0
      %3995 = vdwg.mxu0
      %v3996 = vsub.f32 %v782, %v3993
      %v3997 = vld [vmem:[%s733] sm:$0xff]
      %v3998 = vld [vmem:[%s733 + $0x8] sm:$0xff]
      %v3999 = vld [vmem:[%s733 + $0x10] sm:$0xff]
      %v4000 = vld [vmem:[%s733 + $0x18] sm:$0xff]
      %v4001 = vld [vmem:[%s733 + $0x20] sm:$0xff]
      %v4002 = vld [vmem:[%s733 + $0x28] sm:$0xff]
      %v4003 = vld [vmem:[%s733 + $0x30] sm:$0xff]
      %v4004 = vld [vmem:[%s733 + $0x38] sm:$0xff]
      %v4005 = vld [vmem:[%s738] sm:$0xff]
      %v4006 = vld [vmem:[%s738 + $0x8] sm:$0xff]
      %v4007 = vld [vmem:[%s738 + $0x10] sm:$0xff]
      %v4008 = vld [vmem:[%s738 + $0x18] sm:$0xff]
      %v4009 = vld [vmem:[%s738 + $0x20] sm:$0xf]
      %vm4010 = vcmask 519168
      %4011 = vst.msk [vmem:[#allocation3 + $0x8] sm:$0xf] %vm4010, %v3996
      %v4012 = vld [vmem:[#allocation3] sm:$0xf]
      %v4013 = vld [vmem:[#allocation3 + $0x8] sm:$0xf]
      %v4014 = vshra.s32 %v1207, 3
      %v4015 = vand.u32 %v1207, 7
      %vm4016 = vcmp.ge.s32.totalorder %v4014, 1
      %vm4017 = vcmp.ge.s32.totalorder %v4015, 1
      %vm4018 = vmand %vm4016, %vm4017
      %4021 = vrot.lane.b32.xlu0 %v4012, 9
      %v4022 = vpop.permute.xlu0 %4021
      %4023 = vrot.lane.b32.xlu0 %v4013, 9
      %v4024 = vpop.permute.xlu0 %4023
      %vm4025 = vcmask 72704
      %v4026 = vsel %vm4025, %v4022, %v4024
      %v4028 = vsel %vm4018, %v4026, 0.0
      %4029 = vst.msk [vmem:[#allocation4] sm:$0xf] %vm4010, %v4028
      %v4030 = vld [vmem:[#allocation3] sm:$0xf]
      %v4031 = vld [vmem:[#allocation3 + $0x8] sm:$0xf]
      %4034 = vrot.lane.b32.xlu0 %v4030, 8
      %v4035 = vpop.permute.xlu0 %4034
      %4036 = vrot.lane.b32.xlu0 %v4031, 8
      %v4037 = vpop.permute.xlu0 %4036
      %vm4038 = vcmask 64512
      %v4039 = vsel %vm4038, %v4035, %v4037
      %v4041 = vsel %vm4016, %v4039, 0.0
      %v4043 = vrot.slane %v4041, 4
      %vm4045 = vcmask 523268
      %4046 = vst.msk [vmem:[#allocation4] sm:$0xf0] %vm4045, %v4043
      %v4047 = vld [vmem:[#allocation3] sm:$0xf]
      %v4048 = vld [vmem:[#allocation3 + $0x8] sm:$0xf]
      %vm4049 = vcmp.le.s32.totalorder %v4015, 6
      %vm4050 = vmand %vm4016, %vm4049
      %4053 = vrot.lane.b32.xlu0 %v4047, 7
      %v4054 = vpop.permute.xlu0 %4053
      %4055 = vrot.lane.b32.xlu0 %v4048, 7
      %v4056 = vpop.permute.xlu0 %4055
      %vm4057 = vcmask 56320
      %v4058 = vsel %vm4057, %v4054, %v4056
      %v4060 = vsel %vm4050, %v4058, 0.0
      %4061 = vst.msk [vmem:[#allocation4 + $0x40] sm:$0xf] %vm4010, %v4060
      %v4062 = vld [vmem:[#allocation3] sm:$0xf]
      %v4063 = vld [vmem:[#allocation3 + $0x8] sm:$0xf]
      %4066 = vrot.lane.b32.xlu0 %v4062, 1
      %v4067 = vpop.permute.xlu0 %4066
      %4068 = vrot.lane.b32.xlu0 %v4063, 1
      %v4069 = vpop.permute.xlu0 %4068
      %v4070 = vsel %vm1529, %v4067, %v4069
      %v4072 = vsel %vm4017, %v4070, 0.0
      %v4074 = vrot.slane %v4072, 4
      %4076 = vst.msk [vmem:[#allocation4 + $0x40] sm:$0xf0] %vm4045, %v4074
      %v4077 = vld [vmem:[#allocation3 + $0x8] sm:$0xf]
      %4078 = vst.msk [vmem:[#allocation4 + $0x80] sm:$0xf] %vm4010, %v4077
      %v4079 = vld [vmem:[#allocation3 + $0x8] sm:$0xf]
      %4081 = vrot.lane.b32.xlu0 %v4079, 127
      %v4082 = vpop.permute.xlu0 %4081
      %v4084 = vsel %vm4049, %v4082, 0.0
      %v4086 = vrot.slane %v4084, 4
      %4088 = vst.msk [vmem:[#allocation4 + $0x80] sm:$0xf0] %vm4045, %v4086
      %v4089 = vld [vmem:[#allocation3 + $0x8] sm:$0xf]
      %vm4090 = vcmp.le.s32.totalorder %v4014, 6
      %vm4091 = vmand %vm4090, %vm4017
      %4093 = vrot.lane.b32.xlu0 %v4089, 121
      %v4094 = vpop.permute.xlu0 %4093
      %v4096 = vsel %vm4091, %v4094, 0.0
      %4097 = vst.msk [vmem:[#allocation4 + $0xc0] sm:$0xf] %vm4010, %v4096
      %v4098 = vld [vmem:[#allocation3 + $0x8] sm:$0xf]
      %4100 = vrot.lane.b32.xlu0 %v4098, 120
      %v4101 = vpop.permute.xlu0 %4100
      %v4103 = vsel %vm4090, %v4101, 0.0
      %v4105 = vrot.slane %v4103, 4
      %4107 = vst.msk [vmem:[#allocation4 + $0xc0] sm:$0xf0] %vm4045, %v4105
      %v4108 = vld [vmem:[#allocation3 + $0x8] sm:$0xf]
      %vm4109 = vmand %vm4090, %vm4049
      %4111 = vrot.lane.b32.xlu0 %v4108, 119
      %v4112 = vpop.permute.xlu0 %4111
      %v4114 = vsel %vm4109, %v4112, 0.0
      %4115 = vst.msk [vmem:[#allocation4 + $0x100] sm:$0xf] %vm4010, %v4114
      %v4116 = vld [vmem:[#allocation4] sm:$0xff]
      %v4117 = vld [vmem:[#allocation4 + $0x40] sm:$0xff]
      %v4118 = vld [vmem:[#allocation4 + $0x80] sm:$0xff]
      %v4119 = vld [vmem:[#allocation4 + $0xc0] sm:$0xff]
      %v4120 = vld [vmem:[#allocation4 + $0x100] sm:$0xf]
      %v4122 = vsel %vm1990, %v3997, 0
      %v4125 = vsel %vm1990, %v3998, 0
      %v4128 = vsel %vm1990, %v3999, 0
      %v4131 = vsel %vm1990, %v4000, 0
      %v4134 = vsel %vm1990, %v4001, 0
      %v4137 = vsel %vm1990, %v4002, 0
      %v4140 = vsel %vm1990, %v4003, 0
      %v4143 = vsel %vm1990, %v4004, 0
      %v4146 = vsel %vm2015, %v4120, 0
      %4148 = vmatprep.subr.mxu0 0.0
      %4149 = vmatpush1.msra.mxu0 0.0
      %4150 = vmatprep.subr.mxu0 0.0
      %4151 = vmatpush1.msra.mxu0 0.0
      %4152 = vmatprep.subr.mxu0 0.0
      %4153 = vmatpush1.msra.mxu0 0.0
      %4154 = vmatprep.subr.mxu0 0.0
      %4155 = vmatpush1.msra.mxu0 0.0
      %4156 = vmatprep.subr.mxu0 0.0
      %4157 = vmatpush1.msra.mxu0 0.0
      %4158 = vmatprep.subr.mxu0 0.0
      %4159 = vmatpush1.msra.mxu0 0.0
      %4160 = vmatprep.subr.mxu0 0.0
      %4161 = vmatpush1.msra.mxu0 0.0
      %4162 = vmatprep.subr.mxu0 0.0
      %4163 = vmatpush1.msra.mxu0 0.0
      %4164 = vmatprep.subr.mxu0 0.0
      %4165 = vmatpush1.msra.mxu0 0.0
      %4166 = vmatprep.subr.mxu0 0.0
      %4167 = vmatpush1.msra.mxu0 0.0
      %4168 = vmatprep.subr.mxu0 0.0
      %4169 = vmatpush1.msra.mxu0 0.0
      %4170 = vmatprep.subr.mxu0 0.0
      %4171 = vmatpush1.msra.mxu0 %v4146
      %4172 = vmatprep.subr.mxu0 0.0
      %4173 = vmatpush1.msra.mxu0 %v4119
      %4174 = vmatprep.subr.mxu0 0.0
      %4175 = vmatpush1.msra.mxu0 %v4118
      %4176 = vmatprep.subr.mxu0 0.0
      %4177 = vmatpush1.msra.mxu0 %v4117
      %4178 = vmatprep.subr.mxu0 0.0
      %4179 = vmatpush1.msra.mxu0 %v4116
      %4180 = vmatprep.subr.mxu0 0.0
      %4181 = vmatpush2.msra.mxu0 0.0
      %4182 = vmatprep.subr.mxu0 0.0
      %4183 = vmatpush2.msra.mxu0 0.0
      %4184 = vmatprep.subr.mxu0 0.0
      %4185 = vmatpush2.msra.mxu0 0.0
      %4186 = vmatprep.subr.mxu0 0.0
      %4187 = vmatpush2.msra.mxu0 0.0
      %4188 = vmatprep.subr.mxu0 0.0
      %4189 = vmatpush2.msra.mxu0 0.0
      %4190 = vmatprep.subr.mxu0 0.0
      %4191 = vmatpush2.msra.mxu0 0.0
      %4192 = vmatprep.subr.mxu0 0.0
      %4193 = vmatpush2.msra.mxu0 0.0
      %4194 = vmatprep.subr.mxu0 0.0
      %4195 = vmatpush2.msra.mxu0 0.0
      %4196 = vmatprep.subr.mxu0 0.0
      %4197 = vmatpush2.msra.mxu0 0.0
      %4198 = vmatprep.subr.mxu0 0.0
      %4199 = vmatpush2.msra.mxu0 0.0
      %4200 = vmatprep.subr.mxu0 0.0
      %4201 = vmatpush2.msra.mxu0 0.0
      %4202 = vmatprep.subr.mxu0 0.0
      %4203 = vmatpush2.msra.mxu0 0.0
      %4204 = vmatprep.subr.mxu0 0.0
      %4205 = vmatpush2.msra.mxu0 0.0
      %4206 = vmatprep.subr.mxu0 0.0
      %4207 = vmatpush2.msra.mxu0 0.0
      %4208 = vmatprep.subr.mxu0 0.0
      %4209 = vmatpush2.msra.mxu0 0.0
      %4210 = vmatprep.subr.mxu0 0.0
      %4211 = vmatpush2.msra.mxu0 0.0
      %4212 = vmatprep.mubr.f32.mxu0 0.0
      %4213 = vmatmul.mubr.f32.gmra.mxu0 %v4122
      %v4214 = vpop.f32.mrf.mxu0
      %v4215 = vadd.f32 0.0, %v4214
      %v4216 = vpop.f32.mrf.mxu0
      %4217 = vmatprep.mubr.f32.mxu0 0.0
      %4218 = vmatmul.mubr.f32.gmra.mxu0 %v4125
      %v4219 = vpop.f32.mrf.mxu0
      %v4220 = vadd.f32 0.0, %v4219
      %v4221 = vpop.f32.mrf.mxu0
      %4222 = vmatprep.mubr.f32.mxu0 0.0
      %4223 = vmatmul.mubr.f32.gmra.mxu0 %v4128
      %v4224 = vpop.f32.mrf.mxu0
      %v4225 = vadd.f32 0.0, %v4224
      %v4226 = vpop.f32.mrf.mxu0
      %4227 = vmatprep.mubr.f32.mxu0 0.0
      %4228 = vmatmul.mubr.f32.gmra.mxu0 %v4131
      %v4229 = vpop.f32.mrf.mxu0
      %v4230 = vadd.f32 0.0, %v4229
      %v4231 = vpop.f32.mrf.mxu0
      %4232 = vmatprep.mubr.f32.mxu0 0.0
      %4233 = vmatmul.mubr.f32.gmra.mxu0 %v4134
      %v4234 = vpop.f32.mrf.mxu0
      %v4235 = vadd.f32 0.0, %v4234
      %v4236 = vpop.f32.mrf.mxu0
      %4237 = vmatprep.mubr.f32.mxu0 0.0
      %4238 = vmatmul.mubr.f32.gmra.mxu0 %v4137
      %v4239 = vpop.f32.mrf.mxu0
      %v4240 = vadd.f32 0.0, %v4239
      %v4241 = vpop.f32.mrf.mxu0
      %4242 = vmatprep.mubr.f32.mxu0 0.0
      %4243 = vmatmul.mubr.f32.gmra.mxu0 %v4140
      %v4244 = vpop.f32.mrf.mxu0
      %v4245 = vadd.f32 0.0, %v4244
      %v4246 = vpop.f32.mrf.mxu0
      %4247 = vmatprep.mubr.f32.mxu0 0.0
      %4248 = vmatmul.mubr.f32.gmra.mxu0 %v4143
      %v4249 = vpop.f32.mrf.mxu0
      %v4250 = vadd.f32 0.0, %v4249
      %v4251 = vpop.f32.mrf.mxu0
      %4252 = vdwg.mxu0
      %v4253 = vmax.f32 %v4215, 0.0
      %v4254 = vmax.f32 %v4220, 0.0
      %v4255 = vmax.f32 %v4225, 0.0
      %v4256 = vmax.f32 %v4230, 0.0
      %v4257 = vmax.f32 %v4235, 0.0
      %v4258 = vmax.f32 %v4240, 0.0
      %v4259 = vmax.f32 %v4245, 0.0
      %v4260 = vmax.f32 %v4250, 0.0
      %v4262 = vsel %vm2556, %v4005, 0
      %v4265 = vsel %vm2556, %v4006, 0
      %v4268 = vsel %vm2556, %v4007, 0
      %v4271 = vsel %vm2556, %v4008, 0
      %v4274 = vsel %vm2556, %v4009, 0
      %4276 = vmatprep.subr.mxu0 0.0
      %4277 = vmatpush1.msra.mxu0 0.0
      %4278 = vmatprep.subr.mxu0 0.0
      %4279 = vmatpush1.msra.mxu0 0.0
      %4280 = vmatprep.subr.mxu0 0.0
      %4281 = vmatpush1.msra.mxu0 0.0
      %4282 = vmatprep.subr.mxu0 0.0
      %4283 = vmatpush1.msra.mxu0 0.0
      %4284 = vmatprep.subr.mxu0 0.0
      %4285 = vmatpush1.msra.mxu0 0.0
      %4286 = vmatprep.subr.mxu0 0.0
      %4287 = vmatpush1.msra.mxu0 0.0
      %4288 = vmatprep.subr.mxu0 0.0
      %4289 = vmatpush1.msra.mxu0 0.0
      %4290 = vmatprep.subr.mxu0 0.0
      %4291 = vmatpush1.msra.mxu0 0.0
      %4292 = vmatprep.subr.mxu0 0.0
      %4293 = vmatpush1.msra.mxu0 %v4260
      %4294 = vmatprep.subr.mxu0 0.0
      %4295 = vmatpush1.msra.mxu0 %v4259
      %4296 = vmatprep.subr.mxu0 0.0
      %4297 = vmatpush1.msra.mxu0 %v4258
      %4298 = vmatprep.subr.mxu0 0.0
      %4299 = vmatpush1.msra.mxu0 %v4257
      %4300 = vmatprep.subr.mxu0 0.0
      %4301 = vmatpush1.msra.mxu0 %v4256
      %4302 = vmatprep.subr.mxu0 0.0
      %4303 = vmatpush1.msra.mxu0 %v4255
      %4304 = vmatprep.subr.mxu0 0.0
      %4305 = vmatpush1.msra.mxu0 %v4254
      %4306 = vmatprep.subr.mxu0 0.0
      %4307 = vmatpush1.msra.mxu0 %v4253
      %4308 = vmatprep.subr.mxu0 0.0
      %4309 = vmatpush2.msra.mxu0 0.0
      %4310 = vmatprep.subr.mxu0 0.0
      %4311 = vmatpush2.msra.mxu0 0.0
      %4312 = vmatprep.subr.mxu0 0.0
      %4313 = vmatpush2.msra.mxu0 0.0
      %4314 = vmatprep.subr.mxu0 0.0
      %4315 = vmatpush2.msra.mxu0 0.0
      %4316 = vmatprep.subr.mxu0 0.0
      %4317 = vmatpush2.msra.mxu0 0.0
      %4318 = vmatprep.subr.mxu0 0.0
      %4319 = vmatpush2.msra.mxu0 0.0
      %4320 = vmatprep.subr.mxu0 0.0
      %4321 = vmatpush2.msra.mxu0 0.0
      %4322 = vmatprep.subr.mxu0 0.0
      %4323 = vmatpush2.msra.mxu0 0.0
      %4324 = vmatprep.subr.mxu0 0.0
      %4325 = vmatpush2.msra.mxu0 0.0
      %4326 = vmatprep.subr.mxu0 0.0
      %4327 = vmatpush2.msra.mxu0 0.0
      %4328 = vmatprep.subr.mxu0 0.0
      %4329 = vmatpush2.msra.mxu0 0.0
      %4330 = vmatprep.subr.mxu0 0.0
      %4331 = vmatpush2.msra.mxu0 0.0
      %4332 = vmatprep.subr.mxu0 0.0
      %4333 = vmatpush2.msra.mxu0 0.0
      %4334 = vmatprep.subr.mxu0 0.0
      %4335 = vmatpush2.msra.mxu0 0.0
      %4336 = vmatprep.subr.mxu0 0.0
      %4337 = vmatpush2.msra.mxu0 0.0
      %4338 = vmatprep.subr.mxu0 0.0
      %4339 = vmatpush2.msra.mxu0 0.0
      %4340 = vmatprep.mubr.f32.mxu0 0.0
      %4341 = vmatmul.mubr.f32.gmra.mxu0 %v4262
      %v4342 = vpop.f32.mrf.mxu0
      %v4343 = vadd.f32 0.0, %v4342
      %v4344 = vpop.f32.mrf.mxu0
      %4345 = vmatprep.mubr.f32.mxu0 0.0
      %4346 = vmatmul.mubr.f32.gmra.mxu0 %v4265
      %v4347 = vpop.f32.mrf.mxu0
      %v4348 = vadd.f32 0.0, %v4347
      %v4349 = vpop.f32.mrf.mxu0
      %4350 = vmatprep.mubr.f32.mxu0 0.0
      %4351 = vmatmul.mubr.f32.gmra.mxu0 %v4268
      %v4352 = vpop.f32.mrf.mxu0
      %v4353 = vadd.f32 0.0, %v4352
      %v4354 = vpop.f32.mrf.mxu0
      %4355 = vmatprep.mubr.f32.mxu0 0.0
      %4356 = vmatmul.mubr.f32.gmra.mxu0 %v4271
      %v4357 = vpop.f32.mrf.mxu0
      %v4358 = vadd.f32 0.0, %v4357
      %v4359 = vpop.f32.mrf.mxu0
      %4360 = vmatprep.mubr.f32.mxu0 0.0
      %4361 = vmatmul.mubr.f32.gmra.mxu0 %v4274
      %v4362 = vpop.f32.mrf.mxu0
      %v4363 = vadd.f32 0.0, %v4362
      %v4364 = vpop.f32.mrf.mxu0
      %4365 = vdwg.mxu0
      %4366 = vst.msk [vmem:[#allocation3 + $0x8] sm:$0xff] %vm2556, %v4343
      %4367 = vst.msk [vmem:[#allocation3 + $0x58] sm:$0xff] %vm2556, %v4348
      %4368 = vst.msk [vmem:[#allocation3 + $0xa8] sm:$0xff] %vm2556, %v4353
      %4369 = vst.msk [vmem:[#allocation3 + $0xf8] sm:$0xff] %vm2556, %v4358
      %4370 = vst.msk [vmem:[#allocation3 + $0x148] sm:$0xf] %vm4010, %v4363
      %v4371 = vld [vmem:[#allocation3] sm:$0xf]
      %v4372 = vld [vmem:[#allocation3 + $0x8] sm:$0xf]
      %4375 = vrot.lane.b32.xlu0 %v4371, 9
      %v4376 = vpop.permute.xlu0 %4375
      %4377 = vrot.lane.b32.xlu0 %v4372, 9
      %v4378 = vpop.permute.xlu0 %4377
      %v4379 = vsel %vm4025, %v4376, %v4378
      %v4381 = vsel %vm4018, %v4379, 0.0
      %v4382 = vadd.f32 %v4381, 0.0
      %v4383 = vld [vmem:[#allocation3] sm:$0xf0]
      %v4384 = vld [vmem:[#allocation3 + $0x8] sm:$0xf0]
      %v4387 = vrot.slane %v4383, 4
      %v4388 = vrot.slane %v4384, 4
      %4389 = vrot.lane.b32.xlu0 %v4387, 8
      %v4390 = vpop.permute.xlu0 %4389
      %4391 = vrot.lane.b32.xlu0 %v4388, 8
      %v4392 = vpop.permute.xlu0 %4391
      %v4393 = vsel %vm4038, %v4390, %v4392
      %v4395 = vsel %vm4016, %v4393, 0.0
      %v4396 = vadd.f32 %v4382, %v4395
      %v4397 = vld [vmem:[#allocation3 + $0x50] sm:$0xf]
      %v4398 = vld [vmem:[#allocation3 + $0x58] sm:$0xf]
      %4401 = vrot.lane.b32.xlu0 %v4397, 7
      %v4402 = vpop.permute.xlu0 %4401
      %4403 = vrot.lane.b32.xlu0 %v4398, 7
      %v4404 = vpop.permute.xlu0 %4403
      %v4405 = vsel %vm4057, %v4402, %v4404
      %v4407 = vsel %vm4050, %v4405, 0.0
      %v4408 = vadd.f32 %v4396, %v4407
      %v4409 = vld [vmem:[#allocation3 + $0x50] sm:$0xf0]
      %v4410 = vld [vmem:[#allocation3 + $0x58] sm:$0xf0]
      %v4413 = vrot.slane %v4409, 4
      %v4414 = vrot.slane %v4410, 4
      %4415 = vrot.lane.b32.xlu0 %v4413, 1
      %v4416 = vpop.permute.xlu0 %4415
      %4417 = vrot.lane.b32.xlu0 %v4414, 1
      %v4418 = vpop.permute.xlu0 %4417
      %v4419 = vsel %vm1529, %v4416, %v4418
      %v4421 = vsel %vm4017, %v4419, 0.0
      %v4422 = vadd.f32 %v4408, %v4421
      %v4423 = vld [vmem:[#allocation3 + $0xa8] sm:$0xf]
      %v4424 = vadd.f32 %v4422, %v4423
      %v4425 = vld [vmem:[#allocation3 + $0xa8] sm:$0xf0]
      %v4427 = vrot.slane %v4425, 4
      %4428 = vrot.lane.b32.xlu0 %v4427, 127
      %v4429 = vpop.permute.xlu0 %4428
      %v4431 = vsel %vm4049, %v4429, 0.0
      %v4432 = vadd.f32 %v4424, %v4431
      %v4433 = vld [vmem:[#allocation3 + $0xf8] sm:$0xf]
      %4435 = vrot.lane.b32.xlu0 %v4433, 121
      %v4436 = vpop.permute.xlu0 %4435
      %v4438 = vsel %vm4091, %v4436, 0.0
      %v4439 = vadd.f32 %v4432, %v4438
      %v4440 = vld [vmem:[#allocation3 + $0xf8] sm:$0xf0]
      %v4442 = vrot.slane %v4440, 4
      %4443 = vrot.lane.b32.xlu0 %v4442, 120
      %v4444 = vpop.permute.xlu0 %4443
      %v4446 = vsel %vm4090, %v4444, 0.0
      %v4447 = vadd.f32 %v4439, %v4446
      %v4448 = vld [vmem:[#allocation3 + $0x148] sm:$0xf]
      %4450 = vrot.lane.b32.xlu0 %v4448, 119
      %v4451 = vpop.permute.xlu0 %4450
      %v4453 = vsel %vm4109, %v4451, 0.0
      %v4454 = vadd.f32 %v4447, %v4453
      %v4455 = vld [vmem:[%s2] sm:$0xff]
      %v4456 = vld [vmem:[%s2 + $0x8] sm:$0xff]
      %v4457 = vld [vmem:[%s2 + $0x10] sm:$0xff]
      %v4458 = vld [vmem:[%s2 + $0x18] sm:$0xff]
      %v4459 = vld [vmem:[%s2 + $0x20] sm:$0xff]
      %v4460 = vld [vmem:[%s2 + $0x28] sm:$0xff]
      %v4461 = vld [vmem:[%s2 + $0x30] sm:$0xff]
      %v4462 = vld [vmem:[%s2 + $0x38] sm:$0xff]
      %v4463 = vld [vmem:[%s2 + $0x40] sm:$0xff]
      %v4464 = vld [vmem:[%s2 + $0x48] sm:$0xff]
      %v4465 = vld [vmem:[%s2 + $0x50] sm:$0xff]
      %v4466 = vld [vmem:[%s2 + $0x58] sm:$0xff]
      %v4467 = vld [vmem:[%s2 + $0x60] sm:$0xff]
      %v4468 = vld [vmem:[%s2 + $0x68] sm:$0xff]
      %v4469 = vld [vmem:[%s2 + $0x70] sm:$0xff]
      %v4470 = vld [vmem:[%s2 + $0x78] sm:$0xff]
      %v4471 = vld [vmem:[%s2 + $0x80] sm:$0xff]
      %v4472 = vld [vmem:[%s2 + $0x88] sm:$0xff]
      %v4473 = vld [vmem:[%s2 + $0x90] sm:$0xff]
      %v4474 = vld [vmem:[%s2 + $0x98] sm:$0xff]
      %v4475 = vld [vmem:[%s2 + $0xa0] sm:$0xff]
      %v4476 = vld [vmem:[%s2 + $0xa8] sm:$0xff]
      %v4477 = vld [vmem:[%s2 + $0xb0] sm:$0xff]
      %v4478 = vld [vmem:[%s2 + $0xb8] sm:$0xff]
      %v4479 = vld [vmem:[%s2 + $0xc0] sm:$0xff]
      %v4480 = vld [vmem:[%s2 + $0xc8] sm:$0xff]
      %v4481 = vld [vmem:[%s2 + $0xd0] sm:$0xff]
      %v4482 = vld [vmem:[%s2 + $0xd8] sm:$0xff]
      %v4483 = vld [vmem:[%s2 + $0xe0] sm:$0xff]
      %v4484 = vld [vmem:[%s2 + $0xe8] sm:$0xff]
      %v4485 = vld [vmem:[%s2 + $0xf0] sm:$0xff]
      %v4486 = vld [vmem:[%s2 + $0xf8] sm:$0xff]
      %v4487 = vld [vmem:[%s2 + $0x100] sm:$0xff]
      %v4488 = vld [vmem:[%s2 + $0x108] sm:$0xff]
      %v4489 = vld [vmem:[%s2 + $0x110] sm:$0xff]
      %v4490 = vld [vmem:[%s2 + $0x118] sm:$0xff]
      %v4491 = vld [vmem:[%s2 + $0x120] sm:$0xff]
      %v4492 = vld [vmem:[%s2 + $0x128] sm:$0xff]
      %v4493 = vld [vmem:[%s2 + $0x130] sm:$0xff]
      %v4494 = vld [vmem:[%s2 + $0x138] sm:$0xff]
      %v4495 = vld [vmem:[%s2 + $0x140] sm:$0xff]
      %v4496 = vld [vmem:[%s2 + $0x148] sm:$0xff]
      %v4497 = vld [vmem:[%s2 + $0x150] sm:$0xff]
      %v4498 = vld [vmem:[%s2 + $0x158] sm:$0xff]
      %v4499 = vld [vmem:[%s2 + $0x160] sm:$0xff]
      %v4500 = vld [vmem:[%s2 + $0x168] sm:$0xff]
      %v4501 = vld [vmem:[%s2 + $0x170] sm:$0xff]
      %v4502 = vld [vmem:[%s2 + $0x178] sm:$0xff]
      %v4503 = vld [vmem:[%s2 + $0x180] sm:$0xff]
      %v4504 = vld [vmem:[%s2 + $0x188] sm:$0xff]
      %v4505 = vld [vmem:[%s2 + $0x190] sm:$0xff]
      %v4506 = vld [vmem:[%s2 + $0x198] sm:$0xff]
      %v4507 = vld [vmem:[%s2 + $0x1a0] sm:$0xff]
      %v4508 = vld [vmem:[%s2 + $0x1a8] sm:$0xff]
      %v4509 = vld [vmem:[%s2 + $0x1b0] sm:$0xff]
      %v4510 = vld [vmem:[%s2 + $0x1b8] sm:$0xff]
      %v4511 = vld [vmem:[%s2 + $0x1c0] sm:$0xff]
      %v4512 = vld [vmem:[%s2 + $0x1c8] sm:$0xff]
      %v4513 = vld [vmem:[%s2 + $0x1d0] sm:$0xff]
      %v4514 = vld [vmem:[%s2 + $0x1d8] sm:$0xff]
      %v4515 = vld [vmem:[%s2 + $0x1e0] sm:$0xff]
      %v4516 = vld [vmem:[%s2 + $0x1e8] sm:$0xff]
      %v4517 = vld [vmem:[%s2 + $0x1f0] sm:$0xff]
      %v4518 = vld [vmem:[%s2 + $0x1f8] sm:$0xff]
      %v4520 = vsel %vm2556, %v4454, 0
      %4522 = vmatprep.subr.mxu0 0.0
      %4523 = vmatpush1.msra.mxu0 0.0
      %4524 = vmatprep.subr.mxu0 0.0
      %4525 = vmatpush1.msra.mxu0 0.0
      %4526 = vmatprep.subr.mxu0 0.0
      %4527 = vmatpush1.msra.mxu0 0.0
      %4528 = vmatprep.subr.mxu0 0.0
      %4529 = vmatpush1.msra.mxu0 0.0
      %4530 = vmatprep.subr.mxu0 0.0
      %4531 = vmatpush1.msra.mxu0 0.0
      %4532 = vmatprep.subr.mxu0 0.0
      %4533 = vmatpush1.msra.mxu0 0.0
      %4534 = vmatprep.subr.mxu0 0.0
      %4535 = vmatpush1.msra.mxu0 0.0
      %4536 = vmatprep.subr.mxu0 0.0
      %4537 = vmatpush1.msra.mxu0 0.0
      %4538 = vmatprep.subr.mxu0 %v4512
      %4539 = vmatpush1.msra.mxu0 %v4511
      %4540 = vmatprep.subr.mxu0 %v4504
      %4541 = vmatpush1.msra.mxu0 %v4503
      %4542 = vmatprep.subr.mxu0 %v4496
      %4543 = vmatpush1.msra.mxu0 %v4495
      %4544 = vmatprep.subr.mxu0 %v4488
      %4545 = vmatpush1.msra.mxu0 %v4487
      %4546 = vmatprep.subr.mxu0 %v4480
      %4547 = vmatpush1.msra.mxu0 %v4479
      %4548 = vmatprep.subr.mxu0 %v4472
      %4549 = vmatpush1.msra.mxu0 %v4471
      %4550 = vmatprep.subr.mxu0 %v4464
      %4551 = vmatpush1.msra.mxu0 %v4463
      %4552 = vmatprep.subr.mxu0 %v4456
      %4553 = vmatpush1.msra.mxu0 %v4455
      %4554 = vmatprep.subr.mxu0 0.0
      %4555 = vmatpush2.msra.mxu0 0.0
      %4556 = vmatprep.subr.mxu0 0.0
      %4557 = vmatpush2.msra.mxu0 0.0
      %4558 = vmatprep.subr.mxu0 0.0
      %4559 = vmatpush2.msra.mxu0 0.0
      %4560 = vmatprep.subr.mxu0 0.0
      %4561 = vmatpush2.msra.mxu0 0.0
      %4562 = vmatprep.subr.mxu0 0.0
      %4563 = vmatpush2.msra.mxu0 0.0
      %4564 = vmatprep.subr.mxu0 0.0
      %4565 = vmatpush2.msra.mxu0 0.0
      %4566 = vmatprep.subr.mxu0 0.0
      %4567 = vmatpush2.msra.mxu0 0.0
      %4568 = vmatprep.subr.mxu0 0.0
      %4569 = vmatpush2.msra.mxu0 0.0
      %4570 = vmatprep.subr.mxu0 0.0
      %4571 = vmatpush2.msra.mxu0 0.0
      %4572 = vmatprep.subr.mxu0 0.0
      %4573 = vmatpush2.msra.mxu0 0.0
      %4574 = vmatprep.subr.mxu0 0.0
      %4575 = vmatpush2.msra.mxu0 0.0
      %4576 = vmatprep.subr.mxu0 0.0
      %4577 = vmatpush2.msra.mxu0 0.0
      %4578 = vmatprep.subr.mxu0 0.0
      %4579 = vmatpush2.msra.mxu0 0.0
      %4580 = vmatprep.subr.mxu0 0.0
      %4581 = vmatpush2.msra.mxu0 0.0
      %4582 = vmatprep.subr.mxu0 0.0
      %4583 = vmatpush2.msra.mxu0 0.0
      %4584 = vmatprep.subr.mxu0 0.0
      %4585 = vmatpush2.msra.mxu0 0.0
      %4586 = vmatprep.mubr.f32.mxu0 0.0
      %4587 = vmatmul.mubr.f32.gmra.mxu0 %v4520
      %v4588 = vpop.f32.mrf.mxu0
      %v4589 = vadd.f32 0.0, %v4588
      %v4590 = vpop.f32.mrf.mxu0
      %v4591 = vadd.f32 0.0, %v4590
      %4592 = vdwg.mxu0
      %4593 = vmatprep.subr.mxu0 0.0
      %4594 = vmatpush1.msra.mxu0 0.0
      %4595 = vmatprep.subr.mxu0 0.0
      %4596 = vmatpush1.msra.mxu0 0.0
      %4597 = vmatprep.subr.mxu0 0.0
      %4598 = vmatpush1.msra.mxu0 0.0
      %4599 = vmatprep.subr.mxu0 0.0
      %4600 = vmatpush1.msra.mxu0 0.0
      %4601 = vmatprep.subr.mxu0 0.0
      %4602 = vmatpush1.msra.mxu0 0.0
      %4603 = vmatprep.subr.mxu0 0.0
      %4604 = vmatpush1.msra.mxu0 0.0
      %4605 = vmatprep.subr.mxu0 0.0
      %4606 = vmatpush1.msra.mxu0 0.0
      %4607 = vmatprep.subr.mxu0 0.0
      %4608 = vmatpush1.msra.mxu0 0.0
      %4609 = vmatprep.subr.mxu0 %v4514
      %4610 = vmatpush1.msra.mxu0 %v4513
      %4611 = vmatprep.subr.mxu0 %v4506
      %4612 = vmatpush1.msra.mxu0 %v4505
      %4613 = vmatprep.subr.mxu0 %v4498
      %4614 = vmatpush1.msra.mxu0 %v4497
      %4615 = vmatprep.subr.mxu0 %v4490
      %4616 = vmatpush1.msra.mxu0 %v4489
      %4617 = vmatprep.subr.mxu0 %v4482
      %4618 = vmatpush1.msra.mxu0 %v4481
      %4619 = vmatprep.subr.mxu0 %v4474
      %4620 = vmatpush1.msra.mxu0 %v4473
      %4621 = vmatprep.subr.mxu0 %v4466
      %4622 = vmatpush1.msra.mxu0 %v4465
      %4623 = vmatprep.subr.mxu0 %v4458
      %4624 = vmatpush1.msra.mxu0 %v4457
      %4625 = vmatprep.subr.mxu0 0.0
      %4626 = vmatpush2.msra.mxu0 0.0
      %4627 = vmatprep.subr.mxu0 0.0
      %4628 = vmatpush2.msra.mxu0 0.0
      %4629 = vmatprep.subr.mxu0 0.0
      %4630 = vmatpush2.msra.mxu0 0.0
      %4631 = vmatprep.subr.mxu0 0.0
      %4632 = vmatpush2.msra.mxu0 0.0
      %4633 = vmatprep.subr.mxu0 0.0
      %4634 = vmatpush2.msra.mxu0 0.0
      %4635 = vmatprep.subr.mxu0 0.0
      %4636 = vmatpush2.msra.mxu0 0.0
      %4637 = vmatprep.subr.mxu0 0.0
      %4638 = vmatpush2.msra.mxu0 0.0
      %4639 = vmatprep.subr.mxu0 0.0
      %4640 = vmatpush2.msra.mxu0 0.0
      %4641 = vmatprep.subr.mxu0 0.0
      %4642 = vmatpush2.msra.mxu0 0.0
      %4643 = vmatprep.subr.mxu0 0.0
      %4644 = vmatpush2.msra.mxu0 0.0
      %4645 = vmatprep.subr.mxu0 0.0
      %4646 = vmatpush2.msra.mxu0 0.0
      %4647 = vmatprep.subr.mxu0 0.0
      %4648 = vmatpush2.msra.mxu0 0.0
      %4649 = vmatprep.subr.mxu0 0.0
      %4650 = vmatpush2.msra.mxu0 0.0
      %4651 = vmatprep.subr.mxu0 0.0
      %4652 = vmatpush2.msra.mxu0 0.0
      %4653 = vmatprep.subr.mxu0 0.0
      %4654 = vmatpush2.msra.mxu0 0.0
      %4655 = vmatprep.subr.mxu0 0.0
      %4656 = vmatpush2.msra.mxu0 0.0
      %4657 = vmatprep.mubr.f32.mxu0 0.0
      %4658 = vmatmul.mubr.f32.gmra.mxu0 %v4520
      %v4659 = vpop.f32.mrf.mxu0
      %v4660 = vadd.f32 0.0, %v4659
      %v4661 = vpop.f32.mrf.mxu0
      %v4662 = vadd.f32 0.0, %v4661
      %4663 = vdwg.mxu0
      %4664 = vmatprep.subr.mxu0 0.0
      %4665 = vmatpush1.msra.mxu0 0.0
      %4666 = vmatprep.subr.mxu0 0.0
      %4667 = vmatpush1.msra.mxu0 0.0
      %4668 = vmatprep.subr.mxu0 0.0
      %4669 = vmatpush1.msra.mxu0 0.0
      %4670 = vmatprep.subr.mxu0 0.0
      %4671 = vmatpush1.msra.mxu0 0.0
      %4672 = vmatprep.subr.mxu0 0.0
      %4673 = vmatpush1.msra.mxu0 0.0
      %4674 = vmatprep.subr.mxu0 0.0
      %4675 = vmatpush1.msra.mxu0 0.0
      %4676 = vmatprep.subr.mxu0 0.0
      %4677 = vmatpush1.msra.mxu0 0.0
      %4678 = vmatprep.subr.mxu0 0.0
      %4679 = vmatpush1.msra.mxu0 0.0
      %4680 = vmatprep.subr.mxu0 %v4516
      %4681 = vmatpush1.msra.mxu0 %v4515
      %4682 = vmatprep.subr.mxu0 %v4508
      %4683 = vmatpush1.msra.mxu0 %v4507
      %4684 = vmatprep.subr.mxu0 %v4500
      %4685 = vmatpush1.msra.mxu0 %v4499
      %4686 = vmatprep.subr.mxu0 %v4492
      %4687 = vmatpush1.msra.mxu0 %v4491
      %4688 = vmatprep.subr.mxu0 %v4484
      %4689 = vmatpush1.msra.mxu0 %v4483
      %4690 = vmatprep.subr.mxu0 %v4476
      %4691 = vmatpush1.msra.mxu0 %v4475
      %4692 = vmatprep.subr.mxu0 %v4468
      %4693 = vmatpush1.msra.mxu0 %v4467
      %4694 = vmatprep.subr.mxu0 %v4460
      %4695 = vmatpush1.msra.mxu0 %v4459
      %4696 = vmatprep.subr.mxu0 0.0
      %4697 = vmatpush2.msra.mxu0 0.0
      %4698 = vmatprep.subr.mxu0 0.0
      %4699 = vmatpush2.msra.mxu0 0.0
      %4700 = vmatprep.subr.mxu0 0.0
      %4701 = vmatpush2.msra.mxu0 0.0
      %4702 = vmatprep.subr.mxu0 0.0
      %4703 = vmatpush2.msra.mxu0 0.0
      %4704 = vmatprep.subr.mxu0 0.0
      %4705 = vmatpush2.msra.mxu0 0.0
      %4706 = vmatprep.subr.mxu0 0.0
      %4707 = vmatpush2.msra.mxu0 0.0
      %4708 = vmatprep.subr.mxu0 0.0
      %4709 = vmatpush2.msra.mxu0 0.0
      %4710 = vmatprep.subr.mxu0 0.0
      %4711 = vmatpush2.msra.mxu0 0.0
      %4712 = vmatprep.subr.mxu0 0.0
      %4713 = vmatpush2.msra.mxu0 0.0
      %4714 = vmatprep.subr.mxu0 0.0
      %4715 = vmatpush2.msra.mxu0 0.0
      %4716 = vmatprep.subr.mxu0 0.0
      %4717 = vmatpush2.msra.mxu0 0.0
      %4718 = vmatprep.subr.mxu0 0.0
      %4719 = vmatpush2.msra.mxu0 0.0
      %4720 = vmatprep.subr.mxu0 0.0
      %4721 = vmatpush2.msra.mxu0 0.0
      %4722 = vmatprep.subr.mxu0 0.0
      %4723 = vmatpush2.msra.mxu0 0.0
      %4724 = vmatprep.subr.mxu0 0.0
      %4725 = vmatpush2.msra.mxu0 0.0
      %4726 = vmatprep.subr.mxu0 0.0
      %4727 = vmatpush2.msra.mxu0 0.0
      %4728 = vmatprep.mubr.f32.mxu0 0.0
      %4729 = vmatmul.mubr.f32.gmra.mxu0 %v4520
      %v4730 = vpop.f32.mrf.mxu0
      %v4731 = vadd.f32 0.0, %v4730
      %v4732 = vpop.f32.mrf.mxu0
      %v4733 = vadd.f32 0.0, %v4732
      %4734 = vdwg.mxu0
      %4735 = vmatprep.subr.mxu0 0.0
      %4736 = vmatpush1.msra.mxu0 0.0
      %4737 = vmatprep.subr.mxu0 0.0
      %4738 = vmatpush1.msra.mxu0 0.0
      %4739 = vmatprep.subr.mxu0 0.0
      %4740 = vmatpush1.msra.mxu0 0.0
      %4741 = vmatprep.subr.mxu0 0.0
      %4742 = vmatpush1.msra.mxu0 0.0
      %4743 = vmatprep.subr.mxu0 0.0
      %4744 = vmatpush1.msra.mxu0 0.0
      %4745 = vmatprep.subr.mxu0 0.0
      %4746 = vmatpush1.msra.mxu0 0.0
      %4747 = vmatprep.subr.mxu0 0.0
      %4748 = vmatpush1.msra.mxu0 0.0
      %4749 = vmatprep.subr.mxu0 0.0
      %4750 = vmatpush1.msra.mxu0 0.0
      %4751 = vmatprep.subr.mxu0 %v4518
      %4752 = vmatpush1.msra.mxu0 %v4517
      %4753 = vmatprep.subr.mxu0 %v4510
      %4754 = vmatpush1.msra.mxu0 %v4509
      %4755 = vmatprep.subr.mxu0 %v4502
      %4756 = vmatpush1.msra.mxu0 %v4501
      %4757 = vmatprep.subr.mxu0 %v4494
      %4758 = vmatpush1.msra.mxu0 %v4493
      %4759 = vmatprep.subr.mxu0 %v4486
      %4760 = vmatpush1.msra.mxu0 %v4485
      %4761 = vmatprep.subr.mxu0 %v4478
      %4762 = vmatpush1.msra.mxu0 %v4477
      %4763 = vmatprep.subr.mxu0 %v4470
      %4764 = vmatpush1.msra.mxu0 %v4469
      %4765 = vmatprep.subr.mxu0 %v4462
      %4766 = vmatpush1.msra.mxu0 %v4461
      %4767 = vmatprep.subr.mxu0 0.0
      %4768 = vmatpush2.msra.mxu0 0.0
      %4769 = vmatprep.subr.mxu0 0.0
      %4770 = vmatpush2.msra.mxu0 0.0
      %4771 = vmatprep.subr.mxu0 0.0
      %4772 = vmatpush2.msra.mxu0 0.0
      %4773 = vmatprep.subr.mxu0 0.0
      %4774 = vmatpush2.msra.mxu0 0.0
      %4775 = vmatprep.subr.mxu0 0.0
      %4776 = vmatpush2.msra.mxu0 0.0
      %4777 = vmatprep.subr.mxu0 0.0
      %4778 = vmatpush2.msra.mxu0 0.0
      %4779 = vmatprep.subr.mxu0 0.0
      %4780 = vmatpush2.msra.mxu0 0.0
      %4781 = vmatprep.subr.mxu0 0.0
      %4782 = vmatpush2.msra.mxu0 0.0
      %4783 = vmatprep.subr.mxu0 0.0
      %4784 = vmatpush2.msra.mxu0 0.0
      %4785 = vmatprep.subr.mxu0 0.0
      %4786 = vmatpush2.msra.mxu0 0.0
      %4787 = vmatprep.subr.mxu0 0.0
      %4788 = vmatpush2.msra.mxu0 0.0
      %4789 = vmatprep.subr.mxu0 0.0
      %4790 = vmatpush2.msra.mxu0 0.0
      %4791 = vmatprep.subr.mxu0 0.0
      %4792 = vmatpush2.msra.mxu0 0.0
      %4793 = vmatprep.subr.mxu0 0.0
      %4794 = vmatpush2.msra.mxu0 0.0
      %4795 = vmatprep.subr.mxu0 0.0
      %4796 = vmatpush2.msra.mxu0 0.0
      %4797 = vmatprep.subr.mxu0 0.0
      %4798 = vmatpush2.msra.mxu0 0.0
      %4799 = vmatprep.mubr.f32.mxu0 0.0
      %4800 = vmatmul.mubr.f32.gmra.mxu0 %v4520
      %v4801 = vpop.f32.mrf.mxu0
      %v4802 = vadd.f32 0.0, %v4801
      %v4803 = vpop.f32.mrf.mxu0
      %v4804 = vadd.f32 0.0, %v4803
      %4805 = vdwg.mxu0
      %v4814 = vcombine.low %v4589, %v4591
      %v4815 = vcombine.low %v4660, %v4662
      %v4816 = vcombine.low %v4731, %v4733
      %v4817 = vcombine.low %v4802, %v4804
      %v4822 = vadd.f32 %v1160, %v4814
      %v4823 = vadd.f32 %v1161, %v4815
      %v4824 = vadd.f32 %v1162, %v4816
      %v4825 = vadd.f32 %v1163, %v4817
      %v4826 = vld [vmem:[%s743] sm:$0xff]
      %v4827 = vld [vmem:[%s743 + $0x8] sm:$0xff]
      %v4828 = vld [vmem:[%s743 + $0x10] sm:$0xff]
      %v4829 = vld [vmem:[%s743 + $0x18] sm:$0xff]
      %v4830 = vld [vmem:[%s743 + $0x20] sm:$0xff]
      %v4831 = vld [vmem:[%s743 + $0x28] sm:$0xff]
      %v4832 = vld [vmem:[%s743 + $0x30] sm:$0xff]
      %v4833 = vld [vmem:[%s743 + $0x38] sm:$0xff]
      %v4834 = vld [vmem:[%s748] sm:$0xff]
      %v4835 = vld [vmem:[%s748 + $0x8] sm:$0xff]
      %v4836 = vld [vmem:[%s748 + $0x10] sm:$0xff]
      %v4837 = vld [vmem:[%s748 + $0x18] sm:$0xff]
      %v4838 = vld [vmem:[%s748 + $0x20] sm:$0xf]
      %v4843 = vcombine.high %v4822, %v4822
      %v4844 = vcombine.high %v4823, %v4823
      %v4845 = vcombine.high %v4824, %v4824
      %v4846 = vcombine.high %v4825, %v4825
      %4851 = vst [vmem:[#allocation3 + $0x8] sm:$0xf] %v4822
      %4852 = vst [vmem:[#allocation3 + $0x10] sm:$0xf] %v4843
      %4853 = vst [vmem:[#allocation3 + $0x18] sm:$0xf] %v4823
      %4854 = vst [vmem:[#allocation3 + $0x20] sm:$0xf] %v4844
      %4855 = vst [vmem:[#allocation3 + $0x28] sm:$0xf] %v4824
      %4856 = vst [vmem:[#allocation3 + $0x30] sm:$0xf] %v4845
      %4857 = vst [vmem:[#allocation3 + $0x38] sm:$0xf] %v4825
      %4858 = vst [vmem:[#allocation3 + $0x40] sm:$0xf] %v4846
      %v4859 = vld [vmem:[#allocation3] sm:$0xf]
      %v4860 = vld [vmem:[#allocation3 + $0x8] sm:$0xf]
      %v4861 = vld [vmem:[#allocation3 + $0x10] sm:$0xf]
      %v4862 = vld [vmem:[#allocation3 + $0x18] sm:$0xf]
      %v4863 = vld [vmem:[#allocation3 + $0x20] sm:$0xf]
      %v4864 = vld [vmem:[#allocation3 + $0x28] sm:$0xf]
      %v4865 = vld [vmem:[#allocation3 + $0x30] sm:$0xf]
      %v4866 = vld [vmem:[#allocation3 + $0x38] sm:$0xf]
      %v4867 = vld [vmem:[#allocation3 + $0x40] sm:$0xf]
      %4877 = vrot.lane.b32.xlu0 %v4859, 33
      %v4878 = vpop.permute.xlu0 %4877
      %4879 = vrot.lane.b32.xlu0 %v4860, 33
      %v4880 = vpop.permute.xlu0 %4879
      %4881 = vrot.lane.b32.xlu0 %v4861, 33
      %v4882 = vpop.permute.xlu0 %4881
      %4883 = vrot.lane.b32.xlu0 %v4862, 33
      %v4884 = vpop.permute.xlu0 %4883
      %4885 = vrot.lane.b32.xlu0 %v4863, 33
      %v4886 = vpop.permute.xlu0 %4885
      %4887 = vrot.lane.b32.xlu0 %v4864, 33
      %v4888 = vpop.permute.xlu0 %4887
      %4889 = vrot.lane.b32.xlu0 %v4865, 33
      %v4890 = vpop.permute.xlu0 %4889
      %4891 = vrot.lane.b32.xlu0 %v4866, 33
      %v4892 = vpop.permute.xlu0 %4891
      %4893 = vrot.lane.b32.xlu0 %v4867, 33
      %v4894 = vpop.permute.xlu0 %4893
      %v4895 = vsel %vm1282, %v4878, %v4880
      %v4896 = vsel %vm1282, %v4880, %v4882
      %v4897 = vsel %vm1282, %v4882, %v4884
      %v4898 = vsel %vm1282, %v4884, %v4886
      %v4899 = vsel %vm1282, %v4886, %v4888
      %v4900 = vsel %vm1282, %v4888, %v4890
      %v4901 = vsel %vm1282, %v4890, %v4892
      %v4902 = vsel %vm1282, %v4892, %v4894
      %v4911 = vsel %vm1247, %v4895, 0.0
      %v4912 = vsel %vm1248, %v4896, 0.0
      %v4913 = vsel %vm1249, %v4897, 0.0
      %v4914 = vsel %vm1250, %v4898, 0.0
      %v4915 = vsel %vm1251, %v4899, 0.0
      %v4916 = vsel %vm1252, %v4900, 0.0
      %v4917 = vsel %vm1253, %v4901, 0.0
      %v4918 = vsel %vm1254, %v4902, 0.0
      %4919 = vst [vmem:[#allocation4] sm:$0xf] %v4911
      %4920 = vst [vmem:[#allocation4 + $0x8] sm:$0xf] %v4912
      %4921 = vst [vmem:[#allocation4 + $0x10] sm:$0xf] %v4913
      %4922 = vst [vmem:[#allocation4 + $0x18] sm:$0xf] %v4914
      %4923 = vst [vmem:[#allocation4 + $0x20] sm:$0xf] %v4915
      %4924 = vst [vmem:[#allocation4 + $0x28] sm:$0xf] %v4916
      %4925 = vst [vmem:[#allocation4 + $0x30] sm:$0xf] %v4917
      %4926 = vst [vmem:[#allocation4 + $0x38] sm:$0xf] %v4918
      %v4927 = vld [vmem:[#allocation3] sm:$0xf]
      %v4928 = vld [vmem:[#allocation3 + $0x8] sm:$0xf]
      %v4929 = vld [vmem:[#allocation3 + $0x10] sm:$0xf]
      %v4930 = vld [vmem:[#allocation3 + $0x18] sm:$0xf]
      %v4931 = vld [vmem:[#allocation3 + $0x20] sm:$0xf]
      %v4932 = vld [vmem:[#allocation3 + $0x28] sm:$0xf]
      %v4933 = vld [vmem:[#allocation3 + $0x30] sm:$0xf]
      %v4934 = vld [vmem:[#allocation3 + $0x38] sm:$0xf]
      %v4935 = vld [vmem:[#allocation3 + $0x40] sm:$0xf]
      %4945 = vrot.lane.b32.xlu0 %v4927, 32
      %v4946 = vpop.permute.xlu0 %4945
      %4947 = vrot.lane.b32.xlu0 %v4928, 32
      %v4948 = vpop.permute.xlu0 %4947
      %4949 = vrot.lane.b32.xlu0 %v4929, 32
      %v4950 = vpop.permute.xlu0 %4949
      %4951 = vrot.lane.b32.xlu0 %v4930, 32
      %v4952 = vpop.permute.xlu0 %4951
      %4953 = vrot.lane.b32.xlu0 %v4931, 32
      %v4954 = vpop.permute.xlu0 %4953
      %4955 = vrot.lane.b32.xlu0 %v4932, 32
      %v4956 = vpop.permute.xlu0 %4955
      %4957 = vrot.lane.b32.xlu0 %v4933, 32
      %v4958 = vpop.permute.xlu0 %4957
      %4959 = vrot.lane.b32.xlu0 %v4934, 32
      %v4960 = vpop.permute.xlu0 %4959
      %4961 = vrot.lane.b32.xlu0 %v4935, 32
      %v4962 = vpop.permute.xlu0 %4961
      %v4963 = vsel %vm1351, %v4946, %v4948
      %v4964 = vsel %vm1351, %v4948, %v4950
      %v4965 = vsel %vm1351, %v4950, %v4952
      %v4966 = vsel %vm1351, %v4952, %v4954
      %v4967 = vsel %vm1351, %v4954, %v4956
      %v4968 = vsel %vm1351, %v4956, %v4958
      %v4969 = vsel %vm1351, %v4958, %v4960
      %v4970 = vsel %vm1351, %v4960, %v4962
      %v4979 = vsel %vm1231, %v4963, 0.0
      %v4980 = vsel %vm1232, %v4964, 0.0
      %v4981 = vsel %vm1233, %v4965, 0.0
      %v4982 = vsel %vm1234, %v4966, 0.0
      %v4983 = vsel %vm1235, %v4967, 0.0
      %v4984 = vsel %vm1236, %v4968, 0.0
      %v4985 = vsel %vm1237, %v4969, 0.0
      %v4986 = vsel %vm1238, %v4970, 0.0
      %v4995 = vrot.slane %v4979, 4
      %v4996 = vrot.slane %v4980, 4
      %v4997 = vrot.slane %v4981, 4
      %v4998 = vrot.slane %v4982, 4
      %v4999 = vrot.slane %v4983, 4
      %v5000 = vrot.slane %v4984, 4
      %v5001 = vrot.slane %v4985, 4
      %v5002 = vrot.slane %v4986, 4
      %5011 = vst [vmem:[#allocation4] sm:$0xf0] %v4995
      %5012 = vst [vmem:[#allocation4 + $0x8] sm:$0xf0] %v4996
      %5013 = vst [vmem:[#allocation4 + $0x10] sm:$0xf0] %v4997
      %5014 = vst [vmem:[#allocation4 + $0x18] sm:$0xf0] %v4998
      %5015 = vst [vmem:[#allocation4 + $0x20] sm:$0xf0] %v4999
      %5016 = vst [vmem:[#allocation4 + $0x28] sm:$0xf0] %v5000
      %5017 = vst [vmem:[#allocation4 + $0x30] sm:$0xf0] %v5001
      %5018 = vst [vmem:[#allocation4 + $0x38] sm:$0xf0] %v5002
      %v5019 = vld [vmem:[#allocation3] sm:$0xf]
      %v5020 = vld [vmem:[#allocation3 + $0x8] sm:$0xf]
      %v5021 = vld [vmem:[#allocation3 + $0x10] sm:$0xf]
      %v5022 = vld [vmem:[#allocation3 + $0x18] sm:$0xf]
      %v5023 = vld [vmem:[#allocation3 + $0x20] sm:$0xf]
      %v5024 = vld [vmem:[#allocation3 + $0x28] sm:$0xf]
      %v5025 = vld [vmem:[#allocation3 + $0x30] sm:$0xf]
      %v5026 = vld [vmem:[#allocation3 + $0x38] sm:$0xf]
      %v5027 = vld [vmem:[#allocation3 + $0x40] sm:$0xf]
      %5037 = vrot.lane.b32.xlu0 %v5019, 31
      %v5038 = vpop.permute.xlu0 %5037
      %5039 = vrot.lane.b32.xlu0 %v5020, 31
      %v5040 = vpop.permute.xlu0 %5039
      %5041 = vrot.lane.b32.xlu0 %v5021, 31
      %v5042 = vpop.permute.xlu0 %5041
      %5043 = vrot.lane.b32.xlu0 %v5022, 31
      %v5044 = vpop.permute.xlu0 %5043
      %5045 = vrot.lane.b32.xlu0 %v5023, 31
      %v5046 = vpop.permute.xlu0 %5045
      %5047 = vrot.lane.b32.xlu0 %v5024, 31
      %v5048 = vpop.permute.xlu0 %5047
      %5049 = vrot.lane.b32.xlu0 %v5025, 31
      %v5050 = vpop.permute.xlu0 %5049
      %5051 = vrot.lane.b32.xlu0 %v5026, 31
      %v5052 = vpop.permute.xlu0 %5051
      %5053 = vrot.lane.b32.xlu0 %v5027, 31
      %v5054 = vpop.permute.xlu0 %5053
      %v5055 = vsel %vm1460, %v5038, %v5040
      %v5056 = vsel %vm1460, %v5040, %v5042
      %v5057 = vsel %vm1460, %v5042, %v5044
      %v5058 = vsel %vm1460, %v5044, %v5046
      %v5059 = vsel %vm1460, %v5046, %v5048
      %v5060 = vsel %vm1460, %v5048, %v5050
      %v5061 = vsel %vm1460, %v5050, %v5052
      %v5062 = vsel %vm1460, %v5052, %v5054
      %v5071 = vsel %vm1425, %v5055, 0.0
      %v5072 = vsel %vm1426, %v5056, 0.0
      %v5073 = vsel %vm1427, %v5057, 0.0
      %v5074 = vsel %vm1428, %v5058, 0.0
      %v5075 = vsel %vm1429, %v5059, 0.0
      %v5076 = vsel %vm1430, %v5060, 0.0
      %v5077 = vsel %vm1431, %v5061, 0.0
      %v5078 = vsel %vm1432, %v5062, 0.0
      %5079 = vst [vmem:[#allocation4 + $0x40] sm:$0xf] %v5071
      %5080 = vst [vmem:[#allocation4 + $0x48] sm:$0xf] %v5072
      %5081 = vst [vmem:[#allocation4 + $0x50] sm:$0xf] %v5073
      %5082 = vst [vmem:[#allocation4 + $0x58] sm:$0xf] %v5074
      %5083 = vst [vmem:[#allocation4 + $0x60] sm:$0xf] %v5075
      %5084 = vst [vmem:[#allocation4 + $0x68] sm:$0xf] %v5076
      %5085 = vst [vmem:[#allocation4 + $0x70] sm:$0xf] %v5077
      %5086 = vst [vmem:[#allocation4 + $0x78] sm:$0xf] %v5078
      %v5087 = vld [vmem:[#allocation3] sm:$0xf]
      %v5088 = vld [vmem:[#allocation3 + $0x8] sm:$0xf]
      %v5089 = vld [vmem:[#allocation3 + $0x10] sm:$0xf]
      %v5090 = vld [vmem:[#allocation3 + $0x18] sm:$0xf]
      %v5091 = vld [vmem:[#allocation3 + $0x20] sm:$0xf]
      %v5092 = vld [vmem:[#allocation3 + $0x28] sm:$0xf]
      %v5093 = vld [vmem:[#allocation3 + $0x30] sm:$0xf]
      %v5094 = vld [vmem:[#allocation3 + $0x38] sm:$0xf]
      %v5095 = vld [vmem:[#allocation3 + $0x40] sm:$0xf]
      %5105 = vrot.lane.b32.xlu0 %v5087, 1
      %v5106 = vpop.permute.xlu0 %5105
      %5107 = vrot.lane.b32.xlu0 %v5088, 1
      %v5108 = vpop.permute.xlu0 %5107
      %5109 = vrot.lane.b32.xlu0 %v5089, 1
      %v5110 = vpop.permute.xlu0 %5109
      %5111 = vrot.lane.b32.xlu0 %v5090, 1
      %v5112 = vpop.permute.xlu0 %5111
      %5113 = vrot.lane.b32.xlu0 %v5091, 1
      %v5114 = vpop.permute.xlu0 %5113
      %5115 = vrot.lane.b32.xlu0 %v5092, 1
      %v5116 = vpop.permute.xlu0 %5115
      %5117 = vrot.lane.b32.xlu0 %v5093, 1
      %v5118 = vpop.permute.xlu0 %5117
      %5119 = vrot.lane.b32.xlu0 %v5094, 1
      %v5120 = vpop.permute.xlu0 %5119
      %5121 = vrot.lane.b32.xlu0 %v5095, 1
      %v5122 = vpop.permute.xlu0 %5121
      %v5123 = vsel %vm1529, %v5106, %v5108
      %v5124 = vsel %vm1529, %v5108, %v5110
      %v5125 = vsel %vm1529, %v5110, %v5112
      %v5126 = vsel %vm1529, %v5112, %v5114
      %v5127 = vsel %vm1529, %v5114, %v5116
      %v5128 = vsel %vm1529, %v5116, %v5118
      %v5129 = vsel %vm1529, %v5118, %v5120
      %v5130 = vsel %vm1529, %v5120, %v5122
      %v5139 = vsel %vm1239, %v5123, 0.0
      %v5140 = vsel %vm1240, %v5124, 0.0
      %v5141 = vsel %vm1241, %v5125, 0.0
      %v5142 = vsel %vm1242, %v5126, 0.0
      %v5143 = vsel %vm1243, %v5127, 0.0
      %v5144 = vsel %vm1244, %v5128, 0.0
      %v5145 = vsel %vm1245, %v5129, 0.0
      %v5146 = vsel %vm1246, %v5130, 0.0
      %v5155 = vrot.slane %v5139, 4
      %v5156 = vrot.slane %v5140, 4
      %v5157 = vrot.slane %v5141, 4
      %v5158 = vrot.slane %v5142, 4
      %v5159 = vrot.slane %v5143, 4
      %v5160 = vrot.slane %v5144, 4
      %v5161 = vrot.slane %v5145, 4
      %v5162 = vrot.slane %v5146, 4
      %5171 = vst [vmem:[#allocation4 + $0x40] sm:$0xf0] %v5155
      %5172 = vst [vmem:[#allocation4 + $0x48] sm:$0xf0] %v5156
      %5173 = vst [vmem:[#allocation4 + $0x50] sm:$0xf0] %v5157
      %5174 = vst [vmem:[#allocation4 + $0x58] sm:$0xf0] %v5158
      %5175 = vst [vmem:[#allocation4 + $0x60] sm:$0xf0] %v5159
      %5176 = vst [vmem:[#allocation4 + $0x68] sm:$0xf0] %v5160
      %5177 = vst [vmem:[#allocation4 + $0x70] sm:$0xf0] %v5161
      %5178 = vst [vmem:[#allocation4 + $0x78] sm:$0xf0] %v5162
      %v5179 = vld [vmem:[#allocation3 + $0x8] sm:$0xf]
      %v5180 = vld [vmem:[#allocation3 + $0x10] sm:$0xf]
      %v5181 = vld [vmem:[#allocation3 + $0x18] sm:$0xf]
      %v5182 = vld [vmem:[#allocation3 + $0x20] sm:$0xf]
      %v5183 = vld [vmem:[#allocation3 + $0x28] sm:$0xf]
      %v5184 = vld [vmem:[#allocation3 + $0x30] sm:$0xf]
      %v5185 = vld [vmem:[#allocation3 + $0x38] sm:$0xf]
      %v5186 = vld [vmem:[#allocation3 + $0x40] sm:$0xf]
      %5187 = vst [vmem:[#allocation4 + $0x80] sm:$0xf] %v5179
      %5188 = vst [vmem:[#allocation4 + $0x88] sm:$0xf] %v5180
      %5189 = vst [vmem:[#allocation4 + $0x90] sm:$0xf] %v5181
      %5190 = vst [vmem:[#allocation4 + $0x98] sm:$0xf] %v5182
      %5191 = vst [vmem:[#allocation4 + $0xa0] sm:$0xf] %v5183
      %5192 = vst [vmem:[#allocation4 + $0xa8] sm:$0xf] %v5184
      %5193 = vst [vmem:[#allocation4 + $0xb0] sm:$0xf] %v5185
      %5194 = vst [vmem:[#allocation4 + $0xb8] sm:$0xf] %v5186
      %v5195 = vld [vmem:[#allocation3 + $0x8] sm:$0xf]
      %v5196 = vld [vmem:[#allocation3 + $0x10] sm:$0xf]
      %v5197 = vld [vmem:[#allocation3 + $0x18] sm:$0xf]
      %v5198 = vld [vmem:[#allocation3 + $0x20] sm:$0xf]
      %v5199 = vld [vmem:[#allocation3 + $0x28] sm:$0xf]
      %v5200 = vld [vmem:[#allocation3 + $0x30] sm:$0xf]
      %v5201 = vld [vmem:[#allocation3 + $0x38] sm:$0xf]
      %v5202 = vld [vmem:[#allocation3 + $0x40] sm:$0xf]
      %v5203 = vld [vmem:[#allocation3 + $0x48] sm:$0xf]
      %5213 = vrot.lane.b32.xlu0 %v5195, 127
      %v5214 = vpop.permute.xlu0 %5213
      %5215 = vrot.lane.b32.xlu0 %v5196, 127
      %v5216 = vpop.permute.xlu0 %5215
      %5217 = vrot.lane.b32.xlu0 %v5197, 127
      %v5218 = vpop.permute.xlu0 %5217
      %5219 = vrot.lane.b32.xlu0 %v5198, 127
      %v5220 = vpop.permute.xlu0 %5219
      %5221 = vrot.lane.b32.xlu0 %v5199, 127
      %v5222 = vpop.permute.xlu0 %5221
      %5223 = vrot.lane.b32.xlu0 %v5200, 127
      %v5224 = vpop.permute.xlu0 %5223
      %5225 = vrot.lane.b32.xlu0 %v5201, 127
      %v5226 = vpop.permute.xlu0 %5225
      %5227 = vrot.lane.b32.xlu0 %v5202, 127
      %v5228 = vpop.permute.xlu0 %5227
      %5229 = vrot.lane.b32.xlu0 %v5203, 127
      %v5230 = vpop.permute.xlu0 %5229
      %v5231 = vsel %vm1638, %v5214, %v5216
      %v5232 = vsel %vm1638, %v5216, %v5218
      %v5233 = vsel %vm1638, %v5218, %v5220
      %v5234 = vsel %vm1638, %v5220, %v5222
      %v5235 = vsel %vm1638, %v5222, %v5224
      %v5236 = vsel %vm1638, %v5224, %v5226
      %v5237 = vsel %vm1638, %v5226, %v5228
      %v5238 = vsel %vm1638, %v5228, %v5230
      %v5247 = vsel %vm1417, %v5231, 0.0
      %v5248 = vsel %vm1418, %v5232, 0.0
      %v5249 = vsel %vm1419, %v5233, 0.0
      %v5250 = vsel %vm1420, %v5234, 0.0
      %v5251 = vsel %vm1421, %v5235, 0.0
      %v5252 = vsel %vm1422, %v5236, 0.0
      %v5253 = vsel %vm1423, %v5237, 0.0
      %v5254 = vsel %vm1424, %v5238, 0.0
      %v5263 = vrot.slane %v5247, 4
      %v5264 = vrot.slane %v5248, 4
      %v5265 = vrot.slane %v5249, 4
      %v5266 = vrot.slane %v5250, 4
      %v5267 = vrot.slane %v5251, 4
      %v5268 = vrot.slane %v5252, 4
      %v5269 = vrot.slane %v5253, 4
      %v5270 = vrot.slane %v5254, 4
      %5279 = vst [vmem:[#allocation4 + $0x80] sm:$0xf0] %v5263
      %5280 = vst [vmem:[#allocation4 + $0x88] sm:$0xf0] %v5264
      %5281 = vst [vmem:[#allocation4 + $0x90] sm:$0xf0] %v5265
      %5282 = vst [vmem:[#allocation4 + $0x98] sm:$0xf0] %v5266
      %5283 = vst [vmem:[#allocation4 + $0xa0] sm:$0xf0] %v5267
      %5284 = vst [vmem:[#allocation4 + $0xa8] sm:$0xf0] %v5268
      %5285 = vst [vmem:[#allocation4 + $0xb0] sm:$0xf0] %v5269
      %5286 = vst [vmem:[#allocation4 + $0xb8] sm:$0xf0] %v5270
      %v5287 = vld [vmem:[#allocation3 + $0x8] sm:$0xf]
      %v5288 = vld [vmem:[#allocation3 + $0x10] sm:$0xf]
      %v5289 = vld [vmem:[#allocation3 + $0x18] sm:$0xf]
      %v5290 = vld [vmem:[#allocation3 + $0x20] sm:$0xf]
      %v5291 = vld [vmem:[#allocation3 + $0x28] sm:$0xf]
      %v5292 = vld [vmem:[#allocation3 + $0x30] sm:$0xf]
      %v5293 = vld [vmem:[#allocation3 + $0x38] sm:$0xf]
      %v5294 = vld [vmem:[#allocation3 + $0x40] sm:$0xf]
      %v5295 = vld [vmem:[#allocation3 + $0x48] sm:$0xf]
      %5305 = vrot.lane.b32.xlu0 %v5287, 97
      %v5306 = vpop.permute.xlu0 %5305
      %5307 = vrot.lane.b32.xlu0 %v5288, 97
      %v5308 = vpop.permute.xlu0 %5307
      %5309 = vrot.lane.b32.xlu0 %v5289, 97
      %v5310 = vpop.permute.xlu0 %5309
      %5311 = vrot.lane.b32.xlu0 %v5290, 97
      %v5312 = vpop.permute.xlu0 %5311
      %5313 = vrot.lane.b32.xlu0 %v5291, 97
      %v5314 = vpop.permute.xlu0 %5313
      %5315 = vrot.lane.b32.xlu0 %v5292, 97
      %v5316 = vpop.permute.xlu0 %5315
      %5317 = vrot.lane.b32.xlu0 %v5293, 97
      %v5318 = vpop.permute.xlu0 %5317
      %5319 = vrot.lane.b32.xlu0 %v5294, 97
      %v5320 = vpop.permute.xlu0 %5319
      %5321 = vrot.lane.b32.xlu0 %v5295, 97
      %v5322 = vpop.permute.xlu0 %5321
      %v5323 = vsel %vm1747, %v5306, %v5308
      %v5324 = vsel %vm1747, %v5308, %v5310
      %v5325 = vsel %vm1747, %v5310, %v5312
      %v5326 = vsel %vm1747, %v5312, %v5314
      %v5327 = vsel %vm1747, %v5314, %v5316
      %v5328 = vsel %vm1747, %v5316, %v5318
      %v5329 = vsel %vm1747, %v5318, %v5320
      %v5330 = vsel %vm1747, %v5320, %v5322
      %v5339 = vsel %vm1712, %v5323, 0.0
      %v5340 = vsel %vm1713, %v5324, 0.0
      %v5341 = vsel %vm1714, %v5325, 0.0
      %v5342 = vsel %vm1715, %v5326, 0.0
      %v5343 = vsel %vm1716, %v5327, 0.0
      %v5344 = vsel %vm1717, %v5328, 0.0
      %v5345 = vsel %vm1718, %v5329, 0.0
      %v5346 = vsel %vm1719, %v5330, 0.0
      %5347 = vst [vmem:[#allocation4 + $0xc0] sm:$0xf] %v5339
      %5348 = vst [vmem:[#allocation4 + $0xc8] sm:$0xf] %v5340
      %5349 = vst [vmem:[#allocation4 + $0xd0] sm:$0xf] %v5341
      %5350 = vst [vmem:[#allocation4 + $0xd8] sm:$0xf] %v5342
      %5351 = vst [vmem:[#allocation4 + $0xe0] sm:$0xf] %v5343
      %5352 = vst [vmem:[#allocation4 + $0xe8] sm:$0xf] %v5344
      %5353 = vst [vmem:[#allocation4 + $0xf0] sm:$0xf] %v5345
      %5354 = vst [vmem:[#allocation4 + $0xf8] sm:$0xf] %v5346
      %v5355 = vld [vmem:[#allocation3 + $0x8] sm:$0xf]
      %v5356 = vld [vmem:[#allocation3 + $0x10] sm:$0xf]
      %v5357 = vld [vmem:[#allocation3 + $0x18] sm:$0xf]
      %v5358 = vld [vmem:[#allocation3 + $0x20] sm:$0xf]
      %v5359 = vld [vmem:[#allocation3 + $0x28] sm:$0xf]
      %v5360 = vld [vmem:[#allocation3 + $0x30] sm:$0xf]
      %v5361 = vld [vmem:[#allocation3 + $0x38] sm:$0xf]
      %v5362 = vld [vmem:[#allocation3 + $0x40] sm:$0xf]
      %v5363 = vld [vmem:[#allocation3 + $0x48] sm:$0xf]
      %5373 = vrot.lane.b32.xlu0 %v5355, 96
      %v5374 = vpop.permute.xlu0 %5373
      %5375 = vrot.lane.b32.xlu0 %v5356, 96
      %v5376 = vpop.permute.xlu0 %5375
      %5377 = vrot.lane.b32.xlu0 %v5357, 96
      %v5378 = vpop.permute.xlu0 %5377
      %5379 = vrot.lane.b32.xlu0 %v5358, 96
      %v5380 = vpop.permute.xlu0 %5379
      %5381 = vrot.lane.b32.xlu0 %v5359, 96
      %v5382 = vpop.permute.xlu0 %5381
      %5383 = vrot.lane.b32.xlu0 %v5360, 96
      %v5384 = vpop.permute.xlu0 %5383
      %5385 = vrot.lane.b32.xlu0 %v5361, 96
      %v5386 = vpop.permute.xlu0 %5385
      %5387 = vrot.lane.b32.xlu0 %v5362, 96
      %v5388 = vpop.permute.xlu0 %5387
      %5389 = vrot.lane.b32.xlu0 %v5363, 96
      %v5390 = vpop.permute.xlu0 %5389
      %v5391 = vsel %vm1816, %v5374, %v5376
      %v5392 = vsel %vm1816, %v5376, %v5378
      %v5393 = vsel %vm1816, %v5378, %v5380
      %v5394 = vsel %vm1816, %v5380, %v5382
      %v5395 = vsel %vm1816, %v5382, %v5384
      %v5396 = vsel %vm1816, %v5384, %v5386
      %v5397 = vsel %vm1816, %v5386, %v5388
      %v5398 = vsel %vm1816, %v5388, %v5390
      %v5407 = vsel %vm1704, %v5391, 0.0
      %v5408 = vsel %vm1705, %v5392, 0.0
      %v5409 = vsel %vm1706, %v5393, 0.0
      %v5410 = vsel %vm1707, %v5394, 0.0
      %v5411 = vsel %vm1708, %v5395, 0.0
      %v5412 = vsel %vm1709, %v5396, 0.0
      %v5413 = vsel %vm1710, %v5397, 0.0
      %v5414 = vsel %vm1711, %v5398, 0.0
      %v5423 = vrot.slane %v5407, 4
      %v5424 = vrot.slane %v5408, 4
      %v5425 = vrot.slane %v5409, 4
      %v5426 = vrot.slane %v5410, 4
      %v5427 = vrot.slane %v5411, 4
      %v5428 = vrot.slane %v5412, 4
      %v5429 = vrot.slane %v5413, 4
      %v5430 = vrot.slane %v5414, 4
      %5439 = vst [vmem:[#allocation4 + $0xc0] sm:$0xf0] %v5423
      %5440 = vst [vmem:[#allocation4 + $0xc8] sm:$0xf0] %v5424
      %5441 = vst [vmem:[#allocation4 + $0xd0] sm:$0xf0] %v5425
      %5442 = vst [vmem:[#allocation4 + $0xd8] sm:$0xf0] %v5426
      %5443 = vst [vmem:[#allocation4 + $0xe0] sm:$0xf0] %v5427
      %5444 = vst [vmem:[#allocation4 + $0xe8] sm:$0xf0] %v5428
      %5445 = vst [vmem:[#allocation4 + $0xf0] sm:$0xf0] %v5429
      %5446 = vst [vmem:[#allocation4 + $0xf8] sm:$0xf0] %v5430
      %v5447 = vld [vmem:[#allocation3 + $0x8] sm:$0xf]
      %v5448 = vld [vmem:[#allocation3 + $0x10] sm:$0xf]
      %v5449 = vld [vmem:[#allocation3 + $0x18] sm:$0xf]
      %v5450 = vld [vmem:[#allocation3 + $0x20] sm:$0xf]
      %v5451 = vld [vmem:[#allocation3 + $0x28] sm:$0xf]
      %v5452 = vld [vmem:[#allocation3 + $0x30] sm:$0xf]
      %v5453 = vld [vmem:[#allocation3 + $0x38] sm:$0xf]
      %v5454 = vld [vmem:[#allocation3 + $0x40] sm:$0xf]
      %v5455 = vld [vmem:[#allocation3 + $0x48] sm:$0xf]
      %5465 = vrot.lane.b32.xlu0 %v5447, 95
      %v5466 = vpop.permute.xlu0 %5465
      %5467 = vrot.lane.b32.xlu0 %v5448, 95
      %v5468 = vpop.permute.xlu0 %5467
      %5469 = vrot.lane.b32.xlu0 %v5449, 95
      %v5470 = vpop.permute.xlu0 %5469
      %5471 = vrot.lane.b32.xlu0 %v5450, 95
      %v5472 = vpop.permute.xlu0 %5471
      %5473 = vrot.lane.b32.xlu0 %v5451, 95
      %v5474 = vpop.permute.xlu0 %5473
      %5475 = vrot.lane.b32.xlu0 %v5452, 95
      %v5476 = vpop.permute.xlu0 %5475
      %5477 = vrot.lane.b32.xlu0 %v5453, 95
      %v5478 = vpop.permute.xlu0 %5477
      %5479 = vrot.lane.b32.xlu0 %v5454, 95
      %v5480 = vpop.permute.xlu0 %5479
      %5481 = vrot.lane.b32.xlu0 %v5455, 95
      %v5482 = vpop.permute.xlu0 %5481
      %v5483 = vsel %vm1917, %v5466, %v5468
      %v5484 = vsel %vm1917, %v5468, %v5470
      %v5485 = vsel %vm1917, %v5470, %v5472
      %v5486 = vsel %vm1917, %v5472, %v5474
      %v5487 = vsel %vm1917, %v5474, %v5476
      %v5488 = vsel %vm1917, %v5476, %v5478
      %v5489 = vsel %vm1917, %v5478, %v5480
      %v5490 = vsel %vm1917, %v5480, %v5482
      %v5499 = vsel %vm1882, %v5483, 0.0
      %v5500 = vsel %vm1883, %v5484, 0.0
      %v5501 = vsel %vm1884, %v5485, 0.0
      %v5502 = vsel %vm1885, %v5486, 0.0
      %v5503 = vsel %vm1886, %v5487, 0.0
      %v5504 = vsel %vm1887, %v5488, 0.0
      %v5505 = vsel %vm1888, %v5489, 0.0
      %v5506 = vsel %vm1889, %v5490, 0.0
      %5507 = vst [vmem:[#allocation4 + $0x100] sm:$0xf] %v5499
      %5508 = vst [vmem:[#allocation4 + $0x108] sm:$0xf] %v5500
      %5509 = vst [vmem:[#allocation4 + $0x110] sm:$0xf] %v5501
      %5510 = vst [vmem:[#allocation4 + $0x118] sm:$0xf] %v5502
      %5511 = vst [vmem:[#allocation4 + $0x120] sm:$0xf] %v5503
      %5512 = vst [vmem:[#allocation4 + $0x128] sm:$0xf] %v5504
      %5513 = vst [vmem:[#allocation4 + $0x130] sm:$0xf] %v5505
      %5514 = vst [vmem:[#allocation4 + $0x138] sm:$0xf] %v5506
      %v5515 = vld [vmem:[#allocation4] sm:$0xff]
      %v5516 = vld [vmem:[#allocation4 + $0x8] sm:$0xff]
      %v5517 = vld [vmem:[#allocation4 + $0x10] sm:$0xff]
      %v5518 = vld [vmem:[#allocation4 + $0x18] sm:$0xff]
      %v5519 = vld [vmem:[#allocation4 + $0x20] sm:$0xff]
      %v5520 = vld [vmem:[#allocation4 + $0x28] sm:$0xff]
      %v5521 = vld [vmem:[#allocation4 + $0x30] sm:$0xff]
      %v5522 = vld [vmem:[#allocation4 + $0x38] sm:$0xff]
      %v5523 = vld [vmem:[#allocation4 + $0x40] sm:$0xff]
      %v5524 = vld [vmem:[#allocation4 + $0x48] sm:$0xff]
      %v5525 = vld [vmem:[#allocation4 + $0x50] sm:$0xff]
      %v5526 = vld [vmem:[#allocation4 + $0x58] sm:$0xff]
      %v5527 = vld [vmem:[#allocation4 + $0x60] sm:$0xff]
      %v5528 = vld [vmem:[#allocation4 + $0x68] sm:$0xff]
      %v5529 = vld [vmem:[#allocation4 + $0x70] sm:$0xff]
      %v5530 = vld [vmem:[#allocation4 + $0x78] sm:$0xff]
      %v5531 = vld [vmem:[#allocation4 + $0x80] sm:$0xff]
      %v5532 = vld [vmem:[#allocation4 + $0x88] sm:$0xff]
      %v5533 = vld [vmem:[#allocation4 + $0x90] sm:$0xff]
      %v5534 = vld [vmem:[#allocation4 + $0x98] sm:$0xff]
      %v5535 = vld [vmem:[#allocation4 + $0xa0] sm:$0xff]
      %v5536 = vld [vmem:[#allocation4 + $0xa8] sm:$0xff]
      %v5537 = vld [vmem:[#allocation4 + $0xb0] sm:$0xff]
      %v5538 = vld [vmem:[#allocation4 + $0xb8] sm:$0xff]
      %v5539 = vld [vmem:[#allocation4 + $0xc0] sm:$0xff]
      %v5540 = vld [vmem:[#allocation4 + $0xc8] sm:$0xff]
      %v5541 = vld [vmem:[#allocation4 + $0xd0] sm:$0xff]
      %v5542 = vld [vmem:[#allocation4 + $0xd8] sm:$0xff]
      %v5543 = vld [vmem:[#allocation4 + $0xe0] sm:$0xff]
      %v5544 = vld [vmem:[#allocation4 + $0xe8] sm:$0xff]
      %v5545 = vld [vmem:[#allocation4 + $0xf0] sm:$0xff]
      %v5546 = vld [vmem:[#allocation4 + $0xf8] sm:$0xff]
      %v5547 = vld [vmem:[#allocation4 + $0x100] sm:$0xf]
      %v5548 = vld [vmem:[#allocation4 + $0x108] sm:$0xf]
      %v5549 = vld [vmem:[#allocation4 + $0x110] sm:$0xf]
      %v5550 = vld [vmem:[#allocation4 + $0x118] sm:$0xf]
      %v5551 = vld [vmem:[#allocation4 + $0x120] sm:$0xf]
      %v5552 = vld [vmem:[#allocation4 + $0x128] sm:$0xf]
      %v5553 = vld [vmem:[#allocation4 + $0x130] sm:$0xf]
      %v5554 = vld [vmem:[#allocation4 + $0x138] sm:$0xf]
      %v5556 = vsel %vm1990, %v4826, 0
      %v5559 = vsel %vm1990, %v4827, 0
      %v5562 = vsel %vm1990, %v4828, 0
      %v5565 = vsel %vm1990, %v4829, 0
      %v5568 = vsel %vm1990, %v4830, 0
      %v5571 = vsel %vm1990, %v4831, 0
      %v5574 = vsel %vm1990, %v4832, 0
      %v5577 = vsel %vm1990, %v4833, 0
      %v5580 = vsel %vm2015, %v5547, 0
      %v5583 = vsel %vm2015, %v5548, 0
      %v5586 = vsel %vm2015, %v5549, 0
      %v5589 = vsel %vm2015, %v5550, 0
      %v5592 = vsel %vm2015, %v5551, 0
      %v5595 = vsel %vm2015, %v5552, 0
      %v5598 = vsel %vm2015, %v5553, 0
      %v5601 = vsel %vm2015, %v5554, 0
      %5603 = vmatprep.subr.mxu0 0.0
      %5604 = vmatpush1.msra.mxu0 0.0
      %5605 = vmatprep.subr.mxu0 0.0
      %5606 = vmatpush1.msra.mxu0 0.0
      %5607 = vmatprep.subr.mxu0 0.0
      %5608 = vmatpush1.msra.mxu0 0.0
      %5609 = vmatprep.subr.mxu0 0.0
      %5610 = vmatpush1.msra.mxu0 0.0
      %5611 = vmatprep.subr.mxu0 0.0
      %5612 = vmatpush1.msra.mxu0 0.0
      %5613 = vmatprep.subr.mxu0 0.0
      %5614 = vmatpush1.msra.mxu0 0.0
      %5615 = vmatprep.subr.mxu0 0.0
      %5616 = vmatpush1.msra.mxu0 0.0
      %5617 = vmatprep.subr.mxu0 0.0
      %5618 = vmatpush1.msra.mxu0 0.0
      %5619 = vmatprep.subr.mxu0 0.0
      %5620 = vmatpush1.msra.mxu0 0.0
      %5621 = vmatprep.subr.mxu0 0.0
      %5622 = vmatpush1.msra.mxu0 0.0
      %5623 = vmatprep.subr.mxu0 0.0
      %5624 = vmatpush1.msra.mxu0 0.0
      %5625 = vmatprep.subr.mxu0 %v5583
      %5626 = vmatpush1.msra.mxu0 %v5580
      %5627 = vmatprep.subr.mxu0 %v5540
      %5628 = vmatpush1.msra.mxu0 %v5539
      %5629 = vmatprep.subr.mxu0 %v5532
      %5630 = vmatpush1.msra.mxu0 %v5531
      %5631 = vmatprep.subr.mxu0 %v5524
      %5632 = vmatpush1.msra.mxu0 %v5523
      %5633 = vmatprep.subr.mxu0 %v5516
      %5634 = vmatpush1.msra.mxu0 %v5515
      %5635 = vmatprep.subr.mxu0 0.0
      %5636 = vmatpush2.msra.mxu0 0.0
      %5637 = vmatprep.subr.mxu0 0.0
      %5638 = vmatpush2.msra.mxu0 0.0
      %5639 = vmatprep.subr.mxu0 0.0
      %5640 = vmatpush2.msra.mxu0 0.0
      %5641 = vmatprep.subr.mxu0 0.0
      %5642 = vmatpush2.msra.mxu0 0.0
      %5643 = vmatprep.subr.mxu0 0.0
      %5644 = vmatpush2.msra.mxu0 0.0
      %5645 = vmatprep.subr.mxu0 0.0
      %5646 = vmatpush2.msra.mxu0 0.0
      %5647 = vmatprep.subr.mxu0 0.0
      %5648 = vmatpush2.msra.mxu0 0.0
      %5649 = vmatprep.subr.mxu0 0.0
      %5650 = vmatpush2.msra.mxu0 0.0
      %5651 = vmatprep.subr.mxu0 0.0
      %5652 = vmatpush2.msra.mxu0 0.0
      %5653 = vmatprep.subr.mxu0 0.0
      %5654 = vmatpush2.msra.mxu0 0.0
      %5655 = vmatprep.subr.mxu0 0.0
      %5656 = vmatpush2.msra.mxu0 0.0
      %5657 = vmatprep.subr.mxu0 0.0
      %5658 = vmatpush2.msra.mxu0 0.0
      %5659 = vmatprep.subr.mxu0 0.0
      %5660 = vmatpush2.msra.mxu0 0.0
      %5661 = vmatprep.subr.mxu0 0.0
      %5662 = vmatpush2.msra.mxu0 0.0
      %5663 = vmatprep.subr.mxu0 0.0
      %5664 = vmatpush2.msra.mxu0 0.0
      %5665 = vmatprep.subr.mxu0 0.0
      %5666 = vmatpush2.msra.mxu0 0.0
      %5667 = vmatprep.mubr.f32.mxu0 0.0
      %5668 = vmatmul.mubr.f32.gmra.mxu0 %v5556
      %v5669 = vpop.f32.mrf.mxu0
      %v5670 = vadd.f32 0.0, %v5669
      %v5671 = vpop.f32.mrf.mxu0
      %v5672 = vadd.f32 0.0, %v5671
      %5673 = vmatprep.mubr.f32.mxu0 0.0
      %5674 = vmatmul.mubr.f32.gmra.mxu0 %v5559
      %v5675 = vpop.f32.mrf.mxu0
      %v5676 = vadd.f32 0.0, %v5675
      %v5677 = vpop.f32.mrf.mxu0
      %v5678 = vadd.f32 0.0, %v5677
      %5679 = vmatprep.mubr.f32.mxu0 0.0
      %5680 = vmatmul.mubr.f32.gmra.mxu0 %v5562
      %v5681 = vpop.f32.mrf.mxu0
      %v5682 = vadd.f32 0.0, %v5681
      %v5683 = vpop.f32.mrf.mxu0
      %v5684 = vadd.f32 0.0, %v5683
      %5685 = vmatprep.mubr.f32.mxu0 0.0
      %5686 = vmatmul.mubr.f32.gmra.mxu0 %v5565
      %v5687 = vpop.f32.mrf.mxu0
      %v5688 = vadd.f32 0.0, %v5687
      %v5689 = vpop.f32.mrf.mxu0
      %v5690 = vadd.f32 0.0, %v5689
      %5691 = vmatprep.mubr.f32.mxu0 0.0
      %5692 = vmatmul.mubr.f32.gmra.mxu0 %v5568
      %v5693 = vpop.f32.mrf.mxu0
      %v5694 = vadd.f32 0.0, %v5693
      %v5695 = vpop.f32.mrf.mxu0
      %v5696 = vadd.f32 0.0, %v5695
      %5697 = vmatprep.mubr.f32.mxu0 0.0
      %5698 = vmatmul.mubr.f32.gmra.mxu0 %v5571
      %v5699 = vpop.f32.mrf.mxu0
      %v5700 = vadd.f32 0.0, %v5699
      %v5701 = vpop.f32.mrf.mxu0
      %v5702 = vadd.f32 0.0, %v5701
      %5703 = vmatprep.mubr.f32.mxu0 0.0
      %5704 = vmatmul.mubr.f32.gmra.mxu0 %v5574
      %v5705 = vpop.f32.mrf.mxu0
      %v5706 = vadd.f32 0.0, %v5705
      %v5707 = vpop.f32.mrf.mxu0
      %v5708 = vadd.f32 0.0, %v5707
      %5709 = vmatprep.mubr.f32.mxu0 0.0
      %5710 = vmatmul.mubr.f32.gmra.mxu0 %v5577
      %v5711 = vpop.f32.mrf.mxu0
      %v5712 = vadd.f32 0.0, %v5711
      %v5713 = vpop.f32.mrf.mxu0
      %v5714 = vadd.f32 0.0, %v5713
      %5715 = vdwg.mxu0
      %5716 = vmatprep.subr.mxu0 0.0
      %5717 = vmatpush1.msra.mxu0 0.0
      %5718 = vmatprep.subr.mxu0 0.0
      %5719 = vmatpush1.msra.mxu0 0.0
      %5720 = vmatprep.subr.mxu0 0.0
      %5721 = vmatpush1.msra.mxu0 0.0
      %5722 = vmatprep.subr.mxu0 0.0
      %5723 = vmatpush1.msra.mxu0 0.0
      %5724 = vmatprep.subr.mxu0 0.0
      %5725 = vmatpush1.msra.mxu0 0.0
      %5726 = vmatprep.subr.mxu0 0.0
      %5727 = vmatpush1.msra.mxu0 0.0
      %5728 = vmatprep.subr.mxu0 0.0
      %5729 = vmatpush1.msra.mxu0 0.0
      %5730 = vmatprep.subr.mxu0 0.0
      %5731 = vmatpush1.msra.mxu0 0.0
      %5732 = vmatprep.subr.mxu0 0.0
      %5733 = vmatpush1.msra.mxu0 0.0
      %5734 = vmatprep.subr.mxu0 0.0
      %5735 = vmatpush1.msra.mxu0 0.0
      %5736 = vmatprep.subr.mxu0 0.0
      %5737 = vmatpush1.msra.mxu0 0.0
      %5738 = vmatprep.subr.mxu0 %v5589
      %5739 = vmatpush1.msra.mxu0 %v5586
      %5740 = vmatprep.subr.mxu0 %v5542
      %5741 = vmatpush1.msra.mxu0 %v5541
      %5742 = vmatprep.subr.mxu0 %v5534
      %5743 = vmatpush1.msra.mxu0 %v5533
      %5744 = vmatprep.subr.mxu0 %v5526
      %5745 = vmatpush1.msra.mxu0 %v5525
      %5746 = vmatprep.subr.mxu0 %v5518
      %5747 = vmatpush1.msra.mxu0 %v5517
      %5748 = vmatprep.subr.mxu0 0.0
      %5749 = vmatpush2.msra.mxu0 0.0
      %5750 = vmatprep.subr.mxu0 0.0
      %5751 = vmatpush2.msra.mxu0 0.0
      %5752 = vmatprep.subr.mxu0 0.0
      %5753 = vmatpush2.msra.mxu0 0.0
      %5754 = vmatprep.subr.mxu0 0.0
      %5755 = vmatpush2.msra.mxu0 0.0
      %5756 = vmatprep.subr.mxu0 0.0
      %5757 = vmatpush2.msra.mxu0 0.0
      %5758 = vmatprep.subr.mxu0 0.0
      %5759 = vmatpush2.msra.mxu0 0.0
      %5760 = vmatprep.subr.mxu0 0.0
      %5761 = vmatpush2.msra.mxu0 0.0
      %5762 = vmatprep.subr.mxu0 0.0
      %5763 = vmatpush2.msra.mxu0 0.0
      %5764 = vmatprep.subr.mxu0 0.0
      %5765 = vmatpush2.msra.mxu0 0.0
      %5766 = vmatprep.subr.mxu0 0.0
      %5767 = vmatpush2.msra.mxu0 0.0
      %5768 = vmatprep.subr.mxu0 0.0
      %5769 = vmatpush2.msra.mxu0 0.0
      %5770 = vmatprep.subr.mxu0 0.0
      %5771 = vmatpush2.msra.mxu0 0.0
      %5772 = vmatprep.subr.mxu0 0.0
      %5773 = vmatpush2.msra.mxu0 0.0
      %5774 = vmatprep.subr.mxu0 0.0
      %5775 = vmatpush2.msra.mxu0 0.0
      %5776 = vmatprep.subr.mxu0 0.0
      %5777 = vmatpush2.msra.mxu0 0.0
      %5778 = vmatprep.subr.mxu0 0.0
      %5779 = vmatpush2.msra.mxu0 0.0
      %5780 = vmatprep.mubr.f32.mxu0 0.0
      %5781 = vmatmul.mubr.f32.gmra.mxu0 %v5556
      %v5782 = vpop.f32.mrf.mxu0
      %v5783 = vadd.f32 0.0, %v5782
      %v5784 = vpop.f32.mrf.mxu0
      %v5785 = vadd.f32 0.0, %v5784
      %5786 = vmatprep.mubr.f32.mxu0 0.0
      %5787 = vmatmul.mubr.f32.gmra.mxu0 %v5559
      %v5788 = vpop.f32.mrf.mxu0
      %v5789 = vadd.f32 0.0, %v5788
      %v5790 = vpop.f32.mrf.mxu0
      %v5791 = vadd.f32 0.0, %v5790
      %5792 = vmatprep.mubr.f32.mxu0 0.0
      %5793 = vmatmul.mubr.f32.gmra.mxu0 %v5562
      %v5794 = vpop.f32.mrf.mxu0
      %v5795 = vadd.f32 0.0, %v5794
      %v5796 = vpop.f32.mrf.mxu0
      %v5797 = vadd.f32 0.0, %v5796
      %5798 = vmatprep.mubr.f32.mxu0 0.0
      %5799 = vmatmul.mubr.f32.gmra.mxu0 %v5565
      %v5800 = vpop.f32.mrf.mxu0
      %v5801 = vadd.f32 0.0, %v5800
      %v5802 = vpop.f32.mrf.mxu0
      %v5803 = vadd.f32 0.0, %v5802
      %5804 = vmatprep.mubr.f32.mxu0 0.0
      %5805 = vmatmul.mubr.f32.gmra.mxu0 %v5568
      %v5806 = vpop.f32.mrf.mxu0
      %v5807 = vadd.f32 0.0, %v5806
      %v5808 = vpop.f32.mrf.mxu0
      %v5809 = vadd.f32 0.0, %v5808
      %5810 = vmatprep.mubr.f32.mxu0 0.0
      %5811 = vmatmul.mubr.f32.gmra.mxu0 %v5571
      %v5812 = vpop.f32.mrf.mxu0
      %v5813 = vadd.f32 0.0, %v5812
      %v5814 = vpop.f32.mrf.mxu0
      %v5815 = vadd.f32 0.0, %v5814
      %5816 = vmatprep.mubr.f32.mxu0 0.0
      %5817 = vmatmul.mubr.f32.gmra.mxu0 %v5574
      %v5818 = vpop.f32.mrf.mxu0
      %v5819 = vadd.f32 0.0, %v5818
      %v5820 = vpop.f32.mrf.mxu0
      %v5821 = vadd.f32 0.0, %v5820
      %5822 = vmatprep.mubr.f32.mxu0 0.0
      %5823 = vmatmul.mubr.f32.gmra.mxu0 %v5577
      %v5824 = vpop.f32.mrf.mxu0
      %v5825 = vadd.f32 0.0, %v5824
      %v5826 = vpop.f32.mrf.mxu0
      %v5827 = vadd.f32 0.0, %v5826
      %5828 = vdwg.mxu0
      %5829 = vmatprep.subr.mxu0 0.0
      %5830 = vmatpush1.msra.mxu0 0.0
      %5831 = vmatprep.subr.mxu0 0.0
      %5832 = vmatpush1.msra.mxu0 0.0
      %5833 = vmatprep.subr.mxu0 0.0
      %5834 = vmatpush1.msra.mxu0 0.0
      %5835 = vmatprep.subr.mxu0 0.0
      %5836 = vmatpush1.msra.mxu0 0.0
      %5837 = vmatprep.subr.mxu0 0.0
      %5838 = vmatpush1.msra.mxu0 0.0
      %5839 = vmatprep.subr.mxu0 0.0
      %5840 = vmatpush1.msra.mxu0 0.0
      %5841 = vmatprep.subr.mxu0 0.0
      %5842 = vmatpush1.msra.mxu0 0.0
      %5843 = vmatprep.subr.mxu0 0.0
      %5844 = vmatpush1.msra.mxu0 0.0
      %5845 = vmatprep.subr.mxu0 0.0
      %5846 = vmatpush1.msra.mxu0 0.0
      %5847 = vmatprep.subr.mxu0 0.0
      %5848 = vmatpush1.msra.mxu0 0.0
      %5849 = vmatprep.subr.mxu0 0.0
      %5850 = vmatpush1.msra.mxu0 0.0
      %5851 = vmatprep.subr.mxu0 %v5595
      %5852 = vmatpush1.msra.mxu0 %v5592
      %5853 = vmatprep.subr.mxu0 %v5544
      %5854 = vmatpush1.msra.mxu0 %v5543
      %5855 = vmatprep.subr.mxu0 %v5536
      %5856 = vmatpush1.msra.mxu0 %v5535
      %5857 = vmatprep.subr.mxu0 %v5528
      %5858 = vmatpush1.msra.mxu0 %v5527
      %5859 = vmatprep.subr.mxu0 %v5520
      %5860 = vmatpush1.msra.mxu0 %v5519
      %5861 = vmatprep.subr.mxu0 0.0
      %5862 = vmatpush2.msra.mxu0 0.0
      %5863 = vmatprep.subr.mxu0 0.0
      %5864 = vmatpush2.msra.mxu0 0.0
      %5865 = vmatprep.subr.mxu0 0.0
      %5866 = vmatpush2.msra.mxu0 0.0
      %5867 = vmatprep.subr.mxu0 0.0
      %5868 = vmatpush2.msra.mxu0 0.0
      %5869 = vmatprep.subr.mxu0 0.0
      %5870 = vmatpush2.msra.mxu0 0.0
      %5871 = vmatprep.subr.mxu0 0.0
      %5872 = vmatpush2.msra.mxu0 0.0
      %5873 = vmatprep.subr.mxu0 0.0
      %5874 = vmatpush2.msra.mxu0 0.0
      %5875 = vmatprep.subr.mxu0 0.0
      %5876 = vmatpush2.msra.mxu0 0.0
      %5877 = vmatprep.subr.mxu0 0.0
      %5878 = vmatpush2.msra.mxu0 0.0
      %5879 = vmatprep.subr.mxu0 0.0
      %5880 = vmatpush2.msra.mxu0 0.0
      %5881 = vmatprep.subr.mxu0 0.0
      %5882 = vmatpush2.msra.mxu0 0.0
      %5883 = vmatprep.subr.mxu0 0.0
      %5884 = vmatpush2.msra.mxu0 0.0
      %5885 = vmatprep.subr.mxu0 0.0
      %5886 = vmatpush2.msra.mxu0 0.0
      %5887 = vmatprep.subr.mxu0 0.0
      %5888 = vmatpush2.msra.mxu0 0.0
      %5889 = vmatprep.subr.mxu0 0.0
      %5890 = vmatpush2.msra.mxu0 0.0
      %5891 = vmatprep.subr.mxu0 0.0
      %5892 = vmatpush2.msra.mxu0 0.0
      %5893 = vmatprep.mubr.f32.mxu0 0.0
      %5894 = vmatmul.mubr.f32.gmra.mxu0 %v5556
      %v5895 = vpop.f32.mrf.mxu0
      %v5896 = vadd.f32 0.0, %v5895
      %v5897 = vpop.f32.mrf.mxu0
      %v5898 = vadd.f32 0.0, %v5897
      %5899 = vmatprep.mubr.f32.mxu0 0.0
      %5900 = vmatmul.mubr.f32.gmra.mxu0 %v5559
      %v5901 = vpop.f32.mrf.mxu0
      %v5902 = vadd.f32 0.0, %v5901
      %v5903 = vpop.f32.mrf.mxu0
      %v5904 = vadd.f32 0.0, %v5903
      %5905 = vmatprep.mubr.f32.mxu0 0.0
      %5906 = vmatmul.mubr.f32.gmra.mxu0 %v5562
      %v5907 = vpop.f32.mrf.mxu0
      %v5908 = vadd.f32 0.0, %v5907
      %v5909 = vpop.f32.mrf.mxu0
      %v5910 = vadd.f32 0.0, %v5909
      %5911 = vmatprep.mubr.f32.mxu0 0.0
      %5912 = vmatmul.mubr.f32.gmra.mxu0 %v5565
      %v5913 = vpop.f32.mrf.mxu0
      %v5914 = vadd.f32 0.0, %v5913
      %v5915 = vpop.f32.mrf.mxu0
      %v5916 = vadd.f32 0.0, %v5915
      %5917 = vmatprep.mubr.f32.mxu0 0.0
      %5918 = vmatmul.mubr.f32.gmra.mxu0 %v5568
      %v5919 = vpop.f32.mrf.mxu0
      %v5920 = vadd.f32 0.0, %v5919
      %v5921 = vpop.f32.mrf.mxu0
      %v5922 = vadd.f32 0.0, %v5921
      %5923 = vmatprep.mubr.f32.mxu0 0.0
      %5924 = vmatmul.mubr.f32.gmra.mxu0 %v5571
      %v5925 = vpop.f32.mrf.mxu0
      %v5926 = vadd.f32 0.0, %v5925
      %v5927 = vpop.f32.mrf.mxu0
      %v5928 = vadd.f32 0.0, %v5927
      %5929 = vmatprep.mubr.f32.mxu0 0.0
      %5930 = vmatmul.mubr.f32.gmra.mxu0 %v5574
      %v5931 = vpop.f32.mrf.mxu0
      %v5932 = vadd.f32 0.0, %v5931
      %v5933 = vpop.f32.mrf.mxu0
      %v5934 = vadd.f32 0.0, %v5933
      %5935 = vmatprep.mubr.f32.mxu0 0.0
      %5936 = vmatmul.mubr.f32.gmra.mxu0 %v5577
      %v5937 = vpop.f32.mrf.mxu0
      %v5938 = vadd.f32 0.0, %v5937
      %v5939 = vpop.f32.mrf.mxu0
      %v5940 = vadd.f32 0.0, %v5939
      %5941 = vdwg.mxu0
      %5942 = vmatprep.subr.mxu0 0.0
      %5943 = vmatpush1.msra.mxu0 0.0
      %5944 = vmatprep.subr.mxu0 0.0
      %5945 = vmatpush1.msra.mxu0 0.0
      %5946 = vmatprep.subr.mxu0 0.0
      %5947 = vmatpush1.msra.mxu0 0.0
      %5948 = vmatprep.subr.mxu0 0.0
      %5949 = vmatpush1.msra.mxu0 0.0
      %5950 = vmatprep.subr.mxu0 0.0
      %5951 = vmatpush1.msra.mxu0 0.0
      %5952 = vmatprep.subr.mxu0 0.0
      %5953 = vmatpush1.msra.mxu0 0.0
      %5954 = vmatprep.subr.mxu0 0.0
      %5955 = vmatpush1.msra.mxu0 0.0
      %5956 = vmatprep.subr.mxu0 0.0
      %5957 = vmatpush1.msra.mxu0 0.0
      %5958 = vmatprep.subr.mxu0 0.0
      %5959 = vmatpush1.msra.mxu0 0.0
      %5960 = vmatprep.subr.mxu0 0.0
      %5961 = vmatpush1.msra.mxu0 0.0
      %5962 = vmatprep.subr.mxu0 0.0
      %5963 = vmatpush1.msra.mxu0 0.0
      %5964 = vmatprep.subr.mxu0 %v5601
      %5965 = vmatpush1.msra.mxu0 %v5598
      %5966 = vmatprep.subr.mxu0 %v5546
      %5967 = vmatpush1.msra.mxu0 %v5545
      %5968 = vmatprep.subr.mxu0 %v5538
      %5969 = vmatpush1.msra.mxu0 %v5537
      %5970 = vmatprep.subr.mxu0 %v5530
      %5971 = vmatpush1.msra.mxu0 %v5529
      %5972 = vmatprep.subr.mxu0 %v5522
      %5973 = vmatpush1.msra.mxu0 %v5521
      %5974 = vmatprep.subr.mxu0 0.0
      %5975 = vmatpush2.msra.mxu0 0.0
      %5976 = vmatprep.subr.mxu0 0.0
      %5977 = vmatpush2.msra.mxu0 0.0
      %5978 = vmatprep.subr.mxu0 0.0
      %5979 = vmatpush2.msra.mxu0 0.0
      %5980 = vmatprep.subr.mxu0 0.0
      %5981 = vmatpush2.msra.mxu0 0.0
      %5982 = vmatprep.subr.mxu0 0.0
      %5983 = vmatpush2.msra.mxu0 0.0
      %5984 = vmatprep.subr.mxu0 0.0
      %5985 = vmatpush2.msra.mxu0 0.0
      %5986 = vmatprep.subr.mxu0 0.0
      %5987 = vmatpush2.msra.mxu0 0.0
      %5988 = vmatprep.subr.mxu0 0.0
      %5989 = vmatpush2.msra.mxu0 0.0
      %5990 = vmatprep.subr.mxu0 0.0
      %5991 = vmatpush2.msra.mxu0 0.0
      %5992 = vmatprep.subr.mxu0 0.0
      %5993 = vmatpush2.msra.mxu0 0.0
      %5994 = vmatprep.subr.mxu0 0.0
      %5995 = vmatpush2.msra.mxu0 0.0
      %5996 = vmatprep.subr.mxu0 0.0
      %5997 = vmatpush2.msra.mxu0 0.0
      %5998 = vmatprep.subr.mxu0 0.0
      %5999 = vmatpush2.msra.mxu0 0.0
      %6000 = vmatprep.subr.mxu0 0.0
      %6001 = vmatpush2.msra.mxu0 0.0
      %6002 = vmatprep.subr.mxu0 0.0
      %6003 = vmatpush2.msra.mxu0 0.0
      %6004 = vmatprep.subr.mxu0 0.0
      %6005 = vmatpush2.msra.mxu0 0.0
      %6006 = vmatprep.mubr.f32.mxu0 0.0
      %6007 = vmatmul.mubr.f32.gmra.mxu0 %v5556
      %v6008 = vpop.f32.mrf.mxu0
      %v6009 = vadd.f32 0.0, %v6008
      %v6010 = vpop.f32.mrf.mxu0
      %v6011 = vadd.f32 0.0, %v6010
      %6012 = vmatprep.mubr.f32.mxu0 0.0
      %6013 = vmatmul.mubr.f32.gmra.mxu0 %v5559
      %v6014 = vpop.f32.mrf.mxu0
      %v6015 = vadd.f32 0.0, %v6014
      %v6016 = vpop.f32.mrf.mxu0
      %v6017 = vadd.f32 0.0, %v6016
      %6018 = vmatprep.mubr.f32.mxu0 0.0
      %6019 = vmatmul.mubr.f32.gmra.mxu0 %v5562
      %v6020 = vpop.f32.mrf.mxu0
      %v6021 = vadd.f32 0.0, %v6020
      %v6022 = vpop.f32.mrf.mxu0
      %v6023 = vadd.f32 0.0, %v6022
      %6024 = vmatprep.mubr.f32.mxu0 0.0
      %6025 = vmatmul.mubr.f32.gmra.mxu0 %v5565
      %v6026 = vpop.f32.mrf.mxu0
      %v6027 = vadd.f32 0.0, %v6026
      %v6028 = vpop.f32.mrf.mxu0
      %v6029 = vadd.f32 0.0, %v6028
      %6030 = vmatprep.mubr.f32.mxu0 0.0
      %6031 = vmatmul.mubr.f32.gmra.mxu0 %v5568
      %v6032 = vpop.f32.mrf.mxu0
      %v6033 = vadd.f32 0.0, %v6032
      %v6034 = vpop.f32.mrf.mxu0
      %v6035 = vadd.f32 0.0, %v6034
      %6036 = vmatprep.mubr.f32.mxu0 0.0
      %6037 = vmatmul.mubr.f32.gmra.mxu0 %v5571
      %v6038 = vpop.f32.mrf.mxu0
      %v6039 = vadd.f32 0.0, %v6038
      %v6040 = vpop.f32.mrf.mxu0
      %v6041 = vadd.f32 0.0, %v6040
      %6042 = vmatprep.mubr.f32.mxu0 0.0
      %6043 = vmatmul.mubr.f32.gmra.mxu0 %v5574
      %v6044 = vpop.f32.mrf.mxu0
      %v6045 = vadd.f32 0.0, %v6044
      %v6046 = vpop.f32.mrf.mxu0
      %v6047 = vadd.f32 0.0, %v6046
      %6048 = vmatprep.mubr.f32.mxu0 0.0
      %6049 = vmatmul.mubr.f32.gmra.mxu0 %v5577
      %v6050 = vpop.f32.mrf.mxu0
      %v6051 = vadd.f32 0.0, %v6050
      %v6052 = vpop.f32.mrf.mxu0
      %v6053 = vadd.f32 0.0, %v6052
      %6054 = vdwg.mxu0
      %v6055 = vmax.f32 %v5670, 0.0
      %v6056 = vmax.f32 %v5672, 0.0
      %v6057 = vmax.f32 %v5783, 0.0
      %v6058 = vmax.f32 %v5785, 0.0
      %v6059 = vmax.f32 %v5896, 0.0
      %v6060 = vmax.f32 %v5898, 0.0
      %v6061 = vmax.f32 %v6009, 0.0
      %v6062 = vmax.f32 %v6011, 0.0
      %v6063 = vmax.f32 %v5676, 0.0
      %v6064 = vmax.f32 %v5678, 0.0
      %v6065 = vmax.f32 %v5789, 0.0
      %v6066 = vmax.f32 %v5791, 0.0
      %v6067 = vmax.f32 %v5902, 0.0
      %v6068 = vmax.f32 %v5904, 0.0
      %v6069 = vmax.f32 %v6015, 0.0
      %v6070 = vmax.f32 %v6017, 0.0
      %v6071 = vmax.f32 %v5682, 0.0
      %v6072 = vmax.f32 %v5684, 0.0
      %v6073 = vmax.f32 %v5795, 0.0
      %v6074 = vmax.f32 %v5797, 0.0
      %v6075 = vmax.f32 %v5908, 0.0
      %v6076 = vmax.f32 %v5910, 0.0
      %v6077 = vmax.f32 %v6021, 0.0
      %v6078 = vmax.f32 %v6023, 0.0
      %v6079 = vmax.f32 %v5688, 0.0
      %v6080 = vmax.f32 %v5690, 0.0
      %v6081 = vmax.f32 %v5801, 0.0
      %v6082 = vmax.f32 %v5803, 0.0
      %v6083 = vmax.f32 %v5914, 0.0
      %v6084 = vmax.f32 %v5916, 0.0
      %v6085 = vmax.f32 %v6027, 0.0
      %v6086 = vmax.f32 %v6029, 0.0
      %v6087 = vmax.f32 %v5694, 0.0
      %v6088 = vmax.f32 %v5696, 0.0
      %v6089 = vmax.f32 %v5807, 0.0
      %v6090 = vmax.f32 %v5809, 0.0
      %v6091 = vmax.f32 %v5920, 0.0
      %v6092 = vmax.f32 %v5922, 0.0
      %v6093 = vmax.f32 %v6033, 0.0
      %v6094 = vmax.f32 %v6035, 0.0
      %v6095 = vmax.f32 %v5700, 0.0
      %v6096 = vmax.f32 %v5702, 0.0
      %v6097 = vmax.f32 %v5813, 0.0
      %v6098 = vmax.f32 %v5815, 0.0
      %v6099 = vmax.f32 %v5926, 0.0
      %v6100 = vmax.f32 %v5928, 0.0
      %v6101 = vmax.f32 %v6039, 0.0
      %v6102 = vmax.f32 %v6041, 0.0
      %v6103 = vmax.f32 %v5706, 0.0
      %v6104 = vmax.f32 %v5708, 0.0
      %v6105 = vmax.f32 %v5819, 0.0
      %v6106 = vmax.f32 %v5821, 0.0
      %v6107 = vmax.f32 %v5932, 0.0
      %v6108 = vmax.f32 %v5934, 0.0
      %v6109 = vmax.f32 %v6045, 0.0
      %v6110 = vmax.f32 %v6047, 0.0
      %v6111 = vmax.f32 %v5712, 0.0
      %v6112 = vmax.f32 %v5714, 0.0
      %v6113 = vmax.f32 %v5825, 0.0
      %v6114 = vmax.f32 %v5827, 0.0
      %v6115 = vmax.f32 %v5938, 0.0
      %v6116 = vmax.f32 %v5940, 0.0
      %v6117 = vmax.f32 %v6051, 0.0
      %v6118 = vmax.f32 %v6053, 0.0
      %v6120 = vsel %vm2556, %v4834, 0
      %v6123 = vsel %vm2556, %v4835, 0
      %v6126 = vsel %vm2556, %v4836, 0
      %v6129 = vsel %vm2556, %v4837, 0
      %v6132 = vsel %vm2556, %v4838, 0
      %6134 = vmatprep.subr.mxu0 0.0
      %6135 = vmatpush1.msra.mxu0 0.0
      %6136 = vmatprep.subr.mxu0 0.0
      %6137 = vmatpush1.msra.mxu0 0.0
      %6138 = vmatprep.subr.mxu0 0.0
      %6139 = vmatpush1.msra.mxu0 0.0
      %6140 = vmatprep.subr.mxu0 0.0
      %6141 = vmatpush1.msra.mxu0 0.0
      %6142 = vmatprep.subr.mxu0 0.0
      %6143 = vmatpush1.msra.mxu0 0.0
      %6144 = vmatprep.subr.mxu0 0.0
      %6145 = vmatpush1.msra.mxu0 0.0
      %6146 = vmatprep.subr.mxu0 0.0
      %6147 = vmatpush1.msra.mxu0 0.0
      %6148 = vmatprep.subr.mxu0 0.0
      %6149 = vmatpush1.msra.mxu0 0.0
      %6150 = vmatprep.subr.mxu0 %v6112
      %6151 = vmatpush1.msra.mxu0 %v6111
      %6152 = vmatprep.subr.mxu0 %v6104
      %6153 = vmatpush1.msra.mxu0 %v6103
      %6154 = vmatprep.subr.mxu0 %v6096
      %6155 = vmatpush1.msra.mxu0 %v6095
      %6156 = vmatprep.subr.mxu0 %v6088
      %6157 = vmatpush1.msra.mxu0 %v6087
      %6158 = vmatprep.subr.mxu0 %v6080
      %6159 = vmatpush1.msra.mxu0 %v6079
      %6160 = vmatprep.subr.mxu0 %v6072
      %6161 = vmatpush1.msra.mxu0 %v6071
      %6162 = vmatprep.subr.mxu0 %v6064
      %6163 = vmatpush1.msra.mxu0 %v6063
      %6164 = vmatprep.subr.mxu0 %v6056
      %6165 = vmatpush1.msra.mxu0 %v6055
      %6166 = vmatprep.subr.mxu0 0.0
      %6167 = vmatpush2.msra.mxu0 0.0
      %6168 = vmatprep.subr.mxu0 0.0
      %6169 = vmatpush2.msra.mxu0 0.0
      %6170 = vmatprep.subr.mxu0 0.0
      %6171 = vmatpush2.msra.mxu0 0.0
      %6172 = vmatprep.subr.mxu0 0.0
      %6173 = vmatpush2.msra.mxu0 0.0
      %6174 = vmatprep.subr.mxu0 0.0
      %6175 = vmatpush2.msra.mxu0 0.0
      %6176 = vmatprep.subr.mxu0 0.0
      %6177 = vmatpush2.msra.mxu0 0.0
      %6178 = vmatprep.subr.mxu0 0.0
      %6179 = vmatpush2.msra.mxu0 0.0
      %6180 = vmatprep.subr.mxu0 0.0
      %6181 = vmatpush2.msra.mxu0 0.0
      %6182 = vmatprep.subr.mxu0 0.0
      %6183 = vmatpush2.msra.mxu0 0.0
      %6184 = vmatprep.subr.mxu0 0.0
      %6185 = vmatpush2.msra.mxu0 0.0
      %6186 = vmatprep.subr.mxu0 0.0
      %6187 = vmatpush2.msra.mxu0 0.0
      %6188 = vmatprep.subr.mxu0 0.0
      %6189 = vmatpush2.msra.mxu0 0.0
      %6190 = vmatprep.subr.mxu0 0.0
      %6191 = vmatpush2.msra.mxu0 0.0
      %6192 = vmatprep.subr.mxu0 0.0
      %6193 = vmatpush2.msra.mxu0 0.0
      %6194 = vmatprep.subr.mxu0 0.0
      %6195 = vmatpush2.msra.mxu0 0.0
      %6196 = vmatprep.subr.mxu0 0.0
      %6197 = vmatpush2.msra.mxu0 0.0
      %6198 = vmatprep.mubr.f32.mxu0 0.0
      %6199 = vmatmul.mubr.f32.gmra.mxu0 %v6120
      %v6200 = vpop.f32.mrf.mxu0
      %v6201 = vadd.f32 0.0, %v6200
      %v6202 = vpop.f32.mrf.mxu0
      %v6203 = vadd.f32 0.0, %v6202
      %6204 = vmatprep.mubr.f32.mxu0 0.0
      %6205 = vmatmul.mubr.f32.gmra.mxu0 %v6123
      %v6206 = vpop.f32.mrf.mxu0
      %v6207 = vadd.f32 0.0, %v6206
      %v6208 = vpop.f32.mrf.mxu0
      %v6209 = vadd.f32 0.0, %v6208
      %6210 = vmatprep.mubr.f32.mxu0 0.0
      %6211 = vmatmul.mubr.f32.gmra.mxu0 %v6126
      %v6212 = vpop.f32.mrf.mxu0
      %v6213 = vadd.f32 0.0, %v6212
      %v6214 = vpop.f32.mrf.mxu0
      %v6215 = vadd.f32 0.0, %v6214
      %6216 = vmatprep.mubr.f32.mxu0 0.0
      %6217 = vmatmul.mubr.f32.gmra.mxu0 %v6129
      %v6218 = vpop.f32.mrf.mxu0
      %v6219 = vadd.f32 0.0, %v6218
      %v6220 = vpop.f32.mrf.mxu0
      %v6221 = vadd.f32 0.0, %v6220
      %6222 = vmatprep.mubr.f32.mxu0 0.0
      %6223 = vmatmul.mubr.f32.gmra.mxu0 %v6132
      %v6224 = vpop.f32.mrf.mxu0
      %v6225 = vadd.f32 0.0, %v6224
      %v6226 = vpop.f32.mrf.mxu0
      %v6227 = vadd.f32 0.0, %v6226
      %6228 = vdwg.mxu0
      %6229 = vmatprep.subr.mxu0 0.0
      %6230 = vmatpush1.msra.mxu0 0.0
      %6231 = vmatprep.subr.mxu0 0.0
      %6232 = vmatpush1.msra.mxu0 0.0
      %6233 = vmatprep.subr.mxu0 0.0
      %6234 = vmatpush1.msra.mxu0 0.0
      %6235 = vmatprep.subr.mxu0 0.0
      %6236 = vmatpush1.msra.mxu0 0.0
      %6237 = vmatprep.subr.mxu0 0.0
      %6238 = vmatpush1.msra.mxu0 0.0
      %6239 = vmatprep.subr.mxu0 0.0
      %6240 = vmatpush1.msra.mxu0 0.0
      %6241 = vmatprep.subr.mxu0 0.0
      %6242 = vmatpush1.msra.mxu0 0.0
      %6243 = vmatprep.subr.mxu0 0.0
      %6244 = vmatpush1.msra.mxu0 0.0
      %6245 = vmatprep.subr.mxu0 %v6114
      %6246 = vmatpush1.msra.mxu0 %v6113
      %6247 = vmatprep.subr.mxu0 %v6106
      %6248 = vmatpush1.msra.mxu0 %v6105
      %6249 = vmatprep.subr.mxu0 %v6098
      %6250 = vmatpush1.msra.mxu0 %v6097
      %6251 = vmatprep.subr.mxu0 %v6090
      %6252 = vmatpush1.msra.mxu0 %v6089
      %6253 = vmatprep.subr.mxu0 %v6082
      %6254 = vmatpush1.msra.mxu0 %v6081
      %6255 = vmatprep.subr.mxu0 %v6074
      %6256 = vmatpush1.msra.mxu0 %v6073
      %6257 = vmatprep.subr.mxu0 %v6066
      %6258 = vmatpush1.msra.mxu0 %v6065
      %6259 = vmatprep.subr.mxu0 %v6058
      %6260 = vmatpush1.msra.mxu0 %v6057
      %6261 = vmatprep.subr.mxu0 0.0
      %6262 = vmatpush2.msra.mxu0 0.0
      %6263 = vmatprep.subr.mxu0 0.0
      %6264 = vmatpush2.msra.mxu0 0.0
      %6265 = vmatprep.subr.mxu0 0.0
      %6266 = vmatpush2.msra.mxu0 0.0
      %6267 = vmatprep.subr.mxu0 0.0
      %6268 = vmatpush2.msra.mxu0 0.0
      %6269 = vmatprep.subr.mxu0 0.0
      %6270 = vmatpush2.msra.mxu0 0.0
      %6271 = vmatprep.subr.mxu0 0.0
      %6272 = vmatpush2.msra.mxu0 0.0
      %6273 = vmatprep.subr.mxu0 0.0
      %6274 = vmatpush2.msra.mxu0 0.0
      %6275 = vmatprep.subr.mxu0 0.0
      %6276 = vmatpush2.msra.mxu0 0.0
      %6277 = vmatprep.subr.mxu0 0.0
      %6278 = vmatpush2.msra.mxu0 0.0
      %6279 = vmatprep.subr.mxu0 0.0
      %6280 = vmatpush2.msra.mxu0 0.0
      %6281 = vmatprep.subr.mxu0 0.0
      %6282 = vmatpush2.msra.mxu0 0.0
      %6283 = vmatprep.subr.mxu0 0.0
      %6284 = vmatpush2.msra.mxu0 0.0
      %6285 = vmatprep.subr.mxu0 0.0
      %6286 = vmatpush2.msra.mxu0 0.0
      %6287 = vmatprep.subr.mxu0 0.0
      %6288 = vmatpush2.msra.mxu0 0.0
      %6289 = vmatprep.subr.mxu0 0.0
      %6290 = vmatpush2.msra.mxu0 0.0
      %6291 = vmatprep.subr.mxu0 0.0
      %6292 = vmatpush2.msra.mxu0 0.0
      %6293 = vmatprep.mubr.f32.mxu0 0.0
      %6294 = vmatmul.mubr.f32.gmra.mxu0 %v6120
      %v6295 = vpop.f32.mrf.mxu0
      %v6296 = vadd.f32 0.0, %v6295
      %v6297 = vpop.f32.mrf.mxu0
      %v6298 = vadd.f32 0.0, %v6297
      %6299 = vmatprep.mubr.f32.mxu0 0.0
      %6300 = vmatmul.mubr.f32.gmra.mxu0 %v6123
      %v6301 = vpop.f32.mrf.mxu0
      %v6302 = vadd.f32 0.0, %v6301
      %v6303 = vpop.f32.mrf.mxu0
      %v6304 = vadd.f32 0.0, %v6303
      %6305 = vmatprep.mubr.f32.mxu0 0.0
      %6306 = vmatmul.mubr.f32.gmra.mxu0 %v6126
      %v6307 = vpop.f32.mrf.mxu0
      %v6308 = vadd.f32 0.0, %v6307
      %v6309 = vpop.f32.mrf.mxu0
      %v6310 = vadd.f32 0.0, %v6309
      %6311 = vmatprep.mubr.f32.mxu0 0.0
      %6312 = vmatmul.mubr.f32.gmra.mxu0 %v6129
      %v6313 = vpop.f32.mrf.mxu0
      %v6314 = vadd.f32 0.0, %v6313
      %v6315 = vpop.f32.mrf.mxu0
      %v6316 = vadd.f32 0.0, %v6315
      %6317 = vmatprep.mubr.f32.mxu0 0.0
      %6318 = vmatmul.mubr.f32.gmra.mxu0 %v6132
      %v6319 = vpop.f32.mrf.mxu0
      %v6320 = vadd.f32 0.0, %v6319
      %v6321 = vpop.f32.mrf.mxu0
      %v6322 = vadd.f32 0.0, %v6321
      %6323 = vdwg.mxu0
      %6324 = vmatprep.subr.mxu0 0.0
      %6325 = vmatpush1.msra.mxu0 0.0
      %6326 = vmatprep.subr.mxu0 0.0
      %6327 = vmatpush1.msra.mxu0 0.0
      %6328 = vmatprep.subr.mxu0 0.0
      %6329 = vmatpush1.msra.mxu0 0.0
      %6330 = vmatprep.subr.mxu0 0.0
      %6331 = vmatpush1.msra.mxu0 0.0
      %6332 = vmatprep.subr.mxu0 0.0
      %6333 = vmatpush1.msra.mxu0 0.0
      %6334 = vmatprep.subr.mxu0 0.0
      %6335 = vmatpush1.msra.mxu0 0.0
      %6336 = vmatprep.subr.mxu0 0.0
      %6337 = vmatpush1.msra.mxu0 0.0
      %6338 = vmatprep.subr.mxu0 0.0
      %6339 = vmatpush1.msra.mxu0 0.0
      %6340 = vmatprep.subr.mxu0 %v6116
      %6341 = vmatpush1.msra.mxu0 %v6115
      %6342 = vmatprep.subr.mxu0 %v6108
      %6343 = vmatpush1.msra.mxu0 %v6107
      %6344 = vmatprep.subr.mxu0 %v6100
      %6345 = vmatpush1.msra.mxu0 %v6099
      %6346 = vmatprep.subr.mxu0 %v6092
      %6347 = vmatpush1.msra.mxu0 %v6091
      %6348 = vmatprep.subr.mxu0 %v6084
      %6349 = vmatpush1.msra.mxu0 %v6083
      %6350 = vmatprep.subr.mxu0 %v6076
      %6351 = vmatpush1.msra.mxu0 %v6075
      %6352 = vmatprep.subr.mxu0 %v6068
      %6353 = vmatpush1.msra.mxu0 %v6067
      %6354 = vmatprep.subr.mxu0 %v6060
      %6355 = vmatpush1.msra.mxu0 %v6059
      %6356 = vmatprep.subr.mxu0 0.0
      %6357 = vmatpush2.msra.mxu0 0.0
      %6358 = vmatprep.subr.mxu0 0.0
      %6359 = vmatpush2.msra.mxu0 0.0
      %6360 = vmatprep.subr.mxu0 0.0
      %6361 = vmatpush2.msra.mxu0 0.0
      %6362 = vmatprep.subr.mxu0 0.0
      %6363 = vmatpush2.msra.mxu0 0.0
      %6364 = vmatprep.subr.mxu0 0.0
      %6365 = vmatpush2.msra.mxu0 0.0
      %6366 = vmatprep.subr.mxu0 0.0
      %6367 = vmatpush2.msra.mxu0 0.0
      %6368 = vmatprep.subr.mxu0 0.0
      %6369 = vmatpush2.msra.mxu0 0.0
      %6370 = vmatprep.subr.mxu0 0.0
      %6371 = vmatpush2.msra.mxu0 0.0
      %6372 = vmatprep.subr.mxu0 0.0
      %6373 = vmatpush2.msra.mxu0 0.0
      %6374 = vmatprep.subr.mxu0 0.0
      %6375 = vmatpush2.msra.mxu0 0.0
      %6376 = vmatprep.subr.mxu0 0.0
      %6377 = vmatpush2.msra.mxu0 0.0
      %6378 = vmatprep.subr.mxu0 0.0
      %6379 = vmatpush2.msra.mxu0 0.0
      %6380 = vmatprep.subr.mxu0 0.0
      %6381 = vmatpush2.msra.mxu0 0.0
      %6382 = vmatprep.subr.mxu0 0.0
      %6383 = vmatpush2.msra.mxu0 0.0
      %6384 = vmatprep.subr.mxu0 0.0
      %6385 = vmatpush2.msra.mxu0 0.0
      %6386 = vmatprep.subr.mxu0 0.0
      %6387 = vmatpush2.msra.mxu0 0.0
      %6388 = vmatprep.mubr.f32.mxu0 0.0
      %6389 = vmatmul.mubr.f32.gmra.mxu0 %v6120
      %v6390 = vpop.f32.mrf.mxu0
      %v6391 = vadd.f32 0.0, %v6390
      %v6392 = vpop.f32.mrf.mxu0
      %v6393 = vadd.f32 0.0, %v6392
      %6394 = vmatprep.mubr.f32.mxu0 0.0
      %6395 = vmatmul.mubr.f32.gmra.mxu0 %v6123
      %v6396 = vpop.f32.mrf.mxu0
      %v6397 = vadd.f32 0.0, %v6396
      %v6398 = vpop.f32.mrf.mxu0
      %v6399 = vadd.f32 0.0, %v6398
      %6400 = vmatprep.mubr.f32.mxu0 0.0
      %6401 = vmatmul.mubr.f32.gmra.mxu0 %v6126
      %v6402 = vpop.f32.mrf.mxu0
      %v6403 = vadd.f32 0.0, %v6402
      %v6404 = vpop.f32.mrf.mxu0
      %v6405 = vadd.f32 0.0, %v6404
      %6406 = vmatprep.mubr.f32.mxu0 0.0
      %6407 = vmatmul.mubr.f32.gmra.mxu0 %v6129
      %v6408 = vpop.f32.mrf.mxu0
      %v6409 = vadd.f32 0.0, %v6408
      %v6410 = vpop.f32.mrf.mxu0
      %v6411 = vadd.f32 0.0, %v6410
      %6412 = vmatprep.mubr.f32.mxu0 0.0
      %6413 = vmatmul.mubr.f32.gmra.mxu0 %v6132
      %v6414 = vpop.f32.mrf.mxu0
      %v6415 = vadd.f32 0.0, %v6414
      %v6416 = vpop.f32.mrf.mxu0
      %v6417 = vadd.f32 0.0, %v6416
      %6418 = vdwg.mxu0
      %6419 = vmatprep.subr.mxu0 0.0
      %6420 = vmatpush1.msra.mxu0 0.0
      %6421 = vmatprep.subr.mxu0 0.0
      %6422 = vmatpush1.msra.mxu0 0.0
      %6423 = vmatprep.subr.mxu0 0.0
      %6424 = vmatpush1.msra.mxu0 0.0
      %6425 = vmatprep.subr.mxu0 0.0
      %6426 = vmatpush1.msra.mxu0 0.0
      %6427 = vmatprep.subr.mxu0 0.0
      %6428 = vmatpush1.msra.mxu0 0.0
      %6429 = vmatprep.subr.mxu0 0.0
      %6430 = vmatpush1.msra.mxu0 0.0
      %6431 = vmatprep.subr.mxu0 0.0
      %6432 = vmatpush1.msra.mxu0 0.0
      %6433 = vmatprep.subr.mxu0 0.0
      %6434 = vmatpush1.msra.mxu0 0.0
      %6435 = vmatprep.subr.mxu0 %v6118
      %6436 = vmatpush1.msra.mxu0 %v6117
      %6437 = vmatprep.subr.mxu0 %v6110
      %6438 = vmatpush1.msra.mxu0 %v6109
      %6439 = vmatprep.subr.mxu0 %v6102
      %6440 = vmatpush1.msra.mxu0 %v6101
      %6441 = vmatprep.subr.mxu0 %v6094
      %6442 = vmatpush1.msra.mxu0 %v6093
      %6443 = vmatprep.subr.mxu0 %v6086
      %6444 = vmatpush1.msra.mxu0 %v6085
      %6445 = vmatprep.subr.mxu0 %v6078
      %6446 = vmatpush1.msra.mxu0 %v6077
      %6447 = vmatprep.subr.mxu0 %v6070
      %6448 = vmatpush1.msra.mxu0 %v6069
      %6449 = vmatprep.subr.mxu0 %v6062
      %6450 = vmatpush1.msra.mxu0 %v6061
      %6451 = vmatprep.subr.mxu0 0.0
      %6452 = vmatpush2.msra.mxu0 0.0
      %6453 = vmatprep.subr.mxu0 0.0
      %6454 = vmatpush2.msra.mxu0 0.0
      %6455 = vmatprep.subr.mxu0 0.0
      %6456 = vmatpush2.msra.mxu0 0.0
      %6457 = vmatprep.subr.mxu0 0.0
      %6458 = vmatpush2.msra.mxu0 0.0
      %6459 = vmatprep.subr.mxu0 0.0
      %6460 = vmatpush2.msra.mxu0 0.0
      %6461 = vmatprep.subr.mxu0 0.0
      %6462 = vmatpush2.msra.mxu0 0.0
      %6463 = vmatprep.subr.mxu0 0.0
      %6464 = vmatpush2.msra.mxu0 0.0
      %6465 = vmatprep.subr.mxu0 0.0
      %6466 = vmatpush2.msra.mxu0 0.0
      %6467 = vmatprep.subr.mxu0 0.0
      %6468 = vmatpush2.msra.mxu0 0.0
      %6469 = vmatprep.subr.mxu0 0.0
      %6470 = vmatpush2.msra.mxu0 0.0
      %6471 = vmatprep.subr.mxu0 0.0
      %6472 = vmatpush2.msra.mxu0 0.0
      %6473 = vmatprep.subr.mxu0 0.0
      %6474 = vmatpush2.msra.mxu0 0.0
      %6475 = vmatprep.subr.mxu0 0.0
      %6476 = vmatpush2.msra.mxu0 0.0
      %6477 = vmatprep.subr.mxu0 0.0
      %6478 = vmatpush2.msra.mxu0 0.0
      %6479 = vmatprep.subr.mxu0 0.0
      %6480 = vmatpush2.msra.mxu0 0.0
      %6481 = vmatprep.subr.mxu0 0.0
      %6482 = vmatpush2.msra.mxu0 0.0
      %6483 = vmatprep.mubr.f32.mxu0 0.0
      %6484 = vmatmul.mubr.f32.gmra.mxu0 %v6120
      %v6485 = vpop.f32.mrf.mxu0
      %v6486 = vadd.f32 0.0, %v6485
      %v6487 = vpop.f32.mrf.mxu0
      %v6488 = vadd.f32 0.0, %v6487
      %6489 = vmatprep.mubr.f32.mxu0 0.0
      %6490 = vmatmul.mubr.f32.gmra.mxu0 %v6123
      %v6491 = vpop.f32.mrf.mxu0
      %v6492 = vadd.f32 0.0, %v6491
      %v6493 = vpop.f32.mrf.mxu0
      %v6494 = vadd.f32 0.0, %v6493
      %6495 = vmatprep.mubr.f32.mxu0 0.0
      %6496 = vmatmul.mubr.f32.gmra.mxu0 %v6126
      %v6497 = vpop.f32.mrf.mxu0
      %v6498 = vadd.f32 0.0, %v6497
      %v6499 = vpop.f32.mrf.mxu0
      %v6500 = vadd.f32 0.0, %v6499
      %6501 = vmatprep.mubr.f32.mxu0 0.0
      %6502 = vmatmul.mubr.f32.gmra.mxu0 %v6129
      %v6503 = vpop.f32.mrf.mxu0
      %v6504 = vadd.f32 0.0, %v6503
      %v6505 = vpop.f32.mrf.mxu0
      %v6506 = vadd.f32 0.0, %v6505
      %6507 = vmatprep.mubr.f32.mxu0 0.0
      %6508 = vmatmul.mubr.f32.gmra.mxu0 %v6132
      %v6509 = vpop.f32.mrf.mxu0
      %v6510 = vadd.f32 0.0, %v6509
      %v6511 = vpop.f32.mrf.mxu0
      %v6512 = vadd.f32 0.0, %v6511
      %6513 = vdwg.mxu0
      %6514 = vst [vmem:[#allocation3 + $0x8] sm:$0xff] %v6201
      %6515 = vst [vmem:[#allocation3 + $0x10] sm:$0xff] %v6203
      %6516 = vst [vmem:[#allocation3 + $0x18] sm:$0xff] %v6296
      %6517 = vst [vmem:[#allocation3 + $0x20] sm:$0xff] %v6298
      %6518 = vst [vmem:[#allocation3 + $0x28] sm:$0xff] %v6391
      %6519 = vst [vmem:[#allocation3 + $0x30] sm:$0xff] %v6393
      %6520 = vst [vmem:[#allocation3 + $0x38] sm:$0xff] %v6486
      %6521 = vst [vmem:[#allocation3 + $0x40] sm:$0xff] %v6488
      %6522 = vst [vmem:[#allocation3 + $0x58] sm:$0xff] %v6207
      %6523 = vst [vmem:[#allocation3 + $0x60] sm:$0xff] %v6209
      %6524 = vst [vmem:[#allocation3 + $0x68] sm:$0xff] %v6302
      %6525 = vst [vmem:[#allocation3 + $0x70] sm:$0xff] %v6304
      %6526 = vst [vmem:[#allocation3 + $0x78] sm:$0xff] %v6397
      %6527 = vst [vmem:[#allocation3 + $0x80] sm:$0xff] %v6399
      %6528 = vst [vmem:[#allocation3 + $0x88] sm:$0xff] %v6492
      %6529 = vst [vmem:[#allocation3 + $0x90] sm:$0xff] %v6494
      %6530 = vst [vmem:[#allocation3 + $0xa8] sm:$0xff] %v6213
      %6531 = vst [vmem:[#allocation3 + $0xb0] sm:$0xff] %v6215
      %6532 = vst [vmem:[#allocation3 + $0xb8] sm:$0xff] %v6308
      %6533 = vst [vmem:[#allocation3 + $0xc0] sm:$0xff] %v6310
      %6534 = vst [vmem:[#allocation3 + $0xc8] sm:$0xff] %v6403
      %6535 = vst [vmem:[#allocation3 + $0xd0] sm:$0xff] %v6405
      %6536 = vst [vmem:[#allocation3 + $0xd8] sm:$0xff] %v6498
      %6537 = vst [vmem:[#allocation3 + $0xe0] sm:$0xff] %v6500
      %6538 = vst [vmem:[#allocation3 + $0xf8] sm:$0xff] %v6219
      %6539 = vst [vmem:[#allocation3 + $0x100] sm:$0xff] %v6221
      %6540 = vst [vmem:[#allocation3 + $0x108] sm:$0xff] %v6314
      %6541 = vst [vmem:[#allocation3 + $0x110] sm:$0xff] %v6316
      %6542 = vst [vmem:[#allocation3 + $0x118] sm:$0xff] %v6409
      %6543 = vst [vmem:[#allocation3 + $0x120] sm:$0xff] %v6411
      %6544 = vst [vmem:[#allocation3 + $0x128] sm:$0xff] %v6504
      %6545 = vst [vmem:[#allocation3 + $0x130] sm:$0xff] %v6506
      %6546 = vst [vmem:[#allocation3 + $0x148] sm:$0xf] %v6225
      %6547 = vst [vmem:[#allocation3 + $0x150] sm:$0xf] %v6227
      %6548 = vst [vmem:[#allocation3 + $0x158] sm:$0xf] %v6320
      %6549 = vst [vmem:[#allocation3 + $0x160] sm:$0xf] %v6322
      %6550 = vst [vmem:[#allocation3 + $0x168] sm:$0xf] %v6415
      %6551 = vst [vmem:[#allocation3 + $0x170] sm:$0xf] %v6417
      %6552 = vst [vmem:[#allocation3 + $0x178] sm:$0xf] %v6510
      %6553 = vst [vmem:[#allocation3 + $0x180] sm:$0xf] %v6512
      %v6554 = vld [vmem:[#allocation3] sm:$0xf]
      %v6555 = vld [vmem:[#allocation3 + $0x8] sm:$0xf]
      %v6556 = vld [vmem:[#allocation3 + $0x10] sm:$0xf]
      %v6557 = vld [vmem:[#allocation3 + $0x18] sm:$0xf]
      %v6558 = vld [vmem:[#allocation3 + $0x20] sm:$0xf]
      %v6559 = vld [vmem:[#allocation3 + $0x28] sm:$0xf]
      %v6560 = vld [vmem:[#allocation3 + $0x30] sm:$0xf]
      %v6561 = vld [vmem:[#allocation3 + $0x38] sm:$0xf]
      %v6562 = vld [vmem:[#allocation3 + $0x40] sm:$0xf]
      %6572 = vrot.lane.b32.xlu0 %v6554, 33
      %v6573 = vpop.permute.xlu0 %6572
      %6574 = vrot.lane.b32.xlu0 %v6555, 33
      %v6575 = vpop.permute.xlu0 %6574
      %6576 = vrot.lane.b32.xlu0 %v6556, 33
      %v6577 = vpop.permute.xlu0 %6576
      %6578 = vrot.lane.b32.xlu0 %v6557, 33
      %v6579 = vpop.permute.xlu0 %6578
      %6580 = vrot.lane.b32.xlu0 %v6558, 33
      %v6581 = vpop.permute.xlu0 %6580
      %6582 = vrot.lane.b32.xlu0 %v6559, 33
      %v6583 = vpop.permute.xlu0 %6582
      %6584 = vrot.lane.b32.xlu0 %v6560, 33
      %v6585 = vpop.permute.xlu0 %6584
      %6586 = vrot.lane.b32.xlu0 %v6561, 33
      %v6587 = vpop.permute.xlu0 %6586
      %6588 = vrot.lane.b32.xlu0 %v6562, 33
      %v6589 = vpop.permute.xlu0 %6588
      %v6590 = vsel %vm1282, %v6573, %v6575
      %v6591 = vsel %vm1282, %v6575, %v6577
      %v6592 = vsel %vm1282, %v6577, %v6579
      %v6593 = vsel %vm1282, %v6579, %v6581
      %v6594 = vsel %vm1282, %v6581, %v6583
      %v6595 = vsel %vm1282, %v6583, %v6585
      %v6596 = vsel %vm1282, %v6585, %v6587
      %v6597 = vsel %vm1282, %v6587, %v6589
      %v6606 = vsel %vm1247, %v6590, 0.0
      %v6607 = vsel %vm1248, %v6591, 0.0
      %v6608 = vsel %vm1249, %v6592, 0.0
      %v6609 = vsel %vm1250, %v6593, 0.0
      %v6610 = vsel %vm1251, %v6594, 0.0
      %v6611 = vsel %vm1252, %v6595, 0.0
      %v6612 = vsel %vm1253, %v6596, 0.0
      %v6613 = vsel %vm1254, %v6597, 0.0
      %v6614 = vadd.f32 %v6606, 0.0
      %v6615 = vadd.f32 %v6607, 0.0
      %v6616 = vadd.f32 %v6608, 0.0
      %v6617 = vadd.f32 %v6609, 0.0
      %v6618 = vadd.f32 %v6610, 0.0
      %v6619 = vadd.f32 %v6611, 0.0
      %v6620 = vadd.f32 %v6612, 0.0
      %v6621 = vadd.f32 %v6613, 0.0
      %v6622 = vld [vmem:[#allocation3] sm:$0xf0]
      %v6623 = vld [vmem:[#allocation3 + $0x8] sm:$0xf0]
      %v6624 = vld [vmem:[#allocation3 + $0x10] sm:$0xf0]
      %v6625 = vld [vmem:[#allocation3 + $0x18] sm:$0xf0]
      %v6626 = vld [vmem:[#allocation3 + $0x20] sm:$0xf0]
      %v6627 = vld [vmem:[#allocation3 + $0x28] sm:$0xf0]
      %v6628 = vld [vmem:[#allocation3 + $0x30] sm:$0xf0]
      %v6629 = vld [vmem:[#allocation3 + $0x38] sm:$0xf0]
      %v6630 = vld [vmem:[#allocation3 + $0x40] sm:$0xf0]
      %v6640 = vrot.slane %v6622, 4
      %v6641 = vrot.slane %v6623, 4
      %v6642 = vrot.slane %v6624, 4
      %v6643 = vrot.slane %v6625, 4
      %v6644 = vrot.slane %v6626, 4
      %v6645 = vrot.slane %v6627, 4
      %v6646 = vrot.slane %v6628, 4
      %v6647 = vrot.slane %v6629, 4
      %v6648 = vrot.slane %v6630, 4
      %6649 = vrot.lane.b32.xlu0 %v6640, 32
      %v6650 = vpop.permute.xlu0 %6649
      %6651 = vrot.lane.b32.xlu0 %v6641, 32
      %v6652 = vpop.permute.xlu0 %6651
      %6653 = vrot.lane.b32.xlu0 %v6642, 32
      %v6654 = vpop.permute.xlu0 %6653
      %6655 = vrot.lane.b32.xlu0 %v6643, 32
      %v6656 = vpop.permute.xlu0 %6655
      %6657 = vrot.lane.b32.xlu0 %v6644, 32
      %v6658 = vpop.permute.xlu0 %6657
      %6659 = vrot.lane.b32.xlu0 %v6645, 32
      %v6660 = vpop.permute.xlu0 %6659
      %6661 = vrot.lane.b32.xlu0 %v6646, 32
      %v6662 = vpop.permute.xlu0 %6661
      %6663 = vrot.lane.b32.xlu0 %v6647, 32
      %v6664 = vpop.permute.xlu0 %6663
      %6665 = vrot.lane.b32.xlu0 %v6648, 32
      %v6666 = vpop.permute.xlu0 %6665
      %v6667 = vsel %vm1351, %v6650, %v6652
      %v6668 = vsel %vm1351, %v6652, %v6654
      %v6669 = vsel %vm1351, %v6654, %v6656
      %v6670 = vsel %vm1351, %v6656, %v6658
      %v6671 = vsel %vm1351, %v6658, %v6660
      %v6672 = vsel %vm1351, %v6660, %v6662
      %v6673 = vsel %vm1351, %v6662, %v6664
      %v6674 = vsel %vm1351, %v6664, %v6666
      %v6683 = vsel %vm1231, %v6667, 0.0
      %v6684 = vsel %vm1232, %v6668, 0.0
      %v6685 = vsel %vm1233, %v6669, 0.0
      %v6686 = vsel %vm1234, %v6670, 0.0
      %v6687 = vsel %vm1235, %v6671, 0.0
      %v6688 = vsel %vm1236, %v6672, 0.0
      %v6689 = vsel %vm1237, %v6673, 0.0
      %v6690 = vsel %vm1238, %v6674, 0.0
      %v6691 = vadd.f32 %v6614, %v6683
      %v6692 = vadd.f32 %v6615, %v6684
      %v6693 = vadd.f32 %v6616, %v6685
      %v6694 = vadd.f32 %v6617, %v6686
      %v6695 = vadd.f32 %v6618, %v6687
      %v6696 = vadd.f32 %v6619, %v6688
      %v6697 = vadd.f32 %v6620, %v6689
      %v6698 = vadd.f32 %v6621, %v6690
      %v6699 = vld [vmem:[#allocation3 + $0x50] sm:$0xf]
      %v6700 = vld [vmem:[#allocation3 + $0x58] sm:$0xf]
      %v6701 = vld [vmem:[#allocation3 + $0x60] sm:$0xf]
      %v6702 = vld [vmem:[#allocation3 + $0x68] sm:$0xf]
      %v6703 = vld [vmem:[#allocation3 + $0x70] sm:$0xf]
      %v6704 = vld [vmem:[#allocation3 + $0x78] sm:$0xf]
      %v6705 = vld [vmem:[#allocation3 + $0x80] sm:$0xf]
      %v6706 = vld [vmem:[#allocation3 + $0x88] sm:$0xf]
      %v6707 = vld [vmem:[#allocation3 + $0x90] sm:$0xf]
      %6717 = vrot.lane.b32.xlu0 %v6699, 31
      %v6718 = vpop.permute.xlu0 %6717
      %6719 = vrot.lane.b32.xlu0 %v6700, 31
      %v6720 = vpop.permute.xlu0 %6719
      %6721 = vrot.lane.b32.xlu0 %v6701, 31
      %v6722 = vpop.permute.xlu0 %6721
      %6723 = vrot.lane.b32.xlu0 %v6702, 31
      %v6724 = vpop.permute.xlu0 %6723
      %6725 = vrot.lane.b32.xlu0 %v6703, 31
      %v6726 = vpop.permute.xlu0 %6725
      %6727 = vrot.lane.b32.xlu0 %v6704, 31
      %v6728 = vpop.permute.xlu0 %6727
      %6729 = vrot.lane.b32.xlu0 %v6705, 31
      %v6730 = vpop.permute.xlu0 %6729
      %6731 = vrot.lane.b32.xlu0 %v6706, 31
      %v6732 = vpop.permute.xlu0 %6731
      %6733 = vrot.lane.b32.xlu0 %v6707, 31
      %v6734 = vpop.permute.xlu0 %6733
      %v6735 = vsel %vm1460, %v6718, %v6720
      %v6736 = vsel %vm1460, %v6720, %v6722
      %v6737 = vsel %vm1460, %v6722, %v6724
      %v6738 = vsel %vm1460, %v6724, %v6726
      %v6739 = vsel %vm1460, %v6726, %v6728
      %v6740 = vsel %vm1460, %v6728, %v6730
      %v6741 = vsel %vm1460, %v6730, %v6732
      %v6742 = vsel %vm1460, %v6732, %v6734
      %v6751 = vsel %vm1425, %v6735, 0.0
      %v6752 = vsel %vm1426, %v6736, 0.0
      %v6753 = vsel %vm1427, %v6737, 0.0
      %v6754 = vsel %vm1428, %v6738, 0.0
      %v6755 = vsel %vm1429, %v6739, 0.0
      %v6756 = vsel %vm1430, %v6740, 0.0
      %v6757 = vsel %vm1431, %v6741, 0.0
      %v6758 = vsel %vm1432, %v6742, 0.0
      %v6759 = vadd.f32 %v6691, %v6751
      %v6760 = vadd.f32 %v6692, %v6752
      %v6761 = vadd.f32 %v6693, %v6753
      %v6762 = vadd.f32 %v6694, %v6754
      %v6763 = vadd.f32 %v6695, %v6755
      %v6764 = vadd.f32 %v6696, %v6756
      %v6765 = vadd.f32 %v6697, %v6757
      %v6766 = vadd.f32 %v6698, %v6758
      %v6767 = vld [vmem:[#allocation3 + $0x50] sm:$0xf0]
      %v6768 = vld [vmem:[#allocation3 + $0x58] sm:$0xf0]
      %v6769 = vld [vmem:[#allocation3 + $0x60] sm:$0xf0]
      %v6770 = vld [vmem:[#allocation3 + $0x68] sm:$0xf0]
      %v6771 = vld [vmem:[#allocation3 + $0x70] sm:$0xf0]
      %v6772 = vld [vmem:[#allocation3 + $0x78] sm:$0xf0]
      %v6773 = vld [vmem:[#allocation3 + $0x80] sm:$0xf0]
      %v6774 = vld [vmem:[#allocation3 + $0x88] sm:$0xf0]
      %v6775 = vld [vmem:[#allocation3 + $0x90] sm:$0xf0]
      %v6785 = vrot.slane %v6767, 4
      %v6786 = vrot.slane %v6768, 4
      %v6787 = vrot.slane %v6769, 4
      %v6788 = vrot.slane %v6770, 4
      %v6789 = vrot.slane %v6771, 4
      %v6790 = vrot.slane %v6772, 4
      %v6791 = vrot.slane %v6773, 4
      %v6792 = vrot.slane %v6774, 4
      %v6793 = vrot.slane %v6775, 4
      %6794 = vrot.lane.b32.xlu0 %v6785, 1
      %v6795 = vpop.permute.xlu0 %6794
      %6796 = vrot.lane.b32.xlu0 %v6786, 1
      %v6797 = vpop.permute.xlu0 %6796
      %6798 = vrot.lane.b32.xlu0 %v6787, 1
      %v6799 = vpop.permute.xlu0 %6798
      %6800 = vrot.lane.b32.xlu0 %v6788, 1
      %v6801 = vpop.permute.xlu0 %6800
      %6802 = vrot.lane.b32.xlu0 %v6789, 1
      %v6803 = vpop.permute.xlu0 %6802
      %6804 = vrot.lane.b32.xlu0 %v6790, 1
      %v6805 = vpop.permute.xlu0 %6804
      %6806 = vrot.lane.b32.xlu0 %v6791, 1
      %v6807 = vpop.permute.xlu0 %6806
      %6808 = vrot.lane.b32.xlu0 %v6792, 1
      %v6809 = vpop.permute.xlu0 %6808
      %6810 = vrot.lane.b32.xlu0 %v6793, 1
      %v6811 = vpop.permute.xlu0 %6810
      %v6812 = vsel %vm1529, %v6795, %v6797
      %v6813 = vsel %vm1529, %v6797, %v6799
      %v6814 = vsel %vm1529, %v6799, %v6801
      %v6815 = vsel %vm1529, %v6801, %v6803
      %v6816 = vsel %vm1529, %v6803, %v6805
      %v6817 = vsel %vm1529, %v6805, %v6807
      %v6818 = vsel %vm1529, %v6807, %v6809
      %v6819 = vsel %vm1529, %v6809, %v6811
      %v6828 = vsel %vm1239, %v6812, 0.0
      %v6829 = vsel %vm1240, %v6813, 0.0
      %v6830 = vsel %vm1241, %v6814, 0.0
      %v6831 = vsel %vm1242, %v6815, 0.0
      %v6832 = vsel %vm1243, %v6816, 0.0
      %v6833 = vsel %vm1244, %v6817, 0.0
      %v6834 = vsel %vm1245, %v6818, 0.0
      %v6835 = vsel %vm1246, %v6819, 0.0
      %v6836 = vadd.f32 %v6759, %v6828
      %v6837 = vadd.f32 %v6760, %v6829
      %v6838 = vadd.f32 %v6761, %v6830
      %v6839 = vadd.f32 %v6762, %v6831
      %v6840 = vadd.f32 %v6763, %v6832
      %v6841 = vadd.f32 %v6764, %v6833
      %v6842 = vadd.f32 %v6765, %v6834
      %v6843 = vadd.f32 %v6766, %v6835
      %v6844 = vld [vmem:[#allocation3 + $0xa8] sm:$0xf]
      %v6845 = vld [vmem:[#allocation3 + $0xb0] sm:$0xf]
      %v6846 = vld [vmem:[#allocation3 + $0xb8] sm:$0xf]
      %v6847 = vld [vmem:[#allocation3 + $0xc0] sm:$0xf]
      %v6848 = vld [vmem:[#allocation3 + $0xc8] sm:$0xf]
      %v6849 = vld [vmem:[#allocation3 + $0xd0] sm:$0xf]
      %v6850 = vld [vmem:[#allocation3 + $0xd8] sm:$0xf]
      %v6851 = vld [vmem:[#allocation3 + $0xe0] sm:$0xf]
      %v6852 = vadd.f32 %v6836, %v6844
      %v6853 = vadd.f32 %v6837, %v6845
      %v6854 = vadd.f32 %v6838, %v6846
      %v6855 = vadd.f32 %v6839, %v6847
      %v6856 = vadd.f32 %v6840, %v6848
      %v6857 = vadd.f32 %v6841, %v6849
      %v6858 = vadd.f32 %v6842, %v6850
      %v6859 = vadd.f32 %v6843, %v6851
      %v6860 = vld [vmem:[#allocation3 + $0xa8] sm:$0xf0]
      %v6861 = vld [vmem:[#allocation3 + $0xb0] sm:$0xf0]
      %v6862 = vld [vmem:[#allocation3 + $0xb8] sm:$0xf0]
      %v6863 = vld [vmem:[#allocation3 + $0xc0] sm:$0xf0]
      %v6864 = vld [vmem:[#allocation3 + $0xc8] sm:$0xf0]
      %v6865 = vld [vmem:[#allocation3 + $0xd0] sm:$0xf0]
      %v6866 = vld [vmem:[#allocation3 + $0xd8] sm:$0xf0]
      %v6867 = vld [vmem:[#allocation3 + $0xe0] sm:$0xf0]
      %v6868 = vld [vmem:[#allocation3 + $0xe8] sm:$0xf0]
      %v6878 = vrot.slane %v6860, 4
      %v6879 = vrot.slane %v6861, 4
      %v6880 = vrot.slane %v6862, 4
      %v6881 = vrot.slane %v6863, 4
      %v6882 = vrot.slane %v6864, 4
      %v6883 = vrot.slane %v6865, 4
      %v6884 = vrot.slane %v6866, 4
      %v6885 = vrot.slane %v6867, 4
      %v6886 = vrot.slane %v6868, 4
      %6887 = vrot.lane.b32.xlu0 %v6878, 127
      %v6888 = vpop.permute.xlu0 %6887
      %6889 = vrot.lane.b32.xlu0 %v6879, 127
      %v6890 = vpop.permute.xlu0 %6889
      %6891 = vrot.lane.b32.xlu0 %v6880, 127
      %v6892 = vpop.permute.xlu0 %6891
      %6893 = vrot.lane.b32.xlu0 %v6881, 127
      %v6894 = vpop.permute.xlu0 %6893
      %6895 = vrot.lane.b32.xlu0 %v6882, 127
      %v6896 = vpop.permute.xlu0 %6895
      %6897 = vrot.lane.b32.xlu0 %v6883, 127
      %v6898 = vpop.permute.xlu0 %6897
      %6899 = vrot.lane.b32.xlu0 %v6884, 127
      %v6900 = vpop.permute.xlu0 %6899
      %6901 = vrot.lane.b32.xlu0 %v6885, 127
      %v6902 = vpop.permute.xlu0 %6901
      %6903 = vrot.lane.b32.xlu0 %v6886, 127
      %v6904 = vpop.permute.xlu0 %6903
      %v6905 = vsel %vm1638, %v6888, %v6890
      %v6906 = vsel %vm1638, %v6890, %v6892
      %v6907 = vsel %vm1638, %v6892, %v6894
      %v6908 = vsel %vm1638, %v6894, %v6896
      %v6909 = vsel %vm1638, %v6896, %v6898
      %v6910 = vsel %vm1638, %v6898, %v6900
      %v6911 = vsel %vm1638, %v6900, %v6902
      %v6912 = vsel %vm1638, %v6902, %v6904
      %v6921 = vsel %vm1417, %v6905, 0.0
      %v6922 = vsel %vm1418, %v6906, 0.0
      %v6923 = vsel %vm1419, %v6907, 0.0
      %v6924 = vsel %vm1420, %v6908, 0.0
      %v6925 = vsel %vm1421, %v6909, 0.0
      %v6926 = vsel %vm1422, %v6910, 0.0
      %v6927 = vsel %vm1423, %v6911, 0.0
      %v6928 = vsel %vm1424, %v6912, 0.0
      %v6929 = vadd.f32 %v6852, %v6921
      %v6930 = vadd.f32 %v6853, %v6922
      %v6931 = vadd.f32 %v6854, %v6923
      %v6932 = vadd.f32 %v6855, %v6924
      %v6933 = vadd.f32 %v6856, %v6925
      %v6934 = vadd.f32 %v6857, %v6926
      %v6935 = vadd.f32 %v6858, %v6927
      %v6936 = vadd.f32 %v6859, %v6928
      %v6937 = vld [vmem:[#allocation3 + $0xf8] sm:$0xf]
      %v6938 = vld [vmem:[#allocation3 + $0x100] sm:$0xf]
      %v6939 = vld [vmem:[#allocation3 + $0x108] sm:$0xf]
      %v6940 = vld [vmem:[#allocation3 + $0x110] sm:$0xf]
      %v6941 = vld [vmem:[#allocation3 + $0x118] sm:$0xf]
      %v6942 = vld [vmem:[#allocation3 + $0x120] sm:$0xf]
      %v6943 = vld [vmem:[#allocation3 + $0x128] sm:$0xf]
      %v6944 = vld [vmem:[#allocation3 + $0x130] sm:$0xf]
      %v6945 = vld [vmem:[#allocation3 + $0x138] sm:$0xf]
      %6955 = vrot.lane.b32.xlu0 %v6937, 97
      %v6956 = vpop.permute.xlu0 %6955
      %6957 = vrot.lane.b32.xlu0 %v6938, 97
      %v6958 = vpop.permute.xlu0 %6957
      %6959 = vrot.lane.b32.xlu0 %v6939, 97
      %v6960 = vpop.permute.xlu0 %6959
      %6961 = vrot.lane.b32.xlu0 %v6940, 97
      %v6962 = vpop.permute.xlu0 %6961
      %6963 = vrot.lane.b32.xlu0 %v6941, 97
      %v6964 = vpop.permute.xlu0 %6963
      %6965 = vrot.lane.b32.xlu0 %v6942, 97
      %v6966 = vpop.permute.xlu0 %6965
      %6967 = vrot.lane.b32.xlu0 %v6943, 97
      %v6968 = vpop.permute.xlu0 %6967
      %6969 = vrot.lane.b32.xlu0 %v6944, 97
      %v6970 = vpop.permute.xlu0 %6969
      %6971 = vrot.lane.b32.xlu0 %v6945, 97
      %v6972 = vpop.permute.xlu0 %6971
      %v6973 = vsel %vm1747, %v6956, %v6958
      %v6974 = vsel %vm1747, %v6958, %v6960
      %v6975 = vsel %vm1747, %v6960, %v6962
      %v6976 = vsel %vm1747, %v6962, %v6964
      %v6977 = vsel %vm1747, %v6964, %v6966
      %v6978 = vsel %vm1747, %v6966, %v6968
      %v6979 = vsel %vm1747, %v6968, %v6970
      %v6980 = vsel %vm1747, %v6970, %v6972
      %v6989 = vsel %vm1712, %v6973, 0.0
      %v6990 = vsel %vm1713, %v6974, 0.0
      %v6991 = vsel %vm1714, %v6975, 0.0
      %v6992 = vsel %vm1715, %v6976, 0.0
      %v6993 = vsel %vm1716, %v6977, 0.0
      %v6994 = vsel %vm1717, %v6978, 0.0
      %v6995 = vsel %vm1718, %v6979, 0.0
      %v6996 = vsel %vm1719, %v6980, 0.0
      %v6997 = vadd.f32 %v6929, %v6989
      %v6998 = vadd.f32 %v6930, %v6990
      %v6999 = vadd.f32 %v6931, %v6991
      %v7000 = vadd.f32 %v6932, %v6992
      %v7001 = vadd.f32 %v6933, %v6993
      %v7002 = vadd.f32 %v6934, %v6994
      %v7003 = vadd.f32 %v6935, %v6995
      %v7004 = vadd.f32 %v6936, %v6996
      %v7005 = vld [vmem:[#allocation3 + $0xf8] sm:$0xf0]
      %v7006 = vld [vmem:[#allocation3 + $0x100] sm:$0xf0]
      %v7007 = vld [vmem:[#allocation3 + $0x108] sm:$0xf0]
      %v7008 = vld [vmem:[#allocation3 + $0x110] sm:$0xf0]
      %v7009 = vld [vmem:[#allocation3 + $0x118] sm:$0xf0]
      %v7010 = vld [vmem:[#allocation3 + $0x120] sm:$0xf0]
      %v7011 = vld [vmem:[#allocation3 + $0x128] sm:$0xf0]
      %v7012 = vld [vmem:[#allocation3 + $0x130] sm:$0xf0]
      %v7013 = vld [vmem:[#allocation3 + $0x138] sm:$0xf0]
      %v7023 = vrot.slane %v7005, 4
      %v7024 = vrot.slane %v7006, 4
      %v7025 = vrot.slane %v7007, 4
      %v7026 = vrot.slane %v7008, 4
      %v7027 = vrot.slane %v7009, 4
      %v7028 = vrot.slane %v7010, 4
      %v7029 = vrot.slane %v7011, 4
      %v7030 = vrot.slane %v7012, 4
      %v7031 = vrot.slane %v7013, 4
      %7032 = vrot.lane.b32.xlu0 %v7023, 96
      %v7033 = vpop.permute.xlu0 %7032
      %7034 = vrot.lane.b32.xlu0 %v7024, 96
      %v7035 = vpop.permute.xlu0 %7034
      %7036 = vrot.lane.b32.xlu0 %v7025, 96
      %v7037 = vpop.permute.xlu0 %7036
      %7038 = vrot.lane.b32.xlu0 %v7026, 96
      %v7039 = vpop.permute.xlu0 %7038
      %7040 = vrot.lane.b32.xlu0 %v7027, 96
      %v7041 = vpop.permute.xlu0 %7040
      %7042 = vrot.lane.b32.xlu0 %v7028, 96
      %v7043 = vpop.permute.xlu0 %7042
      %7044 = vrot.lane.b32.xlu0 %v7029, 96
      %v7045 = vpop.permute.xlu0 %7044
      %7046 = vrot.lane.b32.xlu0 %v7030, 96
      %v7047 = vpop.permute.xlu0 %7046
      %7048 = vrot.lane.b32.xlu0 %v7031, 96
      %v7049 = vpop.permute.xlu0 %7048
      %v7050 = vsel %vm1816, %v7033, %v7035
      %v7051 = vsel %vm1816, %v7035, %v7037
      %v7052 = vsel %vm1816, %v7037, %v7039
      %v7053 = vsel %vm1816, %v7039, %v7041
      %v7054 = vsel %vm1816, %v7041, %v7043
      %v7055 = vsel %vm1816, %v7043, %v7045
      %v7056 = vsel %vm1816, %v7045, %v7047
      %v7057 = vsel %vm1816, %v7047, %v7049
      %v7066 = vsel %vm1704, %v7050, 0.0
      %v7067 = vsel %vm1705, %v7051, 0.0
      %v7068 = vsel %vm1706, %v7052, 0.0
      %v7069 = vsel %vm1707, %v7053, 0.0
      %v7070 = vsel %vm1708, %v7054, 0.0
      %v7071 = vsel %vm1709, %v7055, 0.0
      %v7072 = vsel %vm1710, %v7056, 0.0
      %v7073 = vsel %vm1711, %v7057, 0.0
      %v7074 = vadd.f32 %v6997, %v7066
      %v7075 = vadd.f32 %v6998, %v7067
      %v7076 = vadd.f32 %v6999, %v7068
      %v7077 = vadd.f32 %v7000, %v7069
      %v7078 = vadd.f32 %v7001, %v7070
      %v7079 = vadd.f32 %v7002, %v7071
      %v7080 = vadd.f32 %v7003, %v7072
      %v7081 = vadd.f32 %v7004, %v7073
      %v7082 = vld [vmem:[#allocation3 + $0x148] sm:$0xf]
      %v7083 = vld [vmem:[#allocation3 + $0x150] sm:$0xf]
      %v7084 = vld [vmem:[#allocation3 + $0x158] sm:$0xf]
      %v7085 = vld [vmem:[#allocation3 + $0x160] sm:$0xf]
      %v7086 = vld [vmem:[#allocation3 + $0x168] sm:$0xf]
      %v7087 = vld [vmem:[#allocation3 + $0x170] sm:$0xf]
      %v7088 = vld [vmem:[#allocation3 + $0x178] sm:$0xf]
      %v7089 = vld [vmem:[#allocation3 + $0x180] sm:$0xf]
      %v7090 = vld [vmem:[#allocation3 + $0x188] sm:$0xf]
      %7100 = vrot.lane.b32.xlu0 %v7082, 95
      %v7101 = vpop.permute.xlu0 %7100
      %7102 = vrot.lane.b32.xlu0 %v7083, 95
      %v7103 = vpop.permute.xlu0 %7102
      %7104 = vrot.lane.b32.xlu0 %v7084, 95
      %v7105 = vpop.permute.xlu0 %7104
      %7106 = vrot.lane.b32.xlu0 %v7085, 95
      %v7107 = vpop.permute.xlu0 %7106
      %7108 = vrot.lane.b32.xlu0 %v7086, 95
      %v7109 = vpop.permute.xlu0 %7108
      %7110 = vrot.lane.b32.xlu0 %v7087, 95
      %v7111 = vpop.permute.xlu0 %7110
      %7112 = vrot.lane.b32.xlu0 %v7088, 95
      %v7113 = vpop.permute.xlu0 %7112
      %7114 = vrot.lane.b32.xlu0 %v7089, 95
      %v7115 = vpop.permute.xlu0 %7114
      %7116 = vrot.lane.b32.xlu0 %v7090, 95
      %v7117 = vpop.permute.xlu0 %7116
      %v7118 = vsel %vm1917, %v7101, %v7103
      %v7119 = vsel %vm1917, %v7103, %v7105
      %v7120 = vsel %vm1917, %v7105, %v7107
      %v7121 = vsel %vm1917, %v7107, %v7109
      %v7122 = vsel %vm1917, %v7109, %v7111
      %v7123 = vsel %vm1917, %v7111, %v7113
      %v7124 = vsel %vm1917, %v7113, %v7115
      %v7125 = vsel %vm1917, %v7115, %v7117
      %v7134 = vsel %vm1882, %v7118, 0.0
      %v7135 = vsel %vm1883, %v7119, 0.0
      %v7136 = vsel %vm1884, %v7120, 0.0
      %v7137 = vsel %vm1885, %v7121, 0.0
      %v7138 = vsel %vm1886, %v7122, 0.0
      %v7139 = vsel %vm1887, %v7123, 0.0
      %v7140 = vsel %vm1888, %v7124, 0.0
      %v7141 = vsel %vm1889, %v7125, 0.0
      %v7142 = vadd.f32 %v7074, %v7134
      %v7143 = vadd.f32 %v7075, %v7135
      %v7144 = vadd.f32 %v7076, %v7136
      %v7145 = vadd.f32 %v7077, %v7137
      %v7146 = vadd.f32 %v7078, %v7138
      %v7147 = vadd.f32 %v7079, %v7139
      %v7148 = vadd.f32 %v7080, %v7140
      %v7149 = vadd.f32 %v7081, %v7141
      %v7150 = vld [vmem:[%s753] sm:$0xff]
      %v7151 = vld [vmem:[%s753 + $0x8] sm:$0xff]
      %v7152 = vld [vmem:[%s753 + $0x10] sm:$0xff]
      %v7153 = vld [vmem:[%s753 + $0x18] sm:$0xff]
      %v7154 = vld [vmem:[%s753 + $0x20] sm:$0xff]
      %v7155 = vld [vmem:[%s753 + $0x28] sm:$0xff]
      %v7156 = vld [vmem:[%s753 + $0x30] sm:$0xff]
      %v7157 = vld [vmem:[%s753 + $0x38] sm:$0xff]
      %vm7158 = vcmask 31744
      %v7160 = vsel %vm7158, %v7150, 0
      %v7163 = vsel %vm7158, %v7151, 0
      %v7166 = vsel %vm7158, %v7152, 0
      %v7169 = vsel %vm7158, %v7153, 0
      %v7172 = vsel %vm7158, %v7154, 0
      %v7175 = vsel %vm7158, %v7155, 0
      %v7178 = vsel %vm7158, %v7156, 0
      %v7181 = vsel %vm7158, %v7157, 0
      %v7184 = vsel %vm2015, %v7142, 0
      %v7187 = vsel %vm2015, %v7143, 0
      %v7190 = vsel %vm2015, %v7144, 0
      %v7193 = vsel %vm2015, %v7145, 0
      %v7196 = vsel %vm2015, %v7146, 0
      %v7199 = vsel %vm2015, %v7147, 0
      %v7202 = vsel %vm2015, %v7148, 0
      %v7205 = vsel %vm2015, %v7149, 0
      %7207 = vmatprep.subr.mxu0 0.0
      %7208 = vmatpush1.msra.mxu0 0.0
      %7209 = vmatprep.subr.mxu0 0.0
      %7210 = vmatpush1.msra.mxu0 0.0
      %7211 = vmatprep.subr.mxu0 0.0
      %7212 = vmatpush1.msra.mxu0 0.0
      %7213 = vmatprep.subr.mxu0 0.0
      %7214 = vmatpush1.msra.mxu0 0.0
      %7215 = vmatprep.subr.mxu0 0.0
      %7216 = vmatpush1.msra.mxu0 0.0
      %7217 = vmatprep.subr.mxu0 0.0
      %7218 = vmatpush1.msra.mxu0 0.0
      %7219 = vmatprep.subr.mxu0 0.0
      %7220 = vmatpush1.msra.mxu0 0.0
      %7221 = vmatprep.subr.mxu0 0.0
      %7222 = vmatpush1.msra.mxu0 0.0
      %7223 = vmatprep.subr.mxu0 0.0
      %7224 = vmatpush1.msra.mxu0 0.0
      %7225 = vmatprep.subr.mxu0 0.0
      %7226 = vmatpush1.msra.mxu0 0.0
      %7227 = vmatprep.subr.mxu0 0.0
      %7228 = vmatpush1.msra.mxu0 0.0
      %7229 = vmatprep.subr.mxu0 0.0
      %7230 = vmatpush1.msra.mxu0 0.0
      %7231 = vmatprep.subr.mxu0 0.0
      %7232 = vmatpush1.msra.mxu0 0.0
      %7233 = vmatprep.subr.mxu0 0.0
      %7234 = vmatpush1.msra.mxu0 0.0
      %7235 = vmatprep.subr.mxu0 0.0
      %7236 = vmatpush1.msra.mxu0 0.0
      %7237 = vmatprep.subr.mxu0 %v7187
      %7238 = vmatpush1.msra.mxu0 %v7184
      %7239 = vmatprep.subr.mxu0 0.0
      %7240 = vmatpush2.msra.mxu0 0.0
      %7241 = vmatprep.subr.mxu0 0.0
      %7242 = vmatpush2.msra.mxu0 0.0
      %7243 = vmatprep.subr.mxu0 0.0
      %7244 = vmatpush2.msra.mxu0 0.0
      %7245 = vmatprep.subr.mxu0 0.0
      %7246 = vmatpush2.msra.mxu0 0.0
      %7247 = vmatprep.subr.mxu0 0.0
      %7248 = vmatpush2.msra.mxu0 0.0
      %7249 = vmatprep.subr.mxu0 0.0
      %7250 = vmatpush2.msra.mxu0 0.0
      %7251 = vmatprep.subr.mxu0 0.0
      %7252 = vmatpush2.msra.mxu0 0.0
      %7253 = vmatprep.subr.mxu0 0.0
      %7254 = vmatpush2.msra.mxu0 0.0
      %7255 = vmatprep.subr.mxu0 0.0
      %7256 = vmatpush2.msra.mxu0 0.0
      %7257 = vmatprep.subr.mxu0 0.0
      %7258 = vmatpush2.msra.mxu0 0.0
      %7259 = vmatprep.subr.mxu0 0.0
      %7260 = vmatpush2.msra.mxu0 0.0
      %7261 = vmatprep.subr.mxu0 0.0
      %7262 = vmatpush2.msra.mxu0 0.0
      %7263 = vmatprep.subr.mxu0 0.0
      %7264 = vmatpush2.msra.mxu0 0.0
      %7265 = vmatprep.subr.mxu0 0.0
      %7266 = vmatpush2.msra.mxu0 0.0
      %7267 = vmatprep.subr.mxu0 0.0
      %7268 = vmatpush2.msra.mxu0 0.0
      %7269 = vmatprep.subr.mxu0 0.0
      %7270 = vmatpush2.msra.mxu0 0.0
      %7271 = vmatprep.mubr.f32.mxu0 0.0
      %7272 = vmatmul.mubr.f32.gmra.mxu0 %v7160
      %v7273 = vpop.f32.mrf.mxu0
      %v7274 = vadd.f32 0.0, %v7273
      %v7275 = vpop.f32.mrf.mxu0
      %v7276 = vadd.f32 0.0, %v7275
      %7277 = vmatprep.mubr.f32.mxu0 0.0
      %7278 = vmatmul.mubr.f32.gmra.mxu0 %v7163
      %v7279 = vpop.f32.mrf.mxu0
      %v7280 = vadd.f32 0.0, %v7279
      %v7281 = vpop.f32.mrf.mxu0
      %v7282 = vadd.f32 0.0, %v7281
      %7283 = vmatprep.mubr.f32.mxu0 0.0
      %7284 = vmatmul.mubr.f32.gmra.mxu0 %v7166
      %v7285 = vpop.f32.mrf.mxu0
      %v7286 = vadd.f32 0.0, %v7285
      %v7287 = vpop.f32.mrf.mxu0
      %v7288 = vadd.f32 0.0, %v7287
      %7289 = vmatprep.mubr.f32.mxu0 0.0
      %7290 = vmatmul.mubr.f32.gmra.mxu0 %v7169
      %v7291 = vpop.f32.mrf.mxu0
      %v7292 = vadd.f32 0.0, %v7291
      %v7293 = vpop.f32.mrf.mxu0
      %v7294 = vadd.f32 0.0, %v7293
      %7295 = vmatprep.mubr.f32.mxu0 0.0
      %7296 = vmatmul.mubr.f32.gmra.mxu0 %v7172
      %v7297 = vpop.f32.mrf.mxu0
      %v7298 = vadd.f32 0.0, %v7297
      %v7299 = vpop.f32.mrf.mxu0
      %v7300 = vadd.f32 0.0, %v7299
      %7301 = vmatprep.mubr.f32.mxu0 0.0
      %7302 = vmatmul.mubr.f32.gmra.mxu0 %v7175
      %v7303 = vpop.f32.mrf.mxu0
      %v7304 = vadd.f32 0.0, %v7303
      %v7305 = vpop.f32.mrf.mxu0
      %v7306 = vadd.f32 0.0, %v7305
      %7307 = vmatprep.mubr.f32.mxu0 0.0
      %7308 = vmatmul.mubr.f32.gmra.mxu0 %v7178
      %v7309 = vpop.f32.mrf.mxu0
      %v7310 = vadd.f32 0.0, %v7309
      %v7311 = vpop.f32.mrf.mxu0
      %v7312 = vadd.f32 0.0, %v7311
      %7313 = vmatprep.mubr.f32.mxu0 0.0
      %7314 = vmatmul.mubr.f32.gmra.mxu0 %v7181
      %v7315 = vpop.f32.mrf.mxu0
      %v7316 = vadd.f32 0.0, %v7315
      %v7317 = vpop.f32.mrf.mxu0
      %v7318 = vadd.f32 0.0, %v7317
      %7319 = vdwg.mxu0
      %7320 = vmatprep.subr.mxu0 0.0
      %7321 = vmatpush1.msra.mxu0 0.0
      %7322 = vmatprep.subr.mxu0 0.0
      %7323 = vmatpush1.msra.mxu0 0.0
      %7324 = vmatprep.subr.mxu0 0.0
      %7325 = vmatpush1.msra.mxu0 0.0
      %7326 = vmatprep.subr.mxu0 0.0
      %7327 = vmatpush1.msra.mxu0 0.0
      %7328 = vmatprep.subr.mxu0 0.0
      %7329 = vmatpush1.msra.mxu0 0.0
      %7330 = vmatprep.subr.mxu0 0.0
      %7331 = vmatpush1.msra.mxu0 0.0
      %7332 = vmatprep.subr.mxu0 0.0
      %7333 = vmatpush1.msra.mxu0 0.0
      %7334 = vmatprep.subr.mxu0 0.0
      %7335 = vmatpush1.msra.mxu0 0.0
      %7336 = vmatprep.subr.mxu0 0.0
      %7337 = vmatpush1.msra.mxu0 0.0
      %7338 = vmatprep.subr.mxu0 0.0
      %7339 = vmatpush1.msra.mxu0 0.0
      %7340 = vmatprep.subr.mxu0 0.0
      %7341 = vmatpush1.msra.mxu0 0.0
      %7342 = vmatprep.subr.mxu0 0.0
      %7343 = vmatpush1.msra.mxu0 0.0
      %7344 = vmatprep.subr.mxu0 0.0
      %7345 = vmatpush1.msra.mxu0 0.0
      %7346 = vmatprep.subr.mxu0 0.0
      %7347 = vmatpush1.msra.mxu0 0.0
      %7348 = vmatprep.subr.mxu0 0.0
      %7349 = vmatpush1.msra.mxu0 0.0
      %7350 = vmatprep.subr.mxu0 %v7193
      %7351 = vmatpush1.msra.mxu0 %v7190
      %7352 = vmatprep.subr.mxu0 0.0
      %7353 = vmatpush2.msra.mxu0 0.0
      %7354 = vmatprep.subr.mxu0 0.0
      %7355 = vmatpush2.msra.mxu0 0.0
      %7356 = vmatprep.subr.mxu0 0.0
      %7357 = vmatpush2.msra.mxu0 0.0
      %7358 = vmatprep.subr.mxu0 0.0
      %7359 = vmatpush2.msra.mxu0 0.0
      %7360 = vmatprep.subr.mxu0 0.0
      %7361 = vmatpush2.msra.mxu0 0.0
      %7362 = vmatprep.subr.mxu0 0.0
      %7363 = vmatpush2.msra.mxu0 0.0
      %7364 = vmatprep.subr.mxu0 0.0
      %7365 = vmatpush2.msra.mxu0 0.0
      %7366 = vmatprep.subr.mxu0 0.0
      %7367 = vmatpush2.msra.mxu0 0.0
      %7368 = vmatprep.subr.mxu0 0.0
      %7369 = vmatpush2.msra.mxu0 0.0
      %7370 = vmatprep.subr.mxu0 0.0
      %7371 = vmatpush2.msra.mxu0 0.0
      %7372 = vmatprep.subr.mxu0 0.0
      %7373 = vmatpush2.msra.mxu0 0.0
      %7374 = vmatprep.subr.mxu0 0.0
      %7375 = vmatpush2.msra.mxu0 0.0
      %7376 = vmatprep.subr.mxu0 0.0
      %7377 = vmatpush2.msra.mxu0 0.0
      %7378 = vmatprep.subr.mxu0 0.0
      %7379 = vmatpush2.msra.mxu0 0.0
      %7380 = vmatprep.subr.mxu0 0.0
      %7381 = vmatpush2.msra.mxu0 0.0
      %7382 = vmatprep.subr.mxu0 0.0
      %7383 = vmatpush2.msra.mxu0 0.0
      %7384 = vmatprep.mubr.f32.mxu0 0.0
      %7385 = vmatmul.mubr.f32.gmra.mxu0 %v7160
      %v7386 = vpop.f32.mrf.mxu0
      %v7387 = vadd.f32 0.0, %v7386
      %v7388 = vpop.f32.mrf.mxu0
      %v7389 = vadd.f32 0.0, %v7388
      %7390 = vmatprep.mubr.f32.mxu0 0.0
      %7391 = vmatmul.mubr.f32.gmra.mxu0 %v7163
      %v7392 = vpop.f32.mrf.mxu0
      %v7393 = vadd.f32 0.0, %v7392
      %v7394 = vpop.f32.mrf.mxu0
      %v7395 = vadd.f32 0.0, %v7394
      %7396 = vmatprep.mubr.f32.mxu0 0.0
      %7397 = vmatmul.mubr.f32.gmra.mxu0 %v7166
      %v7398 = vpop.f32.mrf.mxu0
      %v7399 = vadd.f32 0.0, %v7398
      %v7400 = vpop.f32.mrf.mxu0
      %v7401 = vadd.f32 0.0, %v7400
      %7402 = vmatprep.mubr.f32.mxu0 0.0
      %7403 = vmatmul.mubr.f32.gmra.mxu0 %v7169
      %v7404 = vpop.f32.mrf.mxu0
      %v7405 = vadd.f32 0.0, %v7404
      %v7406 = vpop.f32.mrf.mxu0
      %v7407 = vadd.f32 0.0, %v7406
      %7408 = vmatprep.mubr.f32.mxu0 0.0
      %7409 = vmatmul.mubr.f32.gmra.mxu0 %v7172
      %v7410 = vpop.f32.mrf.mxu0
      %v7411 = vadd.f32 0.0, %v7410
      %v7412 = vpop.f32.mrf.mxu0
      %v7413 = vadd.f32 0.0, %v7412
      %7414 = vmatprep.mubr.f32.mxu0 0.0
      %7415 = vmatmul.mubr.f32.gmra.mxu0 %v7175
      %v7416 = vpop.f32.mrf.mxu0
      %v7417 = vadd.f32 0.0, %v7416
      %v7418 = vpop.f32.mrf.mxu0
      %v7419 = vadd.f32 0.0, %v7418
      %7420 = vmatprep.mubr.f32.mxu0 0.0
      %7421 = vmatmul.mubr.f32.gmra.mxu0 %v7178
      %v7422 = vpop.f32.mrf.mxu0
      %v7423 = vadd.f32 0.0, %v7422
      %v7424 = vpop.f32.mrf.mxu0
      %v7425 = vadd.f32 0.0, %v7424
      %7426 = vmatprep.mubr.f32.mxu0 0.0
      %7427 = vmatmul.mubr.f32.gmra.mxu0 %v7181
      %v7428 = vpop.f32.mrf.mxu0
      %v7429 = vadd.f32 0.0, %v7428
      %v7430 = vpop.f32.mrf.mxu0
      %v7431 = vadd.f32 0.0, %v7430
      %7432 = vdwg.mxu0
      %7433 = vmatprep.subr.mxu0 0.0
      %7434 = vmatpush1.msra.mxu0 0.0
      %7435 = vmatprep.subr.mxu0 0.0
      %7436 = vmatpush1.msra.mxu0 0.0
      %7437 = vmatprep.subr.mxu0 0.0
      %7438 = vmatpush1.msra.mxu0 0.0
      %7439 = vmatprep.subr.mxu0 0.0
      %7440 = vmatpush1.msra.mxu0 0.0
      %7441 = vmatprep.subr.mxu0 0.0
      %7442 = vmatpush1.msra.mxu0 0.0
      %7443 = vmatprep.subr.mxu0 0.0
      %7444 = vmatpush1.msra.mxu0 0.0
      %7445 = vmatprep.subr.mxu0 0.0
      %7446 = vmatpush1.msra.mxu0 0.0
      %7447 = vmatprep.subr.mxu0 0.0
      %7448 = vmatpush1.msra.mxu0 0.0
      %7449 = vmatprep.subr.mxu0 0.0
      %7450 = vmatpush1.msra.mxu0 0.0
      %7451 = vmatprep.subr.mxu0 0.0
      %7452 = vmatpush1.msra.mxu0 0.0
      %7453 = vmatprep.subr.mxu0 0.0
      %7454 = vmatpush1.msra.mxu0 0.0
      %7455 = vmatprep.subr.mxu0 0.0
      %7456 = vmatpush1.msra.mxu0 0.0
      %7457 = vmatprep.subr.mxu0 0.0
      %7458 = vmatpush1.msra.mxu0 0.0
      %7459 = vmatprep.subr.mxu0 0.0
      %7460 = vmatpush1.msra.mxu0 0.0
      %7461 = vmatprep.subr.mxu0 0.0
      %7462 = vmatpush1.msra.mxu0 0.0
      %7463 = vmatprep.subr.mxu0 %v7199
      %7464 = vmatpush1.msra.mxu0 %v7196
      %7465 = vmatprep.subr.mxu0 0.0
      %7466 = vmatpush2.msra.mxu0 0.0
      %7467 = vmatprep.subr.mxu0 0.0
      %7468 = vmatpush2.msra.mxu0 0.0
      %7469 = vmatprep.subr.mxu0 0.0
      %7470 = vmatpush2.msra.mxu0 0.0
      %7471 = vmatprep.subr.mxu0 0.0
      %7472 = vmatpush2.msra.mxu0 0.0
      %7473 = vmatprep.subr.mxu0 0.0
      %7474 = vmatpush2.msra.mxu0 0.0
      %7475 = vmatprep.subr.mxu0 0.0
      %7476 = vmatpush2.msra.mxu0 0.0
      %7477 = vmatprep.subr.mxu0 0.0
      %7478 = vmatpush2.msra.mxu0 0.0
      %7479 = vmatprep.subr.mxu0 0.0
      %7480 = vmatpush2.msra.mxu0 0.0
      %7481 = vmatprep.subr.mxu0 0.0
      %7482 = vmatpush2.msra.mxu0 0.0
      %7483 = vmatprep.subr.mxu0 0.0
      %7484 = vmatpush2.msra.mxu0 0.0
      %7485 = vmatprep.subr.mxu0 0.0
      %7486 = vmatpush2.msra.mxu0 0.0
      %7487 = vmatprep.subr.mxu0 0.0
      %7488 = vmatpush2.msra.mxu0 0.0
      %7489 = vmatprep.subr.mxu0 0.0
      %7490 = vmatpush2.msra.mxu0 0.0
      %7491 = vmatprep.subr.mxu0 0.0
      %7492 = vmatpush2.msra.mxu0 0.0
      %7493 = vmatprep.subr.mxu0 0.0
      %7494 = vmatpush2.msra.mxu0 0.0
      %7495 = vmatprep.subr.mxu0 0.0
      %7496 = vmatpush2.msra.mxu0 0.0
      %7497 = vmatprep.mubr.f32.mxu0 0.0
      %7498 = vmatmul.mubr.f32.gmra.mxu0 %v7160
      %v7499 = vpop.f32.mrf.mxu0
      %v7500 = vadd.f32 0.0, %v7499
      %v7501 = vpop.f32.mrf.mxu0
      %v7502 = vadd.f32 0.0, %v7501
      %7503 = vmatprep.mubr.f32.mxu0 0.0
      %7504 = vmatmul.mubr.f32.gmra.mxu0 %v7163
      %v7505 = vpop.f32.mrf.mxu0
      %v7506 = vadd.f32 0.0, %v7505
      %v7507 = vpop.f32.mrf.mxu0
      %v7508 = vadd.f32 0.0, %v7507
      %7509 = vmatprep.mubr.f32.mxu0 0.0
      %7510 = vmatmul.mubr.f32.gmra.mxu0 %v7166
      %v7511 = vpop.f32.mrf.mxu0
      %v7512 = vadd.f32 0.0, %v7511
      %v7513 = vpop.f32.mrf.mxu0
      %v7514 = vadd.f32 0.0, %v7513
      %7515 = vmatprep.mubr.f32.mxu0 0.0
      %7516 = vmatmul.mubr.f32.gmra.mxu0 %v7169
      %v7517 = vpop.f32.mrf.mxu0
      %v7518 = vadd.f32 0.0, %v7517
      %v7519 = vpop.f32.mrf.mxu0
      %v7520 = vadd.f32 0.0, %v7519
      %7521 = vmatprep.mubr.f32.mxu0 0.0
      %7522 = vmatmul.mubr.f32.gmra.mxu0 %v7172
      %v7523 = vpop.f32.mrf.mxu0
      %v7524 = vadd.f32 0.0, %v7523
      %v7525 = vpop.f32.mrf.mxu0
      %v7526 = vadd.f32 0.0, %v7525
      %7527 = vmatprep.mubr.f32.mxu0 0.0
      %7528 = vmatmul.mubr.f32.gmra.mxu0 %v7175
      %v7529 = vpop.f32.mrf.mxu0
      %v7530 = vadd.f32 0.0, %v7529
      %v7531 = vpop.f32.mrf.mxu0
      %v7532 = vadd.f32 0.0, %v7531
      %7533 = vmatprep.mubr.f32.mxu0 0.0
      %7534 = vmatmul.mubr.f32.gmra.mxu0 %v7178
      %v7535 = vpop.f32.mrf.mxu0
      %v7536 = vadd.f32 0.0, %v7535
      %v7537 = vpop.f32.mrf.mxu0
      %v7538 = vadd.f32 0.0, %v7537
      %7539 = vmatprep.mubr.f32.mxu0 0.0
      %7540 = vmatmul.mubr.f32.gmra.mxu0 %v7181
      %v7541 = vpop.f32.mrf.mxu0
      %v7542 = vadd.f32 0.0, %v7541
      %v7543 = vpop.f32.mrf.mxu0
      %v7544 = vadd.f32 0.0, %v7543
      %7545 = vdwg.mxu0
      %7546 = vmatprep.subr.mxu0 0.0
      %7547 = vmatpush1.msra.mxu0 0.0
      %7548 = vmatprep.subr.mxu0 0.0
      %7549 = vmatpush1.msra.mxu0 0.0
      %7550 = vmatprep.subr.mxu0 0.0
      %7551 = vmatpush1.msra.mxu0 0.0
      %7552 = vmatprep.subr.mxu0 0.0
      %7553 = vmatpush1.msra.mxu0 0.0
      %7554 = vmatprep.subr.mxu0 0.0
      %7555 = vmatpush1.msra.mxu0 0.0
      %7556 = vmatprep.subr.mxu0 0.0
      %7557 = vmatpush1.msra.mxu0 0.0
      %7558 = vmatprep.subr.mxu0 0.0
      %7559 = vmatpush1.msra.mxu0 0.0
      %7560 = vmatprep.subr.mxu0 0.0
      %7561 = vmatpush1.msra.mxu0 0.0
      %7562 = vmatprep.subr.mxu0 0.0
      %7563 = vmatpush1.msra.mxu0 0.0
      %7564 = vmatprep.subr.mxu0 0.0
      %7565 = vmatpush1.msra.mxu0 0.0
      %7566 = vmatprep.subr.mxu0 0.0
      %7567 = vmatpush1.msra.mxu0 0.0
      %7568 = vmatprep.subr.mxu0 0.0
      %7569 = vmatpush1.msra.mxu0 0.0
      %7570 = vmatprep.subr.mxu0 0.0
      %7571 = vmatpush1.msra.mxu0 0.0
      %7572 = vmatprep.subr.mxu0 0.0
      %7573 = vmatpush1.msra.mxu0 0.0
      %7574 = vmatprep.subr.mxu0 0.0
      %7575 = vmatpush1.msra.mxu0 0.0
      %7576 = vmatprep.subr.mxu0 %v7205
      %7577 = vmatpush1.msra.mxu0 %v7202
      %7578 = vmatprep.subr.mxu0 0.0
      %7579 = vmatpush2.msra.mxu0 0.0
      %7580 = vmatprep.subr.mxu0 0.0
      %7581 = vmatpush2.msra.mxu0 0.0
      %7582 = vmatprep.subr.mxu0 0.0
      %7583 = vmatpush2.msra.mxu0 0.0
      %7584 = vmatprep.subr.mxu0 0.0
      %7585 = vmatpush2.msra.mxu0 0.0
      %7586 = vmatprep.subr.mxu0 0.0
      %7587 = vmatpush2.msra.mxu0 0.0
      %7588 = vmatprep.subr.mxu0 0.0
      %7589 = vmatpush2.msra.mxu0 0.0
      %7590 = vmatprep.subr.mxu0 0.0
      %7591 = vmatpush2.msra.mxu0 0.0
      %7592 = vmatprep.subr.mxu0 0.0
      %7593 = vmatpush2.msra.mxu0 0.0
      %7594 = vmatprep.subr.mxu0 0.0
      %7595 = vmatpush2.msra.mxu0 0.0
      %7596 = vmatprep.subr.mxu0 0.0
      %7597 = vmatpush2.msra.mxu0 0.0
      %7598 = vmatprep.subr.mxu0 0.0
      %7599 = vmatpush2.msra.mxu0 0.0
      %7600 = vmatprep.subr.mxu0 0.0
      %7601 = vmatpush2.msra.mxu0 0.0
      %7602 = vmatprep.subr.mxu0 0.0
      %7603 = vmatpush2.msra.mxu0 0.0
      %7604 = vmatprep.subr.mxu0 0.0
      %7605 = vmatpush2.msra.mxu0 0.0
      %7606 = vmatprep.subr.mxu0 0.0
      %7607 = vmatpush2.msra.mxu0 0.0
      %7608 = vmatprep.subr.mxu0 0.0
      %7609 = vmatpush2.msra.mxu0 0.0
      %7610 = vmatprep.mubr.f32.mxu0 0.0
      %7611 = vmatmul.mubr.f32.gmra.mxu0 %v7160
      %v7612 = vpop.f32.mrf.mxu0
      %v7613 = vadd.f32 0.0, %v7612
      %v7614 = vpop.f32.mrf.mxu0
      %v7615 = vadd.f32 0.0, %v7614
      %7616 = vmatprep.mubr.f32.mxu0 0.0
      %7617 = vmatmul.mubr.f32.gmra.mxu0 %v7163
      %v7618 = vpop.f32.mrf.mxu0
      %v7619 = vadd.f32 0.0, %v7618
      %v7620 = vpop.f32.mrf.mxu0
      %v7621 = vadd.f32 0.0, %v7620
      %7622 = vmatprep.mubr.f32.mxu0 0.0
      %7623 = vmatmul.mubr.f32.gmra.mxu0 %v7166
      %v7624 = vpop.f32.mrf.mxu0
      %v7625 = vadd.f32 0.0, %v7624
      %v7626 = vpop.f32.mrf.mxu0
      %v7627 = vadd.f32 0.0, %v7626
      %7628 = vmatprep.mubr.f32.mxu0 0.0
      %7629 = vmatmul.mubr.f32.gmra.mxu0 %v7169
      %v7630 = vpop.f32.mrf.mxu0
      %v7631 = vadd.f32 0.0, %v7630
      %v7632 = vpop.f32.mrf.mxu0
      %v7633 = vadd.f32 0.0, %v7632
      %7634 = vmatprep.mubr.f32.mxu0 0.0
      %7635 = vmatmul.mubr.f32.gmra.mxu0 %v7172
      %v7636 = vpop.f32.mrf.mxu0
      %v7637 = vadd.f32 0.0, %v7636
      %v7638 = vpop.f32.mrf.mxu0
      %v7639 = vadd.f32 0.0, %v7638
      %7640 = vmatprep.mubr.f32.mxu0 0.0
      %7641 = vmatmul.mubr.f32.gmra.mxu0 %v7175
      %v7642 = vpop.f32.mrf.mxu0
      %v7643 = vadd.f32 0.0, %v7642
      %v7644 = vpop.f32.mrf.mxu0
      %v7645 = vadd.f32 0.0, %v7644
      %7646 = vmatprep.mubr.f32.mxu0 0.0
      %7647 = vmatmul.mubr.f32.gmra.mxu0 %v7178
      %v7648 = vpop.f32.mrf.mxu0
      %v7649 = vadd.f32 0.0, %v7648
      %v7650 = vpop.f32.mrf.mxu0
      %v7651 = vadd.f32 0.0, %v7650
      %7652 = vmatprep.mubr.f32.mxu0 0.0
      %7653 = vmatmul.mubr.f32.gmra.mxu0 %v7181
      %v7654 = vpop.f32.mrf.mxu0
      %v7655 = vadd.f32 0.0, %v7654
      %v7656 = vpop.f32.mrf.mxu0
      %v7657 = vadd.f32 0.0, %v7656
      %7658 = vdwg.mxu0
      %v7659 = vmax.f32 %v7274, 0.0
      %v7660 = vmax.f32 %v7276, 0.0
      %v7661 = vmax.f32 %v7387, 0.0
      %v7662 = vmax.f32 %v7389, 0.0
      %v7663 = vmax.f32 %v7500, 0.0
      %v7664 = vmax.f32 %v7502, 0.0
      %v7665 = vmax.f32 %v7613, 0.0
      %v7666 = vmax.f32 %v7615, 0.0
      %v7667 = vmax.f32 %v7280, 0.0
      %v7668 = vmax.f32 %v7282, 0.0
      %v7669 = vmax.f32 %v7393, 0.0
      %v7670 = vmax.f32 %v7395, 0.0
      %v7671 = vmax.f32 %v7506, 0.0
      %v7672 = vmax.f32 %v7508, 0.0
      %v7673 = vmax.f32 %v7619, 0.0
      %v7674 = vmax.f32 %v7621, 0.0
      %v7675 = vmax.f32 %v7286, 0.0
      %v7676 = vmax.f32 %v7288, 0.0
      %v7677 = vmax.f32 %v7399, 0.0
      %v7678 = vmax.f32 %v7401, 0.0
      %v7679 = vmax.f32 %v7512, 0.0
      %v7680 = vmax.f32 %v7514, 0.0
      %v7681 = vmax.f32 %v7625, 0.0
      %v7682 = vmax.f32 %v7627, 0.0
      %v7683 = vmax.f32 %v7292, 0.0
      %v7684 = vmax.f32 %v7294, 0.0
      %v7685 = vmax.f32 %v7405, 0.0
      %v7686 = vmax.f32 %v7407, 0.0
      %v7687 = vmax.f32 %v7518, 0.0
      %v7688 = vmax.f32 %v7520, 0.0
      %v7689 = vmax.f32 %v7631, 0.0
      %v7690 = vmax.f32 %v7633, 0.0
      %v7691 = vmax.f32 %v7298, 0.0
      %v7692 = vmax.f32 %v7300, 0.0
      %v7693 = vmax.f32 %v7411, 0.0
      %v7694 = vmax.f32 %v7413, 0.0
      %v7695 = vmax.f32 %v7524, 0.0
      %v7696 = vmax.f32 %v7526, 0.0
      %v7697 = vmax.f32 %v7637, 0.0
      %v7698 = vmax.f32 %v7639, 0.0
      %v7699 = vmax.f32 %v7304, 0.0
      %v7700 = vmax.f32 %v7306, 0.0
      %v7701 = vmax.f32 %v7417, 0.0
      %v7702 = vmax.f32 %v7419, 0.0
      %v7703 = vmax.f32 %v7530, 0.0
      %v7704 = vmax.f32 %v7532, 0.0
      %v7705 = vmax.f32 %v7643, 0.0
      %v7706 = vmax.f32 %v7645, 0.0
      %v7707 = vmax.f32 %v7310, 0.0
      %v7708 = vmax.f32 %v7312, 0.0
      %v7709 = vmax.f32 %v7423, 0.0
      %v7710 = vmax.f32 %v7425, 0.0
      %v7711 = vmax.f32 %v7536, 0.0
      %v7712 = vmax.f32 %v7538, 0.0
      %v7713 = vmax.f32 %v7649, 0.0
      %v7714 = vmax.f32 %v7651, 0.0
      %v7715 = vmax.f32 %v7316, 0.0
      %v7716 = vmax.f32 %v7318, 0.0
      %v7717 = vmax.f32 %v7429, 0.0
      %v7718 = vmax.f32 %v7431, 0.0
      %v7719 = vmax.f32 %v7542, 0.0
      %v7720 = vmax.f32 %v7544, 0.0
      %v7721 = vmax.f32 %v7655, 0.0
      %v7722 = vmax.f32 %v7657, 0.0
      %v7723 = vld [vmem:[%s758] sm:$0xff]
      %v7724 = vld [vmem:[%s758 + $0x8] sm:$0xff]
      %v7725 = vld [vmem:[%s758 + $0x10] sm:$0xff]
      %v7726 = vld [vmem:[%s758 + $0x18] sm:$0xff]
      %v7727 = vld [vmem:[%s758 + $0x20] sm:$0xff]
      %v7728 = vld [vmem:[%s758 + $0x28] sm:$0xff]
      %v7729 = vld [vmem:[%s758 + $0x30] sm:$0xff]
      %v7730 = vld [vmem:[%s758 + $0x38] sm:$0xff]
      %7732 = vset.pattern.permute.xlu0 0
      %7733 = vperm.xlu0 %7732, %v7723
      %v7734 = vpop.permute.xlu0 %7733
      %7737 = vset.pattern.permute.xlu0 0
      %7738 = vperm.xlu0 %7737, %v7724
      %v7739 = vpop.permute.xlu0 %7738
      %7742 = vset.pattern.permute.xlu0 0
      %7743 = vperm.xlu0 %7742, %v7725
      %v7744 = vpop.permute.xlu0 %7743
      %7747 = vset.pattern.permute.xlu0 0
      %7748 = vperm.xlu0 %7747, %v7726
      %v7749 = vpop.permute.xlu0 %7748
      %7752 = vset.pattern.permute.xlu0 0
      %7753 = vperm.xlu0 %7752, %v7727
      %v7754 = vpop.permute.xlu0 %7753
      %7757 = vset.pattern.permute.xlu0 0
      %7758 = vperm.xlu0 %7757, %v7728
      %v7759 = vpop.permute.xlu0 %7758
      %7762 = vset.pattern.permute.xlu0 0
      %7763 = vperm.xlu0 %7762, %v7729
      %v7764 = vpop.permute.xlu0 %7763
      %7767 = vset.pattern.permute.xlu0 0
      %7768 = vperm.xlu0 %7767, %v7730
      %v7769 = vpop.permute.xlu0 %7768
      %v7771 = vmul.f32 %v7659, %v7734
      %v7772 = vmul.f32 %v7660, %v7734
      %v7773 = vmul.f32 %v7661, %v7734
      %v7774 = vmul.f32 %v7662, %v7734
      %v7775 = vmul.f32 %v7663, %v7734
      %v7776 = vmul.f32 %v7664, %v7734
      %v7777 = vmul.f32 %v7665, %v7734
      %v7778 = vmul.f32 %v7666, %v7734
      %v7779 = vmul.f32 %v7667, %v7739
      %v7780 = vmul.f32 %v7668, %v7739
      %v7781 = vmul.f32 %v7669, %v7739
      %v7782 = vmul.f32 %v7670, %v7739
      %v7783 = vmul.f32 %v7671, %v7739
      %v7784 = vmul.f32 %v7672, %v7739
      %v7785 = vmul.f32 %v7673, %v7739
      %v7786 = vmul.f32 %v7674, %v7739
      %v7787 = vmul.f32 %v7675, %v7744
      %v7788 = vmul.f32 %v7676, %v7744
      %v7789 = vmul.f32 %v7677, %v7744
      %v7790 = vmul.f32 %v7678, %v7744
      %v7791 = vmul.f32 %v7679, %v7744
      %v7792 = vmul.f32 %v7680, %v7744
      %v7793 = vmul.f32 %v7681, %v7744
      %v7794 = vmul.f32 %v7682, %v7744
      %v7795 = vmul.f32 %v7683, %v7749
      %v7796 = vmul.f32 %v7684, %v7749
      %v7797 = vmul.f32 %v7685, %v7749
      %v7798 = vmul.f32 %v7686, %v7749
      %v7799 = vmul.f32 %v7687, %v7749
      %v7800 = vmul.f32 %v7688, %v7749
      %v7801 = vmul.f32 %v7689, %v7749
      %v7802 = vmul.f32 %v7690, %v7749
      %v7803 = vmul.f32 %v7691, %v7754
      %v7804 = vmul.f32 %v7692, %v7754
      %v7805 = vmul.f32 %v7693, %v7754
      %v7806 = vmul.f32 %v7694, %v7754
      %v7807 = vmul.f32 %v7695, %v7754
      %v7808 = vmul.f32 %v7696, %v7754
      %v7809 = vmul.f32 %v7697, %v7754
      %v7810 = vmul.f32 %v7698, %v7754
      %v7811 = vmul.f32 %v7699, %v7759
      %v7812 = vmul.f32 %v7700, %v7759
      %v7813 = vmul.f32 %v7701, %v7759
      %v7814 = vmul.f32 %v7702, %v7759
      %v7815 = vmul.f32 %v7703, %v7759
      %v7816 = vmul.f32 %v7704, %v7759
      %v7817 = vmul.f32 %v7705, %v7759
      %v7818 = vmul.f32 %v7706, %v7759
      %v7819 = vmul.f32 %v7707, %v7764
      %v7820 = vmul.f32 %v7708, %v7764
      %v7821 = vmul.f32 %v7709, %v7764
      %v7822 = vmul.f32 %v7710, %v7764
      %v7823 = vmul.f32 %v7711, %v7764
      %v7824 = vmul.f32 %v7712, %v7764
      %v7825 = vmul.f32 %v7713, %v7764
      %v7826 = vmul.f32 %v7714, %v7764
      %v7827 = vmul.f32 %v7715, %v7769
      %v7828 = vmul.f32 %v7716, %v7769
      %v7829 = vmul.f32 %v7717, %v7769
      %v7830 = vmul.f32 %v7718, %v7769
      %v7831 = vmul.f32 %v7719, %v7769
      %v7832 = vmul.f32 %v7720, %v7769
      %v7833 = vmul.f32 %v7721, %v7769
      %v7834 = vmul.f32 %v7722, %v7769
      %v7835 = vadd.f32 %v7771, %v7779
      %v7836 = vadd.f32 %v7835, %v7787
      %v7837 = vadd.f32 %v7836, %v7795
      %v7838 = vadd.f32 %v7837, %v7803
      %v7839 = vadd.f32 %v7838, %v7811
      %v7840 = vadd.f32 %v7839, %v7819
      %v7841 = vadd.f32 %v7840, %v7827
      %v7842 = vrot.slane %v7841, 4
      %v7843 = vadd.f32 %v7841, %v7842
      %v7844 = vrot.slane %v7843, 2
      %v7845 = vadd.f32 %v7843, %v7844
      %v7846 = vrot.slane %v7845, 1
      %v7847 = vadd.f32 %v7845, %v7846
      %v7848 = vadd.f32 %v7772, %v7780
      %v7849 = vadd.f32 %v7848, %v7788
      %v7850 = vadd.f32 %v7849, %v7796
      %v7851 = vadd.f32 %v7850, %v7804
      %v7852 = vadd.f32 %v7851, %v7812
      %v7853 = vadd.f32 %v7852, %v7820
      %v7854 = vadd.f32 %v7853, %v7828
      %v7855 = vrot.slane %v7854, 4
      %v7856 = vadd.f32 %v7854, %v7855
      %v7857 = vrot.slane %v7856, 2
      %v7858 = vadd.f32 %v7856, %v7857
      %v7859 = vrot.slane %v7858, 1
      %v7860 = vadd.f32 %v7858, %v7859
      %v7861 = vadd.f32 %v7773, %v7781
      %v7862 = vadd.f32 %v7861, %v7789
      %v7863 = vadd.f32 %v7862, %v7797
      %v7864 = vadd.f32 %v7863, %v7805
      %v7865 = vadd.f32 %v7864, %v7813
      %v7866 = vadd.f32 %v7865, %v7821
      %v7867 = vadd.f32 %v7866, %v7829
      %v7868 = vrot.slane %v7867, 4
      %v7869 = vadd.f32 %v7867, %v7868
      %v7870 = vrot.slane %v7869, 2
      %v7871 = vadd.f32 %v7869, %v7870
      %v7872 = vrot.slane %v7871, 1
      %v7873 = vadd.f32 %v7871, %v7872
      %v7874 = vadd.f32 %v7774, %v7782
      %v7875 = vadd.f32 %v7874, %v7790
      %v7876 = vadd.f32 %v7875, %v7798
      %v7877 = vadd.f32 %v7876, %v7806
      %v7878 = vadd.f32 %v7877, %v7814
      %v7879 = vadd.f32 %v7878, %v7822
      %v7880 = vadd.f32 %v7879, %v7830
      %v7881 = vrot.slane %v7880, 4
      %v7882 = vadd.f32 %v7880, %v7881
      %v7883 = vrot.slane %v7882, 2
      %v7884 = vadd.f32 %v7882, %v7883
      %v7885 = vrot.slane %v7884, 1
      %v7886 = vadd.f32 %v7884, %v7885
      %v7887 = vadd.f32 %v7775, %v7783
      %v7888 = vadd.f32 %v7887, %v7791
      %v7889 = vadd.f32 %v7888, %v7799
      %v7890 = vadd.f32 %v7889, %v7807
      %v7891 = vadd.f32 %v7890, %v7815
      %v7892 = vadd.f32 %v7891, %v7823
      %v7893 = vadd.f32 %v7892, %v7831
      %v7894 = vrot.slane %v7893, 4
      %v7895 = vadd.f32 %v7893, %v7894
      %v7896 = vrot.slane %v7895, 2
      %v7897 = vadd.f32 %v7895, %v7896
      %v7898 = vrot.slane %v7897, 1
      %v7899 = vadd.f32 %v7897, %v7898
      %v7900 = vadd.f32 %v7776, %v7784
      %v7901 = vadd.f32 %v7900, %v7792
      %v7902 = vadd.f32 %v7901, %v7800
      %v7903 = vadd.f32 %v7902, %v7808
      %v7904 = vadd.f32 %v7903, %v7816
      %v7905 = vadd.f32 %v7904, %v7824
      %v7906 = vadd.f32 %v7905, %v7832
      %v7907 = vrot.slane %v7906, 4
      %v7908 = vadd.f32 %v7906, %v7907
      %v7909 = vrot.slane %v7908, 2
      %v7910 = vadd.f32 %v7908, %v7909
      %v7911 = vrot.slane %v7910, 1
      %v7912 = vadd.f32 %v7910, %v7911
      %v7913 = vadd.f32 %v7777, %v7785
      %v7914 = vadd.f32 %v7913, %v7793
      %v7915 = vadd.f32 %v7914, %v7801
      %v7916 = vadd.f32 %v7915, %v7809
      %v7917 = vadd.f32 %v7916, %v7817
      %v7918 = vadd.f32 %v7917, %v7825
      %v7919 = vadd.f32 %v7918, %v7833
      %v7920 = vrot.slane %v7919, 4
      %v7921 = vadd.f32 %v7919, %v7920
      %v7922 = vrot.slane %v7921, 2
      %v7923 = vadd.f32 %v7921, %v7922
      %v7924 = vrot.slane %v7923, 1
      %v7925 = vadd.f32 %v7923, %v7924
      %v7926 = vadd.f32 %v7778, %v7786
      %v7927 = vadd.f32 %v7926, %v7794
      %v7928 = vadd.f32 %v7927, %v7802
      %v7929 = vadd.f32 %v7928, %v7810
      %v7930 = vadd.f32 %v7929, %v7818
      %v7931 = vadd.f32 %v7930, %v7826
      %v7932 = vadd.f32 %v7931, %v7834
      %v7933 = vrot.slane %v7932, 4
      %v7934 = vadd.f32 %v7932, %v7933
      %v7935 = vrot.slane %v7934, 2
      %v7936 = vadd.f32 %v7934, %v7935
      %v7937 = vrot.slane %v7936, 1
      %v7938 = vadd.f32 %v7936, %v7937
      %v7947 = vcombine.low %v7847, %v7860
      %v7948 = vcombine.low %v7873, %v7886
      %v7949 = vcombine.low %v7899, %v7912
      %v7950 = vcombine.low %v7925, %v7938
      %v7952 = vunpack.c.l.s4 1966171168
      %v7953 = vunpack.c.0.s8 %v7952
      %v7954 = vlaneseq
      %v7955 = vshrl.u32 %v7954, 7
      %v7956 = vsub.s32 %v7953, %v7955
      %v7957 = vrot.slane %v7947, %v7956
      %v7959 = vunpack.c.l.s4 1966171168
      %v7960 = vunpack.c.0.s8 %v7959
      %v7961 = vlaneseq
      %v7962 = vshrl.u32 %v7961, 7
      %v7963 = vsub.s32 %v7960, %v7962
      %v7964 = vrot.slane %v7948, %v7963
      %v7966 = vunpack.c.l.s4 1966171168
      %v7967 = vunpack.c.0.s8 %v7966
      %v7968 = vlaneseq
      %v7969 = vshrl.u32 %v7968, 7
      %v7970 = vsub.s32 %v7967, %v7969
      %v7971 = vrot.slane %v7949, %v7970
      %v7973 = vunpack.c.l.s4 1966171168
      %v7974 = vunpack.c.0.s8 %v7973
      %v7975 = vlaneseq
      %v7976 = vshrl.u32 %v7975, 7
      %v7977 = vsub.s32 %v7974, %v7976
      %v7978 = vrot.slane %v7950, %v7977
      %v7979 = vcombine.low %v7957, %v7964
      %v7980 = vcombine.low %v7971, %v7978
      %v7982 = vunpack.c.l.s4 1966171168
      %v7983 = vunpack.c.0.s8 %v7982
      %v7984 = vlaneseq
      %v7985 = vshrl.u32 %v7984, 7
      %v7986 = vsub.s32 %v7983, %v7985
      %v7987 = vrot.slane %v7979, %v7986
      %v7989 = vunpack.c.l.s4 1966171168
      %v7990 = vunpack.c.0.s8 %v7989
      %v7991 = vlaneseq
      %v7992 = vshrl.u32 %v7991, 7
      %v7993 = vsub.s32 %v7990, %v7992
      %v7994 = vrot.slane %v7980, %v7993
      %v7995 = vcombine.low %v7987, %v7994
      %v7997 = vsub.f32 %v783, %v7995
      %v7998 = vld [vmem:[%s763] sm:$0xff]
      %v7999 = vld [vmem:[%s763 + $0x8] sm:$0xff]
      %v8000 = vld [vmem:[%s763 + $0x10] sm:$0xff]
      %v8001 = vld [vmem:[%s763 + $0x18] sm:$0xff]
      %v8002 = vld [vmem:[%s763 + $0x20] sm:$0xff]
      %v8003 = vld [vmem:[%s763 + $0x28] sm:$0xff]
      %v8004 = vld [vmem:[%s763 + $0x30] sm:$0xff]
      %v8005 = vld [vmem:[%s763 + $0x38] sm:$0xff]
      %8007 = vset.pattern.permute.xlu0 0
      %8008 = vperm.xlu0 %8007, %v7998
      %v8009 = vpop.permute.xlu0 %8008
      %8012 = vset.pattern.permute.xlu0 0
      %8013 = vperm.xlu0 %8012, %v7999
      %v8014 = vpop.permute.xlu0 %8013
      %8017 = vset.pattern.permute.xlu0 0
      %8018 = vperm.xlu0 %8017, %v8000
      %v8019 = vpop.permute.xlu0 %8018
      %8022 = vset.pattern.permute.xlu0 0
      %8023 = vperm.xlu0 %8022, %v8001
      %v8024 = vpop.permute.xlu0 %8023
      %8027 = vset.pattern.permute.xlu0 0
      %8028 = vperm.xlu0 %8027, %v8002
      %v8029 = vpop.permute.xlu0 %8028
      %8032 = vset.pattern.permute.xlu0 0
      %8033 = vperm.xlu0 %8032, %v8003
      %v8034 = vpop.permute.xlu0 %8033
      %8037 = vset.pattern.permute.xlu0 0
      %8038 = vperm.xlu0 %8037, %v8004
      %v8039 = vpop.permute.xlu0 %8038
      %8042 = vset.pattern.permute.xlu0 0
      %8043 = vperm.xlu0 %8042, %v8005
      %v8044 = vpop.permute.xlu0 %8043
      %v8047 = vlaneseq
      %v8048 = vshrl.u32 %v8047, 7
      %v8049 = vsub.s32 0, %v8048
      %v8050 = vrot.slane %v7997, %v8049
      %v8051 = vlaneseq
      %v8052 = vshrl.u32 %v8051, 7
      %v8053 = vsub.s32 1, %v8052
      %v8054 = vrot.slane %v7997, %v8053
      %v8055 = vlaneseq
      %v8056 = vshrl.u32 %v8055, 7
      %v8057 = vsub.s32 2, %v8056
      %v8058 = vrot.slane %v7997, %v8057
      %v8059 = vlaneseq
      %v8060 = vshrl.u32 %v8059, 7
      %v8061 = vsub.s32 3, %v8060
      %v8062 = vrot.slane %v7997, %v8061
      %v8063 = vlaneseq
      %v8064 = vshrl.u32 %v8063, 7
      %v8065 = vsub.s32 4, %v8064
      %v8066 = vrot.slane %v7997, %v8065
      %v8067 = vlaneseq
      %v8068 = vshrl.u32 %v8067, 7
      %v8069 = vsub.s32 5, %v8068
      %v8070 = vrot.slane %v7997, %v8069
      %v8071 = vlaneseq
      %v8072 = vshrl.u32 %v8071, 7
      %v8073 = vsub.s32 6, %v8072
      %v8074 = vrot.slane %v7997, %v8073
      %v8075 = vlaneseq
      %v8076 = vshrl.u32 %v8075, 7
      %v8077 = vsub.s32 7, %v8076
      %v8078 = vrot.slane %v7997, %v8077
      %v8087 = vmul.f32 %v8009, %v8050
      %v8088 = vmul.f32 %v8009, %v8054
      %v8089 = vmul.f32 %v8009, %v8058
      %v8090 = vmul.f32 %v8009, %v8062
      %v8091 = vmul.f32 %v8009, %v8066
      %v8092 = vmul.f32 %v8009, %v8070
      %v8093 = vmul.f32 %v8009, %v8074
      %v8094 = vmul.f32 %v8009, %v8078
      %v8095 = vmul.f32 %v8014, %v8050
      %v8096 = vmul.f32 %v8014, %v8054
      %v8097 = vmul.f32 %v8014, %v8058
      %v8098 = vmul.f32 %v8014, %v8062
      %v8099 = vmul.f32 %v8014, %v8066
      %v8100 = vmul.f32 %v8014, %v8070
      %v8101 = vmul.f32 %v8014, %v8074
      %v8102 = vmul.f32 %v8014, %v8078
      %v8103 = vmul.f32 %v8019, %v8050
      %v8104 = vmul.f32 %v8019, %v8054
      %v8105 = vmul.f32 %v8019, %v8058
      %v8106 = vmul.f32 %v8019, %v8062
      %v8107 = vmul.f32 %v8019, %v8066
      %v8108 = vmul.f32 %v8019, %v8070
      %v8109 = vmul.f32 %v8019, %v8074
      %v8110 = vmul.f32 %v8019, %v8078
      %v8111 = vmul.f32 %v8024, %v8050
      %v8112 = vmul.f32 %v8024, %v8054
      %v8113 = vmul.f32 %v8024, %v8058
      %v8114 = vmul.f32 %v8024, %v8062
      %v8115 = vmul.f32 %v8024, %v8066
      %v8116 = vmul.f32 %v8024, %v8070
      %v8117 = vmul.f32 %v8024, %v8074
      %v8118 = vmul.f32 %v8024, %v8078
      %v8119 = vmul.f32 %v8029, %v8050
      %v8120 = vmul.f32 %v8029, %v8054
      %v8121 = vmul.f32 %v8029, %v8058
      %v8122 = vmul.f32 %v8029, %v8062
      %v8123 = vmul.f32 %v8029, %v8066
      %v8124 = vmul.f32 %v8029, %v8070
      %v8125 = vmul.f32 %v8029, %v8074
      %v8126 = vmul.f32 %v8029, %v8078
      %v8127 = vmul.f32 %v8034, %v8050
      %v8128 = vmul.f32 %v8034, %v8054
      %v8129 = vmul.f32 %v8034, %v8058
      %v8130 = vmul.f32 %v8034, %v8062
      %v8131 = vmul.f32 %v8034, %v8066
      %v8132 = vmul.f32 %v8034, %v8070
      %v8133 = vmul.f32 %v8034, %v8074
      %v8134 = vmul.f32 %v8034, %v8078
      %v8135 = vmul.f32 %v8039, %v8050
      %v8136 = vmul.f32 %v8039, %v8054
      %v8137 = vmul.f32 %v8039, %v8058
      %v8138 = vmul.f32 %v8039, %v8062
      %v8139 = vmul.f32 %v8039, %v8066
      %v8140 = vmul.f32 %v8039, %v8070
      %v8141 = vmul.f32 %v8039, %v8074
      %v8142 = vmul.f32 %v8039, %v8078
      %v8143 = vmul.f32 %v8044, %v8050
      %v8144 = vmul.f32 %v8044, %v8054
      %v8145 = vmul.f32 %v8044, %v8058
      %v8146 = vmul.f32 %v8044, %v8062
      %v8147 = vmul.f32 %v8044, %v8066
      %v8148 = vmul.f32 %v8044, %v8070
      %v8149 = vmul.f32 %v8044, %v8074
      %v8150 = vmul.f32 %v8044, %v8078
      %v8151 = vmax.f32 %v8087, 0.0
      %v8152 = vmax.f32 %v8088, 0.0
      %v8153 = vmax.f32 %v8089, 0.0
      %v8154 = vmax.f32 %v8090, 0.0
      %v8155 = vmax.f32 %v8091, 0.0
      %v8156 = vmax.f32 %v8092, 0.0
      %v8157 = vmax.f32 %v8093, 0.0
      %v8158 = vmax.f32 %v8094, 0.0
      %v8159 = vmax.f32 %v8095, 0.0
      %v8160 = vmax.f32 %v8096, 0.0
      %v8161 = vmax.f32 %v8097, 0.0
      %v8162 = vmax.f32 %v8098, 0.0
      %v8163 = vmax.f32 %v8099, 0.0
      %v8164 = vmax.f32 %v8100, 0.0
      %v8165 = vmax.f32 %v8101, 0.0
      %v8166 = vmax.f32 %v8102, 0.0
      %v8167 = vmax.f32 %v8103, 0.0
      %v8168 = vmax.f32 %v8104, 0.0
      %v8169 = vmax.f32 %v8105, 0.0
      %v8170 = vmax.f32 %v8106, 0.0
      %v8171 = vmax.f32 %v8107, 0.0
      %v8172 = vmax.f32 %v8108, 0.0
      %v8173 = vmax.f32 %v8109, 0.0
      %v8174 = vmax.f32 %v8110, 0.0
      %v8175 = vmax.f32 %v8111, 0.0
      %v8176 = vmax.f32 %v8112, 0.0
      %v8177 = vmax.f32 %v8113, 0.0
      %v8178 = vmax.f32 %v8114, 0.0
      %v8179 = vmax.f32 %v8115, 0.0
      %v8180 = vmax.f32 %v8116, 0.0
      %v8181 = vmax.f32 %v8117, 0.0
      %v8182 = vmax.f32 %v8118, 0.0
      %v8183 = vmax.f32 %v8119, 0.0
      %v8184 = vmax.f32 %v8120, 0.0
      %v8185 = vmax.f32 %v8121, 0.0
      %v8186 = vmax.f32 %v8122, 0.0
      %v8187 = vmax.f32 %v8123, 0.0
      %v8188 = vmax.f32 %v8124, 0.0
      %v8189 = vmax.f32 %v8125, 0.0
      %v8190 = vmax.f32 %v8126, 0.0
      %v8191 = vmax.f32 %v8127, 0.0
      %v8192 = vmax.f32 %v8128, 0.0
      %v8193 = vmax.f32 %v8129, 0.0
      %v8194 = vmax.f32 %v8130, 0.0
      %v8195 = vmax.f32 %v8131, 0.0
      %v8196 = vmax.f32 %v8132, 0.0
      %v8197 = vmax.f32 %v8133, 0.0
      %v8198 = vmax.f32 %v8134, 0.0
      %v8199 = vmax.f32 %v8135, 0.0
      %v8200 = vmax.f32 %v8136, 0.0
      %v8201 = vmax.f32 %v8137, 0.0
      %v8202 = vmax.f32 %v8138, 0.0
      %v8203 = vmax.f32 %v8139, 0.0
      %v8204 = vmax.f32 %v8140, 0.0
      %v8205 = vmax.f32 %v8141, 0.0
      %v8206 = vmax.f32 %v8142, 0.0
      %v8207 = vmax.f32 %v8143, 0.0
      %v8208 = vmax.f32 %v8144, 0.0
      %v8209 = vmax.f32 %v8145, 0.0
      %v8210 = vmax.f32 %v8146, 0.0
      %v8211 = vmax.f32 %v8147, 0.0
      %v8212 = vmax.f32 %v8148, 0.0
      %v8213 = vmax.f32 %v8149, 0.0
      %v8214 = vmax.f32 %v8150, 0.0
      %v8215 = vld [vmem:[%s767] sm:$0xf]
      %v8217 = vsel %vm2556, %v8215, 0
      %8219 = vmatprep.subr.mxu0 0.0
      %8220 = vmatpush1.msra.mxu0 0.0
      %8221 = vmatprep.subr.mxu0 0.0
      %8222 = vmatpush1.msra.mxu0 0.0
      %8223 = vmatprep.subr.mxu0 0.0
      %8224 = vmatpush1.msra.mxu0 0.0
      %8225 = vmatprep.subr.mxu0 0.0
      %8226 = vmatpush1.msra.mxu0 0.0
      %8227 = vmatprep.subr.mxu0 0.0
      %8228 = vmatpush1.msra.mxu0 0.0
      %8229 = vmatprep.subr.mxu0 0.0
      %8230 = vmatpush1.msra.mxu0 0.0
      %8231 = vmatprep.subr.mxu0 0.0
      %8232 = vmatpush1.msra.mxu0 0.0
      %8233 = vmatprep.subr.mxu0 0.0
      %8234 = vmatpush1.msra.mxu0 0.0
      %8235 = vmatprep.subr.mxu0 %v8208
      %8236 = vmatpush1.msra.mxu0 %v8207
      %8237 = vmatprep.subr.mxu0 %v8200
      %8238 = vmatpush1.msra.mxu0 %v8199
      %8239 = vmatprep.subr.mxu0 %v8192
      %8240 = vmatpush1.msra.mxu0 %v8191
      %8241 = vmatprep.subr.mxu0 %v8184
      %8242 = vmatpush1.msra.mxu0 %v8183
      %8243 = vmatprep.subr.mxu0 %v8176
      %8244 = vmatpush1.msra.mxu0 %v8175
      %8245 = vmatprep.subr.mxu0 %v8168
      %8246 = vmatpush1.msra.mxu0 %v8167
      %8247 = vmatprep.subr.mxu0 %v8160
      %8248 = vmatpush1.msra.mxu0 %v8159
      %8249 = vmatprep.subr.mxu0 %v8152
      %8250 = vmatpush1.msra.mxu0 %v8151
      %8251 = vmatprep.subr.mxu0 0.0
      %8252 = vmatpush2.msra.mxu0 0.0
      %8253 = vmatprep.subr.mxu0 0.0
      %8254 = vmatpush2.msra.mxu0 0.0
      %8255 = vmatprep.subr.mxu0 0.0
      %8256 = vmatpush2.msra.mxu0 0.0
      %8257 = vmatprep.subr.mxu0 0.0
      %8258 = vmatpush2.msra.mxu0 0.0
      %8259 = vmatprep.subr.mxu0 0.0
      %8260 = vmatpush2.msra.mxu0 0.0
      %8261 = vmatprep.subr.mxu0 0.0
      %8262 = vmatpush2.msra.mxu0 0.0
      %8263 = vmatprep.subr.mxu0 0.0
      %8264 = vmatpush2.msra.mxu0 0.0
      %8265 = vmatprep.subr.mxu0 0.0
      %8266 = vmatpush2.msra.mxu0 0.0
      %8267 = vmatprep.subr.mxu0 0.0
      %8268 = vmatpush2.msra.mxu0 0.0
      %8269 = vmatprep.subr.mxu0 0.0
      %8270 = vmatpush2.msra.mxu0 0.0
      %8271 = vmatprep.subr.mxu0 0.0
      %8272 = vmatpush2.msra.mxu0 0.0
      %8273 = vmatprep.subr.mxu0 0.0
      %8274 = vmatpush2.msra.mxu0 0.0
      %8275 = vmatprep.subr.mxu0 0.0
      %8276 = vmatpush2.msra.mxu0 0.0
      %8277 = vmatprep.subr.mxu0 0.0
      %8278 = vmatpush2.msra.mxu0 0.0
      %8279 = vmatprep.subr.mxu0 0.0
      %8280 = vmatpush2.msra.mxu0 0.0
      %8281 = vmatprep.subr.mxu0 0.0
      %8282 = vmatpush2.msra.mxu0 0.0
      %8283 = vmatprep.mubr.f32.mxu0 0.0
      %8284 = vmatmul.mubr.f32.gmra.mxu0 %v8217
      %v8285 = vpop.f32.mrf.mxu0
      %v8286 = vadd.f32 0.0, %v8285
      %v8287 = vpop.f32.mrf.mxu0
      %v8288 = vadd.f32 0.0, %v8287
      %8289 = vdwg.mxu0
      %8290 = vmatprep.subr.mxu0 0.0
      %8291 = vmatpush1.msra.mxu0 0.0
      %8292 = vmatprep.subr.mxu0 0.0
      %8293 = vmatpush1.msra.mxu0 0.0
      %8294 = vmatprep.subr.mxu0 0.0
      %8295 = vmatpush1.msra.mxu0 0.0
      %8296 = vmatprep.subr.mxu0 0.0
      %8297 = vmatpush1.msra.mxu0 0.0
      %8298 = vmatprep.subr.mxu0 0.0
      %8299 = vmatpush1.msra.mxu0 0.0
      %8300 = vmatprep.subr.mxu0 0.0
      %8301 = vmatpush1.msra.mxu0 0.0
      %8302 = vmatprep.subr.mxu0 0.0
      %8303 = vmatpush1.msra.mxu0 0.0
      %8304 = vmatprep.subr.mxu0 0.0
      %8305 = vmatpush1.msra.mxu0 0.0
      %8306 = vmatprep.subr.mxu0 %v8210
      %8307 = vmatpush1.msra.mxu0 %v8209
      %8308 = vmatprep.subr.mxu0 %v8202
      %8309 = vmatpush1.msra.mxu0 %v8201
      %8310 = vmatprep.subr.mxu0 %v8194
      %8311 = vmatpush1.msra.mxu0 %v8193
      %8312 = vmatprep.subr.mxu0 %v8186
      %8313 = vmatpush1.msra.mxu0 %v8185
      %8314 = vmatprep.subr.mxu0 %v8178
      %8315 = vmatpush1.msra.mxu0 %v8177
      %8316 = vmatprep.subr.mxu0 %v8170
      %8317 = vmatpush1.msra.mxu0 %v8169
      %8318 = vmatprep.subr.mxu0 %v8162
      %8319 = vmatpush1.msra.mxu0 %v8161
      %8320 = vmatprep.subr.mxu0 %v8154
      %8321 = vmatpush1.msra.mxu0 %v8153
      %8322 = vmatprep.subr.mxu0 0.0
      %8323 = vmatpush2.msra.mxu0 0.0
      %8324 = vmatprep.subr.mxu0 0.0
      %8325 = vmatpush2.msra.mxu0 0.0
      %8326 = vmatprep.subr.mxu0 0.0
      %8327 = vmatpush2.msra.mxu0 0.0
      %8328 = vmatprep.subr.mxu0 0.0
      %8329 = vmatpush2.msra.mxu0 0.0
      %8330 = vmatprep.subr.mxu0 0.0
      %8331 = vmatpush2.msra.mxu0 0.0
      %8332 = vmatprep.subr.mxu0 0.0
      %8333 = vmatpush2.msra.mxu0 0.0
      %8334 = vmatprep.subr.mxu0 0.0
      %8335 = vmatpush2.msra.mxu0 0.0
      %8336 = vmatprep.subr.mxu0 0.0
      %8337 = vmatpush2.msra.mxu0 0.0
      %8338 = vmatprep.subr.mxu0 0.0
      %8339 = vmatpush2.msra.mxu0 0.0
      %8340 = vmatprep.subr.mxu0 0.0
      %8341 = vmatpush2.msra.mxu0 0.0
      %8342 = vmatprep.subr.mxu0 0.0
      %8343 = vmatpush2.msra.mxu0 0.0
      %8344 = vmatprep.subr.mxu0 0.0
      %8345 = vmatpush2.msra.mxu0 0.0
      %8346 = vmatprep.subr.mxu0 0.0
      %8347 = vmatpush2.msra.mxu0 0.0
      %8348 = vmatprep.subr.mxu0 0.0
      %8349 = vmatpush2.msra.mxu0 0.0
      %8350 = vmatprep.subr.mxu0 0.0
      %8351 = vmatpush2.msra.mxu0 0.0
      %8352 = vmatprep.subr.mxu0 0.0
      %8353 = vmatpush2.msra.mxu0 0.0
      %8354 = vmatprep.mubr.f32.mxu0 0.0
      %8355 = vmatmul.mubr.f32.gmra.mxu0 %v8217
      %v8356 = vpop.f32.mrf.mxu0
      %v8357 = vadd.f32 0.0, %v8356
      %v8358 = vpop.f32.mrf.mxu0
      %v8359 = vadd.f32 0.0, %v8358
      %8360 = vdwg.mxu0
      %8361 = vmatprep.subr.mxu0 0.0
      %8362 = vmatpush1.msra.mxu0 0.0
      %8363 = vmatprep.subr.mxu0 0.0
      %8364 = vmatpush1.msra.mxu0 0.0
      %8365 = vmatprep.subr.mxu0 0.0
      %8366 = vmatpush1.msra.mxu0 0.0
      %8367 = vmatprep.subr.mxu0 0.0
      %8368 = vmatpush1.msra.mxu0 0.0
      %8369 = vmatprep.subr.mxu0 0.0
      %8370 = vmatpush1.msra.mxu0 0.0
      %8371 = vmatprep.subr.mxu0 0.0
      %8372 = vmatpush1.msra.mxu0 0.0
      %8373 = vmatprep.subr.mxu0 0.0
      %8374 = vmatpush1.msra.mxu0 0.0
      %8375 = vmatprep.subr.mxu0 0.0
      %8376 = vmatpush1.msra.mxu0 0.0
      %8377 = vmatprep.subr.mxu0 %v8212
      %8378 = vmatpush1.msra.mxu0 %v8211
      %8379 = vmatprep.subr.mxu0 %v8204
      %8380 = vmatpush1.msra.mxu0 %v8203
      %8381 = vmatprep.subr.mxu0 %v8196
      %8382 = vmatpush1.msra.mxu0 %v8195
      %8383 = vmatprep.subr.mxu0 %v8188
      %8384 = vmatpush1.msra.mxu0 %v8187
      %8385 = vmatprep.subr.mxu0 %v8180
      %8386 = vmatpush1.msra.mxu0 %v8179
      %8387 = vmatprep.subr.mxu0 %v8172
      %8388 = vmatpush1.msra.mxu0 %v8171
      %8389 = vmatprep.subr.mxu0 %v8164
      %8390 = vmatpush1.msra.mxu0 %v8163
      %8391 = vmatprep.subr.mxu0 %v8156
      %8392 = vmatpush1.msra.mxu0 %v8155
      %8393 = vmatprep.subr.mxu0 0.0
      %8394 = vmatpush2.msra.mxu0 0.0
      %8395 = vmatprep.subr.mxu0 0.0
      %8396 = vmatpush2.msra.mxu0 0.0
      %8397 = vmatprep.subr.mxu0 0.0
      %8398 = vmatpush2.msra.mxu0 0.0
      %8399 = vmatprep.subr.mxu0 0.0
      %8400 = vmatpush2.msra.mxu0 0.0
      %8401 = vmatprep.subr.mxu0 0.0
      %8402 = vmatpush2.msra.mxu0 0.0
      %8403 = vmatprep.subr.mxu0 0.0
      %8404 = vmatpush2.msra.mxu0 0.0
      %8405 = vmatprep.subr.mxu0 0.0
      %8406 = vmatpush2.msra.mxu0 0.0
      %8407 = vmatprep.subr.mxu0 0.0
      %8408 = vmatpush2.msra.mxu0 0.0
      %8409 = vmatprep.subr.mxu0 0.0
      %8410 = vmatpush2.msra.mxu0 0.0
      %8411 = vmatprep.subr.mxu0 0.0
      %8412 = vmatpush2.msra.mxu0 0.0
      %8413 = vmatprep.subr.mxu0 0.0
      %8414 = vmatpush2.msra.mxu0 0.0
      %8415 = vmatprep.subr.mxu0 0.0
      %8416 = vmatpush2.msra.mxu0 0.0
      %8417 = vmatprep.subr.mxu0 0.0
      %8418 = vmatpush2.msra.mxu0 0.0
      %8419 = vmatprep.subr.mxu0 0.0
      %8420 = vmatpush2.msra.mxu0 0.0
      %8421 = vmatprep.subr.mxu0 0.0
      %8422 = vmatpush2.msra.mxu0 0.0
      %8423 = vmatprep.subr.mxu0 0.0
      %8424 = vmatpush2.msra.mxu0 0.0
      %8425 = vmatprep.mubr.f32.mxu0 0.0
      %8426 = vmatmul.mubr.f32.gmra.mxu0 %v8217
      %v8427 = vpop.f32.mrf.mxu0
      %v8428 = vadd.f32 0.0, %v8427
      %v8429 = vpop.f32.mrf.mxu0
      %v8430 = vadd.f32 0.0, %v8429
      %8431 = vdwg.mxu0
      %8432 = vmatprep.subr.mxu0 0.0
      %8433 = vmatpush1.msra.mxu0 0.0
      %8434 = vmatprep.subr.mxu0 0.0
      %8435 = vmatpush1.msra.mxu0 0.0
      %8436 = vmatprep.subr.mxu0 0.0
      %8437 = vmatpush1.msra.mxu0 0.0
      %8438 = vmatprep.subr.mxu0 0.0
      %8439 = vmatpush1.msra.mxu0 0.0
      %8440 = vmatprep.subr.mxu0 0.0
      %8441 = vmatpush1.msra.mxu0 0.0
      %8442 = vmatprep.subr.mxu0 0.0
      %8443 = vmatpush1.msra.mxu0 0.0
      %8444 = vmatprep.subr.mxu0 0.0
      %8445 = vmatpush1.msra.mxu0 0.0
      %8446 = vmatprep.subr.mxu0 0.0
      %8447 = vmatpush1.msra.mxu0 0.0
      %8448 = vmatprep.subr.mxu0 %v8214
      %8449 = vmatpush1.msra.mxu0 %v8213
      %8450 = vmatprep.subr.mxu0 %v8206
      %8451 = vmatpush1.msra.mxu0 %v8205
      %8452 = vmatprep.subr.mxu0 %v8198
      %8453 = vmatpush1.msra.mxu0 %v8197
      %8454 = vmatprep.subr.mxu0 %v8190
      %8455 = vmatpush1.msra.mxu0 %v8189
      %8456 = vmatprep.subr.mxu0 %v8182
      %8457 = vmatpush1.msra.mxu0 %v8181
      %8458 = vmatprep.subr.mxu0 %v8174
      %8459 = vmatpush1.msra.mxu0 %v8173
      %8460 = vmatprep.subr.mxu0 %v8166
      %8461 = vmatpush1.msra.mxu0 %v8165
      %8462 = vmatprep.subr.mxu0 %v8158
      %8463 = vmatpush1.msra.mxu0 %v8157
      %8464 = vmatprep.subr.mxu0 0.0
      %8465 = vmatpush2.msra.mxu0 0.0
      %8466 = vmatprep.subr.mxu0 0.0
      %8467 = vmatpush2.msra.mxu0 0.0
      %8468 = vmatprep.subr.mxu0 0.0
      %8469 = vmatpush2.msra.mxu0 0.0
      %8470 = vmatprep.subr.mxu0 0.0
      %8471 = vmatpush2.msra.mxu0 0.0
      %8472 = vmatprep.subr.mxu0 0.0
      %8473 = vmatpush2.msra.mxu0 0.0
      %8474 = vmatprep.subr.mxu0 0.0
      %8475 = vmatpush2.msra.mxu0 0.0
      %8476 = vmatprep.subr.mxu0 0.0
      %8477 = vmatpush2.msra.mxu0 0.0
      %8478 = vmatprep.subr.mxu0 0.0
      %8479 = vmatpush2.msra.mxu0 0.0
      %8480 = vmatprep.subr.mxu0 0.0
      %8481 = vmatpush2.msra.mxu0 0.0
      %8482 = vmatprep.subr.mxu0 0.0
      %8483 = vmatpush2.msra.mxu0 0.0
      %8484 = vmatprep.subr.mxu0 0.0
      %8485 = vmatpush2.msra.mxu0 0.0
      %8486 = vmatprep.subr.mxu0 0.0
      %8487 = vmatpush2.msra.mxu0 0.0
      %8488 = vmatprep.subr.mxu0 0.0
      %8489 = vmatpush2.msra.mxu0 0.0
      %8490 = vmatprep.subr.mxu0 0.0
      %8491 = vmatpush2.msra.mxu0 0.0
      %8492 = vmatprep.subr.mxu0 0.0
      %8493 = vmatpush2.msra.mxu0 0.0
      %8494 = vmatprep.subr.mxu0 0.0
      %8495 = vmatpush2.msra.mxu0 0.0
      %8496 = vmatprep.mubr.f32.mxu0 0.0
      %8497 = vmatmul.mubr.f32.gmra.mxu0 %v8217
      %v8498 = vpop.f32.mrf.mxu0
      %v8499 = vadd.f32 0.0, %v8498
      %v8500 = vpop.f32.mrf.mxu0
      %v8501 = vadd.f32 0.0, %v8500
      %8502 = vdwg.mxu0
      %v8503 = vld [vmem:[%s772] sm:$0xff]
      %v8504 = vld [vmem:[%s772 + $0x8] sm:$0xff]
      %v8505 = vld [vmem:[%s772 + $0x10] sm:$0xff]
      %v8506 = vld [vmem:[%s772 + $0x18] sm:$0xff]
      %v8507 = vld [vmem:[%s772 + $0x20] sm:$0xff]
      %v8508 = vld [vmem:[%s772 + $0x28] sm:$0xff]
      %v8509 = vld [vmem:[%s772 + $0x30] sm:$0xff]
      %v8510 = vld [vmem:[%s772 + $0x38] sm:$0xff]
      %v8511 = vadd.f32 %v7142, %v8286
      %v8512 = vadd.f32 %v7143, %v8288
      %v8513 = vadd.f32 %v7144, %v8357
      %v8514 = vadd.f32 %v7145, %v8359
      %v8515 = vadd.f32 %v7146, %v8428
      %v8516 = vadd.f32 %v7147, %v8430
      %v8517 = vadd.f32 %v7148, %v8499
      %v8518 = vadd.f32 %v7149, %v8501
      %v8520 = vsel %vm7158, %v8503, 0
      %v8523 = vsel %vm7158, %v8504, 0
      %v8526 = vsel %vm7158, %v8505, 0
      %v8529 = vsel %vm7158, %v8506, 0
      %v8532 = vsel %vm7158, %v8507, 0
      %v8535 = vsel %vm7158, %v8508, 0
      %v8538 = vsel %vm7158, %v8509, 0
      %v8541 = vsel %vm7158, %v8510, 0
      %v8544 = vsel %vm2015, %v8511, 0
      %v8547 = vsel %vm2015, %v8512, 0
      %v8550 = vsel %vm2015, %v8513, 0
      %v8553 = vsel %vm2015, %v8514, 0
      %v8556 = vsel %vm2015, %v8515, 0
      %v8559 = vsel %vm2015, %v8516, 0
      %v8562 = vsel %vm2015, %v8517, 0
      %v8565 = vsel %vm2015, %v8518, 0
      %8567 = vmatprep.subr.mxu0 0.0
      %8568 = vmatpush1.msra.mxu0 0.0
      %8569 = vmatprep.subr.mxu0 0.0
      %8570 = vmatpush1.msra.mxu0 0.0
      %8571 = vmatprep.subr.mxu0 0.0
      %8572 = vmatpush1.msra.mxu0 0.0
      %8573 = vmatprep.subr.mxu0 0.0
      %8574 = vmatpush1.msra.mxu0 0.0
      %8575 = vmatprep.subr.mxu0 0.0
      %8576 = vmatpush1.msra.mxu0 0.0
      %8577 = vmatprep.subr.mxu0 0.0
      %8578 = vmatpush1.msra.mxu0 0.0
      %8579 = vmatprep.subr.mxu0 0.0
      %8580 = vmatpush1.msra.mxu0 0.0
      %8581 = vmatprep.subr.mxu0 0.0
      %8582 = vmatpush1.msra.mxu0 0.0
      %8583 = vmatprep.subr.mxu0 0.0
      %8584 = vmatpush1.msra.mxu0 0.0
      %8585 = vmatprep.subr.mxu0 0.0
      %8586 = vmatpush1.msra.mxu0 0.0
      %8587 = vmatprep.subr.mxu0 0.0
      %8588 = vmatpush1.msra.mxu0 0.0
      %8589 = vmatprep.subr.mxu0 0.0
      %8590 = vmatpush1.msra.mxu0 0.0
      %8591 = vmatprep.subr.mxu0 0.0
      %8592 = vmatpush1.msra.mxu0 0.0
      %8593 = vmatprep.subr.mxu0 0.0
      %8594 = vmatpush1.msra.mxu0 0.0
      %8595 = vmatprep.subr.mxu0 0.0
      %8596 = vmatpush1.msra.mxu0 0.0
      %8597 = vmatprep.subr.mxu0 %v8547
      %8598 = vmatpush1.msra.mxu0 %v8544
      %8599 = vmatprep.subr.mxu0 0.0
      %8600 = vmatpush2.msra.mxu0 0.0
      %8601 = vmatprep.subr.mxu0 0.0
      %8602 = vmatpush2.msra.mxu0 0.0
      %8603 = vmatprep.subr.mxu0 0.0
      %8604 = vmatpush2.msra.mxu0 0.0
      %8605 = vmatprep.subr.mxu0 0.0
      %8606 = vmatpush2.msra.mxu0 0.0
      %8607 = vmatprep.subr.mxu0 0.0
      %8608 = vmatpush2.msra.mxu0 0.0
      %8609 = vmatprep.subr.mxu0 0.0
      %8610 = vmatpush2.msra.mxu0 0.0
      %8611 = vmatprep.subr.mxu0 0.0
      %8612 = vmatpush2.msra.mxu0 0.0
      %8613 = vmatprep.subr.mxu0 0.0
      %8614 = vmatpush2.msra.mxu0 0.0
      %8615 = vmatprep.subr.mxu0 0.0
      %8616 = vmatpush2.msra.mxu0 0.0
      %8617 = vmatprep.subr.mxu0 0.0
      %8618 = vmatpush2.msra.mxu0 0.0
      %8619 = vmatprep.subr.mxu0 0.0
      %8620 = vmatpush2.msra.mxu0 0.0
      %8621 = vmatprep.subr.mxu0 0.0
      %8622 = vmatpush2.msra.mxu0 0.0
      %8623 = vmatprep.subr.mxu0 0.0
      %8624 = vmatpush2.msra.mxu0 0.0
      %8625 = vmatprep.subr.mxu0 0.0
      %8626 = vmatpush2.msra.mxu0 0.0
      %8627 = vmatprep.subr.mxu0 0.0
      %8628 = vmatpush2.msra.mxu0 0.0
      %8629 = vmatprep.subr.mxu0 0.0
      %8630 = vmatpush2.msra.mxu0 0.0
      %8631 = vmatprep.mubr.f32.mxu0 0.0
      %8632 = vmatmul.mubr.f32.gmra.mxu0 %v8520
      %v8633 = vpop.f32.mrf.mxu0
      %v8634 = vadd.f32 0.0, %v8633
      %v8635 = vpop.f32.mrf.mxu0
      %v8636 = vadd.f32 0.0, %v8635
      %8637 = vmatprep.mubr.f32.mxu0 0.0
      %8638 = vmatmul.mubr.f32.gmra.mxu0 %v8523
      %v8639 = vpop.f32.mrf.mxu0
      %v8640 = vadd.f32 0.0, %v8639
      %v8641 = vpop.f32.mrf.mxu0
      %v8642 = vadd.f32 0.0, %v8641
      %8643 = vmatprep.mubr.f32.mxu0 0.0
      %8644 = vmatmul.mubr.f32.gmra.mxu0 %v8526
      %v8645 = vpop.f32.mrf.mxu0
      %v8646 = vadd.f32 0.0, %v8645
      %v8647 = vpop.f32.mrf.mxu0
      %v8648 = vadd.f32 0.0, %v8647
      %8649 = vmatprep.mubr.f32.mxu0 0.0
      %8650 = vmatmul.mubr.f32.gmra.mxu0 %v8529
      %v8651 = vpop.f32.mrf.mxu0
      %v8652 = vadd.f32 0.0, %v8651
      %v8653 = vpop.f32.mrf.mxu0
      %v8654 = vadd.f32 0.0, %v8653
      %8655 = vmatprep.mubr.f32.mxu0 0.0
      %8656 = vmatmul.mubr.f32.gmra.mxu0 %v8532
      %v8657 = vpop.f32.mrf.mxu0
      %v8658 = vadd.f32 0.0, %v8657
      %v8659 = vpop.f32.mrf.mxu0
      %v8660 = vadd.f32 0.0, %v8659
      %8661 = vmatprep.mubr.f32.mxu0 0.0
      %8662 = vmatmul.mubr.f32.gmra.mxu0 %v8535
      %v8663 = vpop.f32.mrf.mxu0
      %v8664 = vadd.f32 0.0, %v8663
      %v8665 = vpop.f32.mrf.mxu0
      %v8666 = vadd.f32 0.0, %v8665
      %8667 = vmatprep.mubr.f32.mxu0 0.0
      %8668 = vmatmul.mubr.f32.gmra.mxu0 %v8538
      %v8669 = vpop.f32.mrf.mxu0
      %v8670 = vadd.f32 0.0, %v8669
      %v8671 = vpop.f32.mrf.mxu0
      %v8672 = vadd.f32 0.0, %v8671
      %8673 = vmatprep.mubr.f32.mxu0 0.0
      %8674 = vmatmul.mubr.f32.gmra.mxu0 %v8541
      %v8675 = vpop.f32.mrf.mxu0
      %v8676 = vadd.f32 0.0, %v8675
      %v8677 = vpop.f32.mrf.mxu0
      %v8678 = vadd.f32 0.0, %v8677
      %8679 = vdwg.mxu0
      %8680 = vmatprep.subr.mxu0 0.0
      %8681 = vmatpush1.msra.mxu0 0.0
      %8682 = vmatprep.subr.mxu0 0.0
      %8683 = vmatpush1.msra.mxu0 0.0
      %8684 = vmatprep.subr.mxu0 0.0
      %8685 = vmatpush1.msra.mxu0 0.0
      %8686 = vmatprep.subr.mxu0 0.0
      %8687 = vmatpush1.msra.mxu0 0.0
      %8688 = vmatprep.subr.mxu0 0.0
      %8689 = vmatpush1.msra.mxu0 0.0
      %8690 = vmatprep.subr.mxu0 0.0
      %8691 = vmatpush1.msra.mxu0 0.0
      %8692 = vmatprep.subr.mxu0 0.0
      %8693 = vmatpush1.msra.mxu0 0.0
      %8694 = vmatprep.subr.mxu0 0.0
      %8695 = vmatpush1.msra.mxu0 0.0
      %8696 = vmatprep.subr.mxu0 0.0
      %8697 = vmatpush1.msra.mxu0 0.0
      %8698 = vmatprep.subr.mxu0 0.0
      %8699 = vmatpush1.msra.mxu0 0.0
      %8700 = vmatprep.subr.mxu0 0.0
      %8701 = vmatpush1.msra.mxu0 0.0
      %8702 = vmatprep.subr.mxu0 0.0
      %8703 = vmatpush1.msra.mxu0 0.0
      %8704 = vmatprep.subr.mxu0 0.0
      %8705 = vmatpush1.msra.mxu0 0.0
      %8706 = vmatprep.subr.mxu0 0.0
      %8707 = vmatpush1.msra.mxu0 0.0
      %8708 = vmatprep.subr.mxu0 0.0
      %8709 = vmatpush1.msra.mxu0 0.0
      %8710 = vmatprep.subr.mxu0 %v8553
      %8711 = vmatpush1.msra.mxu0 %v8550
      %8712 = vmatprep.subr.mxu0 0.0
      %8713 = vmatpush2.msra.mxu0 0.0
      %8714 = vmatprep.subr.mxu0 0.0
      %8715 = vmatpush2.msra.mxu0 0.0
      %8716 = vmatprep.subr.mxu0 0.0
      %8717 = vmatpush2.msra.mxu0 0.0
      %8718 = vmatprep.subr.mxu0 0.0
      %8719 = vmatpush2.msra.mxu0 0.0
      %8720 = vmatprep.subr.mxu0 0.0
      %8721 = vmatpush2.msra.mxu0 0.0
      %8722 = vmatprep.subr.mxu0 0.0
      %8723 = vmatpush2.msra.mxu0 0.0
      %8724 = vmatprep.subr.mxu0 0.0
      %8725 = vmatpush2.msra.mxu0 0.0
      %8726 = vmatprep.subr.mxu0 0.0
      %8727 = vmatpush2.msra.mxu0 0.0
      %8728 = vmatprep.subr.mxu0 0.0
      %8729 = vmatpush2.msra.mxu0 0.0
      %8730 = vmatprep.subr.mxu0 0.0
      %8731 = vmatpush2.msra.mxu0 0.0
      %8732 = vmatprep.subr.mxu0 0.0
      %8733 = vmatpush2.msra.mxu0 0.0
      %8734 = vmatprep.subr.mxu0 0.0
      %8735 = vmatpush2.msra.mxu0 0.0
      %8736 = vmatprep.subr.mxu0 0.0
      %8737 = vmatpush2.msra.mxu0 0.0
      %8738 = vmatprep.subr.mxu0 0.0
      %8739 = vmatpush2.msra.mxu0 0.0
      %8740 = vmatprep.subr.mxu0 0.0
      %8741 = vmatpush2.msra.mxu0 0.0
      %8742 = vmatprep.subr.mxu0 0.0
      %8743 = vmatpush2.msra.mxu0 0.0
      %8744 = vmatprep.mubr.f32.mxu0 0.0
      %8745 = vmatmul.mubr.f32.gmra.mxu0 %v8520
      %v8746 = vpop.f32.mrf.mxu0
      %v8747 = vadd.f32 0.0, %v8746
      %v8748 = vpop.f32.mrf.mxu0
      %v8749 = vadd.f32 0.0, %v8748
      %8750 = vmatprep.mubr.f32.mxu0 0.0
      %8751 = vmatmul.mubr.f32.gmra.mxu0 %v8523
      %v8752 = vpop.f32.mrf.mxu0
      %v8753 = vadd.f32 0.0, %v8752
      %v8754 = vpop.f32.mrf.mxu0
      %v8755 = vadd.f32 0.0, %v8754
      %8756 = vmatprep.mubr.f32.mxu0 0.0
      %8757 = vmatmul.mubr.f32.gmra.mxu0 %v8526
      %v8758 = vpop.f32.mrf.mxu0
      %v8759 = vadd.f32 0.0, %v8758
      %v8760 = vpop.f32.mrf.mxu0
      %v8761 = vadd.f32 0.0, %v8760
      %8762 = vmatprep.mubr.f32.mxu0 0.0
      %8763 = vmatmul.mubr.f32.gmra.mxu0 %v8529
      %v8764 = vpop.f32.mrf.mxu0
      %v8765 = vadd.f32 0.0, %v8764
      %v8766 = vpop.f32.mrf.mxu0
      %v8767 = vadd.f32 0.0, %v8766
      %8768 = vmatprep.mubr.f32.mxu0 0.0
      %8769 = vmatmul.mubr.f32.gmra.mxu0 %v8532
      %v8770 = vpop.f32.mrf.mxu0
      %v8771 = vadd.f32 0.0, %v8770
      %v8772 = vpop.f32.mrf.mxu0
      %v8773 = vadd.f32 0.0, %v8772
      %8774 = vmatprep.mubr.f32.mxu0 0.0
      %8775 = vmatmul.mubr.f32.gmra.mxu0 %v8535
      %v8776 = vpop.f32.mrf.mxu0
      %v8777 = vadd.f32 0.0, %v8776
      %v8778 = vpop.f32.mrf.mxu0
      %v8779 = vadd.f32 0.0, %v8778
      %8780 = vmatprep.mubr.f32.mxu0 0.0
      %8781 = vmatmul.mubr.f32.gmra.mxu0 %v8538
      %v8782 = vpop.f32.mrf.mxu0
      %v8783 = vadd.f32 0.0, %v8782
      %v8784 = vpop.f32.mrf.mxu0
      %v8785 = vadd.f32 0.0, %v8784
      %8786 = vmatprep.mubr.f32.mxu0 0.0
      %8787 = vmatmul.mubr.f32.gmra.mxu0 %v8541
      %v8788 = vpop.f32.mrf.mxu0
      %v8789 = vadd.f32 0.0, %v8788
      %v8790 = vpop.f32.mrf.mxu0
      %v8791 = vadd.f32 0.0, %v8790
      %8792 = vdwg.mxu0
      %8793 = vmatprep.subr.mxu0 0.0
      %8794 = vmatpush1.msra.mxu0 0.0
      %8795 = vmatprep.subr.mxu0 0.0
      %8796 = vmatpush1.msra.mxu0 0.0
      %8797 = vmatprep.subr.mxu0 0.0
      %8798 = vmatpush1.msra.mxu0 0.0
      %8799 = vmatprep.subr.mxu0 0.0
      %8800 = vmatpush1.msra.mxu0 0.0
      %8801 = vmatprep.subr.mxu0 0.0
      %8802 = vmatpush1.msra.mxu0 0.0
      %8803 = vmatprep.subr.mxu0 0.0
      %8804 = vmatpush1.msra.mxu0 0.0
      %8805 = vmatprep.subr.mxu0 0.0
      %8806 = vmatpush1.msra.mxu0 0.0
      %8807 = vmatprep.subr.mxu0 0.0
      %8808 = vmatpush1.msra.mxu0 0.0
      %8809 = vmatprep.subr.mxu0 0.0
      %8810 = vmatpush1.msra.mxu0 0.0
      %8811 = vmatprep.subr.mxu0 0.0
      %8812 = vmatpush1.msra.mxu0 0.0
      %8813 = vmatprep.subr.mxu0 0.0
      %8814 = vmatpush1.msra.mxu0 0.0
      %8815 = vmatprep.subr.mxu0 0.0
      %8816 = vmatpush1.msra.mxu0 0.0
      %8817 = vmatprep.subr.mxu0 0.0
      %8818 = vmatpush1.msra.mxu0 0.0
      %8819 = vmatprep.subr.mxu0 0.0
      %8820 = vmatpush1.msra.mxu0 0.0
      %8821 = vmatprep.subr.mxu0 0.0
      %8822 = vmatpush1.msra.mxu0 0.0
      %8823 = vmatprep.subr.mxu0 %v8559
      %8824 = vmatpush1.msra.mxu0 %v8556
      %8825 = vmatprep.subr.mxu0 0.0
      %8826 = vmatpush2.msra.mxu0 0.0
      %8827 = vmatprep.subr.mxu0 0.0
      %8828 = vmatpush2.msra.mxu0 0.0
      %8829 = vmatprep.subr.mxu0 0.0
      %8830 = vmatpush2.msra.mxu0 0.0
      %8831 = vmatprep.subr.mxu0 0.0
      %8832 = vmatpush2.msra.mxu0 0.0
      %8833 = vmatprep.subr.mxu0 0.0
      %8834 = vmatpush2.msra.mxu0 0.0
      %8835 = vmatprep.subr.mxu0 0.0
      %8836 = vmatpush2.msra.mxu0 0.0
      %8837 = vmatprep.subr.mxu0 0.0
      %8838 = vmatpush2.msra.mxu0 0.0
      %8839 = vmatprep.subr.mxu0 0.0
      %8840 = vmatpush2.msra.mxu0 0.0
      %8841 = vmatprep.subr.mxu0 0.0
      %8842 = vmatpush2.msra.mxu0 0.0
      %8843 = vmatprep.subr.mxu0 0.0
      %8844 = vmatpush2.msra.mxu0 0.0
      %8845 = vmatprep.subr.mxu0 0.0
      %8846 = vmatpush2.msra.mxu0 0.0
      %8847 = vmatprep.subr.mxu0 0.0
      %8848 = vmatpush2.msra.mxu0 0.0
      %8849 = vmatprep.subr.mxu0 0.0
      %8850 = vmatpush2.msra.mxu0 0.0
      %8851 = vmatprep.subr.mxu0 0.0
      %8852 = vmatpush2.msra.mxu0 0.0
      %8853 = vmatprep.subr.mxu0 0.0
      %8854 = vmatpush2.msra.mxu0 0.0
      %8855 = vmatprep.subr.mxu0 0.0
      %8856 = vmatpush2.msra.mxu0 0.0
      %8857 = vmatprep.mubr.f32.mxu0 0.0
      %8858 = vmatmul.mubr.f32.gmra.mxu0 %v8520
      %v8859 = vpop.f32.mrf.mxu0
      %v8860 = vadd.f32 0.0, %v8859
      %v8861 = vpop.f32.mrf.mxu0
      %v8862 = vadd.f32 0.0, %v8861
      %8863 = vmatprep.mubr.f32.mxu0 0.0
      %8864 = vmatmul.mubr.f32.gmra.mxu0 %v8523
      %v8865 = vpop.f32.mrf.mxu0
      %v8866 = vadd.f32 0.0, %v8865
      %v8867 = vpop.f32.mrf.mxu0
      %v8868 = vadd.f32 0.0, %v8867
      %8869 = vmatprep.mubr.f32.mxu0 0.0
      %8870 = vmatmul.mubr.f32.gmra.mxu0 %v8526
      %v8871 = vpop.f32.mrf.mxu0
      %v8872 = vadd.f32 0.0, %v8871
      %v8873 = vpop.f32.mrf.mxu0
      %v8874 = vadd.f32 0.0, %v8873
      %8875 = vmatprep.mubr.f32.mxu0 0.0
      %8876 = vmatmul.mubr.f32.gmra.mxu0 %v8529
      %v8877 = vpop.f32.mrf.mxu0
      %v8878 = vadd.f32 0.0, %v8877
      %v8879 = vpop.f32.mrf.mxu0
      %v8880 = vadd.f32 0.0, %v8879
      %8881 = vmatprep.mubr.f32.mxu0 0.0
      %8882 = vmatmul.mubr.f32.gmra.mxu0 %v8532
      %v8883 = vpop.f32.mrf.mxu0
      %v8884 = vadd.f32 0.0, %v8883
      %v8885 = vpop.f32.mrf.mxu0
      %v8886 = vadd.f32 0.0, %v8885
      %8887 = vmatprep.mubr.f32.mxu0 0.0
      %8888 = vmatmul.mubr.f32.gmra.mxu0 %v8535
      %v8889 = vpop.f32.mrf.mxu0
      %v8890 = vadd.f32 0.0, %v8889
      %v8891 = vpop.f32.mrf.mxu0
      %v8892 = vadd.f32 0.0, %v8891
      %8893 = vmatprep.mubr.f32.mxu0 0.0
      %8894 = vmatmul.mubr.f32.gmra.mxu0 %v8538
      %v8895 = vpop.f32.mrf.mxu0
      %v8896 = vadd.f32 0.0, %v8895
      %v8897 = vpop.f32.mrf.mxu0
      %v8898 = vadd.f32 0.0, %v8897
      %8899 = vmatprep.mubr.f32.mxu0 0.0
      %8900 = vmatmul.mubr.f32.gmra.mxu0 %v8541
      %v8901 = vpop.f32.mrf.mxu0
      %v8902 = vadd.f32 0.0, %v8901
      %v8903 = vpop.f32.mrf.mxu0
      %v8904 = vadd.f32 0.0, %v8903
      %8905 = vdwg.mxu0
      %8906 = vmatprep.subr.mxu0 0.0
      %8907 = vmatpush1.msra.mxu0 0.0
      %8908 = vmatprep.subr.mxu0 0.0
      %8909 = vmatpush1.msra.mxu0 0.0
      %8910 = vmatprep.subr.mxu0 0.0
      %8911 = vmatpush1.msra.mxu0 0.0
      %8912 = vmatprep.subr.mxu0 0.0
      %8913 = vmatpush1.msra.mxu0 0.0
      %8914 = vmatprep.subr.mxu0 0.0
      %8915 = vmatpush1.msra.mxu0 0.0
      %8916 = vmatprep.subr.mxu0 0.0
      %8917 = vmatpush1.msra.mxu0 0.0
      %8918 = vmatprep.subr.mxu0 0.0
      %8919 = vmatpush1.msra.mxu0 0.0
      %8920 = vmatprep.subr.mxu0 0.0
      %8921 = vmatpush1.msra.mxu0 0.0
      %8922 = vmatprep.subr.mxu0 0.0
      %8923 = vmatpush1.msra.mxu0 0.0
      %8924 = vmatprep.subr.mxu0 0.0
      %8925 = vmatpush1.msra.mxu0 0.0
      %8926 = vmatprep.subr.mxu0 0.0
      %8927 = vmatpush1.msra.mxu0 0.0
      %8928 = vmatprep.subr.mxu0 0.0
      %8929 = vmatpush1.msra.mxu0 0.0
      %8930 = vmatprep.subr.mxu0 0.0
      %8931 = vmatpush1.msra.mxu0 0.0
      %8932 = vmatprep.subr.mxu0 0.0
      %8933 = vmatpush1.msra.mxu0 0.0
      %8934 = vmatprep.subr.mxu0 0.0
      %8935 = vmatpush1.msra.mxu0 0.0
      %8936 = vmatprep.subr.mxu0 %v8565
      %8937 = vmatpush1.msra.mxu0 %v8562
      %8938 = vmatprep.subr.mxu0 0.0
      %8939 = vmatpush2.msra.mxu0 0.0
      %8940 = vmatprep.subr.mxu0 0.0
      %8941 = vmatpush2.msra.mxu0 0.0
      %8942 = vmatprep.subr.mxu0 0.0
      %8943 = vmatpush2.msra.mxu0 0.0
      %8944 = vmatprep.subr.mxu0 0.0
      %8945 = vmatpush2.msra.mxu0 0.0
      %8946 = vmatprep.subr.mxu0 0.0
      %8947 = vmatpush2.msra.mxu0 0.0
      %8948 = vmatprep.subr.mxu0 0.0
      %8949 = vmatpush2.msra.mxu0 0.0
      %8950 = vmatprep.subr.mxu0 0.0
      %8951 = vmatpush2.msra.mxu0 0.0
      %8952 = vmatprep.subr.mxu0 0.0
      %8953 = vmatpush2.msra.mxu0 0.0
      %8954 = vmatprep.subr.mxu0 0.0
      %8955 = vmatpush2.msra.mxu0 0.0
      %8956 = vmatprep.subr.mxu0 0.0
      %8957 = vmatpush2.msra.mxu0 0.0
      %8958 = vmatprep.subr.mxu0 0.0
      %8959 = vmatpush2.msra.mxu0 0.0
      %8960 = vmatprep.subr.mxu0 0.0
      %8961 = vmatpush2.msra.mxu0 0.0
      %8962 = vmatprep.subr.mxu0 0.0
      %8963 = vmatpush2.msra.mxu0 0.0
      %8964 = vmatprep.subr.mxu0 0.0
      %8965 = vmatpush2.msra.mxu0 0.0
      %8966 = vmatprep.subr.mxu0 0.0
      %8967 = vmatpush2.msra.mxu0 0.0
      %8968 = vmatprep.subr.mxu0 0.0
      %8969 = vmatpush2.msra.mxu0 0.0
      %8970 = vmatprep.mubr.f32.mxu0 0.0
      %8971 = vmatmul.mubr.f32.gmra.mxu0 %v8520
      %v8972 = vpop.f32.mrf.mxu0
      %v8973 = vadd.f32 0.0, %v8972
      %v8974 = vpop.f32.mrf.mxu0
      %v8975 = vadd.f32 0.0, %v8974
      %8976 = vmatprep.mubr.f32.mxu0 0.0
      %8977 = vmatmul.mubr.f32.gmra.mxu0 %v8523
      %v8978 = vpop.f32.mrf.mxu0
      %v8979 = vadd.f32 0.0, %v8978
      %v8980 = vpop.f32.mrf.mxu0
      %v8981 = vadd.f32 0.0, %v8980
      %8982 = vmatprep.mubr.f32.mxu0 0.0
      %8983 = vmatmul.mubr.f32.gmra.mxu0 %v8526
      %v8984 = vpop.f32.mrf.mxu0
      %v8985 = vadd.f32 0.0, %v8984
      %v8986 = vpop.f32.mrf.mxu0
      %v8987 = vadd.f32 0.0, %v8986
      %8988 = vmatprep.mubr.f32.mxu0 0.0
      %8989 = vmatmul.mubr.f32.gmra.mxu0 %v8529
      %v8990 = vpop.f32.mrf.mxu0
      %v8991 = vadd.f32 0.0, %v8990
      %v8992 = vpop.f32.mrf.mxu0
      %v8993 = vadd.f32 0.0, %v8992
      %8994 = vmatprep.mubr.f32.mxu0 0.0
      %8995 = vmatmul.mubr.f32.gmra.mxu0 %v8532
      %v8996 = vpop.f32.mrf.mxu0
      %v8997 = vadd.f32 0.0, %v8996
      %v8998 = vpop.f32.mrf.mxu0
      %v8999 = vadd.f32 0.0, %v8998
      %9000 = vmatprep.mubr.f32.mxu0 0.0
      %9001 = vmatmul.mubr.f32.gmra.mxu0 %v8535
      %v9002 = vpop.f32.mrf.mxu0
      %v9003 = vadd.f32 0.0, %v9002
      %v9004 = vpop.f32.mrf.mxu0
      %v9005 = vadd.f32 0.0, %v9004
      %9006 = vmatprep.mubr.f32.mxu0 0.0
      %9007 = vmatmul.mubr.f32.gmra.mxu0 %v8538
      %v9008 = vpop.f32.mrf.mxu0
      %v9009 = vadd.f32 0.0, %v9008
      %v9010 = vpop.f32.mrf.mxu0
      %v9011 = vadd.f32 0.0, %v9010
      %9012 = vmatprep.mubr.f32.mxu0 0.0
      %9013 = vmatmul.mubr.f32.gmra.mxu0 %v8541
      %v9014 = vpop.f32.mrf.mxu0
      %v9015 = vadd.f32 0.0, %v9014
      %v9016 = vpop.f32.mrf.mxu0
      %v9017 = vadd.f32 0.0, %v9016
      %9018 = vdwg.mxu0
      %v9019 = vmax.f32 %v8634, 0.0
      %v9020 = vmax.f32 %v8636, 0.0
      %v9021 = vmax.f32 %v8747, 0.0
      %v9022 = vmax.f32 %v8749, 0.0
      %v9023 = vmax.f32 %v8860, 0.0
      %v9024 = vmax.f32 %v8862, 0.0
      %v9025 = vmax.f32 %v8973, 0.0
      %v9026 = vmax.f32 %v8975, 0.0
      %v9027 = vmax.f32 %v8640, 0.0
      %v9028 = vmax.f32 %v8642, 0.0
      %v9029 = vmax.f32 %v8753, 0.0
      %v9030 = vmax.f32 %v8755, 0.0
      %v9031 = vmax.f32 %v8866, 0.0
      %v9032 = vmax.f32 %v8868, 0.0
      %v9033 = vmax.f32 %v8979, 0.0
      %v9034 = vmax.f32 %v8981, 0.0
      %v9035 = vmax.f32 %v8646, 0.0
      %v9036 = vmax.f32 %v8648, 0.0
      %v9037 = vmax.f32 %v8759, 0.0
      %v9038 = vmax.f32 %v8761, 0.0
      %v9039 = vmax.f32 %v8872, 0.0
      %v9040 = vmax.f32 %v8874, 0.0
      %v9041 = vmax.f32 %v8985, 0.0
      %v9042 = vmax.f32 %v8987, 0.0
      %v9043 = vmax.f32 %v8652, 0.0
      %v9044 = vmax.f32 %v8654, 0.0
      %v9045 = vmax.f32 %v8765, 0.0
      %v9046 = vmax.f32 %v8767, 0.0
      %v9047 = vmax.f32 %v8878, 0.0
      %v9048 = vmax.f32 %v8880, 0.0
      %v9049 = vmax.f32 %v8991, 0.0
      %v9050 = vmax.f32 %v8993, 0.0
      %v9051 = vmax.f32 %v8658, 0.0
      %v9052 = vmax.f32 %v8660, 0.0
      %v9053 = vmax.f32 %v8771, 0.0
      %v9054 = vmax.f32 %v8773, 0.0
      %v9055 = vmax.f32 %v8884, 0.0
      %v9056 = vmax.f32 %v8886, 0.0
      %v9057 = vmax.f32 %v8997, 0.0
      %v9058 = vmax.f32 %v8999, 0.0
      %v9059 = vmax.f32 %v8664, 0.0
      %v9060 = vmax.f32 %v8666, 0.0
      %v9061 = vmax.f32 %v8777, 0.0
      %v9062 = vmax.f32 %v8779, 0.0
      %v9063 = vmax.f32 %v8890, 0.0
      %v9064 = vmax.f32 %v8892, 0.0
      %v9065 = vmax.f32 %v9003, 0.0
      %v9066 = vmax.f32 %v9005, 0.0
      %v9067 = vmax.f32 %v8670, 0.0
      %v9068 = vmax.f32 %v8672, 0.0
      %v9069 = vmax.f32 %v8783, 0.0
      %v9070 = vmax.f32 %v8785, 0.0
      %v9071 = vmax.f32 %v8896, 0.0
      %v9072 = vmax.f32 %v8898, 0.0
      %v9073 = vmax.f32 %v9009, 0.0
      %v9074 = vmax.f32 %v9011, 0.0
      %v9075 = vmax.f32 %v8676, 0.0
      %v9076 = vmax.f32 %v8678, 0.0
      %v9077 = vmax.f32 %v8789, 0.0
      %v9078 = vmax.f32 %v8791, 0.0
      %v9079 = vmax.f32 %v8902, 0.0
      %v9080 = vmax.f32 %v8904, 0.0
      %v9081 = vmax.f32 %v9015, 0.0
      %v9082 = vmax.f32 %v9017, 0.0
      %v9083 = vld [vmem:[%s776] sm:$0xf]
      %v9085 = vsel %vm2556, %v9083, 0
      %9087 = vmatprep.subr.mxu0 0.0
      %9088 = vmatpush1.msra.mxu0 0.0
      %9089 = vmatprep.subr.mxu0 0.0
      %9090 = vmatpush1.msra.mxu0 0.0
      %9091 = vmatprep.subr.mxu0 0.0
      %9092 = vmatpush1.msra.mxu0 0.0
      %9093 = vmatprep.subr.mxu0 0.0
      %9094 = vmatpush1.msra.mxu0 0.0
      %9095 = vmatprep.subr.mxu0 0.0
      %9096 = vmatpush1.msra.mxu0 0.0
      %9097 = vmatprep.subr.mxu0 0.0
      %9098 = vmatpush1.msra.mxu0 0.0
      %9099 = vmatprep.subr.mxu0 0.0
      %9100 = vmatpush1.msra.mxu0 0.0
      %9101 = vmatprep.subr.mxu0 0.0
      %9102 = vmatpush1.msra.mxu0 0.0
      %9103 = vmatprep.subr.mxu0 %v9076
      %9104 = vmatpush1.msra.mxu0 %v9075
      %9105 = vmatprep.subr.mxu0 %v9068
      %9106 = vmatpush1.msra.mxu0 %v9067
      %9107 = vmatprep.subr.mxu0 %v9060
      %9108 = vmatpush1.msra.mxu0 %v9059
      %9109 = vmatprep.subr.mxu0 %v9052
      %9110 = vmatpush1.msra.mxu0 %v9051
      %9111 = vmatprep.subr.mxu0 %v9044
      %9112 = vmatpush1.msra.mxu0 %v9043
      %9113 = vmatprep.subr.mxu0 %v9036
      %9114 = vmatpush1.msra.mxu0 %v9035
      %9115 = vmatprep.subr.mxu0 %v9028
      %9116 = vmatpush1.msra.mxu0 %v9027
      %9117 = vmatprep.subr.mxu0 %v9020
      %9118 = vmatpush1.msra.mxu0 %v9019
      %9119 = vmatprep.subr.mxu0 0.0
      %9120 = vmatpush2.msra.mxu0 0.0
      %9121 = vmatprep.subr.mxu0 0.0
      %9122 = vmatpush2.msra.mxu0 0.0
      %9123 = vmatprep.subr.mxu0 0.0
      %9124 = vmatpush2.msra.mxu0 0.0
      %9125 = vmatprep.subr.mxu0 0.0
      %9126 = vmatpush2.msra.mxu0 0.0
      %9127 = vmatprep.subr.mxu0 0.0
      %9128 = vmatpush2.msra.mxu0 0.0
      %9129 = vmatprep.subr.mxu0 0.0
      %9130 = vmatpush2.msra.mxu0 0.0
      %9131 = vmatprep.subr.mxu0 0.0
      %9132 = vmatpush2.msra.mxu0 0.0
      %9133 = vmatprep.subr.mxu0 0.0
      %9134 = vmatpush2.msra.mxu0 0.0
      %9135 = vmatprep.subr.mxu0 0.0
      %9136 = vmatpush2.msra.mxu0 0.0
      %9137 = vmatprep.subr.mxu0 0.0
      %9138 = vmatpush2.msra.mxu0 0.0
      %9139 = vmatprep.subr.mxu0 0.0
      %9140 = vmatpush2.msra.mxu0 0.0
      %9141 = vmatprep.subr.mxu0 0.0
      %9142 = vmatpush2.msra.mxu0 0.0
      %9143 = vmatprep.subr.mxu0 0.0
      %9144 = vmatpush2.msra.mxu0 0.0
      %9145 = vmatprep.subr.mxu0 0.0
      %9146 = vmatpush2.msra.mxu0 0.0
      %9147 = vmatprep.subr.mxu0 0.0
      %9148 = vmatpush2.msra.mxu0 0.0
      %9149 = vmatprep.subr.mxu0 0.0
      %9150 = vmatpush2.msra.mxu0 0.0
      %9151 = vmatprep.mubr.f32.mxu0 0.0
      %9152 = vmatmul.mubr.f32.gmra.mxu0 %v9085
      %v9153 = vpop.f32.mrf.mxu0
      %v9154 = vadd.f32 0.0, %v9153
      %v9155 = vpop.f32.mrf.mxu0
      %v9156 = vadd.f32 0.0, %v9155
      %9157 = vdwg.mxu0
      %9158 = vmatprep.subr.mxu0 0.0
      %9159 = vmatpush1.msra.mxu0 0.0
      %9160 = vmatprep.subr.mxu0 0.0
      %9161 = vmatpush1.msra.mxu0 0.0
      %9162 = vmatprep.subr.mxu0 0.0
      %9163 = vmatpush1.msra.mxu0 0.0
      %9164 = vmatprep.subr.mxu0 0.0
      %9165 = vmatpush1.msra.mxu0 0.0
      %9166 = vmatprep.subr.mxu0 0.0
      %9167 = vmatpush1.msra.mxu0 0.0
      %9168 = vmatprep.subr.mxu0 0.0
      %9169 = vmatpush1.msra.mxu0 0.0
      %9170 = vmatprep.subr.mxu0 0.0
      %9171 = vmatpush1.msra.mxu0 0.0
      %9172 = vmatprep.subr.mxu0 0.0
      %9173 = vmatpush1.msra.mxu0 0.0
      %9174 = vmatprep.subr.mxu0 %v9078
      %9175 = vmatpush1.msra.mxu0 %v9077
      %9176 = vmatprep.subr.mxu0 %v9070
      %9177 = vmatpush1.msra.mxu0 %v9069
      %9178 = vmatprep.subr.mxu0 %v9062
      %9179 = vmatpush1.msra.mxu0 %v9061
      %9180 = vmatprep.subr.mxu0 %v9054
      %9181 = vmatpush1.msra.mxu0 %v9053
      %9182 = vmatprep.subr.mxu0 %v9046
      %9183 = vmatpush1.msra.mxu0 %v9045
      %9184 = vmatprep.subr.mxu0 %v9038
      %9185 = vmatpush1.msra.mxu0 %v9037
      %9186 = vmatprep.subr.mxu0 %v9030
      %9187 = vmatpush1.msra.mxu0 %v9029
      %9188 = vmatprep.subr.mxu0 %v9022
      %9189 = vmatpush1.msra.mxu0 %v9021
      %9190 = vmatprep.subr.mxu0 0.0
      %9191 = vmatpush2.msra.mxu0 0.0
      %9192 = vmatprep.subr.mxu0 0.0
      %9193 = vmatpush2.msra.mxu0 0.0
      %9194 = vmatprep.subr.mxu0 0.0
      %9195 = vmatpush2.msra.mxu0 0.0
      %9196 = vmatprep.subr.mxu0 0.0
      %9197 = vmatpush2.msra.mxu0 0.0
      %9198 = vmatprep.subr.mxu0 0.0
      %9199 = vmatpush2.msra.mxu0 0.0
      %9200 = vmatprep.subr.mxu0 0.0
      %9201 = vmatpush2.msra.mxu0 0.0
      %9202 = vmatprep.subr.mxu0 0.0
      %9203 = vmatpush2.msra.mxu0 0.0
      %9204 = vmatprep.subr.mxu0 0.0
      %9205 = vmatpush2.msra.mxu0 0.0
      %9206 = vmatprep.subr.mxu0 0.0
      %9207 = vmatpush2.msra.mxu0 0.0
      %9208 = vmatprep.subr.mxu0 0.0
      %9209 = vmatpush2.msra.mxu0 0.0
      %9210 = vmatprep.subr.mxu0 0.0
      %9211 = vmatpush2.msra.mxu0 0.0
      %9212 = vmatprep.subr.mxu0 0.0
      %9213 = vmatpush2.msra.mxu0 0.0
      %9214 = vmatprep.subr.mxu0 0.0
      %9215 = vmatpush2.msra.mxu0 0.0
      %9216 = vmatprep.subr.mxu0 0.0
      %9217 = vmatpush2.msra.mxu0 0.0
      %9218 = vmatprep.subr.mxu0 0.0
      %9219 = vmatpush2.msra.mxu0 0.0
      %9220 = vmatprep.subr.mxu0 0.0
      %9221 = vmatpush2.msra.mxu0 0.0
      %9222 = vmatprep.mubr.f32.mxu0 0.0
      %9223 = vmatmul.mubr.f32.gmra.mxu0 %v9085
      %v9224 = vpop.f32.mrf.mxu0
      %v9225 = vadd.f32 0.0, %v9224
      %v9226 = vpop.f32.mrf.mxu0
      %v9227 = vadd.f32 0.0, %v9226
      %9228 = vdwg.mxu0
      %9229 = vmatprep.subr.mxu0 0.0
      %9230 = vmatpush1.msra.mxu0 0.0
      %9231 = vmatprep.subr.mxu0 0.0
      %9232 = vmatpush1.msra.mxu0 0.0
      %9233 = vmatprep.subr.mxu0 0.0
      %9234 = vmatpush1.msra.mxu0 0.0
      %9235 = vmatprep.subr.mxu0 0.0
      %9236 = vmatpush1.msra.mxu0 0.0
      %9237 = vmatprep.subr.mxu0 0.0
      %9238 = vmatpush1.msra.mxu0 0.0
      %9239 = vmatprep.subr.mxu0 0.0
      %9240 = vmatpush1.msra.mxu0 0.0
      %9241 = vmatprep.subr.mxu0 0.0
      %9242 = vmatpush1.msra.mxu0 0.0
      %9243 = vmatprep.subr.mxu0 0.0
      %9244 = vmatpush1.msra.mxu0 0.0
      %9245 = vmatprep.subr.mxu0 %v9080
      %9246 = vmatpush1.msra.mxu0 %v9079
      %9247 = vmatprep.subr.mxu0 %v9072
      %9248 = vmatpush1.msra.mxu0 %v9071
      %9249 = vmatprep.subr.mxu0 %v9064
      %9250 = vmatpush1.msra.mxu0 %v9063
      %9251 = vmatprep.subr.mxu0 %v9056
      %9252 = vmatpush1.msra.mxu0 %v9055
      %9253 = vmatprep.subr.mxu0 %v9048
      %9254 = vmatpush1.msra.mxu0 %v9047
      %9255 = vmatprep.subr.mxu0 %v9040
      %9256 = vmatpush1.msra.mxu0 %v9039
      %9257 = vmatprep.subr.mxu0 %v9032
      %9258 = vmatpush1.msra.mxu0 %v9031
      %9259 = vmatprep.subr.mxu0 %v9024
      %9260 = vmatpush1.msra.mxu0 %v9023
      %9261 = vmatprep.subr.mxu0 0.0
      %9262 = vmatpush2.msra.mxu0 0.0
      %9263 = vmatprep.subr.mxu0 0.0
      %9264 = vmatpush2.msra.mxu0 0.0
      %9265 = vmatprep.subr.mxu0 0.0
      %9266 = vmatpush2.msra.mxu0 0.0
      %9267 = vmatprep.subr.mxu0 0.0
      %9268 = vmatpush2.msra.mxu0 0.0
      %9269 = vmatprep.subr.mxu0 0.0
      %9270 = vmatpush2.msra.mxu0 0.0
      %9271 = vmatprep.subr.mxu0 0.0
      %9272 = vmatpush2.msra.mxu0 0.0
      %9273 = vmatprep.subr.mxu0 0.0
      %9274 = vmatpush2.msra.mxu0 0.0
      %9275 = vmatprep.subr.mxu0 0.0
      %9276 = vmatpush2.msra.mxu0 0.0
      %9277 = vmatprep.subr.mxu0 0.0
      %9278 = vmatpush2.msra.mxu0 0.0
      %9279 = vmatprep.subr.mxu0 0.0
      %9280 = vmatpush2.msra.mxu0 0.0
      %9281 = vmatprep.subr.mxu0 0.0
      %9282 = vmatpush2.msra.mxu0 0.0
      %9283 = vmatprep.subr.mxu0 0.0
      %9284 = vmatpush2.msra.mxu0 0.0
      %9285 = vmatprep.subr.mxu0 0.0
      %9286 = vmatpush2.msra.mxu0 0.0
      %9287 = vmatprep.subr.mxu0 0.0
      %9288 = vmatpush2.msra.mxu0 0.0
      %9289 = vmatprep.subr.mxu0 0.0
      %9290 = vmatpush2.msra.mxu0 0.0
      %9291 = vmatprep.subr.mxu0 0.0
      %9292 = vmatpush2.msra.mxu0 0.0
      %9293 = vmatprep.mubr.f32.mxu0 0.0
      %9294 = vmatmul.mubr.f32.gmra.mxu0 %v9085
      %v9295 = vpop.f32.mrf.mxu0
      %v9296 = vadd.f32 0.0, %v9295
      %v9297 = vpop.f32.mrf.mxu0
      %v9298 = vadd.f32 0.0, %v9297
      %9299 = vdwg.mxu0
      %9300 = vmatprep.subr.mxu0 0.0
      %9301 = vmatpush1.msra.mxu0 0.0
      %9302 = vmatprep.subr.mxu0 0.0
      %9303 = vmatpush1.msra.mxu0 0.0
      %9304 = vmatprep.subr.mxu0 0.0
      %9305 = vmatpush1.msra.mxu0 0.0
      %9306 = vmatprep.subr.mxu0 0.0
      %9307 = vmatpush1.msra.mxu0 0.0
      %9308 = vmatprep.subr.mxu0 0.0
      %9309 = vmatpush1.msra.mxu0 0.0
      %9310 = vmatprep.subr.mxu0 0.0
      %9311 = vmatpush1.msra.mxu0 0.0
      %9312 = vmatprep.subr.mxu0 0.0
      %9313 = vmatpush1.msra.mxu0 0.0
      %9314 = vmatprep.subr.mxu0 0.0
      %9315 = vmatpush1.msra.mxu0 0.0
      %9316 = vmatprep.subr.mxu0 %v9082
      %9317 = vmatpush1.msra.mxu0 %v9081
      %9318 = vmatprep.subr.mxu0 %v9074
      %9319 = vmatpush1.msra.mxu0 %v9073
      %9320 = vmatprep.subr.mxu0 %v9066
      %9321 = vmatpush1.msra.mxu0 %v9065
      %9322 = vmatprep.subr.mxu0 %v9058
      %9323 = vmatpush1.msra.mxu0 %v9057
      %9324 = vmatprep.subr.mxu0 %v9050
      %9325 = vmatpush1.msra.mxu0 %v9049
      %9326 = vmatprep.subr.mxu0 %v9042
      %9327 = vmatpush1.msra.mxu0 %v9041
      %9328 = vmatprep.subr.mxu0 %v9034
      %9329 = vmatpush1.msra.mxu0 %v9033
      %9330 = vmatprep.subr.mxu0 %v9026
      %9331 = vmatpush1.msra.mxu0 %v9025
      %9332 = vmatprep.subr.mxu0 0.0
      %9333 = vmatpush2.msra.mxu0 0.0
      %9334 = vmatprep.subr.mxu0 0.0
      %9335 = vmatpush2.msra.mxu0 0.0
      %9336 = vmatprep.subr.mxu0 0.0
      %9337 = vmatpush2.msra.mxu0 0.0
      %9338 = vmatprep.subr.mxu0 0.0
      %9339 = vmatpush2.msra.mxu0 0.0
      %9340 = vmatprep.subr.mxu0 0.0
      %9341 = vmatpush2.msra.mxu0 0.0
      %9342 = vmatprep.subr.mxu0 0.0
      %9343 = vmatpush2.msra.mxu0 0.0
      %9344 = vmatprep.subr.mxu0 0.0
      %9345 = vmatpush2.msra.mxu0 0.0
      %9346 = vmatprep.subr.mxu0 0.0
      %9347 = vmatpush2.msra.mxu0 0.0
      %9348 = vmatprep.subr.mxu0 0.0
      %9349 = vmatpush2.msra.mxu0 0.0
      %9350 = vmatprep.subr.mxu0 0.0
      %9351 = vmatpush2.msra.mxu0 0.0
      %9352 = vmatprep.subr.mxu0 0.0
      %9353 = vmatpush2.msra.mxu0 0.0
      %9354 = vmatprep.subr.mxu0 0.0
      %9355 = vmatpush2.msra.mxu0 0.0
      %9356 = vmatprep.subr.mxu0 0.0
      %9357 = vmatpush2.msra.mxu0 0.0
      %9358 = vmatprep.subr.mxu0 0.0
      %9359 = vmatpush2.msra.mxu0 0.0
      %9360 = vmatprep.subr.mxu0 0.0
      %9361 = vmatpush2.msra.mxu0 0.0
      %9362 = vmatprep.subr.mxu0 0.0
      %9363 = vmatpush2.msra.mxu0 0.0
      %9364 = vmatprep.mubr.f32.mxu0 0.0
      %9365 = vmatmul.mubr.f32.gmra.mxu0 %v9085
      %v9366 = vpop.f32.mrf.mxu0
      %v9367 = vadd.f32 0.0, %v9366
      %v9368 = vpop.f32.mrf.mxu0
      %v9369 = vadd.f32 0.0, %v9368
      %9370 = vdwg.mxu0
      %v9379 = vcombine.low %v9154, %v9156
      %v9380 = vcombine.low %v9225, %v9227
      %v9381 = vcombine.low %v9296, %v9298
      %v9382 = vcombine.low %v9367, %v9369
      %9387 = vst [vmem:[#allocation2] sm:$0xff] %v9379
      %9388 = vst [vmem:[#allocation2 + $0x8] sm:$0xff] %v9380
      %9389 = vst [vmem:[#allocation2 + $0x10] sm:$0xff] %v9381
      %9390 = vst [vmem:[#allocation2 + $0x18] sm:$0xff] %v9382
      %9391 = vst [vmem:[%s781] sm:$0xff] %v9379
      %9392 = vst [vmem:[%s781 + $0x8] sm:$0xff] %v9380
      %9393 = vst [vmem:[%s781 + $0x10] sm:$0xff] %v9381
      %9394 = vst [vmem:[%s781 + $0x18] sm:$0xff] %v9382
      %p9395 = scmp.lt.s32.totalorder %s31, 1
      %s9396 = scalar_select %p9395, %s31, 1
      %s9397 = smul.addr %s9396, 8
      %s9398 = smul.addr %s9397, 4
      %s9399 = scalar_lea.vmem %s16, %s9398
      // Predicated region
      $region89: #{network_forward.1} parent=83 // pred_check
        %p9400 = pneg %p463
      $region90: #{network_forward.1} parent=83 // pred_check_branch
        %9402 = sbr.rel (%p9400) target = $region92
      $region91: #{network_forward.1} parent=83 // pred_region
        _
      $region92: #{network_forward.1} parent=83 // pred_fallthru
        _
    $region84: #{network_forward.1} parent=5 // pred_fallthru
      _
    %p9403 = scmp.le.s32.totalorder 2, %s22
    // Predicated region
    $region93: #{network_forward.1} parent=5 // pred_check
      %p9404 = pneg %p9403
    $region94: #{network_forward.1} parent=5 // pred_check_branch
      %9406 = sbr.rel (%p9404) target = $region96
    $region95: #{network_forward.1} parent=5 // pred_region
      %s9407 = ssub.s32 %s22, 2
      // Predicated region
      $region97: #{network_forward.1} parent=95 // pred_check
        %p9408 = pneg %p469
      $region98: #{network_forward.1} parent=95 // pred_check_branch
        %9410 = sbr.rel (%p9408) target = $region100
      $region99: #{network_forward.1} parent=95 // pred_region
        %p9411 = scmp.lt.s32.totalorder %s33, 1
        %s9412 = scalar_select %p9411, %s33, 1
        %s9413 = smul.addr %s9412, 8
        %s9414 = smul.addr %s9413, 4
        %s9415 = scalar_lea.vmem %s16, %s9414
      $region100: #{network_forward.1} parent=95 // pred_fallthru
        _
    $region96: #{network_forward.1} parent=5 // pred_fallthru
      _
  $region6: #{network_forward.1} parent=0 // loop_footer
    %s26 = sadd.s32 1, %s22
  $region7: #{network_forward.1} parent=0 // loop_footer_branch
    %21 = sbr.rel target = $region3
  $region8: #{network_forward.1} parent=0 // loop_exit
    _

</llo_original>
